<compile_context>
chip_gen: v7x
topology: tpu7x:2x2x1
jax: 0.10.0
libtpu: 0.0.40
codegen_flags: <defaults>
</compile_context>

<pallas_src>
import jax
import jax.numpy as jnp
from jax import lax
from jax.experimental import pallas as pl
from jax.experimental.pallas import tpu as pltpu

VOCAB      = 64     # char vocabulary == char_out_size (argmax index feeds back into char_emb)
EMB        = 32     # char_emb.embedding_dim (== HIDDEN so layer>0 GRU weights stack cleanly)
HIDDEN     = 32     # GRU hidden size
NUM_LAYERS = 2
CHAR_OUT   = VOCAB
SEQ_LEN    = 8      # encoder char sequence length
MAX_OUT    = 8      # max_out_char_seq_len

PAD_ID, SOS_ID, EOS_ID, SEP_ID = 0, 1, 2, 3

TH      = 3 * HIDDEN                 # 96  (gate-stacked width)
STATE_W = NUM_LAYERS * HIDDEN        # 64
OUT_W   = CHAR_OUT + STATE_W         # 128 -> lane-dense packed output row

# row offsets inside the packed GRU parameter array (columns = 3*HIDDEN)
_R_ENC_WI0 = 0                        # fused  emb @ enc weight_ih_l0.T : (VOCAB, 3H)
_R_ENC_WH0 = _R_ENC_WI0 + VOCAB       # enc weight_hh_l0.T             : (H, 3H)
_R_ENC_WI1 = _R_ENC_WH0 + HIDDEN      # enc weight_ih_l1.T
_R_ENC_WH1 = _R_ENC_WI1 + HIDDEN      # enc weight_hh_l1.T
_R_DEC_WI0 = _R_ENC_WH1 + HIDDEN      # fused  emb @ dec weight_ih_l0.T
_R_DEC_WH0 = _R_DEC_WI0 + VOCAB
_R_DEC_WI1 = _R_DEC_WH0 + HIDDEN
_R_DEC_WH1 = _R_DEC_WI1 + HIDDEN
_R_BIAS    = _R_DEC_WH1 + HIDDEN      # 8 bias rows: enc bi0,bh0,bi1,bh1, dec bi0,bh0,bi1,bh1
GRU_PACK_ROWS = _R_BIAS + 4 * NUM_LAYERS   # 328


def _gru_gates(gi, gh, h):
    """PyTorch-convention GRU gates. gi/gh:(1,3H) already include their biases, h:(1,H)."""
    H = HIDDEN
    r = jax.nn.sigmoid(gi[:, 0:H] + gh[:, 0:H])
    z = jax.nn.sigmoid(gi[:, H:2 * H] + gh[:, H:2 * H])
    n = jnp.tanh(gi[:, 2 * H:3 * H] + r * gh[:, 2 * H:3 * H])
    return (1.0 - z) * n + z * h


def _segment_decoder_kernel(
    sym_ref,            # SMEM (3,) int32 : [<s>, </s>, <sep>]
    char_ids_ref,       # VMEM (SEQ_LEN, 1) int32 encoder chars (0 == PAD)
    enc_state_ref,      # VMEM (NUM_LAYERS, HIDDEN) f32 initial encoder hidden state
    gru_pack_ref,       # VMEM (GRU_PACK_ROWS, 3H) f32 packed GRU weights + biases
    out_pack_ref,       # VMEM (HIDDEN+1, CHAR_OUT) f32 : rows 0..H-1 = char_out.weight.T, row H = bias
    out_ref,            # VMEM (MAX_OUT, CHAR_OUT + L*HIDDEN) packed [logits | h0 | h1] rows
    gi0_scratch,        # VMEM (SEQ_LEN, 3H) hoisted encoder layer-0 input projections
):
    H = HIDDEN

    # ---- unpack parameters once; all loop bodies close over these loop-invariant values ----
    enc_wi0f = gru_pack_ref[_R_ENC_WI0:_R_ENC_WI0 + VOCAB, :]
    enc_wh0  = gru_pack_ref[_R_ENC_WH0:_R_ENC_WH0 + H, :]
    enc_wi1  = gru_pack_ref[_R_ENC_WI1:_R_ENC_WI1 + H, :]
    enc_wh1  = gru_pack_ref[_R_ENC_WH1:_R_ENC_WH1 + H, :]
    dec_wi0f = gru_pack_ref[_R_DEC_WI0:_R_DEC_WI0 + VOCAB, :]
    dec_wh0  = gru_pack_ref[_R_DEC_WH0:_R_DEC_WH0 + H, :]
    dec_wi1  = gru_pack_ref[_R_DEC_WI1:_R_DEC_WI1 + H, :]
    dec_wh1  = gru_pack_ref[_R_DEC_WH1:_R_DEC_WH1 + H, :]
    enc_bi0 = gru_pack_ref[_R_BIAS + 0:_R_BIAS + 1, :]
    enc_bh0 = gru_pack_ref[_R_BIAS + 1:_R_BIAS + 2, :]
    enc_bi1 = gru_pack_ref[_R_BIAS + 2:_R_BIAS + 3, :]
    enc_bh1 = gru_pack_ref[_R_BIAS + 3:_R_BIAS + 4, :]
    dec_bi0 = gru_pack_ref[_R_BIAS + 4:_R_BIAS + 5, :]
    dec_bh0 = gru_pack_ref[_R_BIAS + 5:_R_BIAS + 6, :]
    dec_bi1 = gru_pack_ref[_R_BIAS + 6:_R_BIAS + 7, :]
    dec_bh1 = gru_pack_ref[_R_BIAS + 7:_R_BIAS + 8, :]
    w_out = out_pack_ref[0:H, :]
    b_out = out_pack_ref[H:H + 1, :]

    lane_ids = lax.broadcasted_iota(jnp.int32, (1, VOCAB), 1)

    # -------- encoder: GRU over the non-pad chars (== char_emb(char_seq[mask])) --------
    # Hoist all layer-0 input projections into one (SEQ_LEN, VOCAB) @ (VOCAB, 3H) matmul.
    seq_iota = lax.broadcasted_iota(jnp.int32, (SEQ_LEN, VOCAB), 1)
    onehot_seq = (seq_iota == char_ids_ref[...]).astype(jnp.float32)         # (SEQ_LEN, VOCAB)
    gi0_scratch[...] = (
        jnp.dot(onehot_seq, enc_wi0f, preferred_element_type=jnp.float32) + enc_bi0)

    h0_init = enc_state_ref[0:1, :]
    h1_init = enc_state_ref[1:2, :]

    def enc_body(t, carry):
        h0, h1 = carry
        # hidden projections of BOTH layers first: they depend only on the carry,
        # so their MXU latency overlaps the layer-0 -> layer-1 dependency chain.
        gh0 = jnp.dot(h0, enc_wh0, preferred_element_type=jnp.float32) + enc_bh0
        gh1 = jnp.dot(h1, enc_wh1, preferred_element_type=jnp.float32) + enc_bh1
        gi0 = gi0_scratch[pl.ds(t, 1), :]                                    # precomputed
        h0_new = _gru_gates(gi0, gh0, h0)
        gi1 = jnp.dot(h0_new, enc_wi1, preferred_element_type=jnp.float32) + enc_bi1
        h1_new = _gru_gates(gi1, gh1, h1)
        keep = char_ids_ref[pl.ds(t, 1), :] != PAD_ID                        # (1,1) bool
        # PAD positions carry the state through unchanged == torch's masked gather
        return (jnp.where(keep, h0_new, h0), jnp.where(keep, h1_new, h1))

    h0, h1 = lax.fori_loop(0, SEQ_LEN, enc_body, (h0_init, h1_init), unroll=True)

    # -------- greedy decoder loop (target_char_seq is None path) -----------------------
    sos = sym_ref[0]
    eos = sym_ref[1]
    x0 = (lane_ids == sos).astype(jnp.float32)          # one-hot of <s>, feeds fused layer-0
    done0 = jnp.zeros((1, 1), dtype=jnp.bool_)

    def dec_body(t, carry):
        x_oh, h0, h1, done = carry
        gh0 = jnp.dot(h0, dec_wh0, preferred_element_type=jnp.float32) + dec_bh0
        gh1 = jnp.dot(h1, dec_wh1, preferred_element_type=jnp.float32) + dec_bh1
        gi0 = jnp.dot(x_oh, dec_wi0f, preferred_element_type=jnp.float32) + dec_bi0
        h0_new = _gru_gates(gi0, gh0, h0)
        gi1 = jnp.dot(h0_new, dec_wi1, preferred_element_type=jnp.float32) + dec_bi1
        h1_new = _gru_gates(gi1, gh1, h1)
        # char_dropout is identity at inference; char_out Linear:
        logits = jnp.dot(h1_new, w_out, preferred_element_type=jnp.float32) + b_out  # (1,CHAR_OUT)

        # argmax (first maximal index, torch tie-break); feedback stays as a one-hot vector
        max_val = jnp.max(logits, axis=-1, keepdims=True)                    # (1,1)
        idx = jnp.min(jnp.where(logits == max_val, lane_ids, VOCAB),
                      axis=-1, keepdims=True).astype(jnp.int32)              # (1,1)
        next_oh = (lane_ids == idx).astype(jnp.float32)                      # (1, VOCAB)

        active = jnp.logical_not(done)                                       # (1,1) bool
        # single lane-dense 128-wide store: [logits | h0 | h1];
        # rows after EOS stay zero == F.pad(..., (0, 0, 0, fill_len)) in the reference
        row = jnp.concatenate([logits, h0_new, h1_new], axis=1)              # (1, OUT_W)
        out_ref[pl.ds(t, 1), :] = jnp.where(active, row, 0.0)

        h0 = jnp.where(active, h0_new, h0)
        h1 = jnp.where(active, h1_new, h1)
        x_oh = jnp.where(active, next_oh, x_oh)
        done = jnp.logical_or(done, jnp.logical_and(active, idx == eos))
        return (x_oh, h0, h1, done)

    lax.fori_loop(0, MAX_OUT, dec_body, (x0, h0, h1, done0), unroll=True)


def _pack_params(params):
    """Fuse char_emb into the layer-0 input weights and pack everything into 2 VMEM arrays."""
    emb = params["emb"]
    rows = [
        jnp.dot(emb, params["enc_wi"][0]),      # fused encoder layer-0 input projection
        params["enc_wh"][0],
        params["enc_wi"][1],
        params["enc_wh"][1],
        jnp.dot(emb, params["dec_wi"][0]),      # fused decoder layer-0 input projection
        params["dec_wh"][0],
        params["dec_wi"][1],
        params["dec_wh"][1],
        params["enc_bi"][0], params["enc_bh"][0],
        params["enc_bi"][1], params["enc_bh"][1],
        params["dec_bi"][0], params["dec_bh"][0],
        params["dec_bi"][1], params["dec_bh"][1],
    ]
    gru_pack = jnp.concatenate(rows, axis=0).astype(jnp.float32)             # (328, 3H)
    out_pack = jnp.concatenate([params["w_out"], params["b_out"]],
                               axis=0).astype(jnp.float32)                   # (H+1, CHAR_OUT)
    return gru_pack, out_pack


@jax.jit
def segment_decoder_forward(char_seq, enc_state, symbols, params):
    """Returns (char_scores_out, char_states_out, label_scores_out) like the torch module."""
    gru_pack, out_pack = _pack_params(params)
    assert gru_pack.shape == (GRU_PACK_ROWS, TH)

    char_ids = char_seq.astype(jnp.int32).reshape(SEQ_LEN, 1)
    # enc_state.view(1,1,-1) -> split into num_layers chunks -> cat on dim 0  ==  reshape (L, H)
    enc_state_lh = enc_state.reshape(NUM_LAYERS, HIDDEN).astype(jnp.float32)

    smem = pl.BlockSpec(memory_space=pltpu.SMEM)
    vmem = pl.BlockSpec(memory_space=pltpu.VMEM)
    packed = pl.pallas_call(
        _segment_decoder_kernel,
        out_shape=jax.ShapeDtypeStruct((MAX_OUT, OUT_W), jnp.float32),
        in_specs=[smem, vmem, vmem, vmem, vmem],
        out_specs=vmem,
        scratch_shapes=[pltpu.VMEM((SEQ_LEN, TH), jnp.float32)],
    )(symbols.astype(jnp.int32), char_ids, enc_state_lh, gru_pack, out_pack)

    # torch: char_scores_out (1, max_out, char_out), char_states_out (1, max_out, L*H)
    char_scores = packed[:, :CHAR_OUT][None]
    char_states = packed[:, CHAR_OUT:][None]
    # TODO(synk): labels_configs=[] -> no SequenceLabelClassifier heads; label_scores_out == []
    return char_scores, char_states, []


def init_params(key):
    ks = jax.random.split(key, 11)
    bound = 1.0 / float(HIDDEN) ** 0.5

    def u(k, shape):
        return jax.random.uniform(k, shape, jnp.float32, minval=-bound, maxval=bound)

    return {
        "emb":    0.1 * jax.random.normal(ks[0], (VOCAB, EMB), jnp.float32),
        # GRU weights stored pre-transposed (weight_ih_l{k}.T / weight_hh_l{k}.T), stacked over layers
        "enc_wi": u(ks[1], (NUM_LAYERS, EMB, 3 * HIDDEN)),
        "enc_wh": u(ks[2], (NUM_LAYERS, HIDDEN, 3 * HIDDEN)),
        "enc_bi": u(ks[3], (NUM_LAYERS, 1, 3 * HIDDEN)),
        "enc_bh": u(ks[4], (NUM_LAYERS, 1, 3 * HIDDEN)),
        "dec_wi": u(ks[5], (NUM_LAYERS, EMB, 3 * HIDDEN)),
        "dec_wh": u(ks[6], (NUM_LAYERS, HIDDEN, 3 * HIDDEN)),
        "dec_bi": u(ks[7], (NUM_LAYERS, 1, 3 * HIDDEN)),
        "dec_bh": u(ks[8], (NUM_LAYERS, 1, 3 * HIDDEN)),
        "w_out":  u(ks[9], (HIDDEN, CHAR_OUT)),   # char_out.weight.T
        "b_out":  u(ks[10], (1, CHAR_OUT)),
    }


if __name__ == "__main__":
    assert EMB == HIDDEN, "layer>0 GRU input size is HIDDEN; stacking requires EMB == HIDDEN"
    key = jax.random.PRNGKey(0)
    k_par, k_seq, k_state = jax.random.split(key, 3)
    params = init_params(k_par)

    # encoder char sequence: real char ids followed by PAD (id 0)
    chars = jax.random.randint(k_seq, (SEQ_LEN,), SEP_ID + 1, VOCAB, dtype=jnp.int32)
    char_seq = chars.at[SEQ_LEN - 2:].set(PAD_ID)

    enc_state = jax.random.normal(k_state, (1, NUM_LAYERS * HIDDEN), jnp.float32)
    symbols = jnp.array([SOS_ID, EOS_ID, SEP_ID], dtype=jnp.int32)  # <s>, </s>, <sep>

    char_scores, char_states, label_scores = segment_decoder_forward(
        char_seq, enc_state, symbols, params)
    jax.block_until_ready((char_scores, char_states))

    assert char_scores.shape == (1, MAX_OUT, CHAR_OUT)
    assert char_states.shape == (1, MAX_OUT, NUM_LAYERS * HIDDEN)
    assert bool(jnp.all(jnp.isfinite(char_scores)))
    assert bool(jnp.all(jnp.isfinite(char_states)))
    assert label_scores == []
    print("KERNEL_OK")
</pallas_src>

<mosaic_0001>
module attributes {stable_mosaic.version = 11 : i64} {
  func.func @_segment_decoder_kernel(%arg0: memref<3xi32, #tpu.memory_space<smem>>, %arg1: memref<8x1xi32, #tpu.memory_space<vmem>>, %arg2: memref<2x32xf32, #tpu.memory_space<vmem>>, %arg3: memref<328x96xf32, #tpu.memory_space<vmem>>, %arg4: memref<33x64xf32, #tpu.memory_space<vmem>>, %arg5: memref<8x128xf32, #tpu.memory_space<vmem>>, %arg6: memref<8x96xf32, #tpu.memory_space<vmem>>) attributes {dimension_semantics = [], scalar_prefetch = 0 : i64, scratch_operands = 1 : i64, tpu.core_type = #tpu.core_type<tc>} {
    %c0 = arith.constant 0 : index
    %c0_0 = arith.constant 0 : index
    %0 = vector.load %arg3[%c0, %c0_0] : memref<328x96xf32, #tpu.memory_space<vmem>>, vector<64x96xf32>
    %c64 = arith.constant 64 : index
    %c0_1 = arith.constant 0 : index
    %1 = vector.load %arg3[%c64, %c0_1] : memref<328x96xf32, #tpu.memory_space<vmem>>, vector<32x96xf32>
    %c96 = arith.constant 96 : index
    %c0_2 = arith.constant 0 : index
    %2 = vector.load %arg3[%c96, %c0_2] : memref<328x96xf32, #tpu.memory_space<vmem>>, vector<32x96xf32>
    %c128 = arith.constant 128 : index
    %c0_3 = arith.constant 0 : index
    %3 = vector.load %arg3[%c128, %c0_3] : memref<328x96xf32, #tpu.memory_space<vmem>>, vector<32x96xf32>
    %c160 = arith.constant 160 : index
    %c0_4 = arith.constant 0 : index
    %4 = vector.load %arg3[%c160, %c0_4] : memref<328x96xf32, #tpu.memory_space<vmem>>, vector<64x96xf32>
    %c224 = arith.constant 224 : index
    %c0_5 = arith.constant 0 : index
    %5 = vector.load %arg3[%c224, %c0_5] : memref<328x96xf32, #tpu.memory_space<vmem>>, vector<32x96xf32>
    %c256 = arith.constant 256 : index
    %c0_6 = arith.constant 0 : index
    %6 = vector.load %arg3[%c256, %c0_6] : memref<328x96xf32, #tpu.memory_space<vmem>>, vector<32x96xf32>
    %c288 = arith.constant 288 : index
    %c0_7 = arith.constant 0 : index
    %7 = vector.load %arg3[%c288, %c0_7] : memref<328x96xf32, #tpu.memory_space<vmem>>, vector<32x96xf32>
    %c320 = arith.constant 320 : index
    %c0_8 = arith.constant 0 : index
    %8 = vector.load %arg3[%c320, %c0_8] : memref<328x96xf32, #tpu.memory_space<vmem>>, vector<1x96xf32>
    %c321 = arith.constant 321 : index
    %c0_9 = arith.constant 0 : index
    %9 = vector.load %arg3[%c321, %c0_9] : memref<328x96xf32, #tpu.memory_space<vmem>>, vector<1x96xf32>
    %c322 = arith.constant 322 : index
    %c0_10 = arith.constant 0 : index
    %10 = vector.load %arg3[%c322, %c0_10] : memref<328x96xf32, #tpu.memory_space<vmem>>, vector<1x96xf32>
    %c323 = arith.constant 323 : index
    %c0_11 = arith.constant 0 : index
    %11 = vector.load %arg3[%c323, %c0_11] : memref<328x96xf32, #tpu.memory_space<vmem>>, vector<1x96xf32>
    %c324 = arith.constant 324 : index
    %c0_12 = arith.constant 0 : index
    %12 = vector.load %arg3[%c324, %c0_12] : memref<328x96xf32, #tpu.memory_space<vmem>>, vector<1x96xf32>
    %c325 = arith.constant 325 : index
    %c0_13 = arith.constant 0 : index
    %13 = vector.load %arg3[%c325, %c0_13] : memref<328x96xf32, #tpu.memory_space<vmem>>, vector<1x96xf32>
    %c326 = arith.constant 326 : index
    %c0_14 = arith.constant 0 : index
    %14 = vector.load %arg3[%c326, %c0_14] : memref<328x96xf32, #tpu.memory_space<vmem>>, vector<1x96xf32>
    %c327 = arith.constant 327 : index
    %c0_15 = arith.constant 0 : index
    %15 = vector.load %arg3[%c327, %c0_15] : memref<328x96xf32, #tpu.memory_space<vmem>>, vector<1x96xf32>
    %c0_16 = arith.constant 0 : index
    %c0_17 = arith.constant 0 : index
    %16 = vector.load %arg4[%c0_16, %c0_17] : memref<33x64xf32, #tpu.memory_space<vmem>>, vector<32x64xf32>
    %c32 = arith.constant 32 : index
    %c0_18 = arith.constant 0 : index
    %17 = vector.load %arg4[%c32, %c0_18] : memref<33x64xf32, #tpu.memory_space<vmem>>, vector<1x64xf32>
    %18 = tpu.iota {dimensions = array<i32: 1>} : vector<1x64xi32>
    %19 = tpu.iota {dimensions = array<i32: 1>} : vector<8x64xi32>
    %c0_19 = arith.constant 0 : index
    %c0_20 = arith.constant 0 : index
    %20 = vector.load %arg1[%c0_19, %c0_20] : memref<8x1xi32, #tpu.memory_space<vmem>>, vector<8x1xi32>
    %21 = vector.broadcast %20 : vector<8x1xi32> to vector<8x64xi32>
    %22 = arith.cmpi eq, %19, %21 : vector<8x64xi32>
    %23 = arith.extui %22 : vector<8x64xi1> to vector<8x64xi32>
    %24 = arith.sitofp %23 : vector<8x64xi32> to vector<8x64xf32>
    %cst = arith.constant dense<0.000000e+00> : vector<8x96xf32>
    %25 = tpu.matmul %24, %0, %cst {dimension_numbers = #tpu.dot_dimension_numbers<[1], [0], [0], [1], [0, 0, 1, 1], [], []>} : vector<8x64xf32>, vector<64x96xf32>, vector<8x96xf32> -> vector<8x96xf32>
    %26 = vector.broadcast %8 : vector<1x96xf32> to vector<8x96xf32>
    %27 = arith.addf %25, %26 : vector<8x96xf32>
    %c0_21 = arith.constant 0 : index
    %c0_22 = arith.constant 0 : index
    %28 = vector.load %arg6[%c0_21, %c0_22] : memref<8x96xf32, #tpu.memory_space<vmem>>, vector<8x96xf32>
    tpu.vector_store %arg6[%c0_21, %c0_22], %27 {strides = array<i32>} : memref<8x96xf32, #tpu.memory_space<vmem>>, vector<8x96xf32>,
    %c0_23 = arith.constant 0 : index
    %c0_24 = arith.constant 0 : index
    %29 = vector.load %arg2[%c0_23, %c0_24] : memref<2x32xf32, #tpu.memory_space<vmem>>, vector<1x32xf32>
    %c1 = arith.constant 1 : index
    %c0_25 = arith.constant 0 : index
    %30 = vector.load %arg2[%c1, %c0_25] : memref<2x32xf32, #tpu.memory_space<vmem>>, vector<1x32xf32>
    %c0_i32 = arith.constant 0 : i32
    %cst_26 = arith.constant dense<0.000000e+00> : vector<1x96xf32>
    %31 = tpu.matmul %29, %1, %cst_26 {dimension_numbers = #tpu.dot_dimension_numbers<[1], [0], [0], [1], [0, 0, 1, 1], [], []>} : vector<1x32xf32>, vector<32x96xf32>, vector<1x96xf32> -> vector<1x96xf32>
    %32 = arith.addf %31, %9 : vector<1x96xf32>
    %cst_27 = arith.constant dense<0.000000e+00> : vector<1x96xf32>
    %33 = tpu.matmul %30, %3, %cst_27 {dimension_numbers = #tpu.dot_dimension_numbers<[1], [0], [0], [1], [0, 0, 1, 1], [], []>} : vector<1x32xf32>, vector<32x96xf32>, vector<1x96xf32> -> vector<1x96xf32>
    %34 = arith.addf %33, %11 : vector<1x96xf32>
    %35 = arith.index_cast %c0_i32 : i32 to index
    %c0_28 = arith.constant 0 : index
    %36 = vector.load %arg6[%35, %c0_28] : memref<8x96xf32, #tpu.memory_space<vmem>>, vector<1x96xf32>
    %37 = vector.extract_strided_slice %36 {offsets = [0, 0], sizes = [1, 32], strides = [1, 1]} : vector<1x96xf32> to vector<1x32xf32>
    %38 = vector.extract_strided_slice %32 {offsets = [0, 0], sizes = [1, 32], strides = [1, 1]} : vector<1x96xf32> to vector<1x32xf32>
    %39 = arith.addf %37, %38 : vector<1x32xf32>
    %40 = arith.negf %39 : vector<1x32xf32>
    %41 = math.exp %40 : vector<1x32xf32>
    %cst_29 = arith.constant 1.000000e+00 : f32
    %42 = vector.broadcast %cst_29 : f32 to vector<1x32xf32>
    %43 = arith.addf %42, %41 : vector<1x32xf32>
    %44 = arith.divf %42, %43 : vector<1x32xf32>
    %45 = vector.extract_strided_slice %36 {offsets = [0, 32], sizes = [1, 32], strides = [1, 1]} : vector<1x96xf32> to vector<1x32xf32>
    %46 = vector.extract_strided_slice %32 {offsets = [0, 32], sizes = [1, 32], strides = [1, 1]} : vector<1x96xf32> to vector<1x32xf32>
    %47 = arith.addf %45, %46 : vector<1x32xf32>
    %48 = arith.negf %47 : vector<1x32xf32>
    %49 = math.exp %48 : vector<1x32xf32>
    %cst_30 = arith.constant 1.000000e+00 : f32
    %50 = vector.broadcast %cst_30 : f32 to vector<1x32xf32>
    %51 = arith.addf %50, %49 : vector<1x32xf32>
    %52 = arith.divf %50, %51 : vector<1x32xf32>
    %53 = vector.extract_strided_slice %36 {offsets = [0, 64], sizes = [1, 32], strides = [1, 1]} : vector<1x96xf32> to vector<1x32xf32>
    %54 = vector.extract_strided_slice %32 {offsets = [0, 64], sizes = [1, 32], strides = [1, 1]} : vector<1x96xf32> to vector<1x32xf32>
    %55 = arith.mulf %44, %54 : vector<1x32xf32>
    %56 = arith.addf %53, %55 : vector<1x32xf32>
    %57 = math.tanh %56 : vector<1x32xf32>
    %cst_31 = arith.constant 1.000000e+00 : f32
    %58 = vector.broadcast %cst_31 : f32 to vector<1x32xf32>
    %59 = arith.subf %58, %52 : vector<1x32xf32>
    %60 = arith.mulf %59, %57 : vector<1x32xf32>
    %61 = arith.mulf %52, %29 : vector<1x32xf32>
    %62 = arith.addf %60, %61 : vector<1x32xf32>
    %cst_32 = arith.constant dense<0.000000e+00> : vector<1x96xf32>
    %63 = tpu.matmul %62, %2, %cst_32 {dimension_numbers = #tpu.dot_dimension_numbers<[1], [0], [0], [1], [0, 0, 1, 1], [], []>} : vector<1x32xf32>, vector<32x96xf32>, vector<1x96xf32> -> vector<1x96xf32>
    %64 = arith.addf %63, %10 : vector<1x96xf32>
    %65 = vector.extract_strided_slice %64 {offsets = [0, 0], sizes = [1, 32], strides = [1, 1]} : vector<1x96xf32> to vector<1x32xf32>
    %66 = vector.extract_strided_slice %34 {offsets = [0, 0], sizes = [1, 32], strides = [1, 1]} : vector<1x96xf32> to vector<1x32xf32>
    %67 = arith.addf %65, %66 : vector<1x32xf32>
    %68 = arith.negf %67 : vector<1x32xf32>
    %69 = math.exp %68 : vector<1x32xf32>
    %cst_33 = arith.constant 1.000000e+00 : f32
    %70 = vector.broadcast %cst_33 : f32 to vector<1x32xf32>
    %71 = arith.addf %70, %69 : vector<1x32xf32>
    %72 = arith.divf %70, %71 : vector<1x32xf32>
    %73 = vector.extract_strided_slice %64 {offsets = [0, 32], sizes = [1, 32], strides = [1, 1]} : vector<1x96xf32> to vector<1x32xf32>
    %74 = vector.extract_strided_slice %34 {offsets = [0, 32], sizes = [1, 32], strides = [1, 1]} : vector<1x96xf32> to vector<1x32xf32>
    %75 = arith.addf %73, %74 : vector<1x32xf32>
    %76 = arith.negf %75 : vector<1x32xf32>
    %77 = math.exp %76 : vector<1x32xf32>
    %cst_34 = arith.constant 1.000000e+00 : f32
    %78 = vector.broadcast %cst_34 : f32 to vector<1x32xf32>
    %79 = arith.addf %78, %77 : vector<1x32xf32>
    %80 = arith.divf %78, %79 : vector<1x32xf32>
    %81 = vector.extract_strided_slice %64 {offsets = [0, 64], sizes = [1, 32], strides = [1, 1]} : vector<1x96xf32> to vector<1x32xf32>
    %82 = vector.extract_strided_slice %34 {offsets = [0, 64], sizes = [1, 32], strides = [1, 1]} : vector<1x96xf32> to vector<1x32xf32>
    %83 = arith.mulf %72, %82 : vector<1x32xf32>
    %84 = arith.addf %81, %83 : vector<1x32xf32>
    %85 = math.tanh %84 : vector<1x32xf32>
    %cst_35 = arith.constant 1.000000e+00 : f32
    %86 = vector.broadcast %cst_35 : f32 to vector<1x32xf32>
    %87 = arith.subf %86, %80 : vector<1x32xf32>
    %88 = arith.mulf %87, %85 : vector<1x32xf32>
    %89 = arith.mulf %80, %30 : vector<1x32xf32>
    %90 = arith.addf %88, %89 : vector<1x32xf32>
    %91 = arith.index_cast %c0_i32 : i32 to index
    %c0_36 = arith.constant 0 : index
    %92 = vector.load %arg1[%91, %c0_36] : memref<8x1xi32, #tpu.memory_space<vmem>>, vector<1x1xi32>
    %c0_i32_37 = arith.constant 0 : i32
    %93 = vector.broadcast %c0_i32_37 : i32 to vector<1x1xi32>
    %94 = arith.cmpi ne, %92, %93 : vector<1x1xi32>
    %95 = vector.shape_cast %94 : vector<1x1xi1> to vector<1x1xi1>
    %96 = vector.broadcast %95 : vector<1x1xi1> to vector<1x32xi1>
    %97 = arith.select %96, %62, %29 : vector<1x32xi1>, vector<1x32xf32>
    %98 = vector.shape_cast %94 : vector<1x1xi1> to vector<1x1xi1>
    %99 = vector.broadcast %98 : vector<1x1xi1> to vector<1x32xi1>
    %100 = arith.select %99, %90, %30 : vector<1x32xi1>, vector<1x32xf32>
    %c1_i32 = arith.constant 1 : i32
    %cst_38 = arith.constant dense<0.000000e+00> : vector<1x96xf32>
    %101 = tpu.matmul %97, %1, %cst_38 {dimension_numbers = #tpu.dot_dimension_numbers<[1], [0], [0], [1], [0, 0, 1, 1], [], []>} : vector<1x32xf32>, vector<32x96xf32>, vector<1x96xf32> -> vector<1x96xf32>
    %102 = arith.addf %101, %9 : vector<1x96xf32>
    %cst_39 = arith.constant dense<0.000000e+00> : vector<1x96xf32>
    %103 = tpu.matmul %100, %3, %cst_39 {dimension_numbers = #tpu.dot_dimension_numbers<[1], [0], [0], [1], [0, 0, 1, 1], [], []>} : vector<1x32xf32>, vector<32x96xf32>, vector<1x96xf32> -> vector<1x96xf32>
    %104 = arith.addf %103, %11 : vector<1x96xf32>
    %105 = arith.index_cast %c1_i32 : i32 to index
    %c0_40 = arith.constant 0 : index
    %106 = vector.load %arg6[%105, %c0_40] : memref<8x96xf32, #tpu.memory_space<vmem>>, vector<1x96xf32>
    %107 = vector.extract_strided_slice %106 {offsets = [0, 0], sizes = [1, 32], strides = [1, 1]} : vector<1x96xf32> to vector<1x32xf32>
    %108 = vector.extract_strided_slice %102 {offsets = [0, 0], sizes = [1, 32], strides = [1, 1]} : vector<1x96xf32> to vector<1x32xf32>
    %109 = arith.addf %107, %108 : vector<1x32xf32>
    %110 = arith.negf %109 : vector<1x32xf32>
    %111 = math.exp %110 : vector<1x32xf32>
    %cst_41 = arith.constant 1.000000e+00 : f32
    %112 = vector.broadcast %cst_41 : f32 to vector<1x32xf32>
    %113 = arith.addf %112, %111 : vector<1x32xf32>
    %114 = arith.divf %112, %113 : vector<1x32xf32>
    %115 = vector.extract_strided_slice %106 {offsets = [0, 32], sizes = [1, 32], strides = [1, 1]} : vector<1x96xf32> to vector<1x32xf32>
    %116 = vector.extract_strided_slice %102 {offsets = [0, 32], sizes = [1, 32], strides = [1, 1]} : vector<1x96xf32> to vector<1x32xf32>
    %117 = arith.addf %115, %116 : vector<1x32xf32>
    %118 = arith.negf %117 : vector<1x32xf32>
    %119 = math.exp %118 : vector<1x32xf32>
    %cst_42 = arith.constant 1.000000e+00 : f32
    %120 = vector.broadcast %cst_42 : f32 to vector<1x32xf32>
    %121 = arith.addf %120, %119 : vector<1x32xf32>
    %122 = arith.divf %120, %121 : vector<1x32xf32>
    %123 = vector.extract_strided_slice %106 {offsets = [0, 64], sizes = [1, 32], strides = [1, 1]} : vector<1x96xf32> to vector<1x32xf32>
    %124 = vector.extract_strided_slice %102 {offsets = [0, 64], sizes = [1, 32], strides = [1, 1]} : vector<1x96xf32> to vector<1x32xf32>
    %125 = arith.mulf %114, %124 : vector<1x32xf32>
    %126 = arith.addf %123, %125 : vector<1x32xf32>
    %127 = math.tanh %126 : vector<1x32xf32>
    %cst_43 = arith.constant 1.000000e+00 : f32
    %128 = vector.broadcast %cst_43 : f32 to vector<1x32xf32>
    %129 = arith.subf %128, %122 : vector<1x32xf32>
    %130 = arith.mulf %129, %127 : vector<1x32xf32>
    %131 = arith.mulf %122, %97 : vector<1x32xf32>
    %132 = arith.addf %130, %131 : vector<1x32xf32>
    %cst_44 = arith.constant dense<0.000000e+00> : vector<1x96xf32>
    %133 = tpu.matmul %132, %2, %cst_44 {dimension_numbers = #tpu.dot_dimension_numbers<[1], [0], [0], [1], [0, 0, 1, 1], [], []>} : vector<1x32xf32>, vector<32x96xf32>, vector<1x96xf32> -> vector<1x96xf32>
    %134 = arith.addf %133, %10 : vector<1x96xf32>
    %135 = vector.extract_strided_slice %134 {offsets = [0, 0], sizes = [1, 32], strides = [1, 1]} : vector<1x96xf32> to vector<1x32xf32>
    %136 = vector.extract_strided_slice %104 {offsets = [0, 0], sizes = [1, 32], strides = [1, 1]} : vector<1x96xf32> to vector<1x32xf32>
    %137 = arith.addf %135, %136 : vector<1x32xf32>
    %138 = arith.negf %137 : vector<1x32xf32>
    %139 = math.exp %138 : vector<1x32xf32>
    %cst_45 = arith.constant 1.000000e+00 : f32
    %140 = vector.broadcast %cst_45 : f32 to vector<1x32xf32>
    %141 = arith.addf %140, %139 : vector<1x32xf32>
    %142 = arith.divf %140, %141 : vector<1x32xf32>
    %143 = vector.extract_strided_slice %134 {offsets = [0, 32], sizes = [1, 32], strides = [1, 1]} : vector<1x96xf32> to vector<1x32xf32>
    %144 = vector.extract_strided_slice %104 {offsets = [0, 32], sizes = [1, 32], strides = [1, 1]} : vector<1x96xf32> to vector<1x32xf32>
    %145 = arith.addf %143, %144 : vector<1x32xf32>
    %146 = arith.negf %145 : vector<1x32xf32>
    %147 = math.exp %146 : vector<1x32xf32>
    %cst_46 = arith.constant 1.000000e+00 : f32
    %148 = vector.broadcast %cst_46 : f32 to vector<1x32xf32>
    %149 = arith.addf %148, %147 : vector<1x32xf32>
    %150 = arith.divf %148, %149 : vector<1x32xf32>
    %151 = vector.extract_strided_slice %134 {offsets = [0, 64], sizes = [1, 32], strides = [1, 1]} : vector<1x96xf32> to vector<1x32xf32>
    %152 = vector.extract_strided_slice %104 {offsets = [0, 64], sizes = [1, 32], strides = [1, 1]} : vector<1x96xf32> to vector<1x32xf32>
    %153 = arith.mulf %142, %152 : vector<1x32xf32>
    %154 = arith.addf %151, %153 : vector<1x32xf32>
    %155 = math.tanh %154 : vector<1x32xf32>
    %cst_47 = arith.constant 1.000000e+00 : f32
    %156 = vector.broadcast %cst_47 : f32 to vector<1x32xf32>
    %157 = arith.subf %156, %150 : vector<1x32xf32>
    %158 = arith.mulf %157, %155 : vector<1x32xf32>
    %159 = arith.mulf %150, %100 : vector<1x32xf32>
    %160 = arith.addf %158, %159 : vector<1x32xf32>
    %161 = arith.index_cast %c1_i32 : i32 to index
    %c0_48 = arith.constant 0 : index
    %162 = vector.load %arg1[%161, %c0_48] : memref<8x1xi32, #tpu.memory_space<vmem>>, vector<1x1xi32>
    %c0_i32_49 = arith.constant 0 : i32
    %163 = vector.broadcast %c0_i32_49 : i32 to vector<1x1xi32>
    %164 = arith.cmpi ne, %162, %163 : vector<1x1xi32>
    %165 = vector.shape_cast %164 : vector<1x1xi1> to vector<1x1xi1>
    %166 = vector.broadcast %165 : vector<1x1xi1> to vector<1x32xi1>
    %167 = arith.select %166, %132, %97 : vector<1x32xi1>, vector<1x32xf32>
    %168 = vector.shape_cast %164 : vector<1x1xi1> to vector<1x1xi1>
    %169 = vector.broadcast %168 : vector<1x1xi1> to vector<1x32xi1>
    %170 = arith.select %169, %160, %100 : vector<1x32xi1>, vector<1x32xf32>
    %c2_i32 = arith.constant 2 : i32
    %cst_50 = arith.constant dense<0.000000e+00> : vector<1x96xf32>
    %171 = tpu.matmul %167, %1, %cst_50 {dimension_numbers = #tpu.dot_dimension_numbers<[1], [0], [0], [1], [0, 0, 1, 1], [], []>} : vector<1x32xf32>, vector<32x96xf32>, vector<1x96xf32> -> vector<1x96xf32>
    %172 = arith.addf %171, %9 : vector<1x96xf32>
    %cst_51 = arith.constant dense<0.000000e+00> : vector<1x96xf32>
    %173 = tpu.matmul %170, %3, %cst_51 {dimension_numbers = #tpu.dot_dimension_numbers<[1], [0], [0], [1], [0, 0, 1, 1], [], []>} : vector<1x32xf32>, vector<32x96xf32>, vector<1x96xf32> -> vector<1x96xf32>
    %174 = arith.addf %173, %11 : vector<1x96xf32>
    %175 = arith.index_cast %c2_i32 : i32 to index
    %c0_52 = arith.constant 0 : index
    %176 = vector.load %arg6[%175, %c0_52] : memref<8x96xf32, #tpu.memory_space<vmem>>, vector<1x96xf32>
    %177 = vector.extract_strided_slice %176 {offsets = [0, 0], sizes = [1, 32], strides = [1, 1]} : vector<1x96xf32> to vector<1x32xf32>
    %178 = vector.extract_strided_slice %172 {offsets = [0, 0], sizes = [1, 32], strides = [1, 1]} : vector<1x96xf32> to vector<1x32xf32>
    %179 = arith.addf %177, %178 : vector<1x32xf32>
    %180 = arith.negf %179 : vector<1x32xf32>
    %181 = math.exp %180 : vector<1x32xf32>
    %cst_53 = arith.constant 1.000000e+00 : f32
    %182 = vector.broadcast %cst_53 : f32 to vector<1x32xf32>
    %183 = arith.addf %182, %181 : vector<1x32xf32>
    %184 = arith.divf %182, %183 : vector<1x32xf32>
    %185 = vector.extract_strided_slice %176 {offsets = [0, 32], sizes = [1, 32], strides = [1, 1]} : vector<1x96xf32> to vector<1x32xf32>
    %186 = vector.extract_strided_slice %172 {offsets = [0, 32], sizes = [1, 32], strides = [1, 1]} : vector<1x96xf32> to vector<1x32xf32>
    %187 = arith.addf %185, %186 : vector<1x32xf32>
    %188 = arith.negf %187 : vector<1x32xf32>
    %189 = math.exp %188 : vector<1x32xf32>
    %cst_54 = arith.constant 1.000000e+00 : f32
    %190 = vector.broadcast %cst_54 : f32 to vector<1x32xf32>
    %191 = arith.addf %190, %189 : vector<1x32xf32>
    %192 = arith.divf %190, %191 : vector<1x32xf32>
    %193 = vector.extract_strided_slice %176 {offsets = [0, 64], sizes = [1, 32], strides = [1, 1]} : vector<1x96xf32> to vector<1x32xf32>
    %194 = vector.extract_strided_slice %172 {offsets = [0, 64], sizes = [1, 32], strides = [1, 1]} : vector<1x96xf32> to vector<1x32xf32>
    %195 = arith.mulf %184, %194 : vector<1x32xf32>
    %196 = arith.addf %193, %195 : vector<1x32xf32>
    %197 = math.tanh %196 : vector<1x32xf32>
    %cst_55 = arith.constant 1.000000e+00 : f32
    %198 = vector.broadcast %cst_55 : f32 to vector<1x32xf32>
    %199 = arith.subf %198, %192 : vector<1x32xf32>
    %200 = arith.mulf %199, %197 : vector<1x32xf32>
    %201 = arith.mulf %192, %167 : vector<1x32xf32>
    %202 = arith.addf %200, %201 : vector<1x32xf32>
    %cst_56 = arith.constant dense<0.000000e+00> : vector<1x96xf32>
    %203 = tpu.matmul %202, %2, %cst_56 {dimension_numbers = #tpu.dot_dimension_numbers<[1], [0], [0], [1], [0, 0, 1, 1], [], []>} : vector<1x32xf32>, vector<32x96xf32>, vector<1x96xf32> -> vector<1x96xf32>
    %204 = arith.addf %203, %10 : vector<1x96xf32>
    %205 = vector.extract_strided_slice %204 {offsets = [0, 0], sizes = [1, 32], strides = [1, 1]} : vector<1x96xf32> to vector<1x32xf32>
    %206 = vector.extract_strided_slice %174 {offsets = [0, 0], sizes = [1, 32], strides = [1, 1]} : vector<1x96xf32> to vector<1x32xf32>
    %207 = arith.addf %205, %206 : vector<1x32xf32>
    %208 = arith.negf %207 : vector<1x32xf32>
    %209 = math.exp %208 : vector<1x32xf32>
    %cst_57 = arith.constant 1.000000e+00 : f32
    %210 = vector.broadcast %cst_57 : f32 to vector<1x32xf32>
    %211 = arith.addf %210, %209 : vector<1x32xf32>
    %212 = arith.divf %210, %211 : vector<1x32xf32>
    %213 = vector.extract_strided_slice %204 {offsets = [0, 32], sizes = [1, 32], strides = [1, 1]} : vector<1x96xf32> to vector<1x32xf32>
    %214 = vector.extract_strided_slice %174 {offsets = [0, 32], sizes = [1, 32], strides = [1, 1]} : vector<1x96xf32> to vector<1x32xf32>
    %215 = arith.addf %213, %214 : vector<1x32xf32>
    %216 = arith.negf %215 : vector<1x32xf32>
    %217 = math.exp %216 : vector<1x32xf32>
    %cst_58 = arith.constant 1.000000e+00 : f32
    %218 = vector.broadcast %cst_58 : f32 to vector<1x32xf32>
    %219 = arith.addf %218, %217 : vector<1x32xf32>
    %220 = arith.divf %218, %219 : vector<1x32xf32>
    %221 = vector.extract_strided_slice %204 {offsets = [0, 64], sizes = [1, 32], strides = [1, 1]} : vector<1x96xf32> to vector<1x32xf32>
    %222 = vector.extract_strided_slice %174 {offsets = [0, 64], sizes = [1, 32], strides = [1, 1]} : vector<1x96xf32> to vector<1x32xf32>
    %223 = arith.mulf %212, %222 : vector<1x32xf32>
    %224 = arith.addf %221, %223 : vector<1x32xf32>
    %225 = math.tanh %224 : vector<1x32xf32>
    %cst_59 = arith.constant 1.000000e+00 : f32
    %226 = vector.broadcast %cst_59 : f32 to vector<1x32xf32>
    %227 = arith.subf %226, %220 : vector<1x32xf32>
    %228 = arith.mulf %227, %225 : vector<1x32xf32>
    %229 = arith.mulf %220, %170 : vector<1x32xf32>
    %230 = arith.addf %228, %229 : vector<1x32xf32>
    %231 = arith.index_cast %c2_i32 : i32 to index
    %c0_60 = arith.constant 0 : index
    %232 = vector.load %arg1[%231, %c0_60] : memref<8x1xi32, #tpu.memory_space<vmem>>, vector<1x1xi32>
    %c0_i32_61 = arith.constant 0 : i32
    %233 = vector.broadcast %c0_i32_61 : i32 to vector<1x1xi32>
    %234 = arith.cmpi ne, %232, %233 : vector<1x1xi32>
    %235 = vector.shape_cast %234 : vector<1x1xi1> to vector<1x1xi1>
    %236 = vector.broadcast %235 : vector<1x1xi1> to vector<1x32xi1>
    %237 = arith.select %236, %202, %167 : vector<1x32xi1>, vector<1x32xf32>
    %238 = vector.shape_cast %234 : vector<1x1xi1> to vector<1x1xi1>
    %239 = vector.broadcast %238 : vector<1x1xi1> to vector<1x32xi1>
    %240 = arith.select %239, %230, %170 : vector<1x32xi1>, vector<1x32xf32>
    %c3_i32 = arith.constant 3 : i32
    %cst_62 = arith.constant dense<0.000000e+00> : vector<1x96xf32>
    %241 = tpu.matmul %237, %1, %cst_62 {dimension_numbers = #tpu.dot_dimension_numbers<[1], [0], [0], [1], [0, 0, 1, 1], [], []>} : vector<1x32xf32>, vector<32x96xf32>, vector<1x96xf32> -> vector<1x96xf32>
    %242 = arith.addf %241, %9 : vector<1x96xf32>
    %cst_63 = arith.constant dense<0.000000e+00> : vector<1x96xf32>
    %243 = tpu.matmul %240, %3, %cst_63 {dimension_numbers = #tpu.dot_dimension_numbers<[1], [0], [0], [1], [0, 0, 1, 1], [], []>} : vector<1x32xf32>, vector<32x96xf32>, vector<1x96xf32> -> vector<1x96xf32>
    %244 = arith.addf %243, %11 : vector<1x96xf32>
    %245 = arith.index_cast %c3_i32 : i32 to index
    %c0_64 = arith.constant 0 : index
    %246 = vector.load %arg6[%245, %c0_64] : memref<8x96xf32, #tpu.memory_space<vmem>>, vector<1x96xf32>
    %247 = vector.extract_strided_slice %246 {offsets = [0, 0], sizes = [1, 32], strides = [1, 1]} : vector<1x96xf32> to vector<1x32xf32>
    %248 = vector.extract_strided_slice %242 {offsets = [0, 0], sizes = [1, 32], strides = [1, 1]} : vector<1x96xf32> to vector<1x32xf32>
    %249 = arith.addf %247, %248 : vector<1x32xf32>
    %250 = arith.negf %249 : vector<1x32xf32>
    %251 = math.exp %250 : vector<1x32xf32>
    %cst_65 = arith.constant 1.000000e+00 : f32
    %252 = vector.broadcast %cst_65 : f32 to vector<1x32xf32>
    %253 = arith.addf %252, %251 : vector<1x32xf32>
    %254 = arith.divf %252, %253 : vector<1x32xf32>
    %255 = vector.extract_strided_slice %246 {offsets = [0, 32], sizes = [1, 32], strides = [1, 1]} : vector<1x96xf32> to vector<1x32xf32>
    %256 = vector.extract_strided_slice %242 {offsets = [0, 32], sizes = [1, 32], strides = [1, 1]} : vector<1x96xf32> to vector<1x32xf32>
    %257 = arith.addf %255, %256 : vector<1x32xf32>
    %258 = arith.negf %257 : vector<1x32xf32>
    %259 = math.exp %258 : vector<1x32xf32>
    %cst_66 = arith.constant 1.000000e+00 : f32
    %260 = vector.broadcast %cst_66 : f32 to vector<1x32xf32>
    %261 = arith.addf %260, %259 : vector<1x32xf32>
    %262 = arith.divf %260, %261 : vector<1x32xf32>
    %263 = vector.extract_strided_slice %246 {offsets = [0, 64], sizes = [1, 32], strides = [1, 1]} : vector<1x96xf32> to vector<1x32xf32>
    %264 = vector.extract_strided_slice %242 {offsets = [0, 64], sizes = [1, 32], strides = [1, 1]} : vector<1x96xf32> to vector<1x32xf32>
    %265 = arith.mulf %254, %264 : vector<1x32xf32>
    %266 = arith.addf %263, %265 : vector<1x32xf32>
    %267 = math.tanh %266 : vector<1x32xf32>
    %cst_67 = arith.constant 1.000000e+00 : f32
    %268 = vector.broadcast %cst_67 : f32 to vector<1x32xf32>
    %269 = arith.subf %268, %262 : vector<1x32xf32>
    %270 = arith.mulf %269, %267 : vector<1x32xf32>
    %271 = arith.mulf %262, %237 : vector<1x32xf32>
    %272 = arith.addf %270, %271 : vector<1x32xf32>
    %cst_68 = arith.constant dense<0.000000e+00> : vector<1x96xf32>
    %273 = tpu.matmul %272, %2, %cst_68 {dimension_numbers = #tpu.dot_dimension_numbers<[1], [0], [0], [1], [0, 0, 1, 1], [], []>} : vector<1x32xf32>, vector<32x96xf32>, vector<1x96xf32> -> vector<1x96xf32>
    %274 = arith.addf %273, %10 : vector<1x96xf32>
    %275 = vector.extract_strided_slice %274 {offsets = [0, 0], sizes = [1, 32], strides = [1, 1]} : vector<1x96xf32> to vector<1x32xf32>
    %276 = vector.extract_strided_slice %244 {offsets = [0, 0], sizes = [1, 32], strides = [1, 1]} : vector<1x96xf32> to vector<1x32xf32>
    %277 = arith.addf %275, %276 : vector<1x32xf32>
    %278 = arith.negf %277 : vector<1x32xf32>
    %279 = math.exp %278 : vector<1x32xf32>
    %cst_69 = arith.constant 1.000000e+00 : f32
    %280 = vector.broadcast %cst_69 : f32 to vector<1x32xf32>
    %281 = arith.addf %280, %279 : vector<1x32xf32>
    %282 = arith.divf %280, %281 : vector<1x32xf32>
    %283 = vector.extract_strided_slice %274 {offsets = [0, 32], sizes = [1, 32], strides = [1, 1]} : vector<1x96xf32> to vector<1x32xf32>
    %284 = vector.extract_strided_slice %244 {offsets = [0, 32], sizes = [1, 32], strides = [1, 1]} : vector<1x96xf32> to vector<1x32xf32>
    %285 = arith.addf %283, %284 : vector<1x32xf32>
    %286 = arith.negf %285 : vector<1x32xf32>
    %287 = math.exp %286 : vector<1x32xf32>
    %cst_70 = arith.constant 1.000000e+00 : f32
    %288 = vector.broadcast %cst_70 : f32 to vector<1x32xf32>
    %289 = arith.addf %288, %287 : vector<1x32xf32>
    %290 = arith.divf %288, %289 : vector<1x32xf32>
    %291 = vector.extract_strided_slice %274 {offsets = [0, 64], sizes = [1, 32], strides = [1, 1]} : vector<1x96xf32> to vector<1x32xf32>
    %292 = vector.extract_strided_slice %244 {offsets = [0, 64], sizes = [1, 32], strides = [1, 1]} : vector<1x96xf32> to vector<1x32xf32>
    %293 = arith.mulf %282, %292 : vector<1x32xf32>
    %294 = arith.addf %291, %293 : vector<1x32xf32>
    %295 = math.tanh %294 : vector<1x32xf32>
    %cst_71 = arith.constant 1.000000e+00 : f32
    %296 = vector.broadcast %cst_71 : f32 to vector<1x32xf32>
    %297 = arith.subf %296, %290 : vector<1x32xf32>
    %298 = arith.mulf %297, %295 : vector<1x32xf32>
    %299 = arith.mulf %290, %240 : vector<1x32xf32>
    %300 = arith.addf %298, %299 : vector<1x32xf32>
    %301 = arith.index_cast %c3_i32 : i32 to index
    %c0_72 = arith.constant 0 : index
    %302 = vector.load %arg1[%301, %c0_72] : memref<8x1xi32, #tpu.memory_space<vmem>>, vector<1x1xi32>
    %c0_i32_73 = arith.constant 0 : i32
    %303 = vector.broadcast %c0_i32_73 : i32 to vector<1x1xi32>
    %304 = arith.cmpi ne, %302, %303 : vector<1x1xi32>
    %305 = vector.shape_cast %304 : vector<1x1xi1> to vector<1x1xi1>
    %306 = vector.broadcast %305 : vector<1x1xi1> to vector<1x32xi1>
    %307 = arith.select %306, %272, %237 : vector<1x32xi1>, vector<1x32xf32>
    %308 = vector.shape_cast %304 : vector<1x1xi1> to vector<1x1xi1>
    %309 = vector.broadcast %308 : vector<1x1xi1> to vector<1x32xi1>
    %310 = arith.select %309, %300, %240 : vector<1x32xi1>, vector<1x32xf32>
    %c4_i32 = arith.constant 4 : i32
    %cst_74 = arith.constant dense<0.000000e+00> : vector<1x96xf32>
    %311 = tpu.matmul %307, %1, %cst_74 {dimension_numbers = #tpu.dot_dimension_numbers<[1], [0], [0], [1], [0, 0, 1, 1], [], []>} : vector<1x32xf32>, vector<32x96xf32>, vector<1x96xf32> -> vector<1x96xf32>
    %312 = arith.addf %311, %9 : vector<1x96xf32>
    %cst_75 = arith.constant dense<0.000000e+00> : vector<1x96xf32>
    %313 = tpu.matmul %310, %3, %cst_75 {dimension_numbers = #tpu.dot_dimension_numbers<[1], [0], [0], [1], [0, 0, 1, 1], [], []>} : vector<1x32xf32>, vector<32x96xf32>, vector<1x96xf32> -> vector<1x96xf32>
    %314 = arith.addf %313, %11 : vector<1x96xf32>
    %315 = arith.index_cast %c4_i32 : i32 to index
    %c0_76 = arith.constant 0 : index
    %316 = vector.load %arg6[%315, %c0_76] : memref<8x96xf32, #tpu.memory_space<vmem>>, vector<1x96xf32>
    %317 = vector.extract_strided_slice %316 {offsets = [0, 0], sizes = [1, 32], strides = [1, 1]} : vector<1x96xf32> to vector<1x32xf32>
    %318 = vector.extract_strided_slice %312 {offsets = [0, 0], sizes = [1, 32], strides = [1, 1]} : vector<1x96xf32> to vector<1x32xf32>
    %319 = arith.addf %317, %318 : vector<1x32xf32>
    %320 = arith.negf %319 : vector<1x32xf32>
    %321 = math.exp %320 : vector<1x32xf32>
    %cst_77 = arith.constant 1.000000e+00 : f32
    %322 = vector.broadcast %cst_77 : f32 to vector<1x32xf32>
    %323 = arith.addf %322, %321 : vector<1x32xf32>
    %324 = arith.divf %322, %323 : vector<1x32xf32>
    %325 = vector.extract_strided_slice %316 {offsets = [0, 32], sizes = [1, 32], strides = [1, 1]} : vector<1x96xf32> to vector<1x32xf32>
    %326 = vector.extract_strided_slice %312 {offsets = [0, 32], sizes = [1, 32], strides = [1, 1]} : vector<1x96xf32> to vector<1x32xf32>
    %327 = arith.addf %325, %326 : vector<1x32xf32>
    %328 = arith.negf %327 : vector<1x32xf32>
    %329 = math.exp %328 : vector<1x32xf32>
    %cst_78 = arith.constant 1.000000e+00 : f32
    %330 = vector.broadcast %cst_78 : f32 to vector<1x32xf32>
    %331 = arith.addf %330, %329 : vector<1x32xf32>
    %332 = arith.divf %330, %331 : vector<1x32xf32>
    %333 = vector.extract_strided_slice %316 {offsets = [0, 64], sizes = [1, 32], strides = [1, 1]} : vector<1x96xf32> to vector<1x32xf32>
    %334 = vector.extract_strided_slice %312 {offsets = [0, 64], sizes = [1, 32], strides = [1, 1]} : vector<1x96xf32> to vector<1x32xf32>
    %335 = arith.mulf %324, %334 : vector<1x32xf32>
    %336 = arith.addf %333, %335 : vector<1x32xf32>
    %337 = math.tanh %336 : vector<1x32xf32>
    %cst_79 = arith.constant 1.000000e+00 : f32
    %338 = vector.broadcast %cst_79 : f32 to vector<1x32xf32>
    %339 = arith.subf %338, %332 : vector<1x32xf32>
    %340 = arith.mulf %339, %337 : vector<1x32xf32>
    %341 = arith.mulf %332, %307 : vector<1x32xf32>
    %342 = arith.addf %340, %341 : vector<1x32xf32>
    %cst_80 = arith.constant dense<0.000000e+00> : vector<1x96xf32>
    %343 = tpu.matmul %342, %2, %cst_80 {dimension_numbers = #tpu.dot_dimension_numbers<[1], [0], [0], [1], [0, 0, 1, 1], [], []>} : vector<1x32xf32>, vector<32x96xf32>, vector<1x96xf32> -> vector<1x96xf32>
    %344 = arith.addf %343, %10 : vector<1x96xf32>
    %345 = vector.extract_strided_slice %344 {offsets = [0, 0], sizes = [1, 32], strides = [1, 1]} : vector<1x96xf32> to vector<1x32xf32>
    %346 = vector.extract_strided_slice %314 {offsets = [0, 0], sizes = [1, 32], strides = [1, 1]} : vector<1x96xf32> to vector<1x32xf32>
    %347 = arith.addf %345, %346 : vector<1x32xf32>
    %348 = arith.negf %347 : vector<1x32xf32>
    %349 = math.exp %348 : vector<1x32xf32>
    %cst_81 = arith.constant 1.000000e+00 : f32
    %350 = vector.broadcast %cst_81 : f32 to vector<1x32xf32>
    %351 = arith.addf %350, %349 : vector<1x32xf32>
    %352 = arith.divf %350, %351 : vector<1x32xf32>
    %353 = vector.extract_strided_slice %344 {offsets = [0, 32], sizes = [1, 32], strides = [1, 1]} : vector<1x96xf32> to vector<1x32xf32>
    %354 = vector.extract_strided_slice %314 {offsets = [0, 32], sizes = [1, 32], strides = [1, 1]} : vector<1x96xf32> to vector<1x32xf32>
    %355 = arith.addf %353, %354 : vector<1x32xf32>
    %356 = arith.negf %355 : vector<1x32xf32>
    %357 = math.exp %356 : vector<1x32xf32>
    %cst_82 = arith.constant 1.000000e+00 : f32
    %358 = vector.broadcast %cst_82 : f32 to vector<1x32xf32>
    %359 = arith.addf %358, %357 : vector<1x32xf32>
    %360 = arith.divf %358, %359 : vector<1x32xf32>
    %361 = vector.extract_strided_slice %344 {offsets = [0, 64], sizes = [1, 32], strides = [1, 1]} : vector<1x96xf32> to vector<1x32xf32>
    %362 = vector.extract_strided_slice %314 {offsets = [0, 64], sizes = [1, 32], strides = [1, 1]} : vector<1x96xf32> to vector<1x32xf32>
    %363 = arith.mulf %352, %362 : vector<1x32xf32>
    %364 = arith.addf %361, %363 : vector<1x32xf32>
    %365 = math.tanh %364 : vector<1x32xf32>
    %cst_83 = arith.constant 1.000000e+00 : f32
    %366 = vector.broadcast %cst_83 : f32 to vector<1x32xf32>
    %367 = arith.subf %366, %360 : vector<1x32xf32>
    %368 = arith.mulf %367, %365 : vector<1x32xf32>
    %369 = arith.mulf %360, %310 : vector<1x32xf32>
    %370 = arith.addf %368, %369 : vector<1x32xf32>
    %371 = arith.index_cast %c4_i32 : i32 to index
    %c0_84 = arith.constant 0 : index
    %372 = vector.load %arg1[%371, %c0_84] : memref<8x1xi32, #tpu.memory_space<vmem>>, vector<1x1xi32>
    %c0_i32_85 = arith.constant 0 : i32
    %373 = vector.broadcast %c0_i32_85 : i32 to vector<1x1xi32>
    %374 = arith.cmpi ne, %372, %373 : vector<1x1xi32>
    %375 = vector.shape_cast %374 : vector<1x1xi1> to vector<1x1xi1>
    %376 = vector.broadcast %375 : vector<1x1xi1> to vector<1x32xi1>
    %377 = arith.select %376, %342, %307 : vector<1x32xi1>, vector<1x32xf32>
    %378 = vector.shape_cast %374 : vector<1x1xi1> to vector<1x1xi1>
    %379 = vector.broadcast %378 : vector<1x1xi1> to vector<1x32xi1>
    %380 = arith.select %379, %370, %310 : vector<1x32xi1>, vector<1x32xf32>
    %c5_i32 = arith.constant 5 : i32
    %cst_86 = arith.constant dense<0.000000e+00> : vector<1x96xf32>
    %381 = tpu.matmul %377, %1, %cst_86 {dimension_numbers = #tpu.dot_dimension_numbers<[1], [0], [0], [1], [0, 0, 1, 1], [], []>} : vector<1x32xf32>, vector<32x96xf32>, vector<1x96xf32> -> vector<1x96xf32>
    %382 = arith.addf %381, %9 : vector<1x96xf32>
    %cst_87 = arith.constant dense<0.000000e+00> : vector<1x96xf32>
    %383 = tpu.matmul %380, %3, %cst_87 {dimension_numbers = #tpu.dot_dimension_numbers<[1], [0], [0], [1], [0, 0, 1, 1], [], []>} : vector<1x32xf32>, vector<32x96xf32>, vector<1x96xf32> -> vector<1x96xf32>
    %384 = arith.addf %383, %11 : vector<1x96xf32>
    %385 = arith.index_cast %c5_i32 : i32 to index
    %c0_88 = arith.constant 0 : index
    %386 = vector.load %arg6[%385, %c0_88] : memref<8x96xf32, #tpu.memory_space<vmem>>, vector<1x96xf32>
    %387 = vector.extract_strided_slice %386 {offsets = [0, 0], sizes = [1, 32], strides = [1, 1]} : vector<1x96xf32> to vector<1x32xf32>
    %388 = vector.extract_strided_slice %382 {offsets = [0, 0], sizes = [1, 32], strides = [1, 1]} : vector<1x96xf32> to vector<1x32xf32>
    %389 = arith.addf %387, %388 : vector<1x32xf32>
    %390 = arith.negf %389 : vector<1x32xf32>
    %391 = math.exp %390 : vector<1x32xf32>
    %cst_89 = arith.constant 1.000000e+00 : f32
    %392 = vector.broadcast %cst_89 : f32 to vector<1x32xf32>
    %393 = arith.addf %392, %391 : vector<1x32xf32>
    %394 = arith.divf %392, %393 : vector<1x32xf32>
    %395 = vector.extract_strided_slice %386 {offsets = [0, 32], sizes = [1, 32], strides = [1, 1]} : vector<1x96xf32> to vector<1x32xf32>
    %396 = vector.extract_strided_slice %382 {offsets = [0, 32], sizes = [1, 32], strides = [1, 1]} : vector<1x96xf32> to vector<1x32xf32>
    %397 = arith.addf %395, %396 : vector<1x32xf32>
    %398 = arith.negf %397 : vector<1x32xf32>
    %399 = math.exp %398 : vector<1x32xf32>
    %cst_90 = arith.constant 1.000000e+00 : f32
    %400 = vector.broadcast %cst_90 : f32 to vector<1x32xf32>
    %401 = arith.addf %400, %399 : vector<1x32xf32>
    %402 = arith.divf %400, %401 : vector<1x32xf32>
    %403 = vector.extract_strided_slice %386 {offsets = [0, 64], sizes = [1, 32], strides = [1, 1]} : vector<1x96xf32> to vector<1x32xf32>
    %404 = vector.extract_strided_slice %382 {offsets = [0, 64], sizes = [1, 32], strides = [1, 1]} : vector<1x96xf32> to vector<1x32xf32>
    %405 = arith.mulf %394, %404 : vector<1x32xf32>
    %406 = arith.addf %403, %405 : vector<1x32xf32>
    %407 = math.tanh %406 : vector<1x32xf32>
    %cst_91 = arith.constant 1.000000e+00 : f32
    %408 = vector.broadcast %cst_91 : f32 to vector<1x32xf32>
    %409 = arith.subf %408, %402 : vector<1x32xf32>
    %410 = arith.mulf %409, %407 : vector<1x32xf32>
    %411 = arith.mulf %402, %377 : vector<1x32xf32>
    %412 = arith.addf %410, %411 : vector<1x32xf32>
    %cst_92 = arith.constant dense<0.000000e+00> : vector<1x96xf32>
    %413 = tpu.matmul %412, %2, %cst_92 {dimension_numbers = #tpu.dot_dimension_numbers<[1], [0], [0], [1], [0, 0, 1, 1], [], []>} : vector<1x32xf32>, vector<32x96xf32>, vector<1x96xf32> -> vector<1x96xf32>
    %414 = arith.addf %413, %10 : vector<1x96xf32>
    %415 = vector.extract_strided_slice %414 {offsets = [0, 0], sizes = [1, 32], strides = [1, 1]} : vector<1x96xf32> to vector<1x32xf32>
    %416 = vector.extract_strided_slice %384 {offsets = [0, 0], sizes = [1, 32], strides = [1, 1]} : vector<1x96xf32> to vector<1x32xf32>
    %417 = arith.addf %415, %416 : vector<1x32xf32>
    %418 = arith.negf %417 : vector<1x32xf32>
    %419 = math.exp %418 : vector<1x32xf32>
    %cst_93 = arith.constant 1.000000e+00 : f32
    %420 = vector.broadcast %cst_93 : f32 to vector<1x32xf32>
    %421 = arith.addf %420, %419 : vector<1x32xf32>
    %422 = arith.divf %420, %421 : vector<1x32xf32>
    %423 = vector.extract_strided_slice %414 {offsets = [0, 32], sizes = [1, 32], strides = [1, 1]} : vector<1x96xf32> to vector<1x32xf32>
    %424 = vector.extract_strided_slice %384 {offsets = [0, 32], sizes = [1, 32], strides = [1, 1]} : vector<1x96xf32> to vector<1x32xf32>
    %425 = arith.addf %423, %424 : vector<1x32xf32>
    %426 = arith.negf %425 : vector<1x32xf32>
    %427 = math.exp %426 : vector<1x32xf32>
    %cst_94 = arith.constant 1.000000e+00 : f32
    %428 = vector.broadcast %cst_94 : f32 to vector<1x32xf32>
    %429 = arith.addf %428, %427 : vector<1x32xf32>
    %430 = arith.divf %428, %429 : vector<1x32xf32>
    %431 = vector.extract_strided_slice %414 {offsets = [0, 64], sizes = [1, 32], strides = [1, 1]} : vector<1x96xf32> to vector<1x32xf32>
    %432 = vector.extract_strided_slice %384 {offsets = [0, 64], sizes = [1, 32], strides = [1, 1]} : vector<1x96xf32> to vector<1x32xf32>
    %433 = arith.mulf %422, %432 : vector<1x32xf32>
    %434 = arith.addf %431, %433 : vector<1x32xf32>
    %435 = math.tanh %434 : vector<1x32xf32>
    %cst_95 = arith.constant 1.000000e+00 : f32
    %436 = vector.broadcast %cst_95 : f32 to vector<1x32xf32>
    %437 = arith.subf %436, %430 : vector<1x32xf32>
    %438 = arith.mulf %437, %435 : vector<1x32xf32>
    %439 = arith.mulf %430, %380 : vector<1x32xf32>
    %440 = arith.addf %438, %439 : vector<1x32xf32>
    %441 = arith.index_cast %c5_i32 : i32 to index
    %c0_96 = arith.constant 0 : index
    %442 = vector.load %arg1[%441, %c0_96] : memref<8x1xi32, #tpu.memory_space<vmem>>, vector<1x1xi32>
    %c0_i32_97 = arith.constant 0 : i32
    %443 = vector.broadcast %c0_i32_97 : i32 to vector<1x1xi32>
    %444 = arith.cmpi ne, %442, %443 : vector<1x1xi32>
    %445 = vector.shape_cast %444 : vector<1x1xi1> to vector<1x1xi1>
    %446 = vector.broadcast %445 : vector<1x1xi1> to vector<1x32xi1>
    %447 = arith.select %446, %412, %377 : vector<1x32xi1>, vector<1x32xf32>
    %448 = vector.shape_cast %444 : vector<1x1xi1> to vector<1x1xi1>
    %449 = vector.broadcast %448 : vector<1x1xi1> to vector<1x32xi1>
    %450 = arith.select %449, %440, %380 : vector<1x32xi1>, vector<1x32xf32>
    %c6_i32 = arith.constant 6 : i32
    %cst_98 = arith.constant dense<0.000000e+00> : vector<1x96xf32>
    %451 = tpu.matmul %447, %1, %cst_98 {dimension_numbers = #tpu.dot_dimension_numbers<[1], [0], [0], [1], [0, 0, 1, 1], [], []>} : vector<1x32xf32>, vector<32x96xf32>, vector<1x96xf32> -> vector<1x96xf32>
    %452 = arith.addf %451, %9 : vector<1x96xf32>
    %cst_99 = arith.constant dense<0.000000e+00> : vector<1x96xf32>
    %453 = tpu.matmul %450, %3, %cst_99 {dimension_numbers = #tpu.dot_dimension_numbers<[1], [0], [0], [1], [0, 0, 1, 1], [], []>} : vector<1x32xf32>, vector<32x96xf32>, vector<1x96xf32> -> vector<1x96xf32>
    %454 = arith.addf %453, %11 : vector<1x96xf32>
    %455 = arith.index_cast %c6_i32 : i32 to index
    %c0_100 = arith.constant 0 : index
    %456 = vector.load %arg6[%455, %c0_100] : memref<8x96xf32, #tpu.memory_space<vmem>>, vector<1x96xf32>
    %457 = vector.extract_strided_slice %456 {offsets = [0, 0], sizes = [1, 32], strides = [1, 1]} : vector<1x96xf32> to vector<1x32xf32>
    %458 = vector.extract_strided_slice %452 {offsets = [0, 0], sizes = [1, 32], strides = [1, 1]} : vector<1x96xf32> to vector<1x32xf32>
    %459 = arith.addf %457, %458 : vector<1x32xf32>
    %460 = arith.negf %459 : vector<1x32xf32>
    %461 = math.exp %460 : vector<1x32xf32>
    %cst_101 = arith.constant 1.000000e+00 : f32
    %462 = vector.broadcast %cst_101 : f32 to vector<1x32xf32>
    %463 = arith.addf %462, %461 : vector<1x32xf32>
    %464 = arith.divf %462, %463 : vector<1x32xf32>
    %465 = vector.extract_strided_slice %456 {offsets = [0, 32], sizes = [1, 32], strides = [1, 1]} : vector<1x96xf32> to vector<1x32xf32>
    %466 = vector.extract_strided_slice %452 {offsets = [0, 32], sizes = [1, 32], strides = [1, 1]} : vector<1x96xf32> to vector<1x32xf32>
    %467 = arith.addf %465, %466 : vector<1x32xf32>
    %468 = arith.negf %467 : vector<1x32xf32>
    %469 = math.exp %468 : vector<1x32xf32>
    %cst_102 = arith.constant 1.000000e+00 : f32
    %470 = vector.broadcast %cst_102 : f32 to vector<1x32xf32>
    %471 = arith.addf %470, %469 : vector<1x32xf32>
    %472 = arith.divf %470, %471 : vector<1x32xf32>
    %473 = vector.extract_strided_slice %456 {offsets = [0, 64], sizes = [1, 32], strides = [1, 1]} : vector<1x96xf32> to vector<1x32xf32>
    %474 = vector.extract_strided_slice %452 {offsets = [0, 64], sizes = [1, 32], strides = [1, 1]} : vector<1x96xf32> to vector<1x32xf32>
    %475 = arith.mulf %464, %474 : vector<1x32xf32>
    %476 = arith.addf %473, %475 : vector<1x32xf32>
    %477 = math.tanh %476 : vector<1x32xf32>
    %cst_103 = arith.constant 1.000000e+00 : f32
    %478 = vector.broadcast %cst_103 : f32 to vector<1x32xf32>
    %479 = arith.subf %478, %472 : vector<1x32xf32>
    %480 = arith.mulf %479, %477 : vector<1x32xf32>
    %481 = arith.mulf %472, %447 : vector<1x32xf32>
    %482 = arith.addf %480, %481 : vector<1x32xf32>
    %cst_104 = arith.constant dense<0.000000e+00> : vector<1x96xf32>
    %483 = tpu.matmul %482, %2, %cst_104 {dimension_numbers = #tpu.dot_dimension_numbers<[1], [0], [0], [1], [0, 0, 1, 1], [], []>} : vector<1x32xf32>, vector<32x96xf32>, vector<1x96xf32> -> vector<1x96xf32>
    %484 = arith.addf %483, %10 : vector<1x96xf32>
    %485 = vector.extract_strided_slice %484 {offsets = [0, 0], sizes = [1, 32], strides = [1, 1]} : vector<1x96xf32> to vector<1x32xf32>
    %486 = vector.extract_strided_slice %454 {offsets = [0, 0], sizes = [1, 32], strides = [1, 1]} : vector<1x96xf32> to vector<1x32xf32>
    %487 = arith.addf %485, %486 : vector<1x32xf32>
    %488 = arith.negf %487 : vector<1x32xf32>
    %489 = math.exp %488 : vector<1x32xf32>
    %cst_105 = arith.constant 1.000000e+00 : f32
    %490 = vector.broadcast %cst_105 : f32 to vector<1x32xf32>
    %491 = arith.addf %490, %489 : vector<1x32xf32>
    %492 = arith.divf %490, %491 : vector<1x32xf32>
    %493 = vector.extract_strided_slice %484 {offsets = [0, 32], sizes = [1, 32], strides = [1, 1]} : vector<1x96xf32> to vector<1x32xf32>
    %494 = vector.extract_strided_slice %454 {offsets = [0, 32], sizes = [1, 32], strides = [1, 1]} : vector<1x96xf32> to vector<1x32xf32>
    %495 = arith.addf %493, %494 : vector<1x32xf32>
    %496 = arith.negf %495 : vector<1x32xf32>
    %497 = math.exp %496 : vector<1x32xf32>
    %cst_106 = arith.constant 1.000000e+00 : f32
    %498 = vector.broadcast %cst_106 : f32 to vector<1x32xf32>
    %499 = arith.addf %498, %497 : vector<1x32xf32>
    %500 = arith.divf %498, %499 : vector<1x32xf32>
    %501 = vector.extract_strided_slice %484 {offsets = [0, 64], sizes = [1, 32], strides = [1, 1]} : vector<1x96xf32> to vector<1x32xf32>
    %502 = vector.extract_strided_slice %454 {offsets = [0, 64], sizes = [1, 32], strides = [1, 1]} : vector<1x96xf32> to vector<1x32xf32>
    %503 = arith.mulf %492, %502 : vector<1x32xf32>
    %504 = arith.addf %501, %503 : vector<1x32xf32>
    %505 = math.tanh %504 : vector<1x32xf32>
    %cst_107 = arith.constant 1.000000e+00 : f32
    %506 = vector.broadcast %cst_107 : f32 to vector<1x32xf32>
    %507 = arith.subf %506, %500 : vector<1x32xf32>
    %508 = arith.mulf %507, %505 : vector<1x32xf32>
    %509 = arith.mulf %500, %450 : vector<1x32xf32>
    %510 = arith.addf %508, %509 : vector<1x32xf32>
    %511 = arith.index_cast %c6_i32 : i32 to index
    %c0_108 = arith.constant 0 : index
    %512 = vector.load %arg1[%511, %c0_108] : memref<8x1xi32, #tpu.memory_space<vmem>>, vector<1x1xi32>
    %c0_i32_109 = arith.constant 0 : i32
    %513 = vector.broadcast %c0_i32_109 : i32 to vector<1x1xi32>
    %514 = arith.cmpi ne, %512, %513 : vector<1x1xi32>
    %515 = vector.shape_cast %514 : vector<1x1xi1> to vector<1x1xi1>
    %516 = vector.broadcast %515 : vector<1x1xi1> to vector<1x32xi1>
    %517 = arith.select %516, %482, %447 : vector<1x32xi1>, vector<1x32xf32>
    %518 = vector.shape_cast %514 : vector<1x1xi1> to vector<1x1xi1>
    %519 = vector.broadcast %518 : vector<1x1xi1> to vector<1x32xi1>
    %520 = arith.select %519, %510, %450 : vector<1x32xi1>, vector<1x32xf32>
    %c7_i32 = arith.constant 7 : i32
    %cst_110 = arith.constant dense<0.000000e+00> : vector<1x96xf32>
    %521 = tpu.matmul %517, %1, %cst_110 {dimension_numbers = #tpu.dot_dimension_numbers<[1], [0], [0], [1], [0, 0, 1, 1], [], []>} : vector<1x32xf32>, vector<32x96xf32>, vector<1x96xf32> -> vector<1x96xf32>
    %522 = arith.addf %521, %9 : vector<1x96xf32>
    %cst_111 = arith.constant dense<0.000000e+00> : vector<1x96xf32>
    %523 = tpu.matmul %520, %3, %cst_111 {dimension_numbers = #tpu.dot_dimension_numbers<[1], [0], [0], [1], [0, 0, 1, 1], [], []>} : vector<1x32xf32>, vector<32x96xf32>, vector<1x96xf32> -> vector<1x96xf32>
    %524 = arith.addf %523, %11 : vector<1x96xf32>
    %525 = arith.index_cast %c7_i32 : i32 to index
    %c0_112 = arith.constant 0 : index
    %526 = vector.load %arg6[%525, %c0_112] : memref<8x96xf32, #tpu.memory_space<vmem>>, vector<1x96xf32>
    %527 = vector.extract_strided_slice %526 {offsets = [0, 0], sizes = [1, 32], strides = [1, 1]} : vector<1x96xf32> to vector<1x32xf32>
    %528 = vector.extract_strided_slice %522 {offsets = [0, 0], sizes = [1, 32], strides = [1, 1]} : vector<1x96xf32> to vector<1x32xf32>
    %529 = arith.addf %527, %528 : vector<1x32xf32>
    %530 = arith.negf %529 : vector<1x32xf32>
    %531 = math.exp %530 : vector<1x32xf32>
    %cst_113 = arith.constant 1.000000e+00 : f32
    %532 = vector.broadcast %cst_113 : f32 to vector<1x32xf32>
    %533 = arith.addf %532, %531 : vector<1x32xf32>
    %534 = arith.divf %532, %533 : vector<1x32xf32>
    %535 = vector.extract_strided_slice %526 {offsets = [0, 32], sizes = [1, 32], strides = [1, 1]} : vector<1x96xf32> to vector<1x32xf32>
    %536 = vector.extract_strided_slice %522 {offsets = [0, 32], sizes = [1, 32], strides = [1, 1]} : vector<1x96xf32> to vector<1x32xf32>
    %537 = arith.addf %535, %536 : vector<1x32xf32>
    %538 = arith.negf %537 : vector<1x32xf32>
    %539 = math.exp %538 : vector<1x32xf32>
    %cst_114 = arith.constant 1.000000e+00 : f32
    %540 = vector.broadcast %cst_114 : f32 to vector<1x32xf32>
    %541 = arith.addf %540, %539 : vector<1x32xf32>
    %542 = arith.divf %540, %541 : vector<1x32xf32>
    %543 = vector.extract_strided_slice %526 {offsets = [0, 64], sizes = [1, 32], strides = [1, 1]} : vector<1x96xf32> to vector<1x32xf32>
    %544 = vector.extract_strided_slice %522 {offsets = [0, 64], sizes = [1, 32], strides = [1, 1]} : vector<1x96xf32> to vector<1x32xf32>
    %545 = arith.mulf %534, %544 : vector<1x32xf32>
    %546 = arith.addf %543, %545 : vector<1x32xf32>
    %547 = math.tanh %546 : vector<1x32xf32>
    %cst_115 = arith.constant 1.000000e+00 : f32
    %548 = vector.broadcast %cst_115 : f32 to vector<1x32xf32>
    %549 = arith.subf %548, %542 : vector<1x32xf32>
    %550 = arith.mulf %549, %547 : vector<1x32xf32>
    %551 = arith.mulf %542, %517 : vector<1x32xf32>
    %552 = arith.addf %550, %551 : vector<1x32xf32>
    %cst_116 = arith.constant dense<0.000000e+00> : vector<1x96xf32>
    %553 = tpu.matmul %552, %2, %cst_116 {dimension_numbers = #tpu.dot_dimension_numbers<[1], [0], [0], [1], [0, 0, 1, 1], [], []>} : vector<1x32xf32>, vector<32x96xf32>, vector<1x96xf32> -> vector<1x96xf32>
    %554 = arith.addf %553, %10 : vector<1x96xf32>
    %555 = vector.extract_strided_slice %554 {offsets = [0, 0], sizes = [1, 32], strides = [1, 1]} : vector<1x96xf32> to vector<1x32xf32>
    %556 = vector.extract_strided_slice %524 {offsets = [0, 0], sizes = [1, 32], strides = [1, 1]} : vector<1x96xf32> to vector<1x32xf32>
    %557 = arith.addf %555, %556 : vector<1x32xf32>
    %558 = arith.negf %557 : vector<1x32xf32>
    %559 = math.exp %558 : vector<1x32xf32>
    %cst_117 = arith.constant 1.000000e+00 : f32
    %560 = vector.broadcast %cst_117 : f32 to vector<1x32xf32>
    %561 = arith.addf %560, %559 : vector<1x32xf32>
    %562 = arith.divf %560, %561 : vector<1x32xf32>
    %563 = vector.extract_strided_slice %554 {offsets = [0, 32], sizes = [1, 32], strides = [1, 1]} : vector<1x96xf32> to vector<1x32xf32>
    %564 = vector.extract_strided_slice %524 {offsets = [0, 32], sizes = [1, 32], strides = [1, 1]} : vector<1x96xf32> to vector<1x32xf32>
    %565 = arith.addf %563, %564 : vector<1x32xf32>
    %566 = arith.negf %565 : vector<1x32xf32>
    %567 = math.exp %566 : vector<1x32xf32>
    %cst_118 = arith.constant 1.000000e+00 : f32
    %568 = vector.broadcast %cst_118 : f32 to vector<1x32xf32>
    %569 = arith.addf %568, %567 : vector<1x32xf32>
    %570 = arith.divf %568, %569 : vector<1x32xf32>
    %571 = vector.extract_strided_slice %554 {offsets = [0, 64], sizes = [1, 32], strides = [1, 1]} : vector<1x96xf32> to vector<1x32xf32>
    %572 = vector.extract_strided_slice %524 {offsets = [0, 64], sizes = [1, 32], strides = [1, 1]} : vector<1x96xf32> to vector<1x32xf32>
    %573 = arith.mulf %562, %572 : vector<1x32xf32>
    %574 = arith.addf %571, %573 : vector<1x32xf32>
    %575 = math.tanh %574 : vector<1x32xf32>
    %cst_119 = arith.constant 1.000000e+00 : f32
    %576 = vector.broadcast %cst_119 : f32 to vector<1x32xf32>
    %577 = arith.subf %576, %570 : vector<1x32xf32>
    %578 = arith.mulf %577, %575 : vector<1x32xf32>
    %579 = arith.mulf %570, %520 : vector<1x32xf32>
    %580 = arith.addf %578, %579 : vector<1x32xf32>
    %581 = arith.index_cast %c7_i32 : i32 to index
    %c0_120 = arith.constant 0 : index
    %582 = vector.load %arg1[%581, %c0_120] : memref<8x1xi32, #tpu.memory_space<vmem>>, vector<1x1xi32>
    %c0_i32_121 = arith.constant 0 : i32
    %583 = vector.broadcast %c0_i32_121 : i32 to vector<1x1xi32>
    %584 = arith.cmpi ne, %582, %583 : vector<1x1xi32>
    %585 = vector.shape_cast %584 : vector<1x1xi1> to vector<1x1xi1>
    %586 = vector.broadcast %585 : vector<1x1xi1> to vector<1x32xi1>
    %587 = arith.select %586, %552, %517 : vector<1x32xi1>, vector<1x32xf32>
    %588 = vector.shape_cast %584 : vector<1x1xi1> to vector<1x1xi1>
    %589 = vector.broadcast %588 : vector<1x1xi1> to vector<1x32xi1>
    %590 = arith.select %589, %580, %520 : vector<1x32xi1>, vector<1x32xf32>
    %c8_i32 = arith.constant 8 : i32
    %c0_122 = arith.constant 0 : index
    %591 = memref.load %arg0[%c0_122] : memref<3xi32, #tpu.memory_space<smem>>
    %c1_123 = arith.constant 1 : index
    %592 = memref.load %arg0[%c1_123] : memref<3xi32, #tpu.memory_space<smem>>
    %593 = vector.broadcast %591 : i32 to vector<1x64xi32>
    %594 = arith.cmpi eq, %18, %593 : vector<1x64xi32>
    %595 = arith.extui %594 : vector<1x64xi1> to vector<1x64xi32>
    %596 = arith.sitofp %595 : vector<1x64xi32> to vector<1x64xf32>
    %false = arith.constant false
    %597 = vector.broadcast %false : i1 to vector<1x1xi1>
    %c0_i32_124 = arith.constant 0 : i32
    %cst_125 = arith.constant dense<0.000000e+00> : vector<1x96xf32>
    %598 = tpu.matmul %587, %5, %cst_125 {dimension_numbers = #tpu.dot_dimension_numbers<[1], [0], [0], [1], [0, 0, 1, 1], [], []>} : vector<1x32xf32>, vector<32x96xf32>, vector<1x96xf32> -> vector<1x96xf32>
    %599 = arith.addf %598, %13 : vector<1x96xf32>
    %cst_126 = arith.constant dense<0.000000e+00> : vector<1x96xf32>
    %600 = tpu.matmul %590, %7, %cst_126 {dimension_numbers = #tpu.dot_dimension_numbers<[1], [0], [0], [1], [0, 0, 1, 1], [], []>} : vector<1x32xf32>, vector<32x96xf32>, vector<1x96xf32> -> vector<1x96xf32>
    %601 = arith.addf %600, %15 : vector<1x96xf32>
    %cst_127 = arith.constant dense<0.000000e+00> : vector<1x96xf32>
    %602 = tpu.matmul %596, %4, %cst_127 {dimension_numbers = #tpu.dot_dimension_numbers<[1], [0], [0], [1], [0, 0, 1, 1], [], []>} : vector<1x64xf32>, vector<64x96xf32>, vector<1x96xf32> -> vector<1x96xf32>
    %603 = arith.addf %602, %12 : vector<1x96xf32>
    %604 = vector.extract_strided_slice %603 {offsets = [0, 0], sizes = [1, 32], strides = [1, 1]} : vector<1x96xf32> to vector<1x32xf32>
    %605 = vector.extract_strided_slice %599 {offsets = [0, 0], sizes = [1, 32], strides = [1, 1]} : vector<1x96xf32> to vector<1x32xf32>
    %606 = arith.addf %604, %605 : vector<1x32xf32>
    %607 = arith.negf %606 : vector<1x32xf32>
    %608 = math.exp %607 : vector<1x32xf32>
    %cst_128 = arith.constant 1.000000e+00 : f32
    %609 = vector.broadcast %cst_128 : f32 to vector<1x32xf32>
    %610 = arith.addf %609, %608 : vector<1x32xf32>
    %611 = arith.divf %609, %610 : vector<1x32xf32>
    %612 = vector.extract_strided_slice %603 {offsets = [0, 32], sizes = [1, 32], strides = [1, 1]} : vector<1x96xf32> to vector<1x32xf32>
    %613 = vector.extract_strided_slice %599 {offsets = [0, 32], sizes = [1, 32], strides = [1, 1]} : vector<1x96xf32> to vector<1x32xf32>
    %614 = arith.addf %612, %613 : vector<1x32xf32>
    %615 = arith.negf %614 : vector<1x32xf32>
    %616 = math.exp %615 : vector<1x32xf32>
    %cst_129 = arith.constant 1.000000e+00 : f32
    %617 = vector.broadcast %cst_129 : f32 to vector<1x32xf32>
    %618 = arith.addf %617, %616 : vector<1x32xf32>
    %619 = arith.divf %617, %618 : vector<1x32xf32>
    %620 = vector.extract_strided_slice %603 {offsets = [0, 64], sizes = [1, 32], strides = [1, 1]} : vector<1x96xf32> to vector<1x32xf32>
    %621 = vector.extract_strided_slice %599 {offsets = [0, 64], sizes = [1, 32], strides = [1, 1]} : vector<1x96xf32> to vector<1x32xf32>
    %622 = arith.mulf %611, %621 : vector<1x32xf32>
    %623 = arith.addf %620, %622 : vector<1x32xf32>
    %624 = math.tanh %623 : vector<1x32xf32>
    %cst_130 = arith.constant 1.000000e+00 : f32
    %625 = vector.broadcast %cst_130 : f32 to vector<1x32xf32>
    %626 = arith.subf %625, %619 : vector<1x32xf32>
    %627 = arith.mulf %626, %624 : vector<1x32xf32>
    %628 = arith.mulf %619, %587 : vector<1x32xf32>
    %629 = arith.addf %627, %628 : vector<1x32xf32>
    %cst_131 = arith.constant dense<0.000000e+00> : vector<1x96xf32>
    %630 = tpu.matmul %629, %6, %cst_131 {dimension_numbers = #tpu.dot_dimension_numbers<[1], [0], [0], [1], [0, 0, 1, 1], [], []>} : vector<1x32xf32>, vector<32x96xf32>, vector<1x96xf32> -> vector<1x96xf32>
    %631 = arith.addf %630, %14 : vector<1x96xf32>
    %632 = vector.extract_strided_slice %631 {offsets = [0, 0], sizes = [1, 32], strides = [1, 1]} : vector<1x96xf32> to vector<1x32xf32>
    %633 = vector.extract_strided_slice %601 {offsets = [0, 0], sizes = [1, 32], strides = [1, 1]} : vector<1x96xf32> to vector<1x32xf32>
    %634 = arith.addf %632, %633 : vector<1x32xf32>
    %635 = arith.negf %634 : vector<1x32xf32>
    %636 = math.exp %635 : vector<1x32xf32>
    %cst_132 = arith.constant 1.000000e+00 : f32
    %637 = vector.broadcast %cst_132 : f32 to vector<1x32xf32>
    %638 = arith.addf %637, %636 : vector<1x32xf32>
    %639 = arith.divf %637, %638 : vector<1x32xf32>
    %640 = vector.extract_strided_slice %631 {offsets = [0, 32], sizes = [1, 32], strides = [1, 1]} : vector<1x96xf32> to vector<1x32xf32>
    %641 = vector.extract_strided_slice %601 {offsets = [0, 32], sizes = [1, 32], strides = [1, 1]} : vector<1x96xf32> to vector<1x32xf32>
    %642 = arith.addf %640, %641 : vector<1x32xf32>
    %643 = arith.negf %642 : vector<1x32xf32>
    %644 = math.exp %643 : vector<1x32xf32>
    %cst_133 = arith.constant 1.000000e+00 : f32
    %645 = vector.broadcast %cst_133 : f32 to vector<1x32xf32>
    %646 = arith.addf %645, %644 : vector<1x32xf32>
    %647 = arith.divf %645, %646 : vector<1x32xf32>
    %648 = vector.extract_strided_slice %631 {offsets = [0, 64], sizes = [1, 32], strides = [1, 1]} : vector<1x96xf32> to vector<1x32xf32>
    %649 = vector.extract_strided_slice %601 {offsets = [0, 64], sizes = [1, 32], strides = [1, 1]} : vector<1x96xf32> to vector<1x32xf32>
    %650 = arith.mulf %639, %649 : vector<1x32xf32>
    %651 = arith.addf %648, %650 : vector<1x32xf32>
    %652 = math.tanh %651 : vector<1x32xf32>
    %cst_134 = arith.constant 1.000000e+00 : f32
    %653 = vector.broadcast %cst_134 : f32 to vector<1x32xf32>
    %654 = arith.subf %653, %647 : vector<1x32xf32>
    %655 = arith.mulf %654, %652 : vector<1x32xf32>
    %656 = arith.mulf %647, %590 : vector<1x32xf32>
    %657 = arith.addf %655, %656 : vector<1x32xf32>
    %cst_135 = arith.constant dense<0.000000e+00> : vector<1x64xf32>
    %658 = tpu.matmul %657, %16, %cst_135 {dimension_numbers = #tpu.dot_dimension_numbers<[1], [0], [0], [1], [0, 0, 1, 1], [], []>} : vector<1x32xf32>, vector<32x64xf32>, vector<1x64xf32> -> vector<1x64xf32>
    %659 = arith.addf %658, %17 : vector<1x64xf32>
    %cst_136 = arith.constant dense<0xFF800000> : vector<1xf32>
    %660 = vector.multi_reduction <maximumf>, %659, %cst_136 [1] : vector<1x64xf32> to vector<1xf32>
    %661 = vector.shape_cast %660 : vector<1xf32> to vector<1x1xf32>
    %662 = vector.broadcast %661 : vector<1x1xf32> to vector<1x64xf32>
    %663 = arith.cmpf oeq, %659, %662 : vector<1x64xf32>
    %c64_i32 = arith.constant 64 : i32
    %664 = vector.broadcast %c64_i32 : i32 to vector<1x64xi32>
    %665 = arith.select %663, %18, %664 : vector<1x64xi1>, vector<1x64xi32>
    %cst_137 = arith.constant dense<2147483647> : vector<1xi32>
    %666 = vector.multi_reduction <minsi>, %665, %cst_137 [1] : vector<1x64xi32> to vector<1xi32>
    %667 = vector.shape_cast %666 : vector<1xi32> to vector<1x1xi32>
    %668 = vector.broadcast %667 : vector<1x1xi32> to vector<1x64xi32>
    %669 = arith.cmpi eq, %18, %668 : vector<1x64xi32>
    %670 = arith.extui %669 : vector<1x64xi1> to vector<1x64xi32>
    %671 = arith.sitofp %670 : vector<1x64xi32> to vector<1x64xf32>
    %cst_138 = arith.constant dense<true> : vector<1x1xi1>
    %672 = arith.xori %597, %cst_138 : vector<1x1xi1>
    %673 = tpu.concatenate %659, %629, %657 in 1 : vector<1x64xf32>, vector<1x32xf32>, vector<1x32xf32> -> vector<1x128xf32>
    %cst_139 = arith.constant 0.000000e+00 : f32
    %674 = vector.shape_cast %672 : vector<1x1xi1> to vector<1x1xi1>
    %675 = vector.broadcast %674 : vector<1x1xi1> to vector<1x128xi1>
    %676 = vector.broadcast %cst_139 : f32 to vector<1x128xf32>
    %677 = arith.select %675, %673, %676 : vector<1x128xi1>, vector<1x128xf32>
    %678 = arith.index_cast %c0_i32_124 : i32 to index
    %c0_140 = arith.constant 0 : index
    %679 = vector.load %arg5[%678, %c0_140] : memref<8x128xf32, #tpu.memory_space<vmem>>, vector<1x128xf32>
    tpu.vector_store %arg5[%678, %c0_140], %677 {strides = array<i32>} : memref<8x128xf32, #tpu.memory_space<vmem>>, vector<1x128xf32>,
    %680 = vector.shape_cast %672 : vector<1x1xi1> to vector<1x1xi1>
    %681 = vector.broadcast %680 : vector<1x1xi1> to vector<1x32xi1>
    %682 = arith.select %681, %629, %587 : vector<1x32xi1>, vector<1x32xf32>
    %683 = vector.shape_cast %672 : vector<1x1xi1> to vector<1x1xi1>
    %684 = vector.broadcast %683 : vector<1x1xi1> to vector<1x32xi1>
    %685 = arith.select %684, %657, %590 : vector<1x32xi1>, vector<1x32xf32>
    %686 = vector.shape_cast %672 : vector<1x1xi1> to vector<1x1xi1>
    %687 = vector.broadcast %686 : vector<1x1xi1> to vector<1x64xi1>
    %688 = arith.select %687, %671, %596 : vector<1x64xi1>, vector<1x64xf32>
    %689 = vector.broadcast %592 : i32 to vector<1x1xi32>
    %690 = arith.cmpi eq, %667, %689 : vector<1x1xi32>
    %691 = arith.andi %672, %690 : vector<1x1xi1>
    %692 = arith.ori %597, %691 : vector<1x1xi1>
    %c1_i32_141 = arith.constant 1 : i32
    %cst_142 = arith.constant dense<0.000000e+00> : vector<1x96xf32>
    %693 = tpu.matmul %682, %5, %cst_142 {dimension_numbers = #tpu.dot_dimension_numbers<[1], [0], [0], [1], [0, 0, 1, 1], [], []>} : vector<1x32xf32>, vector<32x96xf32>, vector<1x96xf32> -> vector<1x96xf32>
    %694 = arith.addf %693, %13 : vector<1x96xf32>
    %cst_143 = arith.constant dense<0.000000e+00> : vector<1x96xf32>
    %695 = tpu.matmul %685, %7, %cst_143 {dimension_numbers = #tpu.dot_dimension_numbers<[1], [0], [0], [1], [0, 0, 1, 1], [], []>} : vector<1x32xf32>, vector<32x96xf32>, vector<1x96xf32> -> vector<1x96xf32>
    %696 = arith.addf %695, %15 : vector<1x96xf32>
    %cst_144 = arith.constant dense<0.000000e+00> : vector<1x96xf32>
    %697 = tpu.matmul %688, %4, %cst_144 {dimension_numbers = #tpu.dot_dimension_numbers<[1], [0], [0], [1], [0, 0, 1, 1], [], []>} : vector<1x64xf32>, vector<64x96xf32>, vector<1x96xf32> -> vector<1x96xf32>
    %698 = arith.addf %697, %12 : vector<1x96xf32>
    %699 = vector.extract_strided_slice %698 {offsets = [0, 0], sizes = [1, 32], strides = [1, 1]} : vector<1x96xf32> to vector<1x32xf32>
    %700 = vector.extract_strided_slice %694 {offsets = [0, 0], sizes = [1, 32], strides = [1, 1]} : vector<1x96xf32> to vector<1x32xf32>
    %701 = arith.addf %699, %700 : vector<1x32xf32>
    %702 = arith.negf %701 : vector<1x32xf32>
    %703 = math.exp %702 : vector<1x32xf32>
    %cst_145 = arith.constant 1.000000e+00 : f32
    %704 = vector.broadcast %cst_145 : f32 to vector<1x32xf32>
    %705 = arith.addf %704, %703 : vector<1x32xf32>
    %706 = arith.divf %704, %705 : vector<1x32xf32>
    %707 = vector.extract_strided_slice %698 {offsets = [0, 32], sizes = [1, 32], strides = [1, 1]} : vector<1x96xf32> to vector<1x32xf32>
    %708 = vector.extract_strided_slice %694 {offsets = [0, 32], sizes = [1, 32], strides = [1, 1]} : vector<1x96xf32> to vector<1x32xf32>
    %709 = arith.addf %707, %708 : vector<1x32xf32>
    %710 = arith.negf %709 : vector<1x32xf32>
    %711 = math.exp %710 : vector<1x32xf32>
    %cst_146 = arith.constant 1.000000e+00 : f32
    %712 = vector.broadcast %cst_146 : f32 to vector<1x32xf32>
    %713 = arith.addf %712, %711 : vector<1x32xf32>
    %714 = arith.divf %712, %713 : vector<1x32xf32>
    %715 = vector.extract_strided_slice %698 {offsets = [0, 64], sizes = [1, 32], strides = [1, 1]} : vector<1x96xf32> to vector<1x32xf32>
    %716 = vector.extract_strided_slice %694 {offsets = [0, 64], sizes = [1, 32], strides = [1, 1]} : vector<1x96xf32> to vector<1x32xf32>
    %717 = arith.mulf %706, %716 : vector<1x32xf32>
    %718 = arith.addf %715, %717 : vector<1x32xf32>
    %719 = math.tanh %718 : vector<1x32xf32>
    %cst_147 = arith.constant 1.000000e+00 : f32
    %720 = vector.broadcast %cst_147 : f32 to vector<1x32xf32>
    %721 = arith.subf %720, %714 : vector<1x32xf32>
    %722 = arith.mulf %721, %719 : vector<1x32xf32>
    %723 = arith.mulf %714, %682 : vector<1x32xf32>
    %724 = arith.addf %722, %723 : vector<1x32xf32>
    %cst_148 = arith.constant dense<0.000000e+00> : vector<1x96xf32>
    %725 = tpu.matmul %724, %6, %cst_148 {dimension_numbers = #tpu.dot_dimension_numbers<[1], [0], [0], [1], [0, 0, 1, 1], [], []>} : vector<1x32xf32>, vector<32x96xf32>, vector<1x96xf32> -> vector<1x96xf32>
    %726 = arith.addf %725, %14 : vector<1x96xf32>
    %727 = vector.extract_strided_slice %726 {offsets = [0, 0], sizes = [1, 32], strides = [1, 1]} : vector<1x96xf32> to vector<1x32xf32>
    %728 = vector.extract_strided_slice %696 {offsets = [0, 0], sizes = [1, 32], strides = [1, 1]} : vector<1x96xf32> to vector<1x32xf32>
    %729 = arith.addf %727, %728 : vector<1x32xf32>
    %730 = arith.negf %729 : vector<1x32xf32>
    %731 = math.exp %730 : vector<1x32xf32>
    %cst_149 = arith.constant 1.000000e+00 : f32
    %732 = vector.broadcast %cst_149 : f32 to vector<1x32xf32>
    %733 = arith.addf %732, %731 : vector<1x32xf32>
    %734 = arith.divf %732, %733 : vector<1x32xf32>
    %735 = vector.extract_strided_slice %726 {offsets = [0, 32], sizes = [1, 32], strides = [1, 1]} : vector<1x96xf32> to vector<1x32xf32>
    %736 = vector.extract_strided_slice %696 {offsets = [0, 32], sizes = [1, 32], strides = [1, 1]} : vector<1x96xf32> to vector<1x32xf32>
    %737 = arith.addf %735, %736 : vector<1x32xf32>
    %738 = arith.negf %737 : vector<1x32xf32>
    %739 = math.exp %738 : vector<1x32xf32>
    %cst_150 = arith.constant 1.000000e+00 : f32
    %740 = vector.broadcast %cst_150 : f32 to vector<1x32xf32>
    %741 = arith.addf %740, %739 : vector<1x32xf32>
    %742 = arith.divf %740, %741 : vector<1x32xf32>
    %743 = vector.extract_strided_slice %726 {offsets = [0, 64], sizes = [1, 32], strides = [1, 1]} : vector<1x96xf32> to vector<1x32xf32>
    %744 = vector.extract_strided_slice %696 {offsets = [0, 64], sizes = [1, 32], strides = [1, 1]} : vector<1x96xf32> to vector<1x32xf32>
    %745 = arith.mulf %734, %744 : vector<1x32xf32>
    %746 = arith.addf %743, %745 : vector<1x32xf32>
    %747 = math.tanh %746 : vector<1x32xf32>
    %cst_151 = arith.constant 1.000000e+00 : f32
    %748 = vector.broadcast %cst_151 : f32 to vector<1x32xf32>
    %749 = arith.subf %748, %742 : vector<1x32xf32>
    %750 = arith.mulf %749, %747 : vector<1x32xf32>
    %751 = arith.mulf %742, %685 : vector<1x32xf32>
    %752 = arith.addf %750, %751 : vector<1x32xf32>
    %cst_152 = arith.constant dense<0.000000e+00> : vector<1x64xf32>
    %753 = tpu.matmul %752, %16, %cst_152 {dimension_numbers = #tpu.dot_dimension_numbers<[1], [0], [0], [1], [0, 0, 1, 1], [], []>} : vector<1x32xf32>, vector<32x64xf32>, vector<1x64xf32> -> vector<1x64xf32>
    %754 = arith.addf %753, %17 : vector<1x64xf32>
    %cst_153 = arith.constant dense<0xFF800000> : vector<1xf32>
    %755 = vector.multi_reduction <maximumf>, %754, %cst_153 [1] : vector<1x64xf32> to vector<1xf32>
    %756 = vector.shape_cast %755 : vector<1xf32> to vector<1x1xf32>
    %757 = vector.broadcast %756 : vector<1x1xf32> to vector<1x64xf32>
    %758 = arith.cmpf oeq, %754, %757 : vector<1x64xf32>
    %c64_i32_154 = arith.constant 64 : i32
    %759 = vector.broadcast %c64_i32_154 : i32 to vector<1x64xi32>
    %760 = arith.select %758, %18, %759 : vector<1x64xi1>, vector<1x64xi32>
    %cst_155 = arith.constant dense<2147483647> : vector<1xi32>
    %761 = vector.multi_reduction <minsi>, %760, %cst_155 [1] : vector<1x64xi32> to vector<1xi32>
    %762 = vector.shape_cast %761 : vector<1xi32> to vector<1x1xi32>
    %763 = vector.broadcast %762 : vector<1x1xi32> to vector<1x64xi32>
    %764 = arith.cmpi eq, %18, %763 : vector<1x64xi32>
    %765 = arith.extui %764 : vector<1x64xi1> to vector<1x64xi32>
    %766 = arith.sitofp %765 : vector<1x64xi32> to vector<1x64xf32>
    %cst_156 = arith.constant dense<true> : vector<1x1xi1>
    %767 = arith.xori %692, %cst_156 : vector<1x1xi1>
    %768 = tpu.concatenate %754, %724, %752 in 1 : vector<1x64xf32>, vector<1x32xf32>, vector<1x32xf32> -> vector<1x128xf32>
    %cst_157 = arith.constant 0.000000e+00 : f32
    %769 = vector.shape_cast %767 : vector<1x1xi1> to vector<1x1xi1>
    %770 = vector.broadcast %769 : vector<1x1xi1> to vector<1x128xi1>
    %771 = vector.broadcast %cst_157 : f32 to vector<1x128xf32>
    %772 = arith.select %770, %768, %771 : vector<1x128xi1>, vector<1x128xf32>
    %773 = arith.index_cast %c1_i32_141 : i32 to index
    %c0_158 = arith.constant 0 : index
    %774 = vector.load %arg5[%773, %c0_158] : memref<8x128xf32, #tpu.memory_space<vmem>>, vector<1x128xf32>
    tpu.vector_store %arg5[%773, %c0_158], %772 {strides = array<i32>} : memref<8x128xf32, #tpu.memory_space<vmem>>, vector<1x128xf32>,
    %775 = vector.shape_cast %767 : vector<1x1xi1> to vector<1x1xi1>
    %776 = vector.broadcast %775 : vector<1x1xi1> to vector<1x32xi1>
    %777 = arith.select %776, %724, %682 : vector<1x32xi1>, vector<1x32xf32>
    %778 = vector.shape_cast %767 : vector<1x1xi1> to vector<1x1xi1>
    %779 = vector.broadcast %778 : vector<1x1xi1> to vector<1x32xi1>
    %780 = arith.select %779, %752, %685 : vector<1x32xi1>, vector<1x32xf32>
    %781 = vector.shape_cast %767 : vector<1x1xi1> to vector<1x1xi1>
    %782 = vector.broadcast %781 : vector<1x1xi1> to vector<1x64xi1>
    %783 = arith.select %782, %766, %688 : vector<1x64xi1>, vector<1x64xf32>
    %784 = vector.broadcast %592 : i32 to vector<1x1xi32>
    %785 = arith.cmpi eq, %762, %784 : vector<1x1xi32>
    %786 = arith.andi %767, %785 : vector<1x1xi1>
    %787 = arith.ori %692, %786 : vector<1x1xi1>
    %c2_i32_159 = arith.constant 2 : i32
    %cst_160 = arith.constant dense<0.000000e+00> : vector<1x96xf32>
    %788 = tpu.matmul %777, %5, %cst_160 {dimension_numbers = #tpu.dot_dimension_numbers<[1], [0], [0], [1], [0, 0, 1, 1], [], []>} : vector<1x32xf32>, vector<32x96xf32>, vector<1x96xf32> -> vector<1x96xf32>
    %789 = arith.addf %788, %13 : vector<1x96xf32>
    %cst_161 = arith.constant dense<0.000000e+00> : vector<1x96xf32>
    %790 = tpu.matmul %780, %7, %cst_161 {dimension_numbers = #tpu.dot_dimension_numbers<[1], [0], [0], [1], [0, 0, 1, 1], [], []>} : vector<1x32xf32>, vector<32x96xf32>, vector<1x96xf32> -> vector<1x96xf32>
    %791 = arith.addf %790, %15 : vector<1x96xf32>
    %cst_162 = arith.constant dense<0.000000e+00> : vector<1x96xf32>
    %792 = tpu.matmul %783, %4, %cst_162 {dimension_numbers = #tpu.dot_dimension_numbers<[1], [0], [0], [1], [0, 0, 1, 1], [], []>} : vector<1x64xf32>, vector<64x96xf32>, vector<1x96xf32> -> vector<1x96xf32>
    %793 = arith.addf %792, %12 : vector<1x96xf32>
    %794 = vector.extract_strided_slice %793 {offsets = [0, 0], sizes = [1, 32], strides = [1, 1]} : vector<1x96xf32> to vector<1x32xf32>
    %795 = vector.extract_strided_slice %789 {offsets = [0, 0], sizes = [1, 32], strides = [1, 1]} : vector<1x96xf32> to vector<1x32xf32>
    %796 = arith.addf %794, %795 : vector<1x32xf32>
    %797 = arith.negf %796 : vector<1x32xf32>
    %798 = math.exp %797 : vector<1x32xf32>
    %cst_163 = arith.constant 1.000000e+00 : f32
    %799 = vector.broadcast %cst_163 : f32 to vector<1x32xf32>
    %800 = arith.addf %799, %798 : vector<1x32xf32>
    %801 = arith.divf %799, %800 : vector<1x32xf32>
    %802 = vector.extract_strided_slice %793 {offsets = [0, 32], sizes = [1, 32], strides = [1, 1]} : vector<1x96xf32> to vector<1x32xf32>
    %803 = vector.extract_strided_slice %789 {offsets = [0, 32], sizes = [1, 32], strides = [1, 1]} : vector<1x96xf32> to vector<1x32xf32>
    %804 = arith.addf %802, %803 : vector<1x32xf32>
    %805 = arith.negf %804 : vector<1x32xf32>
    %806 = math.exp %805 : vector<1x32xf32>
    %cst_164 = arith.constant 1.000000e+00 : f32
    %807 = vector.broadcast %cst_164 : f32 to vector<1x32xf32>
    %808 = arith.addf %807, %806 : vector<1x32xf32>
    %809 = arith.divf %807, %808 : vector<1x32xf32>
    %810 = vector.extract_strided_slice %793 {offsets = [0, 64], sizes = [1, 32], strides = [1, 1]} : vector<1x96xf32> to vector<1x32xf32>
    %811 = vector.extract_strided_slice %789 {offsets = [0, 64], sizes = [1, 32], strides = [1, 1]} : vector<1x96xf32> to vector<1x32xf32>
    %812 = arith.mulf %801, %811 : vector<1x32xf32>
    %813 = arith.addf %810, %812 : vector<1x32xf32>
    %814 = math.tanh %813 : vector<1x32xf32>
    %cst_165 = arith.constant 1.000000e+00 : f32
    %815 = vector.broadcast %cst_165 : f32 to vector<1x32xf32>
    %816 = arith.subf %815, %809 : vector<1x32xf32>
    %817 = arith.mulf %816, %814 : vector<1x32xf32>
    %818 = arith.mulf %809, %777 : vector<1x32xf32>
    %819 = arith.addf %817, %818 : vector<1x32xf32>
    %cst_166 = arith.constant dense<0.000000e+00> : vector<1x96xf32>
    %820 = tpu.matmul %819, %6, %cst_166 {dimension_numbers = #tpu.dot_dimension_numbers<[1], [0], [0], [1], [0, 0, 1, 1], [], []>} : vector<1x32xf32>, vector<32x96xf32>, vector<1x96xf32> -> vector<1x96xf32>
    %821 = arith.addf %820, %14 : vector<1x96xf32>
    %822 = vector.extract_strided_slice %821 {offsets = [0, 0], sizes = [1, 32], strides = [1, 1]} : vector<1x96xf32> to vector<1x32xf32>
    %823 = vector.extract_strided_slice %791 {offsets = [0, 0], sizes = [1, 32], strides = [1, 1]} : vector<1x96xf32> to vector<1x32xf32>
    %824 = arith.addf %822, %823 : vector<1x32xf32>
    %825 = arith.negf %824 : vector<1x32xf32>
    %826 = math.exp %825 : vector<1x32xf32>
    %cst_167 = arith.constant 1.000000e+00 : f32
    %827 = vector.broadcast %cst_167 : f32 to vector<1x32xf32>
    %828 = arith.addf %827, %826 : vector<1x32xf32>
    %829 = arith.divf %827, %828 : vector<1x32xf32>
    %830 = vector.extract_strided_slice %821 {offsets = [0, 32], sizes = [1, 32], strides = [1, 1]} : vector<1x96xf32> to vector<1x32xf32>
    %831 = vector.extract_strided_slice %791 {offsets = [0, 32], sizes = [1, 32], strides = [1, 1]} : vector<1x96xf32> to vector<1x32xf32>
    %832 = arith.addf %830, %831 : vector<1x32xf32>
    %833 = arith.negf %832 : vector<1x32xf32>
    %834 = math.exp %833 : vector<1x32xf32>
    %cst_168 = arith.constant 1.000000e+00 : f32
    %835 = vector.broadcast %cst_168 : f32 to vector<1x32xf32>
    %836 = arith.addf %835, %834 : vector<1x32xf32>
    %837 = arith.divf %835, %836 : vector<1x32xf32>
    %838 = vector.extract_strided_slice %821 {offsets = [0, 64], sizes = [1, 32], strides = [1, 1]} : vector<1x96xf32> to vector<1x32xf32>
    %839 = vector.extract_strided_slice %791 {offsets = [0, 64], sizes = [1, 32], strides = [1, 1]} : vector<1x96xf32> to vector<1x32xf32>
    %840 = arith.mulf %829, %839 : vector<1x32xf32>
    %841 = arith.addf %838, %840 : vector<1x32xf32>
    %842 = math.tanh %841 : vector<1x32xf32>
    %cst_169 = arith.constant 1.000000e+00 : f32
    %843 = vector.broadcast %cst_169 : f32 to vector<1x32xf32>
    %844 = arith.subf %843, %837 : vector<1x32xf32>
    %845 = arith.mulf %844, %842 : vector<1x32xf32>
    %846 = arith.mulf %837, %780 : vector<1x32xf32>
    %847 = arith.addf %845, %846 : vector<1x32xf32>
    %cst_170 = arith.constant dense<0.000000e+00> : vector<1x64xf32>
    %848 = tpu.matmul %847, %16, %cst_170 {dimension_numbers = #tpu.dot_dimension_numbers<[1], [0], [0], [1], [0, 0, 1, 1], [], []>} : vector<1x32xf32>, vector<32x64xf32>, vector<1x64xf32> -> vector<1x64xf32>
    %849 = arith.addf %848, %17 : vector<1x64xf32>
    %cst_171 = arith.constant dense<0xFF800000> : vector<1xf32>
    %850 = vector.multi_reduction <maximumf>, %849, %cst_171 [1] : vector<1x64xf32> to vector<1xf32>
    %851 = vector.shape_cast %850 : vector<1xf32> to vector<1x1xf32>
    %852 = vector.broadcast %851 : vector<1x1xf32> to vector<1x64xf32>
    %853 = arith.cmpf oeq, %849, %852 : vector<1x64xf32>
    %c64_i32_172 = arith.constant 64 : i32
    %854 = vector.broadcast %c64_i32_172 : i32 to vector<1x64xi32>
    %855 = arith.select %853, %18, %854 : vector<1x64xi1>, vector<1x64xi32>
    %cst_173 = arith.constant dense<2147483647> : vector<1xi32>
    %856 = vector.multi_reduction <minsi>, %855, %cst_173 [1] : vector<1x64xi32> to vector<1xi32>
    %857 = vector.shape_cast %856 : vector<1xi32> to vector<1x1xi32>
    %858 = vector.broadcast %857 : vector<1x1xi32> to vector<1x64xi32>
    %859 = arith.cmpi eq, %18, %858 : vector<1x64xi32>
    %860 = arith.extui %859 : vector<1x64xi1> to vector<1x64xi32>
    %861 = arith.sitofp %860 : vector<1x64xi32> to vector<1x64xf32>
    %cst_174 = arith.constant dense<true> : vector<1x1xi1>
    %862 = arith.xori %787, %cst_174 : vector<1x1xi1>
    %863 = tpu.concatenate %849, %819, %847 in 1 : vector<1x64xf32>, vector<1x32xf32>, vector<1x32xf32> -> vector<1x128xf32>
    %cst_175 = arith.constant 0.000000e+00 : f32
    %864 = vector.shape_cast %862 : vector<1x1xi1> to vector<1x1xi1>
    %865 = vector.broadcast %864 : vector<1x1xi1> to vector<1x128xi1>
    %866 = vector.broadcast %cst_175 : f32 to vector<1x128xf32>
    %867 = arith.select %865, %863, %866 : vector<1x128xi1>, vector<1x128xf32>
    %868 = arith.index_cast %c2_i32_159 : i32 to index
    %c0_176 = arith.constant 0 : index
    %869 = vector.load %arg5[%868, %c0_176] : memref<8x128xf32, #tpu.memory_space<vmem>>, vector<1x128xf32>
    tpu.vector_store %arg5[%868, %c0_176], %867 {strides = array<i32>} : memref<8x128xf32, #tpu.memory_space<vmem>>, vector<1x128xf32>,
    %870 = vector.shape_cast %862 : vector<1x1xi1> to vector<1x1xi1>
    %871 = vector.broadcast %870 : vector<1x1xi1> to vector<1x32xi1>
    %872 = arith.select %871, %819, %777 : vector<1x32xi1>, vector<1x32xf32>
    %873 = vector.shape_cast %862 : vector<1x1xi1> to vector<1x1xi1>
    %874 = vector.broadcast %873 : vector<1x1xi1> to vector<1x32xi1>
    %875 = arith.select %874, %847, %780 : vector<1x32xi1>, vector<1x32xf32>
    %876 = vector.shape_cast %862 : vector<1x1xi1> to vector<1x1xi1>
    %877 = vector.broadcast %876 : vector<1x1xi1> to vector<1x64xi1>
    %878 = arith.select %877, %861, %783 : vector<1x64xi1>, vector<1x64xf32>
    %879 = vector.broadcast %592 : i32 to vector<1x1xi32>
    %880 = arith.cmpi eq, %857, %879 : vector<1x1xi32>
    %881 = arith.andi %862, %880 : vector<1x1xi1>
    %882 = arith.ori %787, %881 : vector<1x1xi1>
    %c3_i32_177 = arith.constant 3 : i32
    %cst_178 = arith.constant dense<0.000000e+00> : vector<1x96xf32>
    %883 = tpu.matmul %872, %5, %cst_178 {dimension_numbers = #tpu.dot_dimension_numbers<[1], [0], [0], [1], [0, 0, 1, 1], [], []>} : vector<1x32xf32>, vector<32x96xf32>, vector<1x96xf32> -> vector<1x96xf32>
    %884 = arith.addf %883, %13 : vector<1x96xf32>
    %cst_179 = arith.constant dense<0.000000e+00> : vector<1x96xf32>
    %885 = tpu.matmul %875, %7, %cst_179 {dimension_numbers = #tpu.dot_dimension_numbers<[1], [0], [0], [1], [0, 0, 1, 1], [], []>} : vector<1x32xf32>, vector<32x96xf32>, vector<1x96xf32> -> vector<1x96xf32>
    %886 = arith.addf %885, %15 : vector<1x96xf32>
    %cst_180 = arith.constant dense<0.000000e+00> : vector<1x96xf32>
    %887 = tpu.matmul %878, %4, %cst_180 {dimension_numbers = #tpu.dot_dimension_numbers<[1], [0], [0], [1], [0, 0, 1, 1], [], []>} : vector<1x64xf32>, vector<64x96xf32>, vector<1x96xf32> -> vector<1x96xf32>
    %888 = arith.addf %887, %12 : vector<1x96xf32>
    %889 = vector.extract_strided_slice %888 {offsets = [0, 0], sizes = [1, 32], strides = [1, 1]} : vector<1x96xf32> to vector<1x32xf32>
    %890 = vector.extract_strided_slice %884 {offsets = [0, 0], sizes = [1, 32], strides = [1, 1]} : vector<1x96xf32> to vector<1x32xf32>
    %891 = arith.addf %889, %890 : vector<1x32xf32>
    %892 = arith.negf %891 : vector<1x32xf32>
    %893 = math.exp %892 : vector<1x32xf32>
    %cst_181 = arith.constant 1.000000e+00 : f32
    %894 = vector.broadcast %cst_181 : f32 to vector<1x32xf32>
    %895 = arith.addf %894, %893 : vector<1x32xf32>
    %896 = arith.divf %894, %895 : vector<1x32xf32>
    %897 = vector.extract_strided_slice %888 {offsets = [0, 32], sizes = [1, 32], strides = [1, 1]} : vector<1x96xf32> to vector<1x32xf32>
    %898 = vector.extract_strided_slice %884 {offsets = [0, 32], sizes = [1, 32], strides = [1, 1]} : vector<1x96xf32> to vector<1x32xf32>
    %899 = arith.addf %897, %898 : vector<1x32xf32>
    %900 = arith.negf %899 : vector<1x32xf32>
    %901 = math.exp %900 : vector<1x32xf32>
    %cst_182 = arith.constant 1.000000e+00 : f32
    %902 = vector.broadcast %cst_182 : f32 to vector<1x32xf32>
    %903 = arith.addf %902, %901 : vector<1x32xf32>
    %904 = arith.divf %902, %903 : vector<1x32xf32>
    %905 = vector.extract_strided_slice %888 {offsets = [0, 64], sizes = [1, 32], strides = [1, 1]} : vector<1x96xf32> to vector<1x32xf32>
    %906 = vector.extract_strided_slice %884 {offsets = [0, 64], sizes = [1, 32], strides = [1, 1]} : vector<1x96xf32> to vector<1x32xf32>
    %907 = arith.mulf %896, %906 : vector<1x32xf32>
    %908 = arith.addf %905, %907 : vector<1x32xf32>
    %909 = math.tanh %908 : vector<1x32xf32>
    %cst_183 = arith.constant 1.000000e+00 : f32
    %910 = vector.broadcast %cst_183 : f32 to vector<1x32xf32>
    %911 = arith.subf %910, %904 : vector<1x32xf32>
    %912 = arith.mulf %911, %909 : vector<1x32xf32>
    %913 = arith.mulf %904, %872 : vector<1x32xf32>
    %914 = arith.addf %912, %913 : vector<1x32xf32>
    %cst_184 = arith.constant dense<0.000000e+00> : vector<1x96xf32>
    %915 = tpu.matmul %914, %6, %cst_184 {dimension_numbers = #tpu.dot_dimension_numbers<[1], [0], [0], [1], [0, 0, 1, 1], [], []>} : vector<1x32xf32>, vector<32x96xf32>, vector<1x96xf32> -> vector<1x96xf32>
    %916 = arith.addf %915, %14 : vector<1x96xf32>
    %917 = vector.extract_strided_slice %916 {offsets = [0, 0], sizes = [1, 32], strides = [1, 1]} : vector<1x96xf32> to vector<1x32xf32>
    %918 = vector.extract_strided_slice %886 {offsets = [0, 0], sizes = [1, 32], strides = [1, 1]} : vector<1x96xf32> to vector<1x32xf32>
    %919 = arith.addf %917, %918 : vector<1x32xf32>
    %920 = arith.negf %919 : vector<1x32xf32>
    %921 = math.exp %920 : vector<1x32xf32>
    %cst_185 = arith.constant 1.000000e+00 : f32
    %922 = vector.broadcast %cst_185 : f32 to vector<1x32xf32>
    %923 = arith.addf %922, %921 : vector<1x32xf32>
    %924 = arith.divf %922, %923 : vector<1x32xf32>
    %925 = vector.extract_strided_slice %916 {offsets = [0, 32], sizes = [1, 32], strides = [1, 1]} : vector<1x96xf32> to vector<1x32xf32>
    %926 = vector.extract_strided_slice %886 {offsets = [0, 32], sizes = [1, 32], strides = [1, 1]} : vector<1x96xf32> to vector<1x32xf32>
    %927 = arith.addf %925, %926 : vector<1x32xf32>
    %928 = arith.negf %927 : vector<1x32xf32>
    %929 = math.exp %928 : vector<1x32xf32>
    %cst_186 = arith.constant 1.000000e+00 : f32
    %930 = vector.broadcast %cst_186 : f32 to vector<1x32xf32>
    %931 = arith.addf %930, %929 : vector<1x32xf32>
    %932 = arith.divf %930, %931 : vector<1x32xf32>
    %933 = vector.extract_strided_slice %916 {offsets = [0, 64], sizes = [1, 32], strides = [1, 1]} : vector<1x96xf32> to vector<1x32xf32>
    %934 = vector.extract_strided_slice %886 {offsets = [0, 64], sizes = [1, 32], strides = [1, 1]} : vector<1x96xf32> to vector<1x32xf32>
    %935 = arith.mulf %924, %934 : vector<1x32xf32>
    %936 = arith.addf %933, %935 : vector<1x32xf32>
    %937 = math.tanh %936 : vector<1x32xf32>
    %cst_187 = arith.constant 1.000000e+00 : f32
    %938 = vector.broadcast %cst_187 : f32 to vector<1x32xf32>
    %939 = arith.subf %938, %932 : vector<1x32xf32>
    %940 = arith.mulf %939, %937 : vector<1x32xf32>
    %941 = arith.mulf %932, %875 : vector<1x32xf32>
    %942 = arith.addf %940, %941 : vector<1x32xf32>
    %cst_188 = arith.constant dense<0.000000e+00> : vector<1x64xf32>
    %943 = tpu.matmul %942, %16, %cst_188 {dimension_numbers = #tpu.dot_dimension_numbers<[1], [0], [0], [1], [0, 0, 1, 1], [], []>} : vector<1x32xf32>, vector<32x64xf32>, vector<1x64xf32> -> vector<1x64xf32>
    %944 = arith.addf %943, %17 : vector<1x64xf32>
    %cst_189 = arith.constant dense<0xFF800000> : vector<1xf32>
    %945 = vector.multi_reduction <maximumf>, %944, %cst_189 [1] : vector<1x64xf32> to vector<1xf32>
    %946 = vector.shape_cast %945 : vector<1xf32> to vector<1x1xf32>
    %947 = vector.broadcast %946 : vector<1x1xf32> to vector<1x64xf32>
    %948 = arith.cmpf oeq, %944, %947 : vector<1x64xf32>
    %c64_i32_190 = arith.constant 64 : i32
    %949 = vector.broadcast %c64_i32_190 : i32 to vector<1x64xi32>
    %950 = arith.select %948, %18, %949 : vector<1x64xi1>, vector<1x64xi32>
    %cst_191 = arith.constant dense<2147483647> : vector<1xi32>
    %951 = vector.multi_reduction <minsi>, %950, %cst_191 [1] : vector<1x64xi32> to vector<1xi32>
    %952 = vector.shape_cast %951 : vector<1xi32> to vector<1x1xi32>
    %953 = vector.broadcast %952 : vector<1x1xi32> to vector<1x64xi32>
    %954 = arith.cmpi eq, %18, %953 : vector<1x64xi32>
    %955 = arith.extui %954 : vector<1x64xi1> to vector<1x64xi32>
    %956 = arith.sitofp %955 : vector<1x64xi32> to vector<1x64xf32>
    %cst_192 = arith.constant dense<true> : vector<1x1xi1>
    %957 = arith.xori %882, %cst_192 : vector<1x1xi1>
    %958 = tpu.concatenate %944, %914, %942 in 1 : vector<1x64xf32>, vector<1x32xf32>, vector<1x32xf32> -> vector<1x128xf32>
    %cst_193 = arith.constant 0.000000e+00 : f32
    %959 = vector.shape_cast %957 : vector<1x1xi1> to vector<1x1xi1>
    %960 = vector.broadcast %959 : vector<1x1xi1> to vector<1x128xi1>
    %961 = vector.broadcast %cst_193 : f32 to vector<1x128xf32>
    %962 = arith.select %960, %958, %961 : vector<1x128xi1>, vector<1x128xf32>
    %963 = arith.index_cast %c3_i32_177 : i32 to index
    %c0_194 = arith.constant 0 : index
    %964 = vector.load %arg5[%963, %c0_194] : memref<8x128xf32, #tpu.memory_space<vmem>>, vector<1x128xf32>
    tpu.vector_store %arg5[%963, %c0_194], %962 {strides = array<i32>} : memref<8x128xf32, #tpu.memory_space<vmem>>, vector<1x128xf32>,
    %965 = vector.shape_cast %957 : vector<1x1xi1> to vector<1x1xi1>
    %966 = vector.broadcast %965 : vector<1x1xi1> to vector<1x32xi1>
    %967 = arith.select %966, %914, %872 : vector<1x32xi1>, vector<1x32xf32>
    %968 = vector.shape_cast %957 : vector<1x1xi1> to vector<1x1xi1>
    %969 = vector.broadcast %968 : vector<1x1xi1> to vector<1x32xi1>
    %970 = arith.select %969, %942, %875 : vector<1x32xi1>, vector<1x32xf32>
    %971 = vector.shape_cast %957 : vector<1x1xi1> to vector<1x1xi1>
    %972 = vector.broadcast %971 : vector<1x1xi1> to vector<1x64xi1>
    %973 = arith.select %972, %956, %878 : vector<1x64xi1>, vector<1x64xf32>
    %974 = vector.broadcast %592 : i32 to vector<1x1xi32>
    %975 = arith.cmpi eq, %952, %974 : vector<1x1xi32>
    %976 = arith.andi %957, %975 : vector<1x1xi1>
    %977 = arith.ori %882, %976 : vector<1x1xi1>
    %c4_i32_195 = arith.constant 4 : i32
    %cst_196 = arith.constant dense<0.000000e+00> : vector<1x96xf32>
    %978 = tpu.matmul %967, %5, %cst_196 {dimension_numbers = #tpu.dot_dimension_numbers<[1], [0], [0], [1], [0, 0, 1, 1], [], []>} : vector<1x32xf32>, vector<32x96xf32>, vector<1x96xf32> -> vector<1x96xf32>
    %979 = arith.addf %978, %13 : vector<1x96xf32>
    %cst_197 = arith.constant dense<0.000000e+00> : vector<1x96xf32>
    %980 = tpu.matmul %970, %7, %cst_197 {dimension_numbers = #tpu.dot_dimension_numbers<[1], [0], [0], [1], [0, 0, 1, 1], [], []>} : vector<1x32xf32>, vector<32x96xf32>, vector<1x96xf32> -> vector<1x96xf32>
    %981 = arith.addf %980, %15 : vector<1x96xf32>
    %cst_198 = arith.constant dense<0.000000e+00> : vector<1x96xf32>
    %982 = tpu.matmul %973, %4, %cst_198 {dimension_numbers = #tpu.dot_dimension_numbers<[1], [0], [0], [1], [0, 0, 1, 1], [], []>} : vector<1x64xf32>, vector<64x96xf32>, vector<1x96xf32> -> vector<1x96xf32>
    %983 = arith.addf %982, %12 : vector<1x96xf32>
    %984 = vector.extract_strided_slice %983 {offsets = [0, 0], sizes = [1, 32], strides = [1, 1]} : vector<1x96xf32> to vector<1x32xf32>
    %985 = vector.extract_strided_slice %979 {offsets = [0, 0], sizes = [1, 32], strides = [1, 1]} : vector<1x96xf32> to vector<1x32xf32>
    %986 = arith.addf %984, %985 : vector<1x32xf32>
    %987 = arith.negf %986 : vector<1x32xf32>
    %988 = math.exp %987 : vector<1x32xf32>
    %cst_199 = arith.constant 1.000000e+00 : f32
    %989 = vector.broadcast %cst_199 : f32 to vector<1x32xf32>
    %990 = arith.addf %989, %988 : vector<1x32xf32>
    %991 = arith.divf %989, %990 : vector<1x32xf32>
    %992 = vector.extract_strided_slice %983 {offsets = [0, 32], sizes = [1, 32], strides = [1, 1]} : vector<1x96xf32> to vector<1x32xf32>
    %993 = vector.extract_strided_slice %979 {offsets = [0, 32], sizes = [1, 32], strides = [1, 1]} : vector<1x96xf32> to vector<1x32xf32>
    %994 = arith.addf %992, %993 : vector<1x32xf32>
    %995 = arith.negf %994 : vector<1x32xf32>
    %996 = math.exp %995 : vector<1x32xf32>
    %cst_200 = arith.constant 1.000000e+00 : f32
    %997 = vector.broadcast %cst_200 : f32 to vector<1x32xf32>
    %998 = arith.addf %997, %996 : vector<1x32xf32>
    %999 = arith.divf %997, %998 : vector<1x32xf32>
    %1000 = vector.extract_strided_slice %983 {offsets = [0, 64], sizes = [1, 32], strides = [1, 1]} : vector<1x96xf32> to vector<1x32xf32>
    %1001 = vector.extract_strided_slice %979 {offsets = [0, 64], sizes = [1, 32], strides = [1, 1]} : vector<1x96xf32> to vector<1x32xf32>
    %1002 = arith.mulf %991, %1001 : vector<1x32xf32>
    %1003 = arith.addf %1000, %1002 : vector<1x32xf32>
    %1004 = math.tanh %1003 : vector<1x32xf32>
    %cst_201 = arith.constant 1.000000e+00 : f32
    %1005 = vector.broadcast %cst_201 : f32 to vector<1x32xf32>
    %1006 = arith.subf %1005, %999 : vector<1x32xf32>
    %1007 = arith.mulf %1006, %1004 : vector<1x32xf32>
    %1008 = arith.mulf %999, %967 : vector<1x32xf32>
    %1009 = arith.addf %1007, %1008 : vector<1x32xf32>
    %cst_202 = arith.constant dense<0.000000e+00> : vector<1x96xf32>
    %1010 = tpu.matmul %1009, %6, %cst_202 {dimension_numbers = #tpu.dot_dimension_numbers<[1], [0], [0], [1], [0, 0, 1, 1], [], []>} : vector<1x32xf32>, vector<32x96xf32>, vector<1x96xf32> -> vector<1x96xf32>
    %1011 = arith.addf %1010, %14 : vector<1x96xf32>
    %1012 = vector.extract_strided_slice %1011 {offsets = [0, 0], sizes = [1, 32], strides = [1, 1]} : vector<1x96xf32> to vector<1x32xf32>
    %1013 = vector.extract_strided_slice %981 {offsets = [0, 0], sizes = [1, 32], strides = [1, 1]} : vector<1x96xf32> to vector<1x32xf32>
    %1014 = arith.addf %1012, %1013 : vector<1x32xf32>
    %1015 = arith.negf %1014 : vector<1x32xf32>
    %1016 = math.exp %1015 : vector<1x32xf32>
    %cst_203 = arith.constant 1.000000e+00 : f32
    %1017 = vector.broadcast %cst_203 : f32 to vector<1x32xf32>
    %1018 = arith.addf %1017, %1016 : vector<1x32xf32>
    %1019 = arith.divf %1017, %1018 : vector<1x32xf32>
    %1020 = vector.extract_strided_slice %1011 {offsets = [0, 32], sizes = [1, 32], strides = [1, 1]} : vector<1x96xf32> to vector<1x32xf32>
    %1021 = vector.extract_strided_slice %981 {offsets = [0, 32], sizes = [1, 32], strides = [1, 1]} : vector<1x96xf32> to vector<1x32xf32>
    %1022 = arith.addf %1020, %1021 : vector<1x32xf32>
    %1023 = arith.negf %1022 : vector<1x32xf32>
    %1024 = math.exp %1023 : vector<1x32xf32>
    %cst_204 = arith.constant 1.000000e+00 : f32
    %1025 = vector.broadcast %cst_204 : f32 to vector<1x32xf32>
    %1026 = arith.addf %1025, %1024 : vector<1x32xf32>
    %1027 = arith.divf %1025, %1026 : vector<1x32xf32>
    %1028 = vector.extract_strided_slice %1011 {offsets = [0, 64], sizes = [1, 32], strides = [1, 1]} : vector<1x96xf32> to vector<1x32xf32>
    %1029 = vector.extract_strided_slice %981 {offsets = [0, 64], sizes = [1, 32], strides = [1, 1]} : vector<1x96xf32> to vector<1x32xf32>
    %1030 = arith.mulf %1019, %1029 : vector<1x32xf32>
    %1031 = arith.addf %1028, %1030 : vector<1x32xf32>
    %1032 = math.tanh %1031 : vector<1x32xf32>
    %cst_205 = arith.constant 1.000000e+00 : f32
    %1033 = vector.broadcast %cst_205 : f32 to vector<1x32xf32>
    %1034 = arith.subf %1033, %1027 : vector<1x32xf32>
    %1035 = arith.mulf %1034, %1032 : vector<1x32xf32>
    %1036 = arith.mulf %1027, %970 : vector<1x32xf32>
    %1037 = arith.addf %1035, %1036 : vector<1x32xf32>
    %cst_206 = arith.constant dense<0.000000e+00> : vector<1x64xf32>
    %1038 = tpu.matmul %1037, %16, %cst_206 {dimension_numbers = #tpu.dot_dimension_numbers<[1], [0], [0], [1], [0, 0, 1, 1], [], []>} : vector<1x32xf32>, vector<32x64xf32>, vector<1x64xf32> -> vector<1x64xf32>
    %1039 = arith.addf %1038, %17 : vector<1x64xf32>
    %cst_207 = arith.constant dense<0xFF800000> : vector<1xf32>
    %1040 = vector.multi_reduction <maximumf>, %1039, %cst_207 [1] : vector<1x64xf32> to vector<1xf32>
    %1041 = vector.shape_cast %1040 : vector<1xf32> to vector<1x1xf32>
    %1042 = vector.broadcast %1041 : vector<1x1xf32> to vector<1x64xf32>
    %1043 = arith.cmpf oeq, %1039, %1042 : vector<1x64xf32>
    %c64_i32_208 = arith.constant 64 : i32
    %1044 = vector.broadcast %c64_i32_208 : i32 to vector<1x64xi32>
    %1045 = arith.select %1043, %18, %1044 : vector<1x64xi1>, vector<1x64xi32>
    %cst_209 = arith.constant dense<2147483647> : vector<1xi32>
    %1046 = vector.multi_reduction <minsi>, %1045, %cst_209 [1] : vector<1x64xi32> to vector<1xi32>
    %1047 = vector.shape_cast %1046 : vector<1xi32> to vector<1x1xi32>
    %1048 = vector.broadcast %1047 : vector<1x1xi32> to vector<1x64xi32>
    %1049 = arith.cmpi eq, %18, %1048 : vector<1x64xi32>
    %1050 = arith.extui %1049 : vector<1x64xi1> to vector<1x64xi32>
    %1051 = arith.sitofp %1050 : vector<1x64xi32> to vector<1x64xf32>
    %cst_210 = arith.constant dense<true> : vector<1x1xi1>
    %1052 = arith.xori %977, %cst_210 : vector<1x1xi1>
    %1053 = tpu.concatenate %1039, %1009, %1037 in 1 : vector<1x64xf32>, vector<1x32xf32>, vector<1x32xf32> -> vector<1x128xf32>
    %cst_211 = arith.constant 0.000000e+00 : f32
    %1054 = vector.shape_cast %1052 : vector<1x1xi1> to vector<1x1xi1>
    %1055 = vector.broadcast %1054 : vector<1x1xi1> to vector<1x128xi1>
    %1056 = vector.broadcast %cst_211 : f32 to vector<1x128xf32>
    %1057 = arith.select %1055, %1053, %1056 : vector<1x128xi1>, vector<1x128xf32>
    %1058 = arith.index_cast %c4_i32_195 : i32 to index
    %c0_212 = arith.constant 0 : index
    %1059 = vector.load %arg5[%1058, %c0_212] : memref<8x128xf32, #tpu.memory_space<vmem>>, vector<1x128xf32>
    tpu.vector_store %arg5[%1058, %c0_212], %1057 {strides = array<i32>} : memref<8x128xf32, #tpu.memory_space<vmem>>, vector<1x128xf32>,
    %1060 = vector.shape_cast %1052 : vector<1x1xi1> to vector<1x1xi1>
    %1061 = vector.broadcast %1060 : vector<1x1xi1> to vector<1x32xi1>
    %1062 = arith.select %1061, %1009, %967 : vector<1x32xi1>, vector<1x32xf32>
    %1063 = vector.shape_cast %1052 : vector<1x1xi1> to vector<1x1xi1>
    %1064 = vector.broadcast %1063 : vector<1x1xi1> to vector<1x32xi1>
    %1065 = arith.select %1064, %1037, %970 : vector<1x32xi1>, vector<1x32xf32>
    %1066 = vector.shape_cast %1052 : vector<1x1xi1> to vector<1x1xi1>
    %1067 = vector.broadcast %1066 : vector<1x1xi1> to vector<1x64xi1>
    %1068 = arith.select %1067, %1051, %973 : vector<1x64xi1>, vector<1x64xf32>
    %1069 = vector.broadcast %592 : i32 to vector<1x1xi32>
    %1070 = arith.cmpi eq, %1047, %1069 : vector<1x1xi32>
    %1071 = arith.andi %1052, %1070 : vector<1x1xi1>
    %1072 = arith.ori %977, %1071 : vector<1x1xi1>
    %c5_i32_213 = arith.constant 5 : i32
    %cst_214 = arith.constant dense<0.000000e+00> : vector<1x96xf32>
    %1073 = tpu.matmul %1062, %5, %cst_214 {dimension_numbers = #tpu.dot_dimension_numbers<[1], [0], [0], [1], [0, 0, 1, 1], [], []>} : vector<1x32xf32>, vector<32x96xf32>, vector<1x96xf32> -> vector<1x96xf32>
    %1074 = arith.addf %1073, %13 : vector<1x96xf32>
    %cst_215 = arith.constant dense<0.000000e+00> : vector<1x96xf32>
    %1075 = tpu.matmul %1065, %7, %cst_215 {dimension_numbers = #tpu.dot_dimension_numbers<[1], [0], [0], [1], [0, 0, 1, 1], [], []>} : vector<1x32xf32>, vector<32x96xf32>, vector<1x96xf32> -> vector<1x96xf32>
    %1076 = arith.addf %1075, %15 : vector<1x96xf32>
    %cst_216 = arith.constant dense<0.000000e+00> : vector<1x96xf32>
    %1077 = tpu.matmul %1068, %4, %cst_216 {dimension_numbers = #tpu.dot_dimension_numbers<[1], [0], [0], [1], [0, 0, 1, 1], [], []>} : vector<1x64xf32>, vector<64x96xf32>, vector<1x96xf32> -> vector<1x96xf32>
    %1078 = arith.addf %1077, %12 : vector<1x96xf32>
    %1079 = vector.extract_strided_slice %1078 {offsets = [0, 0], sizes = [1, 32], strides = [1, 1]} : vector<1x96xf32> to vector<1x32xf32>
    %1080 = vector.extract_strided_slice %1074 {offsets = [0, 0], sizes = [1, 32], strides = [1, 1]} : vector<1x96xf32> to vector<1x32xf32>
    %1081 = arith.addf %1079, %1080 : vector<1x32xf32>
    %1082 = arith.negf %1081 : vector<1x32xf32>
    %1083 = math.exp %1082 : vector<1x32xf32>
    %cst_217 = arith.constant 1.000000e+00 : f32
    %1084 = vector.broadcast %cst_217 : f32 to vector<1x32xf32>
    %1085 = arith.addf %1084, %1083 : vector<1x32xf32>
    %1086 = arith.divf %1084, %1085 : vector<1x32xf32>
    %1087 = vector.extract_strided_slice %1078 {offsets = [0, 32], sizes = [1, 32], strides = [1, 1]} : vector<1x96xf32> to vector<1x32xf32>
    %1088 = vector.extract_strided_slice %1074 {offsets = [0, 32], sizes = [1, 32], strides = [1, 1]} : vector<1x96xf32> to vector<1x32xf32>
    %1089 = arith.addf %1087, %1088 : vector<1x32xf32>
    %1090 = arith.negf %1089 : vector<1x32xf32>
    %1091 = math.exp %1090 : vector<1x32xf32>
    %cst_218 = arith.constant 1.000000e+00 : f32
    %1092 = vector.broadcast %cst_218 : f32 to vector<1x32xf32>
    %1093 = arith.addf %1092, %1091 : vector<1x32xf32>
    %1094 = arith.divf %1092, %1093 : vector<1x32xf32>
    %1095 = vector.extract_strided_slice %1078 {offsets = [0, 64], sizes = [1, 32], strides = [1, 1]} : vector<1x96xf32> to vector<1x32xf32>
    %1096 = vector.extract_strided_slice %1074 {offsets = [0, 64], sizes = [1, 32], strides = [1, 1]} : vector<1x96xf32> to vector<1x32xf32>
    %1097 = arith.mulf %1086, %1096 : vector<1x32xf32>
    %1098 = arith.addf %1095, %1097 : vector<1x32xf32>
    %1099 = math.tanh %1098 : vector<1x32xf32>
    %cst_219 = arith.constant 1.000000e+00 : f32
    %1100 = vector.broadcast %cst_219 : f32 to vector<1x32xf32>
    %1101 = arith.subf %1100, %1094 : vector<1x32xf32>
    %1102 = arith.mulf %1101, %1099 : vector<1x32xf32>
    %1103 = arith.mulf %1094, %1062 : vector<1x32xf32>
    %1104 = arith.addf %1102, %1103 : vector<1x32xf32>
    %cst_220 = arith.constant dense<0.000000e+00> : vector<1x96xf32>
    %1105 = tpu.matmul %1104, %6, %cst_220 {dimension_numbers = #tpu.dot_dimension_numbers<[1], [0], [0], [1], [0, 0, 1, 1], [], []>} : vector<1x32xf32>, vector<32x96xf32>, vector<1x96xf32> -> vector<1x96xf32>
    %1106 = arith.addf %1105, %14 : vector<1x96xf32>
    %1107 = vector.extract_strided_slice %1106 {offsets = [0, 0], sizes = [1, 32], strides = [1, 1]} : vector<1x96xf32> to vector<1x32xf32>
    %1108 = vector.extract_strided_slice %1076 {offsets = [0, 0], sizes = [1, 32], strides = [1, 1]} : vector<1x96xf32> to vector<1x32xf32>
    %1109 = arith.addf %1107, %1108 : vector<1x32xf32>
    %1110 = arith.negf %1109 : vector<1x32xf32>
    %1111 = math.exp %1110 : vector<1x32xf32>
    %cst_221 = arith.constant 1.000000e+00 : f32
    %1112 = vector.broadcast %cst_221 : f32 to vector<1x32xf32>
    %1113 = arith.addf %1112, %1111 : vector<1x32xf32>
    %1114 = arith.divf %1112, %1113 : vector<1x32xf32>
    %1115 = vector.extract_strided_slice %1106 {offsets = [0, 32], sizes = [1, 32], strides = [1, 1]} : vector<1x96xf32> to vector<1x32xf32>
    %1116 = vector.extract_strided_slice %1076 {offsets = [0, 32], sizes = [1, 32], strides = [1, 1]} : vector<1x96xf32> to vector<1x32xf32>
    %1117 = arith.addf %1115, %1116 : vector<1x32xf32>
    %1118 = arith.negf %1117 : vector<1x32xf32>
    %1119 = math.exp %1118 : vector<1x32xf32>
    %cst_222 = arith.constant 1.000000e+00 : f32
    %1120 = vector.broadcast %cst_222 : f32 to vector<1x32xf32>
    %1121 = arith.addf %1120, %1119 : vector<1x32xf32>
    %1122 = arith.divf %1120, %1121 : vector<1x32xf32>
    %1123 = vector.extract_strided_slice %1106 {offsets = [0, 64], sizes = [1, 32], strides = [1, 1]} : vector<1x96xf32> to vector<1x32xf32>
    %1124 = vector.extract_strided_slice %1076 {offsets = [0, 64], sizes = [1, 32], strides = [1, 1]} : vector<1x96xf32> to vector<1x32xf32>
    %1125 = arith.mulf %1114, %1124 : vector<1x32xf32>
    %1126 = arith.addf %1123, %1125 : vector<1x32xf32>
    %1127 = math.tanh %1126 : vector<1x32xf32>
    %cst_223 = arith.constant 1.000000e+00 : f32
    %1128 = vector.broadcast %cst_223 : f32 to vector<1x32xf32>
    %1129 = arith.subf %1128, %1122 : vector<1x32xf32>
    %1130 = arith.mulf %1129, %1127 : vector<1x32xf32>
    %1131 = arith.mulf %1122, %1065 : vector<1x32xf32>
    %1132 = arith.addf %1130, %1131 : vector<1x32xf32>
    %cst_224 = arith.constant dense<0.000000e+00> : vector<1x64xf32>
    %1133 = tpu.matmul %1132, %16, %cst_224 {dimension_numbers = #tpu.dot_dimension_numbers<[1], [0], [0], [1], [0, 0, 1, 1], [], []>} : vector<1x32xf32>, vector<32x64xf32>, vector<1x64xf32> -> vector<1x64xf32>
    %1134 = arith.addf %1133, %17 : vector<1x64xf32>
    %cst_225 = arith.constant dense<0xFF800000> : vector<1xf32>
    %1135 = vector.multi_reduction <maximumf>, %1134, %cst_225 [1] : vector<1x64xf32> to vector<1xf32>
    %1136 = vector.shape_cast %1135 : vector<1xf32> to vector<1x1xf32>
    %1137 = vector.broadcast %1136 : vector<1x1xf32> to vector<1x64xf32>
    %1138 = arith.cmpf oeq, %1134, %1137 : vector<1x64xf32>
    %c64_i32_226 = arith.constant 64 : i32
    %1139 = vector.broadcast %c64_i32_226 : i32 to vector<1x64xi32>
    %1140 = arith.select %1138, %18, %1139 : vector<1x64xi1>, vector<1x64xi32>
    %cst_227 = arith.constant dense<2147483647> : vector<1xi32>
    %1141 = vector.multi_reduction <minsi>, %1140, %cst_227 [1] : vector<1x64xi32> to vector<1xi32>
    %1142 = vector.shape_cast %1141 : vector<1xi32> to vector<1x1xi32>
    %1143 = vector.broadcast %1142 : vector<1x1xi32> to vector<1x64xi32>
    %1144 = arith.cmpi eq, %18, %1143 : vector<1x64xi32>
    %1145 = arith.extui %1144 : vector<1x64xi1> to vector<1x64xi32>
    %1146 = arith.sitofp %1145 : vector<1x64xi32> to vector<1x64xf32>
    %cst_228 = arith.constant dense<true> : vector<1x1xi1>
    %1147 = arith.xori %1072, %cst_228 : vector<1x1xi1>
    %1148 = tpu.concatenate %1134, %1104, %1132 in 1 : vector<1x64xf32>, vector<1x32xf32>, vector<1x32xf32> -> vector<1x128xf32>
    %cst_229 = arith.constant 0.000000e+00 : f32
    %1149 = vector.shape_cast %1147 : vector<1x1xi1> to vector<1x1xi1>
    %1150 = vector.broadcast %1149 : vector<1x1xi1> to vector<1x128xi1>
    %1151 = vector.broadcast %cst_229 : f32 to vector<1x128xf32>
    %1152 = arith.select %1150, %1148, %1151 : vector<1x128xi1>, vector<1x128xf32>
    %1153 = arith.index_cast %c5_i32_213 : i32 to index
    %c0_230 = arith.constant 0 : index
    %1154 = vector.load %arg5[%1153, %c0_230] : memref<8x128xf32, #tpu.memory_space<vmem>>, vector<1x128xf32>
    tpu.vector_store %arg5[%1153, %c0_230], %1152 {strides = array<i32>} : memref<8x128xf32, #tpu.memory_space<vmem>>, vector<1x128xf32>,
    %1155 = vector.shape_cast %1147 : vector<1x1xi1> to vector<1x1xi1>
    %1156 = vector.broadcast %1155 : vector<1x1xi1> to vector<1x32xi1>
    %1157 = arith.select %1156, %1104, %1062 : vector<1x32xi1>, vector<1x32xf32>
    %1158 = vector.shape_cast %1147 : vector<1x1xi1> to vector<1x1xi1>
    %1159 = vector.broadcast %1158 : vector<1x1xi1> to vector<1x32xi1>
    %1160 = arith.select %1159, %1132, %1065 : vector<1x32xi1>, vector<1x32xf32>
    %1161 = vector.shape_cast %1147 : vector<1x1xi1> to vector<1x1xi1>
    %1162 = vector.broadcast %1161 : vector<1x1xi1> to vector<1x64xi1>
    %1163 = arith.select %1162, %1146, %1068 : vector<1x64xi1>, vector<1x64xf32>
    %1164 = vector.broadcast %592 : i32 to vector<1x1xi32>
    %1165 = arith.cmpi eq, %1142, %1164 : vector<1x1xi32>
    %1166 = arith.andi %1147, %1165 : vector<1x1xi1>
    %1167 = arith.ori %1072, %1166 : vector<1x1xi1>
    %c6_i32_231 = arith.constant 6 : i32
    %cst_232 = arith.constant dense<0.000000e+00> : vector<1x96xf32>
    %1168 = tpu.matmul %1157, %5, %cst_232 {dimension_numbers = #tpu.dot_dimension_numbers<[1], [0], [0], [1], [0, 0, 1, 1], [], []>} : vector<1x32xf32>, vector<32x96xf32>, vector<1x96xf32> -> vector<1x96xf32>
    %1169 = arith.addf %1168, %13 : vector<1x96xf32>
    %cst_233 = arith.constant dense<0.000000e+00> : vector<1x96xf32>
    %1170 = tpu.matmul %1160, %7, %cst_233 {dimension_numbers = #tpu.dot_dimension_numbers<[1], [0], [0], [1], [0, 0, 1, 1], [], []>} : vector<1x32xf32>, vector<32x96xf32>, vector<1x96xf32> -> vector<1x96xf32>
    %1171 = arith.addf %1170, %15 : vector<1x96xf32>
    %cst_234 = arith.constant dense<0.000000e+00> : vector<1x96xf32>
    %1172 = tpu.matmul %1163, %4, %cst_234 {dimension_numbers = #tpu.dot_dimension_numbers<[1], [0], [0], [1], [0, 0, 1, 1], [], []>} : vector<1x64xf32>, vector<64x96xf32>, vector<1x96xf32> -> vector<1x96xf32>
    %1173 = arith.addf %1172, %12 : vector<1x96xf32>
    %1174 = vector.extract_strided_slice %1173 {offsets = [0, 0], sizes = [1, 32], strides = [1, 1]} : vector<1x96xf32> to vector<1x32xf32>
    %1175 = vector.extract_strided_slice %1169 {offsets = [0, 0], sizes = [1, 32], strides = [1, 1]} : vector<1x96xf32> to vector<1x32xf32>
    %1176 = arith.addf %1174, %1175 : vector<1x32xf32>
    %1177 = arith.negf %1176 : vector<1x32xf32>
    %1178 = math.exp %1177 : vector<1x32xf32>
    %cst_235 = arith.constant 1.000000e+00 : f32
    %1179 = vector.broadcast %cst_235 : f32 to vector<1x32xf32>
    %1180 = arith.addf %1179, %1178 : vector<1x32xf32>
    %1181 = arith.divf %1179, %1180 : vector<1x32xf32>
    %1182 = vector.extract_strided_slice %1173 {offsets = [0, 32], sizes = [1, 32], strides = [1, 1]} : vector<1x96xf32> to vector<1x32xf32>
    %1183 = vector.extract_strided_slice %1169 {offsets = [0, 32], sizes = [1, 32], strides = [1, 1]} : vector<1x96xf32> to vector<1x32xf32>
    %1184 = arith.addf %1182, %1183 : vector<1x32xf32>
    %1185 = arith.negf %1184 : vector<1x32xf32>
    %1186 = math.exp %1185 : vector<1x32xf32>
    %cst_236 = arith.constant 1.000000e+00 : f32
    %1187 = vector.broadcast %cst_236 : f32 to vector<1x32xf32>
    %1188 = arith.addf %1187, %1186 : vector<1x32xf32>
    %1189 = arith.divf %1187, %1188 : vector<1x32xf32>
    %1190 = vector.extract_strided_slice %1173 {offsets = [0, 64], sizes = [1, 32], strides = [1, 1]} : vector<1x96xf32> to vector<1x32xf32>
    %1191 = vector.extract_strided_slice %1169 {offsets = [0, 64], sizes = [1, 32], strides = [1, 1]} : vector<1x96xf32> to vector<1x32xf32>
    %1192 = arith.mulf %1181, %1191 : vector<1x32xf32>
    %1193 = arith.addf %1190, %1192 : vector<1x32xf32>
    %1194 = math.tanh %1193 : vector<1x32xf32>
    %cst_237 = arith.constant 1.000000e+00 : f32
    %1195 = vector.broadcast %cst_237 : f32 to vector<1x32xf32>
    %1196 = arith.subf %1195, %1189 : vector<1x32xf32>
    %1197 = arith.mulf %1196, %1194 : vector<1x32xf32>
    %1198 = arith.mulf %1189, %1157 : vector<1x32xf32>
    %1199 = arith.addf %1197, %1198 : vector<1x32xf32>
    %cst_238 = arith.constant dense<0.000000e+00> : vector<1x96xf32>
    %1200 = tpu.matmul %1199, %6, %cst_238 {dimension_numbers = #tpu.dot_dimension_numbers<[1], [0], [0], [1], [0, 0, 1, 1], [], []>} : vector<1x32xf32>, vector<32x96xf32>, vector<1x96xf32> -> vector<1x96xf32>
    %1201 = arith.addf %1200, %14 : vector<1x96xf32>
    %1202 = vector.extract_strided_slice %1201 {offsets = [0, 0], sizes = [1, 32], strides = [1, 1]} : vector<1x96xf32> to vector<1x32xf32>
    %1203 = vector.extract_strided_slice %1171 {offsets = [0, 0], sizes = [1, 32], strides = [1, 1]} : vector<1x96xf32> to vector<1x32xf32>
    %1204 = arith.addf %1202, %1203 : vector<1x32xf32>
    %1205 = arith.negf %1204 : vector<1x32xf32>
    %1206 = math.exp %1205 : vector<1x32xf32>
    %cst_239 = arith.constant 1.000000e+00 : f32
    %1207 = vector.broadcast %cst_239 : f32 to vector<1x32xf32>
    %1208 = arith.addf %1207, %1206 : vector<1x32xf32>
    %1209 = arith.divf %1207, %1208 : vector<1x32xf32>
    %1210 = vector.extract_strided_slice %1201 {offsets = [0, 32], sizes = [1, 32], strides = [1, 1]} : vector<1x96xf32> to vector<1x32xf32>
    %1211 = vector.extract_strided_slice %1171 {offsets = [0, 32], sizes = [1, 32], strides = [1, 1]} : vector<1x96xf32> to vector<1x32xf32>
    %1212 = arith.addf %1210, %1211 : vector<1x32xf32>
    %1213 = arith.negf %1212 : vector<1x32xf32>
    %1214 = math.exp %1213 : vector<1x32xf32>
    %cst_240 = arith.constant 1.000000e+00 : f32
    %1215 = vector.broadcast %cst_240 : f32 to vector<1x32xf32>
    %1216 = arith.addf %1215, %1214 : vector<1x32xf32>
    %1217 = arith.divf %1215, %1216 : vector<1x32xf32>
    %1218 = vector.extract_strided_slice %1201 {offsets = [0, 64], sizes = [1, 32], strides = [1, 1]} : vector<1x96xf32> to vector<1x32xf32>
    %1219 = vector.extract_strided_slice %1171 {offsets = [0, 64], sizes = [1, 32], strides = [1, 1]} : vector<1x96xf32> to vector<1x32xf32>
    %1220 = arith.mulf %1209, %1219 : vector<1x32xf32>
    %1221 = arith.addf %1218, %1220 : vector<1x32xf32>
    %1222 = math.tanh %1221 : vector<1x32xf32>
    %cst_241 = arith.constant 1.000000e+00 : f32
    %1223 = vector.broadcast %cst_241 : f32 to vector<1x32xf32>
    %1224 = arith.subf %1223, %1217 : vector<1x32xf32>
    %1225 = arith.mulf %1224, %1222 : vector<1x32xf32>
    %1226 = arith.mulf %1217, %1160 : vector<1x32xf32>
    %1227 = arith.addf %1225, %1226 : vector<1x32xf32>
    %cst_242 = arith.constant dense<0.000000e+00> : vector<1x64xf32>
    %1228 = tpu.matmul %1227, %16, %cst_242 {dimension_numbers = #tpu.dot_dimension_numbers<[1], [0], [0], [1], [0, 0, 1, 1], [], []>} : vector<1x32xf32>, vector<32x64xf32>, vector<1x64xf32> -> vector<1x64xf32>
    %1229 = arith.addf %1228, %17 : vector<1x64xf32>
    %cst_243 = arith.constant dense<0xFF800000> : vector<1xf32>
    %1230 = vector.multi_reduction <maximumf>, %1229, %cst_243 [1] : vector<1x64xf32> to vector<1xf32>
    %1231 = vector.shape_cast %1230 : vector<1xf32> to vector<1x1xf32>
    %1232 = vector.broadcast %1231 : vector<1x1xf32> to vector<1x64xf32>
    %1233 = arith.cmpf oeq, %1229, %1232 : vector<1x64xf32>
    %c64_i32_244 = arith.constant 64 : i32
    %1234 = vector.broadcast %c64_i32_244 : i32 to vector<1x64xi32>
    %1235 = arith.select %1233, %18, %1234 : vector<1x64xi1>, vector<1x64xi32>
    %cst_245 = arith.constant dense<2147483647> : vector<1xi32>
    %1236 = vector.multi_reduction <minsi>, %1235, %cst_245 [1] : vector<1x64xi32> to vector<1xi32>
    %1237 = vector.shape_cast %1236 : vector<1xi32> to vector<1x1xi32>
    %1238 = vector.broadcast %1237 : vector<1x1xi32> to vector<1x64xi32>
    %1239 = arith.cmpi eq, %18, %1238 : vector<1x64xi32>
    %1240 = arith.extui %1239 : vector<1x64xi1> to vector<1x64xi32>
    %1241 = arith.sitofp %1240 : vector<1x64xi32> to vector<1x64xf32>
    %cst_246 = arith.constant dense<true> : vector<1x1xi1>
    %1242 = arith.xori %1167, %cst_246 : vector<1x1xi1>
    %1243 = tpu.concatenate %1229, %1199, %1227 in 1 : vector<1x64xf32>, vector<1x32xf32>, vector<1x32xf32> -> vector<1x128xf32>
    %cst_247 = arith.constant 0.000000e+00 : f32
    %1244 = vector.shape_cast %1242 : vector<1x1xi1> to vector<1x1xi1>
    %1245 = vector.broadcast %1244 : vector<1x1xi1> to vector<1x128xi1>
    %1246 = vector.broadcast %cst_247 : f32 to vector<1x128xf32>
    %1247 = arith.select %1245, %1243, %1246 : vector<1x128xi1>, vector<1x128xf32>
    %1248 = arith.index_cast %c6_i32_231 : i32 to index
    %c0_248 = arith.constant 0 : index
    %1249 = vector.load %arg5[%1248, %c0_248] : memref<8x128xf32, #tpu.memory_space<vmem>>, vector<1x128xf32>
    tpu.vector_store %arg5[%1248, %c0_248], %1247 {strides = array<i32>} : memref<8x128xf32, #tpu.memory_space<vmem>>, vector<1x128xf32>,
    %1250 = vector.shape_cast %1242 : vector<1x1xi1> to vector<1x1xi1>
    %1251 = vector.broadcast %1250 : vector<1x1xi1> to vector<1x32xi1>
    %1252 = arith.select %1251, %1199, %1157 : vector<1x32xi1>, vector<1x32xf32>
    %1253 = vector.shape_cast %1242 : vector<1x1xi1> to vector<1x1xi1>
    %1254 = vector.broadcast %1253 : vector<1x1xi1> to vector<1x32xi1>
    %1255 = arith.select %1254, %1227, %1160 : vector<1x32xi1>, vector<1x32xf32>
    %1256 = vector.shape_cast %1242 : vector<1x1xi1> to vector<1x1xi1>
    %1257 = vector.broadcast %1256 : vector<1x1xi1> to vector<1x64xi1>
    %1258 = arith.select %1257, %1241, %1163 : vector<1x64xi1>, vector<1x64xf32>
    %1259 = vector.broadcast %592 : i32 to vector<1x1xi32>
    %1260 = arith.cmpi eq, %1237, %1259 : vector<1x1xi32>
    %1261 = arith.andi %1242, %1260 : vector<1x1xi1>
    %1262 = arith.ori %1167, %1261 : vector<1x1xi1>
    %c7_i32_249 = arith.constant 7 : i32
    %cst_250 = arith.constant dense<0.000000e+00> : vector<1x96xf32>
    %1263 = tpu.matmul %1252, %5, %cst_250 {dimension_numbers = #tpu.dot_dimension_numbers<[1], [0], [0], [1], [0, 0, 1, 1], [], []>} : vector<1x32xf32>, vector<32x96xf32>, vector<1x96xf32> -> vector<1x96xf32>
    %1264 = arith.addf %1263, %13 : vector<1x96xf32>
    %cst_251 = arith.constant dense<0.000000e+00> : vector<1x96xf32>
    %1265 = tpu.matmul %1255, %7, %cst_251 {dimension_numbers = #tpu.dot_dimension_numbers<[1], [0], [0], [1], [0, 0, 1, 1], [], []>} : vector<1x32xf32>, vector<32x96xf32>, vector<1x96xf32> -> vector<1x96xf32>
    %1266 = arith.addf %1265, %15 : vector<1x96xf32>
    %cst_252 = arith.constant dense<0.000000e+00> : vector<1x96xf32>
    %1267 = tpu.matmul %1258, %4, %cst_252 {dimension_numbers = #tpu.dot_dimension_numbers<[1], [0], [0], [1], [0, 0, 1, 1], [], []>} : vector<1x64xf32>, vector<64x96xf32>, vector<1x96xf32> -> vector<1x96xf32>
    %1268 = arith.addf %1267, %12 : vector<1x96xf32>
    %1269 = vector.extract_strided_slice %1268 {offsets = [0, 0], sizes = [1, 32], strides = [1, 1]} : vector<1x96xf32> to vector<1x32xf32>
    %1270 = vector.extract_strided_slice %1264 {offsets = [0, 0], sizes = [1, 32], strides = [1, 1]} : vector<1x96xf32> to vector<1x32xf32>
    %1271 = arith.addf %1269, %1270 : vector<1x32xf32>
    %1272 = arith.negf %1271 : vector<1x32xf32>
    %1273 = math.exp %1272 : vector<1x32xf32>
    %cst_253 = arith.constant 1.000000e+00 : f32
    %1274 = vector.broadcast %cst_253 : f32 to vector<1x32xf32>
    %1275 = arith.addf %1274, %1273 : vector<1x32xf32>
    %1276 = arith.divf %1274, %1275 : vector<1x32xf32>
    %1277 = vector.extract_strided_slice %1268 {offsets = [0, 32], sizes = [1, 32], strides = [1, 1]} : vector<1x96xf32> to vector<1x32xf32>
    %1278 = vector.extract_strided_slice %1264 {offsets = [0, 32], sizes = [1, 32], strides = [1, 1]} : vector<1x96xf32> to vector<1x32xf32>
    %1279 = arith.addf %1277, %1278 : vector<1x32xf32>
    %1280 = arith.negf %1279 : vector<1x32xf32>
    %1281 = math.exp %1280 : vector<1x32xf32>
    %cst_254 = arith.constant 1.000000e+00 : f32
    %1282 = vector.broadcast %cst_254 : f32 to vector<1x32xf32>
    %1283 = arith.addf %1282, %1281 : vector<1x32xf32>
    %1284 = arith.divf %1282, %1283 : vector<1x32xf32>
    %1285 = vector.extract_strided_slice %1268 {offsets = [0, 64], sizes = [1, 32], strides = [1, 1]} : vector<1x96xf32> to vector<1x32xf32>
    %1286 = vector.extract_strided_slice %1264 {offsets = [0, 64], sizes = [1, 32], strides = [1, 1]} : vector<1x96xf32> to vector<1x32xf32>
    %1287 = arith.mulf %1276, %1286 : vector<1x32xf32>
    %1288 = arith.addf %1285, %1287 : vector<1x32xf32>
    %1289 = math.tanh %1288 : vector<1x32xf32>
    %cst_255 = arith.constant 1.000000e+00 : f32
    %1290 = vector.broadcast %cst_255 : f32 to vector<1x32xf32>
    %1291 = arith.subf %1290, %1284 : vector<1x32xf32>
    %1292 = arith.mulf %1291, %1289 : vector<1x32xf32>
    %1293 = arith.mulf %1284, %1252 : vector<1x32xf32>
    %1294 = arith.addf %1292, %1293 : vector<1x32xf32>
    %cst_256 = arith.constant dense<0.000000e+00> : vector<1x96xf32>
    %1295 = tpu.matmul %1294, %6, %cst_256 {dimension_numbers = #tpu.dot_dimension_numbers<[1], [0], [0], [1], [0, 0, 1, 1], [], []>} : vector<1x32xf32>, vector<32x96xf32>, vector<1x96xf32> -> vector<1x96xf32>
    %1296 = arith.addf %1295, %14 : vector<1x96xf32>
    %1297 = vector.extract_strided_slice %1296 {offsets = [0, 0], sizes = [1, 32], strides = [1, 1]} : vector<1x96xf32> to vector<1x32xf32>
    %1298 = vector.extract_strided_slice %1266 {offsets = [0, 0], sizes = [1, 32], strides = [1, 1]} : vector<1x96xf32> to vector<1x32xf32>
    %1299 = arith.addf %1297, %1298 : vector<1x32xf32>
    %1300 = arith.negf %1299 : vector<1x32xf32>
    %1301 = math.exp %1300 : vector<1x32xf32>
    %cst_257 = arith.constant 1.000000e+00 : f32
    %1302 = vector.broadcast %cst_257 : f32 to vector<1x32xf32>
    %1303 = arith.addf %1302, %1301 : vector<1x32xf32>
    %1304 = arith.divf %1302, %1303 : vector<1x32xf32>
    %1305 = vector.extract_strided_slice %1296 {offsets = [0, 32], sizes = [1, 32], strides = [1, 1]} : vector<1x96xf32> to vector<1x32xf32>
    %1306 = vector.extract_strided_slice %1266 {offsets = [0, 32], sizes = [1, 32], strides = [1, 1]} : vector<1x96xf32> to vector<1x32xf32>
    %1307 = arith.addf %1305, %1306 : vector<1x32xf32>
    %1308 = arith.negf %1307 : vector<1x32xf32>
    %1309 = math.exp %1308 : vector<1x32xf32>
    %cst_258 = arith.constant 1.000000e+00 : f32
    %1310 = vector.broadcast %cst_258 : f32 to vector<1x32xf32>
    %1311 = arith.addf %1310, %1309 : vector<1x32xf32>
    %1312 = arith.divf %1310, %1311 : vector<1x32xf32>
    %1313 = vector.extract_strided_slice %1296 {offsets = [0, 64], sizes = [1, 32], strides = [1, 1]} : vector<1x96xf32> to vector<1x32xf32>
    %1314 = vector.extract_strided_slice %1266 {offsets = [0, 64], sizes = [1, 32], strides = [1, 1]} : vector<1x96xf32> to vector<1x32xf32>
    %1315 = arith.mulf %1304, %1314 : vector<1x32xf32>
    %1316 = arith.addf %1313, %1315 : vector<1x32xf32>
    %1317 = math.tanh %1316 : vector<1x32xf32>
    %cst_259 = arith.constant 1.000000e+00 : f32
    %1318 = vector.broadcast %cst_259 : f32 to vector<1x32xf32>
    %1319 = arith.subf %1318, %1312 : vector<1x32xf32>
    %1320 = arith.mulf %1319, %1317 : vector<1x32xf32>
    %1321 = arith.mulf %1312, %1255 : vector<1x32xf32>
    %1322 = arith.addf %1320, %1321 : vector<1x32xf32>
    %cst_260 = arith.constant dense<0.000000e+00> : vector<1x64xf32>
    %1323 = tpu.matmul %1322, %16, %cst_260 {dimension_numbers = #tpu.dot_dimension_numbers<[1], [0], [0], [1], [0, 0, 1, 1], [], []>} : vector<1x32xf32>, vector<32x64xf32>, vector<1x64xf32> -> vector<1x64xf32>
    %1324 = arith.addf %1323, %17 : vector<1x64xf32>
    %cst_261 = arith.constant dense<0xFF800000> : vector<1xf32>
    %1325 = vector.multi_reduction <maximumf>, %1324, %cst_261 [1] : vector<1x64xf32> to vector<1xf32>
    %1326 = vector.shape_cast %1325 : vector<1xf32> to vector<1x1xf32>
    %1327 = vector.broadcast %1326 : vector<1x1xf32> to vector<1x64xf32>
    %1328 = arith.cmpf oeq, %1324, %1327 : vector<1x64xf32>
    %c64_i32_262 = arith.constant 64 : i32
    %1329 = vector.broadcast %c64_i32_262 : i32 to vector<1x64xi32>
    %1330 = arith.select %1328, %18, %1329 : vector<1x64xi1>, vector<1x64xi32>
    %cst_263 = arith.constant dense<2147483647> : vector<1xi32>
    %1331 = vector.multi_reduction <minsi>, %1330, %cst_263 [1] : vector<1x64xi32> to vector<1xi32>
    %1332 = vector.shape_cast %1331 : vector<1xi32> to vector<1x1xi32>
    %1333 = vector.broadcast %1332 : vector<1x1xi32> to vector<1x64xi32>
    %1334 = arith.cmpi eq, %18, %1333 : vector<1x64xi32>
    %1335 = arith.extui %1334 : vector<1x64xi1> to vector<1x64xi32>
    %1336 = arith.sitofp %1335 : vector<1x64xi32> to vector<1x64xf32>
    %cst_264 = arith.constant dense<true> : vector<1x1xi1>
    %1337 = arith.xori %1262, %cst_264 : vector<1x1xi1>
    %1338 = tpu.concatenate %1324, %1294, %1322 in 1 : vector<1x64xf32>, vector<1x32xf32>, vector<1x32xf32> -> vector<1x128xf32>
    %cst_265 = arith.constant 0.000000e+00 : f32
    %1339 = vector.shape_cast %1337 : vector<1x1xi1> to vector<1x1xi1>
    %1340 = vector.broadcast %1339 : vector<1x1xi1> to vector<1x128xi1>
    %1341 = vector.broadcast %cst_265 : f32 to vector<1x128xf32>
    %1342 = arith.select %1340, %1338, %1341 : vector<1x128xi1>, vector<1x128xf32>
    %1343 = arith.index_cast %c7_i32_249 : i32 to index
    %c0_266 = arith.constant 0 : index
    %1344 = vector.load %arg5[%1343, %c0_266] : memref<8x128xf32, #tpu.memory_space<vmem>>, vector<1x128xf32>
    tpu.vector_store %arg5[%1343, %c0_266], %1342 {strides = array<i32>} : memref<8x128xf32, #tpu.memory_space<vmem>>, vector<1x128xf32>,
    %1345 = vector.shape_cast %1337 : vector<1x1xi1> to vector<1x1xi1>
    %1346 = vector.broadcast %1345 : vector<1x1xi1> to vector<1x32xi1>
    %1347 = arith.select %1346, %1294, %1252 : vector<1x32xi1>, vector<1x32xf32>
    %1348 = vector.shape_cast %1337 : vector<1x1xi1> to vector<1x1xi1>
    %1349 = vector.broadcast %1348 : vector<1x1xi1> to vector<1x32xi1>
    %1350 = arith.select %1349, %1322, %1255 : vector<1x32xi1>, vector<1x32xf32>
    %1351 = vector.shape_cast %1337 : vector<1x1xi1> to vector<1x1xi1>
    %1352 = vector.broadcast %1351 : vector<1x1xi1> to vector<1x64xi1>
    %1353 = arith.select %1352, %1336, %1258 : vector<1x64xi1>, vector<1x64xf32>
    %1354 = vector.broadcast %592 : i32 to vector<1x1xi32>
    %1355 = arith.cmpi eq, %1332, %1354 : vector<1x1xi32>
    %1356 = arith.andi %1337, %1355 : vector<1x1xi1>
    %1357 = arith.ori %1262, %1356 : vector<1x1xi1>
    %c8_i32_267 = arith.constant 8 : i32
    return
  }
}

</mosaic_0001>

<llo_original>
// kernel: segment_decoder_forward.1
$region0: #{segment_decoder_forward.1}
  #allocation0 [shape = 'u32[]', space=smem, size = 0x4, offset = 0x4, fixed_abs, tag = 'smem constant byte address 0x4 - core index']
  #allocation1 [shape = 'u32[144,128]{1,0:T(1,128)}', space=vmem, size = 0x12000, scoped, tag = 'internal scratch']
  #allocation2 [shape = 'f32[8,96]{1,0:T(8,128)}', space=vmem, size = 0x1000, scoped, tag = 'scratch operand']
  %s0 = inlined_call_operand.vmem [shape: s32[3], index: 0, kind: input, shape index: {}]
  %s1 = inlined_call_operand.vmem [shape: s32[8,1], index: 1, kind: input, shape index: {}]
  %s2 = inlined_call_operand.vmem [shape: f32[2,32], index: 2, kind: input, shape index: {}]
  %s3 = inlined_call_operand.vmem [shape: f32[328,96], index: 3, kind: input, shape index: {}]
  %s4 = inlined_call_operand.vmem [shape: f32[33,64], index: 4, kind: input, shape index: {}]
  %s5 = inlined_call_operand.vmem [shape: f32[8,128], index: 5, kind: output, shape index: {}]
  %s6 = sld [smem:[#allocation0]]
  $region34: #{segment_decoder_forward.1} parent=0
    _
  %s8 = ssub.s32 1, %s6
  %s9 = scalar_select 0, %s8, %s6
  $region1: #{segment_decoder_forward.1} parent=0
    #allocation3 [shape = 'u8[512]{0}', space=smem, size = 0x200, scoped, tag = 'input window, operand 0, single buffered']
    #allocation4 [shape = 's32[1]{0}', space=sflag, size = 0x4, scoped, tag = 'scoped memory for segment_decoder_forward.1']
    %10 = vsyncpa [#allocation4], 0
    // Predicated region
    $region2: #{segment_decoder_forward.1} parent=1 // pred_check
      _
    $region3: #{segment_decoder_forward.1} parent=1 // pred_check_branch
      %12 = sbr.rel (0) target = $region5
    $region4: #{segment_decoder_forward.1} parent=1 // pred_region
      %s14 = ssub.s32 16, 16
      %15 = vsyncadd [#allocation4], %s14
      %s17 = sshll.u32 %s0, 4
      %s18 = int_to_ptr.vmem [resolvable:$true] %s17
      %20 = dma.vmem_to_smem %s18, 16, [#allocation3], [#allocation4]
    $region5: #{segment_decoder_forward.1} parent=1 // pred_fallthru
      _
    // Predicated region
    $region6: #{segment_decoder_forward.1} parent=1 // pred_check
      _
    $region7: #{segment_decoder_forward.1} parent=1 // pred_check_branch
      %22 = sbr.rel (0) target = $region9
    $region8: #{segment_decoder_forward.1} parent=1 // pred_region
      _
    $region9: #{segment_decoder_forward.1} parent=1 // pred_fallthru
      _
    // Predicated region
    $region10: #{segment_decoder_forward.1} parent=1 // pred_check
      _
    $region11: #{segment_decoder_forward.1} parent=1 // pred_check_branch
      %24 = sbr.rel (0) target = $region13
    $region12: #{segment_decoder_forward.1} parent=1 // pred_region
      _
    $region13: #{segment_decoder_forward.1} parent=1 // pred_fallthru
      _
    // Predicated region
    $region14: #{segment_decoder_forward.1} parent=1 // pred_check
      _
    $region15: #{segment_decoder_forward.1} parent=1 // pred_check_branch
      %26 = sbr.rel (0) target = $region17
    $region16: #{segment_decoder_forward.1} parent=1 // pred_region
      _
    $region17: #{segment_decoder_forward.1} parent=1 // pred_fallthru
      _
    // Predicated region
    $region18: #{segment_decoder_forward.1} parent=1 // pred_check
      _
    $region19: #{segment_decoder_forward.1} parent=1 // pred_check_branch
      %28 = sbr.rel (0) target = $region21
    $region20: #{segment_decoder_forward.1} parent=1 // pred_region
      _
    $region21: #{segment_decoder_forward.1} parent=1 // pred_fallthru
      _
    // Predicated region
    $region22: #{segment_decoder_forward.1} parent=1 // pred_check
      _
    $region23: #{segment_decoder_forward.1} parent=1 // pred_check_branch
      %30 = sbr.rel (0) target = $region25
    $region24: #{segment_decoder_forward.1} parent=1 // pred_region
      %31 = dma.done [#allocation4], 16
    $region25: #{segment_decoder_forward.1} parent=1 // pred_fallthru
      _
    %32 = sfence
    %v33 = vld [vmem:[%s3] sm:$0xff]
    %v34 = vld [vmem:[%s3 + $0x8] sm:$0xff]
    %v35 = vld [vmem:[%s3 + $0x10] sm:$0xff]
    %v36 = vld [vmem:[%s3 + $0x18] sm:$0xff]
    %v37 = vld [vmem:[%s3 + $0x20] sm:$0xff]
    %v38 = vld [vmem:[%s3 + $0x28] sm:$0xff]
    %v39 = vld [vmem:[%s3 + $0x30] sm:$0xff]
    %v40 = vld [vmem:[%s3 + $0x38] sm:$0xff]
    %v41 = vld [vmem:[%s3 + $0x40] sm:$0xff]
    %v42 = vld [vmem:[%s3 + $0x48] sm:$0xff]
    %v43 = vld [vmem:[%s3 + $0x50] sm:$0xff]
    %v44 = vld [vmem:[%s3 + $0x58] sm:$0xff]
    %v45 = vld [vmem:[%s3 + $0x60] sm:$0xff]
    %v46 = vld [vmem:[%s3 + $0x68] sm:$0xff]
    %v47 = vld [vmem:[%s3 + $0x70] sm:$0xff]
    %v48 = vld [vmem:[%s3 + $0x78] sm:$0xff]
    %v49 = vld [vmem:[%s3 + $0x80] sm:$0xff]
    %v50 = vld [vmem:[%s3 + $0x88] sm:$0xff]
    %v51 = vld [vmem:[%s3 + $0x90] sm:$0xff]
    %v52 = vld [vmem:[%s3 + $0x98] sm:$0xff]
    %v53 = vld [vmem:[%s3 + $0xa0] sm:$0xff]
    %v54 = vld [vmem:[%s3 + $0xa8] sm:$0xff]
    %v55 = vld [vmem:[%s3 + $0xb0] sm:$0xff]
    %v56 = vld [vmem:[%s3 + $0xb8] sm:$0xff]
    %v57 = vld [vmem:[%s3 + $0xc0] sm:$0xff]
    %v58 = vld [vmem:[%s3 + $0xc8] sm:$0xff]
    %v59 = vld [vmem:[%s3 + $0xd0] sm:$0xff]
    %v60 = vld [vmem:[%s3 + $0xd8] sm:$0xff]
    %v61 = vld [vmem:[%s3 + $0xe0] sm:$0xff]
    %v62 = vld [vmem:[%s3 + $0xe8] sm:$0xff]
    %v63 = vld [vmem:[%s3 + $0xf0] sm:$0xff]
    %v64 = vld [vmem:[%s3 + $0xf8] sm:$0xff]
    %v65 = vld [vmem:[%s3 + $0x100] sm:$0xff]
    %v66 = vld [vmem:[%s3 + $0x108] sm:$0xff]
    %v67 = vld [vmem:[%s3 + $0x110] sm:$0xff]
    %v68 = vld [vmem:[%s3 + $0x118] sm:$0xff]
    %v69 = vld [vmem:[%s3 + $0x120] sm:$0xff]
    %v70 = vld [vmem:[%s3 + $0x128] sm:$0xff]
    %v71 = vld [vmem:[%s3 + $0x130] sm:$0xff]
    %v72 = vld [vmem:[%s3 + $0x138] sm:$0xff]
    %v73 = vld [vmem:[%s3 + $0x140] sm:$0x1]
    %v74 = vld [vmem:[%s3 + $0x141] sm:$0x1]
    %v75 = vld [vmem:[%s3 + $0x142] sm:$0x1]
    %v76 = vld [vmem:[%s3 + $0x143] sm:$0x1]
    %v77 = vld [vmem:[%s3 + $0x144] sm:$0x1]
    %v78 = vld [vmem:[%s3 + $0x145] sm:$0x1]
    %v79 = vld [vmem:[%s3 + $0x146] sm:$0x1]
    %v80 = vld [vmem:[%s3 + $0x147] sm:$0x1]
    %v81 = vld [vmem:[%s4] sm:$0xff]
    %v82 = vld [vmem:[%s4 + $0x8] sm:$0xff]
    %v83 = vld [vmem:[%s4 + $0x10] sm:$0xff]
    %v84 = vld [vmem:[%s4 + $0x18] sm:$0xff]
    %v85 = vld [vmem:[%s4 + $0x20] sm:$0x1]
    %v86 = vlaneseq
    %v87 = vand.u32 %v86, 127
    %v88 = vld [vmem:[%s1] sm:$0xff]
    %89 = vset.pattern.permute.xlu0 0
    %90 = vperm.xlu0 %89, %v88
    %v91 = vpop.permute.xlu0 %90
    %vm92 = vcmp.eq.s32.totalorder %v87, %v91
    %v93 = vsel %vm92, 1, 0
    %v94 = vcvt.s32.f32 %v93
    %v95 = vlaneseq
    %v96 = vshrl.u32 %v95, 7
    %v97 = vsub.s32 0, %v96
    %v98 = vrot.slane %v73, %v97
    %vm99 = vcmask 523264
    %v101 = vsel %vm99, %v94, 0
    %103 = vmatprep.subr.mxu0 0.0
    %104 = vmatpush1.msra.mxu0 %v33
    %105 = vmatprep.subr.mxu0 0.0
    %106 = vmatpush1.msra.mxu0 %v34
    %107 = vmatprep.subr.mxu0 0.0
    %108 = vmatpush1.msra.mxu0 %v35
    %109 = vmatprep.subr.mxu0 0.0
    %110 = vmatpush1.msra.mxu0 %v36
    %111 = vmatprep.subr.mxu0 0.0
    %112 = vmatpush1.msra.mxu0 %v37
    %113 = vmatprep.subr.mxu0 0.0
    %114 = vmatpush1.msra.mxu0 %v38
    %115 = vmatprep.subr.mxu0 0.0
    %116 = vmatpush1.msra.mxu0 %v39
    %117 = vmatprep.subr.mxu0 0.0
    %118 = vmatpush1.msra.mxu0 %v40
    %119 = vmatprep.subr.mxu0 0.0
    %120 = vmatpush1.msra.mxu0 0.0
    %121 = vmatprep.subr.mxu0 0.0
    %122 = vmatpush1.msra.mxu0 0.0
    %123 = vmatprep.subr.mxu0 0.0
    %124 = vmatpush1.msra.mxu0 0.0
    %125 = vmatprep.subr.mxu0 0.0
    %126 = vmatpush1.msra.mxu0 0.0
    %127 = vmatprep.subr.mxu0 0.0
    %128 = vmatpush1.msra.mxu0 0.0
    %129 = vmatprep.subr.mxu0 0.0
    %130 = vmatpush1.msra.mxu0 0.0
    %131 = vmatprep.subr.mxu0 0.0
    %132 = vmatpush1.msra.mxu0 0.0
    %133 = vmatprep.subr.mxu0 0.0
    %134 = vmatpush1.msra.mxu0 0.0
    %135 = vmatprep.subr.mxu0 0.0
    %136 = vmatpush1.msra.mxu0 0.0
    %137 = vmatprep.subr.mxu0 0.0
    %138 = vmatpush1.msra.mxu0 0.0
    %139 = vmatprep.subr.mxu0 0.0
    %140 = vmatpush1.msra.mxu0 0.0
    %141 = vmatprep.subr.mxu0 0.0
    %142 = vmatpush1.msra.mxu0 0.0
    %143 = vmatprep.subr.mxu0 0.0
    %144 = vmatpush1.msra.mxu0 0.0
    %145 = vmatprep.subr.mxu0 0.0
    %146 = vmatpush1.msra.mxu0 0.0
    %147 = vmatprep.subr.mxu0 0.0
    %148 = vmatpush1.msra.mxu0 0.0
    %149 = vmatprep.subr.mxu0 0.0
    %150 = vmatpush1.msra.mxu0 0.0
    %151 = vmatprep.subr.mxu0 0.0
    %152 = vmatpush1.msra.mxu0 0.0
    %153 = vmatprep.subr.mxu0 0.0
    %154 = vmatpush1.msra.mxu0 0.0
    %155 = vmatprep.subr.mxu0 0.0
    %156 = vmatpush1.msra.mxu0 0.0
    %157 = vmatprep.subr.mxu0 0.0
    %158 = vmatpush1.msra.mxu0 0.0
    %159 = vmatprep.subr.mxu0 0.0
    %160 = vmatpush1.msra.mxu0 0.0
    %161 = vmatprep.subr.mxu0 0.0
    %162 = vmatpush1.msra.mxu0 0.0
    %163 = vmatprep.subr.mxu0 0.0
    %164 = vmatpush1.msra.mxu0 0.0
    %165 = vmatprep.subr.mxu0 0.0
    %166 = vmatpush1.msra.mxu0 0.0
    %167 = vmatprep.mubr.f32.mxu0 0.0
    %168 = vmatmul.mubr.f32.gmra.mrb[0].mxu0 %v101
    %v169 = vpop.f32.mrb[0].mxu0
    %v170 = vadd.f32 %v98, %v169
    %v171 = vpop.f32.mrb[0].mxu0
    %172 = vdwg.mxu0
    %vm173 = vcmask 785408
    %174 = vst.msk [vmem:[#allocation2] sm:$0xff] %vm173, %v170
    %v175 = vld [vmem:[%s2] sm:$0x1]
    %v176 = vld [vmem:[%s2 + $0x1] sm:$0x1]
    %vm177 = vcmask 261120
    %v179 = vsel %vm177, %v175, 0
    %181 = vmatprep.subr.mxu0 0.0
    %182 = vmatpush1.msra.mxu0 %v41
    %183 = vmatprep.subr.mxu0 0.0
    %184 = vmatpush1.msra.mxu0 %v42
    %185 = vmatprep.subr.mxu0 0.0
    %186 = vmatpush1.msra.mxu0 %v43
    %187 = vmatprep.subr.mxu0 0.0
    %188 = vmatpush1.msra.mxu0 %v44
    %189 = vmatprep.subr.mxu0 0.0
    %190 = vmatpush1.msra.mxu0 0.0
    %191 = vmatprep.subr.mxu0 0.0
    %192 = vmatpush1.msra.mxu0 0.0
    %193 = vmatprep.subr.mxu0 0.0
    %194 = vmatpush1.msra.mxu0 0.0
    %195 = vmatprep.subr.mxu0 0.0
    %196 = vmatpush1.msra.mxu0 0.0
    %197 = vmatprep.subr.mxu0 0.0
    %198 = vmatpush1.msra.mxu0 0.0
    %199 = vmatprep.subr.mxu0 0.0
    %200 = vmatpush1.msra.mxu0 0.0
    %201 = vmatprep.subr.mxu0 0.0
    %202 = vmatpush1.msra.mxu0 0.0
    %203 = vmatprep.subr.mxu0 0.0
    %204 = vmatpush1.msra.mxu0 0.0
    %205 = vmatprep.subr.mxu0 0.0
    %206 = vmatpush1.msra.mxu0 0.0
    %207 = vmatprep.subr.mxu0 0.0
    %208 = vmatpush1.msra.mxu0 0.0
    %209 = vmatprep.subr.mxu0 0.0
    %210 = vmatpush1.msra.mxu0 0.0
    %211 = vmatprep.subr.mxu0 0.0
    %212 = vmatpush1.msra.mxu0 0.0
    %213 = vmatprep.subr.mxu0 0.0
    %214 = vmatpush1.msra.mxu0 0.0
    %215 = vmatprep.subr.mxu0 0.0
    %216 = vmatpush1.msra.mxu0 0.0
    %217 = vmatprep.subr.mxu0 0.0
    %218 = vmatpush1.msra.mxu0 0.0
    %219 = vmatprep.subr.mxu0 0.0
    %220 = vmatpush1.msra.mxu0 0.0
    %221 = vmatprep.subr.mxu0 0.0
    %222 = vmatpush1.msra.mxu0 0.0
    %223 = vmatprep.subr.mxu0 0.0
    %224 = vmatpush1.msra.mxu0 0.0
    %225 = vmatprep.subr.mxu0 0.0
    %226 = vmatpush1.msra.mxu0 0.0
    %227 = vmatprep.subr.mxu0 0.0
    %228 = vmatpush1.msra.mxu0 0.0
    %229 = vmatprep.subr.mxu0 0.0
    %230 = vmatpush1.msra.mxu0 0.0
    %231 = vmatprep.subr.mxu0 0.0
    %232 = vmatpush1.msra.mxu0 0.0
    %233 = vmatprep.subr.mxu0 0.0
    %234 = vmatpush1.msra.mxu0 0.0
    %235 = vmatprep.subr.mxu0 0.0
    %236 = vmatpush1.msra.mxu0 0.0
    %237 = vmatprep.subr.mxu0 0.0
    %238 = vmatpush1.msra.mxu0 0.0
    %239 = vmatprep.subr.mxu0 0.0
    %240 = vmatpush1.msra.mxu0 0.0
    %241 = vmatprep.subr.mxu0 0.0
    %242 = vmatpush1.msra.mxu0 0.0
    %243 = vmatprep.subr.mxu0 0.0
    %244 = vmatpush1.msra.mxu0 0.0
    %245 = vmatprep.mubr.f32.mxu0 0.0
    %246 = vmatmul.mubr.f32.gmra.mrb[0].mxu0 %v179
    %v247 = vpop.f32.mrb[0].mxu0
    %v248 = vadd.f32 %v74, %v247
    %v249 = vpop.f32.mrb[0].mxu0
    %250 = vdwg.mxu0
    %v252 = vsel %vm177, %v176, 0
    %254 = vmatprep.subr.mxu0 0.0
    %255 = vmatpush1.msra.mxu0 %v49
    %256 = vmatprep.subr.mxu0 0.0
    %257 = vmatpush1.msra.mxu0 %v50
    %258 = vmatprep.subr.mxu0 0.0
    %259 = vmatpush1.msra.mxu0 %v51
    %260 = vmatprep.subr.mxu0 0.0
    %261 = vmatpush1.msra.mxu0 %v52
    %262 = vmatprep.subr.mxu0 0.0
    %263 = vmatpush1.msra.mxu0 0.0
    %264 = vmatprep.subr.mxu0 0.0
    %265 = vmatpush1.msra.mxu0 0.0
    %266 = vmatprep.subr.mxu0 0.0
    %267 = vmatpush1.msra.mxu0 0.0
    %268 = vmatprep.subr.mxu0 0.0
    %269 = vmatpush1.msra.mxu0 0.0
    %270 = vmatprep.subr.mxu0 0.0
    %271 = vmatpush1.msra.mxu0 0.0
    %272 = vmatprep.subr.mxu0 0.0
    %273 = vmatpush1.msra.mxu0 0.0
    %274 = vmatprep.subr.mxu0 0.0
    %275 = vmatpush1.msra.mxu0 0.0
    %276 = vmatprep.subr.mxu0 0.0
    %277 = vmatpush1.msra.mxu0 0.0
    %278 = vmatprep.subr.mxu0 0.0
    %279 = vmatpush1.msra.mxu0 0.0
    %280 = vmatprep.subr.mxu0 0.0
    %281 = vmatpush1.msra.mxu0 0.0
    %282 = vmatprep.subr.mxu0 0.0
    %283 = vmatpush1.msra.mxu0 0.0
    %284 = vmatprep.subr.mxu0 0.0
    %285 = vmatpush1.msra.mxu0 0.0
    %286 = vmatprep.subr.mxu0 0.0
    %287 = vmatpush1.msra.mxu0 0.0
    %288 = vmatprep.subr.mxu0 0.0
    %289 = vmatpush1.msra.mxu0 0.0
    %290 = vmatprep.subr.mxu0 0.0
    %291 = vmatpush1.msra.mxu0 0.0
    %292 = vmatprep.subr.mxu0 0.0
    %293 = vmatpush1.msra.mxu0 0.0
    %294 = vmatprep.subr.mxu0 0.0
    %295 = vmatpush1.msra.mxu0 0.0
    %296 = vmatprep.subr.mxu0 0.0
    %297 = vmatpush1.msra.mxu0 0.0
    %298 = vmatprep.subr.mxu0 0.0
    %299 = vmatpush1.msra.mxu0 0.0
    %300 = vmatprep.subr.mxu0 0.0
    %301 = vmatpush1.msra.mxu0 0.0
    %302 = vmatprep.subr.mxu0 0.0
    %303 = vmatpush1.msra.mxu0 0.0
    %304 = vmatprep.subr.mxu0 0.0
    %305 = vmatpush1.msra.mxu0 0.0
    %306 = vmatprep.subr.mxu0 0.0
    %307 = vmatpush1.msra.mxu0 0.0
    %308 = vmatprep.subr.mxu0 0.0
    %309 = vmatpush1.msra.mxu0 0.0
    %310 = vmatprep.subr.mxu0 0.0
    %311 = vmatpush1.msra.mxu0 0.0
    %312 = vmatprep.subr.mxu0 0.0
    %313 = vmatpush1.msra.mxu0 0.0
    %314 = vmatprep.subr.mxu0 0.0
    %315 = vmatpush1.msra.mxu0 0.0
    %316 = vmatprep.subr.mxu0 0.0
    %317 = vmatpush1.msra.mxu0 0.0
    %318 = vmatprep.mubr.f32.mxu0 0.0
    %319 = vmatmul.mubr.f32.gmra.mrb[0].mxu0 %v252
    %v320 = vpop.f32.mrb[0].mxu0
    %v321 = vadd.f32 %v76, %v320
    %v322 = vpop.f32.mrb[0].mxu0
    %323 = vdwg.mxu0
    %v324 = vld [vmem:[#allocation2] sm:$0x1]
    %v325 = vadd.f32 %v324, %v248
    %v326 = vxor.u32 %v325, 2147483648
    %v327 = vmul.f32 %v326, 1.442695
    %v328 = vpow.pop %v327
    %v329 = vadd.f32 %v328, 1.0
    %v330 = vrcp.pop %v329
    %v331 = vmul.f32 1.0, %v330
    %333 = vrot.lane.b32.xlu0 %v248, 64
    %v334 = vpop.permute.xlu0 %333
    %v336 = vmul.f32 %v331, %v334
    %338 = vrot.lane.b32.xlu0 %v336, 64
    %v339 = vpop.permute.xlu0 %338
    %v341 = vadd.f32 %v324, %v339
    %v342 = vtanh.pop %v341
    %v343 = vsub.f32 1.0, %v331
    %345 = vrot.lane.b32.xlu0 %v342, 96
    %v346 = vpop.permute.xlu0 %345
    %v348 = vmul.f32 %v343, %v346
    %349 = vrot.lane.b32.xlu0 %v175, 32
    %v350 = vpop.permute.xlu0 %349
    %v352 = vmul.f32 %v331, %v350
    %v353 = vadd.f32 %v348, %v352
    %355 = vrot.lane.b32.xlu0 %v353, 96
    %v356 = vpop.permute.xlu0 %355
    %v357 = vsel %vm177, %v356, 0
    %359 = vmatprep.subr.mxu0 0.0
    %360 = vmatpush1.msra.mxu0 %v45
    %361 = vmatprep.subr.mxu0 0.0
    %362 = vmatpush1.msra.mxu0 %v46
    %363 = vmatprep.subr.mxu0 0.0
    %364 = vmatpush1.msra.mxu0 %v47
    %365 = vmatprep.subr.mxu0 0.0
    %366 = vmatpush1.msra.mxu0 %v48
    %367 = vmatprep.subr.mxu0 0.0
    %368 = vmatpush1.msra.mxu0 0.0
    %369 = vmatprep.subr.mxu0 0.0
    %370 = vmatpush1.msra.mxu0 0.0
    %371 = vmatprep.subr.mxu0 0.0
    %372 = vmatpush1.msra.mxu0 0.0
    %373 = vmatprep.subr.mxu0 0.0
    %374 = vmatpush1.msra.mxu0 0.0
    %375 = vmatprep.subr.mxu0 0.0
    %376 = vmatpush1.msra.mxu0 0.0
    %377 = vmatprep.subr.mxu0 0.0
    %378 = vmatpush1.msra.mxu0 0.0
    %379 = vmatprep.subr.mxu0 0.0
    %380 = vmatpush1.msra.mxu0 0.0
    %381 = vmatprep.subr.mxu0 0.0
    %382 = vmatpush1.msra.mxu0 0.0
    %383 = vmatprep.subr.mxu0 0.0
    %384 = vmatpush1.msra.mxu0 0.0
    %385 = vmatprep.subr.mxu0 0.0
    %386 = vmatpush1.msra.mxu0 0.0
    %387 = vmatprep.subr.mxu0 0.0
    %388 = vmatpush1.msra.mxu0 0.0
    %389 = vmatprep.subr.mxu0 0.0
    %390 = vmatpush1.msra.mxu0 0.0
    %391 = vmatprep.subr.mxu0 0.0
    %392 = vmatpush1.msra.mxu0 0.0
    %393 = vmatprep.subr.mxu0 0.0
    %394 = vmatpush1.msra.mxu0 0.0
    %395 = vmatprep.subr.mxu0 0.0
    %396 = vmatpush1.msra.mxu0 0.0
    %397 = vmatprep.subr.mxu0 0.0
    %398 = vmatpush1.msra.mxu0 0.0
    %399 = vmatprep.subr.mxu0 0.0
    %400 = vmatpush1.msra.mxu0 0.0
    %401 = vmatprep.subr.mxu0 0.0
    %402 = vmatpush1.msra.mxu0 0.0
    %403 = vmatprep.subr.mxu0 0.0
    %404 = vmatpush1.msra.mxu0 0.0
    %405 = vmatprep.subr.mxu0 0.0
    %406 = vmatpush1.msra.mxu0 0.0
    %407 = vmatprep.subr.mxu0 0.0
    %408 = vmatpush1.msra.mxu0 0.0
    %409 = vmatprep.subr.mxu0 0.0
    %410 = vmatpush1.msra.mxu0 0.0
    %411 = vmatprep.subr.mxu0 0.0
    %412 = vmatpush1.msra.mxu0 0.0
    %413 = vmatprep.subr.mxu0 0.0
    %414 = vmatpush1.msra.mxu0 0.0
    %415 = vmatprep.subr.mxu0 0.0
    %416 = vmatpush1.msra.mxu0 0.0
    %417 = vmatprep.subr.mxu0 0.0
    %418 = vmatpush1.msra.mxu0 0.0
    %419 = vmatprep.subr.mxu0 0.0
    %420 = vmatpush1.msra.mxu0 0.0
    %421 = vmatprep.subr.mxu0 0.0
    %422 = vmatpush1.msra.mxu0 0.0
    %423 = vmatprep.mubr.f32.mxu0 0.0
    %424 = vmatmul.mubr.f32.gmra.mrb[0].mxu0 %v357
    %v425 = vpop.f32.mrb[0].mxu0
    %v426 = vadd.f32 %v75, %v425
    %v427 = vpop.f32.mrb[0].mxu0
    %428 = vdwg.mxu0
    %v429 = vadd.f32 %v426, %v321
    %v430 = vxor.u32 %v429, 2147483648
    %v431 = vmul.f32 %v430, 1.442695
    %v432 = vpow.pop %v431
    %v433 = vadd.f32 %v432, 1.0
    %v434 = vrcp.pop %v433
    %v435 = vmul.f32 1.0, %v434
    %437 = vrot.lane.b32.xlu0 %v321, 64
    %v438 = vpop.permute.xlu0 %437
    %v440 = vmul.f32 %v435, %v438
    %442 = vrot.lane.b32.xlu0 %v440, 64
    %v443 = vpop.permute.xlu0 %442
    %v445 = vadd.f32 %v426, %v443
    %v446 = vtanh.pop %v445
    %v447 = vsub.f32 1.0, %v435
    %449 = vrot.lane.b32.xlu0 %v446, 96
    %v450 = vpop.permute.xlu0 %449
    %v452 = vmul.f32 %v447, %v450
    %453 = vrot.lane.b32.xlu0 %v176, 32
    %v454 = vpop.permute.xlu0 %453
    %v456 = vmul.f32 %v435, %v454
    %v457 = vadd.f32 %v452, %v456
    %v458 = vld [vmem:[%s1] sm:$0x1]
    %vm459 = vcmp.ne.s32.totalorder %v458, 0
    %v460 = vsel %vm459, 1, 0
    %461 = vset.pattern.permute.xlu0 0
    %462 = vperm.xlu0 %461, %v460
    %v463 = vpop.permute.xlu0 %462
    %vm464 = vcmp.eq.s32.totalorder %v463, 1
    %v465 = vsel %vm464, %v353, %v350
    %v466 = vsel %vm464, %v457, %v454
    %468 = vrot.lane.b32.xlu0 %v465, 96
    %v469 = vpop.permute.xlu0 %468
    %v470 = vsel %vm177, %v469, 0
    %472 = vmatprep.subr.mxu0 0.0
    %473 = vmatpush1.msra.mxu0 %v41
    %474 = vmatprep.subr.mxu0 0.0
    %475 = vmatpush1.msra.mxu0 %v42
    %476 = vmatprep.subr.mxu0 0.0
    %477 = vmatpush1.msra.mxu0 %v43
    %478 = vmatprep.subr.mxu0 0.0
    %479 = vmatpush1.msra.mxu0 %v44
    %480 = vmatprep.subr.mxu0 0.0
    %481 = vmatpush1.msra.mxu0 0.0
    %482 = vmatprep.subr.mxu0 0.0
    %483 = vmatpush1.msra.mxu0 0.0
    %484 = vmatprep.subr.mxu0 0.0
    %485 = vmatpush1.msra.mxu0 0.0
    %486 = vmatprep.subr.mxu0 0.0
    %487 = vmatpush1.msra.mxu0 0.0
    %488 = vmatprep.subr.mxu0 0.0
    %489 = vmatpush1.msra.mxu0 0.0
    %490 = vmatprep.subr.mxu0 0.0
    %491 = vmatpush1.msra.mxu0 0.0
    %492 = vmatprep.subr.mxu0 0.0
    %493 = vmatpush1.msra.mxu0 0.0
    %494 = vmatprep.subr.mxu0 0.0
    %495 = vmatpush1.msra.mxu0 0.0
    %496 = vmatprep.subr.mxu0 0.0
    %497 = vmatpush1.msra.mxu0 0.0
    %498 = vmatprep.subr.mxu0 0.0
    %499 = vmatpush1.msra.mxu0 0.0
    %500 = vmatprep.subr.mxu0 0.0
    %501 = vmatpush1.msra.mxu0 0.0
    %502 = vmatprep.subr.mxu0 0.0
    %503 = vmatpush1.msra.mxu0 0.0
    %504 = vmatprep.subr.mxu0 0.0
    %505 = vmatpush1.msra.mxu0 0.0
    %506 = vmatprep.subr.mxu0 0.0
    %507 = vmatpush1.msra.mxu0 0.0
    %508 = vmatprep.subr.mxu0 0.0
    %509 = vmatpush1.msra.mxu0 0.0
    %510 = vmatprep.subr.mxu0 0.0
    %511 = vmatpush1.msra.mxu0 0.0
    %512 = vmatprep.subr.mxu0 0.0
    %513 = vmatpush1.msra.mxu0 0.0
    %514 = vmatprep.subr.mxu0 0.0
    %515 = vmatpush1.msra.mxu0 0.0
    %516 = vmatprep.subr.mxu0 0.0
    %517 = vmatpush1.msra.mxu0 0.0
    %518 = vmatprep.subr.mxu0 0.0
    %519 = vmatpush1.msra.mxu0 0.0
    %520 = vmatprep.subr.mxu0 0.0
    %521 = vmatpush1.msra.mxu0 0.0
    %522 = vmatprep.subr.mxu0 0.0
    %523 = vmatpush1.msra.mxu0 0.0
    %524 = vmatprep.subr.mxu0 0.0
    %525 = vmatpush1.msra.mxu0 0.0
    %526 = vmatprep.subr.mxu0 0.0
    %527 = vmatpush1.msra.mxu0 0.0
    %528 = vmatprep.subr.mxu0 0.0
    %529 = vmatpush1.msra.mxu0 0.0
    %530 = vmatprep.subr.mxu0 0.0
    %531 = vmatpush1.msra.mxu0 0.0
    %532 = vmatprep.subr.mxu0 0.0
    %533 = vmatpush1.msra.mxu0 0.0
    %534 = vmatprep.subr.mxu0 0.0
    %535 = vmatpush1.msra.mxu0 0.0
    %536 = vmatprep.mubr.f32.mxu0 0.0
    %537 = vmatmul.mubr.f32.gmra.mrb[0].mxu0 %v470
    %v538 = vpop.f32.mrb[0].mxu0
    %v539 = vadd.f32 %v74, %v538
    %v540 = vpop.f32.mrb[0].mxu0
    %541 = vdwg.mxu0
    %543 = vrot.lane.b32.xlu0 %v466, 96
    %v544 = vpop.permute.xlu0 %543
    %v545 = vsel %vm177, %v544, 0
    %547 = vmatprep.subr.mxu0 0.0
    %548 = vmatpush1.msra.mxu0 %v49
    %549 = vmatprep.subr.mxu0 0.0
    %550 = vmatpush1.msra.mxu0 %v50
    %551 = vmatprep.subr.mxu0 0.0
    %552 = vmatpush1.msra.mxu0 %v51
    %553 = vmatprep.subr.mxu0 0.0
    %554 = vmatpush1.msra.mxu0 %v52
    %555 = vmatprep.subr.mxu0 0.0
    %556 = vmatpush1.msra.mxu0 0.0
    %557 = vmatprep.subr.mxu0 0.0
    %558 = vmatpush1.msra.mxu0 0.0
    %559 = vmatprep.subr.mxu0 0.0
    %560 = vmatpush1.msra.mxu0 0.0
    %561 = vmatprep.subr.mxu0 0.0
    %562 = vmatpush1.msra.mxu0 0.0
    %563 = vmatprep.subr.mxu0 0.0
    %564 = vmatpush1.msra.mxu0 0.0
    %565 = vmatprep.subr.mxu0 0.0
    %566 = vmatpush1.msra.mxu0 0.0
    %567 = vmatprep.subr.mxu0 0.0
    %568 = vmatpush1.msra.mxu0 0.0
    %569 = vmatprep.subr.mxu0 0.0
    %570 = vmatpush1.msra.mxu0 0.0
    %571 = vmatprep.subr.mxu0 0.0
    %572 = vmatpush1.msra.mxu0 0.0
    %573 = vmatprep.subr.mxu0 0.0
    %574 = vmatpush1.msra.mxu0 0.0
    %575 = vmatprep.subr.mxu0 0.0
    %576 = vmatpush1.msra.mxu0 0.0
    %577 = vmatprep.subr.mxu0 0.0
    %578 = vmatpush1.msra.mxu0 0.0
    %579 = vmatprep.subr.mxu0 0.0
    %580 = vmatpush1.msra.mxu0 0.0
    %581 = vmatprep.subr.mxu0 0.0
    %582 = vmatpush1.msra.mxu0 0.0
    %583 = vmatprep.subr.mxu0 0.0
    %584 = vmatpush1.msra.mxu0 0.0
    %585 = vmatprep.subr.mxu0 0.0
    %586 = vmatpush1.msra.mxu0 0.0
    %587 = vmatprep.subr.mxu0 0.0
    %588 = vmatpush1.msra.mxu0 0.0
    %589 = vmatprep.subr.mxu0 0.0
    %590 = vmatpush1.msra.mxu0 0.0
    %591 = vmatprep.subr.mxu0 0.0
    %592 = vmatpush1.msra.mxu0 0.0
    %593 = vmatprep.subr.mxu0 0.0
    %594 = vmatpush1.msra.mxu0 0.0
    %595 = vmatprep.subr.mxu0 0.0
    %596 = vmatpush1.msra.mxu0 0.0
    %597 = vmatprep.subr.mxu0 0.0
    %598 = vmatpush1.msra.mxu0 0.0
    %599 = vmatprep.subr.mxu0 0.0
    %600 = vmatpush1.msra.mxu0 0.0
    %601 = vmatprep.subr.mxu0 0.0
    %602 = vmatpush1.msra.mxu0 0.0
    %603 = vmatprep.subr.mxu0 0.0
    %604 = vmatpush1.msra.mxu0 0.0
    %605 = vmatprep.subr.mxu0 0.0
    %606 = vmatpush1.msra.mxu0 0.0
    %607 = vmatprep.subr.mxu0 0.0
    %608 = vmatpush1.msra.mxu0 0.0
    %609 = vmatprep.subr.mxu0 0.0
    %610 = vmatpush1.msra.mxu0 0.0
    %611 = vmatprep.mubr.f32.mxu0 0.0
    %612 = vmatmul.mubr.f32.gmra.mrb[0].mxu0 %v545
    %v613 = vpop.f32.mrb[0].mxu0
    %v614 = vadd.f32 %v76, %v613
    %v615 = vpop.f32.mrb[0].mxu0
    %616 = vdwg.mxu0
    %v617 = vld [vmem:[#allocation2 + $0x1] sm:$0x1]
    %v618 = vadd.f32 %v617, %v539
    %v619 = vxor.u32 %v618, 2147483648
    %v620 = vmul.f32 %v619, 1.442695
    %v621 = vpow.pop %v620
    %v622 = vadd.f32 %v621, 1.0
    %v623 = vrcp.pop %v622
    %v624 = vmul.f32 1.0, %v623
    %626 = vrot.lane.b32.xlu0 %v539, 64
    %v627 = vpop.permute.xlu0 %626
    %v629 = vmul.f32 %v624, %v627
    %631 = vrot.lane.b32.xlu0 %v629, 64
    %v632 = vpop.permute.xlu0 %631
    %v634 = vadd.f32 %v617, %v632
    %v635 = vtanh.pop %v634
    %v636 = vsub.f32 1.0, %v624
    %638 = vrot.lane.b32.xlu0 %v635, 96
    %v639 = vpop.permute.xlu0 %638
    %v641 = vmul.f32 %v636, %v639
    %v642 = vmul.f32 %v624, %v465
    %v643 = vadd.f32 %v641, %v642
    %645 = vrot.lane.b32.xlu0 %v643, 96
    %v646 = vpop.permute.xlu0 %645
    %v647 = vsel %vm177, %v646, 0
    %649 = vmatprep.subr.mxu0 0.0
    %650 = vmatpush1.msra.mxu0 %v45
    %651 = vmatprep.subr.mxu0 0.0
    %652 = vmatpush1.msra.mxu0 %v46
    %653 = vmatprep.subr.mxu0 0.0
    %654 = vmatpush1.msra.mxu0 %v47
    %655 = vmatprep.subr.mxu0 0.0
    %656 = vmatpush1.msra.mxu0 %v48
    %657 = vmatprep.subr.mxu0 0.0
    %658 = vmatpush1.msra.mxu0 0.0
    %659 = vmatprep.subr.mxu0 0.0
    %660 = vmatpush1.msra.mxu0 0.0
    %661 = vmatprep.subr.mxu0 0.0
    %662 = vmatpush1.msra.mxu0 0.0
    %663 = vmatprep.subr.mxu0 0.0
    %664 = vmatpush1.msra.mxu0 0.0
    %665 = vmatprep.subr.mxu0 0.0
    %666 = vmatpush1.msra.mxu0 0.0
    %667 = vmatprep.subr.mxu0 0.0
    %668 = vmatpush1.msra.mxu0 0.0
    %669 = vmatprep.subr.mxu0 0.0
    %670 = vmatpush1.msra.mxu0 0.0
    %671 = vmatprep.subr.mxu0 0.0
    %672 = vmatpush1.msra.mxu0 0.0
    %673 = vmatprep.subr.mxu0 0.0
    %674 = vmatpush1.msra.mxu0 0.0
    %675 = vmatprep.subr.mxu0 0.0
    %676 = vmatpush1.msra.mxu0 0.0
    %677 = vmatprep.subr.mxu0 0.0
    %678 = vmatpush1.msra.mxu0 0.0
    %679 = vmatprep.subr.mxu0 0.0
    %680 = vmatpush1.msra.mxu0 0.0
    %681 = vmatprep.subr.mxu0 0.0
    %682 = vmatpush1.msra.mxu0 0.0
    %683 = vmatprep.subr.mxu0 0.0
    %684 = vmatpush1.msra.mxu0 0.0
    %685 = vmatprep.subr.mxu0 0.0
    %686 = vmatpush1.msra.mxu0 0.0
    %687 = vmatprep.subr.mxu0 0.0
    %688 = vmatpush1.msra.mxu0 0.0
    %689 = vmatprep.subr.mxu0 0.0
    %690 = vmatpush1.msra.mxu0 0.0
    %691 = vmatprep.subr.mxu0 0.0
    %692 = vmatpush1.msra.mxu0 0.0
    %693 = vmatprep.subr.mxu0 0.0
    %694 = vmatpush1.msra.mxu0 0.0
    %695 = vmatprep.subr.mxu0 0.0
    %696 = vmatpush1.msra.mxu0 0.0
    %697 = vmatprep.subr.mxu0 0.0
    %698 = vmatpush1.msra.mxu0 0.0
    %699 = vmatprep.subr.mxu0 0.0
    %700 = vmatpush1.msra.mxu0 0.0
    %701 = vmatprep.subr.mxu0 0.0
    %702 = vmatpush1.msra.mxu0 0.0
    %703 = vmatprep.subr.mxu0 0.0
    %704 = vmatpush1.msra.mxu0 0.0
    %705 = vmatprep.subr.mxu0 0.0
    %706 = vmatpush1.msra.mxu0 0.0
    %707 = vmatprep.subr.mxu0 0.0
    %708 = vmatpush1.msra.mxu0 0.0
    %709 = vmatprep.subr.mxu0 0.0
    %710 = vmatpush1.msra.mxu0 0.0
    %711 = vmatprep.subr.mxu0 0.0
    %712 = vmatpush1.msra.mxu0 0.0
    %713 = vmatprep.mubr.f32.mxu0 0.0
    %714 = vmatmul.mubr.f32.gmra.mrb[0].mxu0 %v647
    %v715 = vpop.f32.mrb[0].mxu0
    %v716 = vadd.f32 %v75, %v715
    %v717 = vpop.f32.mrb[0].mxu0
    %718 = vdwg.mxu0
    %v719 = vadd.f32 %v716, %v614
    %v720 = vxor.u32 %v719, 2147483648
    %v721 = vmul.f32 %v720, 1.442695
    %v722 = vpow.pop %v721
    %v723 = vadd.f32 %v722, 1.0
    %v724 = vrcp.pop %v723
    %v725 = vmul.f32 1.0, %v724
    %727 = vrot.lane.b32.xlu0 %v614, 64
    %v728 = vpop.permute.xlu0 %727
    %v730 = vmul.f32 %v725, %v728
    %732 = vrot.lane.b32.xlu0 %v730, 64
    %v733 = vpop.permute.xlu0 %732
    %v735 = vadd.f32 %v716, %v733
    %v736 = vtanh.pop %v735
    %v737 = vsub.f32 1.0, %v725
    %739 = vrot.lane.b32.xlu0 %v736, 96
    %v740 = vpop.permute.xlu0 %739
    %v742 = vmul.f32 %v737, %v740
    %v743 = vmul.f32 %v725, %v466
    %v744 = vadd.f32 %v742, %v743
    %v745 = vld [vmem:[%s1 + $0x1] sm:$0x1]
    %vm746 = vcmp.ne.s32.totalorder %v745, 0
    %v747 = vsel %vm746, 1, 0
    %748 = vset.pattern.permute.xlu0 0
    %749 = vperm.xlu0 %748, %v747
    %v750 = vpop.permute.xlu0 %749
    %vm751 = vcmp.eq.s32.totalorder %v750, 1
    %v752 = vsel %vm751, %v643, %v465
    %v753 = vsel %vm751, %v744, %v466
    %755 = vrot.lane.b32.xlu0 %v752, 96
    %v756 = vpop.permute.xlu0 %755
    %v757 = vsel %vm177, %v756, 0
    %759 = vmatprep.subr.mxu0 0.0
    %760 = vmatpush1.msra.mxu0 %v41
    %761 = vmatprep.subr.mxu0 0.0
    %762 = vmatpush1.msra.mxu0 %v42
    %763 = vmatprep.subr.mxu0 0.0
    %764 = vmatpush1.msra.mxu0 %v43
    %765 = vmatprep.subr.mxu0 0.0
    %766 = vmatpush1.msra.mxu0 %v44
    %767 = vmatprep.subr.mxu0 0.0
    %768 = vmatpush1.msra.mxu0 0.0
    %769 = vmatprep.subr.mxu0 0.0
    %770 = vmatpush1.msra.mxu0 0.0
    %771 = vmatprep.subr.mxu0 0.0
    %772 = vmatpush1.msra.mxu0 0.0
    %773 = vmatprep.subr.mxu0 0.0
    %774 = vmatpush1.msra.mxu0 0.0
    %775 = vmatprep.subr.mxu0 0.0
    %776 = vmatpush1.msra.mxu0 0.0
    %777 = vmatprep.subr.mxu0 0.0
    %778 = vmatpush1.msra.mxu0 0.0
    %779 = vmatprep.subr.mxu0 0.0
    %780 = vmatpush1.msra.mxu0 0.0
    %781 = vmatprep.subr.mxu0 0.0
    %782 = vmatpush1.msra.mxu0 0.0
    %783 = vmatprep.subr.mxu0 0.0
    %784 = vmatpush1.msra.mxu0 0.0
    %785 = vmatprep.subr.mxu0 0.0
    %786 = vmatpush1.msra.mxu0 0.0
    %787 = vmatprep.subr.mxu0 0.0
    %788 = vmatpush1.msra.mxu0 0.0
    %789 = vmatprep.subr.mxu0 0.0
    %790 = vmatpush1.msra.mxu0 0.0
    %791 = vmatprep.subr.mxu0 0.0
    %792 = vmatpush1.msra.mxu0 0.0
    %793 = vmatprep.subr.mxu0 0.0
    %794 = vmatpush1.msra.mxu0 0.0
    %795 = vmatprep.subr.mxu0 0.0
    %796 = vmatpush1.msra.mxu0 0.0
    %797 = vmatprep.subr.mxu0 0.0
    %798 = vmatpush1.msra.mxu0 0.0
    %799 = vmatprep.subr.mxu0 0.0
    %800 = vmatpush1.msra.mxu0 0.0
    %801 = vmatprep.subr.mxu0 0.0
    %802 = vmatpush1.msra.mxu0 0.0
    %803 = vmatprep.subr.mxu0 0.0
    %804 = vmatpush1.msra.mxu0 0.0
    %805 = vmatprep.subr.mxu0 0.0
    %806 = vmatpush1.msra.mxu0 0.0
    %807 = vmatprep.subr.mxu0 0.0
    %808 = vmatpush1.msra.mxu0 0.0
    %809 = vmatprep.subr.mxu0 0.0
    %810 = vmatpush1.msra.mxu0 0.0
    %811 = vmatprep.subr.mxu0 0.0
    %812 = vmatpush1.msra.mxu0 0.0
    %813 = vmatprep.subr.mxu0 0.0
    %814 = vmatpush1.msra.mxu0 0.0
    %815 = vmatprep.subr.mxu0 0.0
    %816 = vmatpush1.msra.mxu0 0.0
    %817 = vmatprep.subr.mxu0 0.0
    %818 = vmatpush1.msra.mxu0 0.0
    %819 = vmatprep.subr.mxu0 0.0
    %820 = vmatpush1.msra.mxu0 0.0
    %821 = vmatprep.subr.mxu0 0.0
    %822 = vmatpush1.msra.mxu0 0.0
    %823 = vmatprep.mubr.f32.mxu0 0.0
    %824 = vmatmul.mubr.f32.gmra.mrb[0].mxu0 %v757
    %v825 = vpop.f32.mrb[0].mxu0
    %v826 = vadd.f32 %v74, %v825
    %v827 = vpop.f32.mrb[0].mxu0
    %828 = vdwg.mxu0
    %830 = vrot.lane.b32.xlu0 %v753, 96
    %v831 = vpop.permute.xlu0 %830
    %v832 = vsel %vm177, %v831, 0
    %834 = vmatprep.subr.mxu0 0.0
    %835 = vmatpush1.msra.mxu0 %v49
    %836 = vmatprep.subr.mxu0 0.0
    %837 = vmatpush1.msra.mxu0 %v50
    %838 = vmatprep.subr.mxu0 0.0
    %839 = vmatpush1.msra.mxu0 %v51
    %840 = vmatprep.subr.mxu0 0.0
    %841 = vmatpush1.msra.mxu0 %v52
    %842 = vmatprep.subr.mxu0 0.0
    %843 = vmatpush1.msra.mxu0 0.0
    %844 = vmatprep.subr.mxu0 0.0
    %845 = vmatpush1.msra.mxu0 0.0
    %846 = vmatprep.subr.mxu0 0.0
    %847 = vmatpush1.msra.mxu0 0.0
    %848 = vmatprep.subr.mxu0 0.0
    %849 = vmatpush1.msra.mxu0 0.0
    %850 = vmatprep.subr.mxu0 0.0
    %851 = vmatpush1.msra.mxu0 0.0
    %852 = vmatprep.subr.mxu0 0.0
    %853 = vmatpush1.msra.mxu0 0.0
    %854 = vmatprep.subr.mxu0 0.0
    %855 = vmatpush1.msra.mxu0 0.0
    %856 = vmatprep.subr.mxu0 0.0
    %857 = vmatpush1.msra.mxu0 0.0
    %858 = vmatprep.subr.mxu0 0.0
    %859 = vmatpush1.msra.mxu0 0.0
    %860 = vmatprep.subr.mxu0 0.0
    %861 = vmatpush1.msra.mxu0 0.0
    %862 = vmatprep.subr.mxu0 0.0
    %863 = vmatpush1.msra.mxu0 0.0
    %864 = vmatprep.subr.mxu0 0.0
    %865 = vmatpush1.msra.mxu0 0.0
    %866 = vmatprep.subr.mxu0 0.0
    %867 = vmatpush1.msra.mxu0 0.0
    %868 = vmatprep.subr.mxu0 0.0
    %869 = vmatpush1.msra.mxu0 0.0
    %870 = vmatprep.subr.mxu0 0.0
    %871 = vmatpush1.msra.mxu0 0.0
    %872 = vmatprep.subr.mxu0 0.0
    %873 = vmatpush1.msra.mxu0 0.0
    %874 = vmatprep.subr.mxu0 0.0
    %875 = vmatpush1.msra.mxu0 0.0
    %876 = vmatprep.subr.mxu0 0.0
    %877 = vmatpush1.msra.mxu0 0.0
    %878 = vmatprep.subr.mxu0 0.0
    %879 = vmatpush1.msra.mxu0 0.0
    %880 = vmatprep.subr.mxu0 0.0
    %881 = vmatpush1.msra.mxu0 0.0
    %882 = vmatprep.subr.mxu0 0.0
    %883 = vmatpush1.msra.mxu0 0.0
    %884 = vmatprep.subr.mxu0 0.0
    %885 = vmatpush1.msra.mxu0 0.0
    %886 = vmatprep.subr.mxu0 0.0
    %887 = vmatpush1.msra.mxu0 0.0
    %888 = vmatprep.subr.mxu0 0.0
    %889 = vmatpush1.msra.mxu0 0.0
    %890 = vmatprep.subr.mxu0 0.0
    %891 = vmatpush1.msra.mxu0 0.0
    %892 = vmatprep.subr.mxu0 0.0
    %893 = vmatpush1.msra.mxu0 0.0
    %894 = vmatprep.subr.mxu0 0.0
    %895 = vmatpush1.msra.mxu0 0.0
    %896 = vmatprep.subr.mxu0 0.0
    %897 = vmatpush1.msra.mxu0 0.0
    %898 = vmatprep.mubr.f32.mxu0 0.0
    %899 = vmatmul.mubr.f32.gmra.mrb[0].mxu0 %v832
    %v900 = vpop.f32.mrb[0].mxu0
    %v901 = vadd.f32 %v76, %v900
    %v902 = vpop.f32.mrb[0].mxu0
    %903 = vdwg.mxu0
    %v904 = vld [vmem:[#allocation2 + $0x2] sm:$0x1]
    %v905 = vadd.f32 %v904, %v826
    %v906 = vxor.u32 %v905, 2147483648
    %v907 = vmul.f32 %v906, 1.442695
    %v908 = vpow.pop %v907
    %v909 = vadd.f32 %v908, 1.0
    %v910 = vrcp.pop %v909
    %v911 = vmul.f32 1.0, %v910
    %913 = vrot.lane.b32.xlu0 %v826, 64
    %v914 = vpop.permute.xlu0 %913
    %v916 = vmul.f32 %v911, %v914
    %918 = vrot.lane.b32.xlu0 %v916, 64
    %v919 = vpop.permute.xlu0 %918
    %v921 = vadd.f32 %v904, %v919
    %v922 = vtanh.pop %v921
    %v923 = vsub.f32 1.0, %v911
    %925 = vrot.lane.b32.xlu0 %v922, 96
    %v926 = vpop.permute.xlu0 %925
    %v928 = vmul.f32 %v923, %v926
    %v929 = vmul.f32 %v911, %v752
    %v930 = vadd.f32 %v928, %v929
    %932 = vrot.lane.b32.xlu0 %v930, 96
    %v933 = vpop.permute.xlu0 %932
    %v934 = vsel %vm177, %v933, 0
    %936 = vmatprep.subr.mxu0 0.0
    %937 = vmatpush1.msra.mxu0 %v45
    %938 = vmatprep.subr.mxu0 0.0
    %939 = vmatpush1.msra.mxu0 %v46
    %940 = vmatprep.subr.mxu0 0.0
    %941 = vmatpush1.msra.mxu0 %v47
    %942 = vmatprep.subr.mxu0 0.0
    %943 = vmatpush1.msra.mxu0 %v48
    %944 = vmatprep.subr.mxu0 0.0
    %945 = vmatpush1.msra.mxu0 0.0
    %946 = vmatprep.subr.mxu0 0.0
    %947 = vmatpush1.msra.mxu0 0.0
    %948 = vmatprep.subr.mxu0 0.0
    %949 = vmatpush1.msra.mxu0 0.0
    %950 = vmatprep.subr.mxu0 0.0
    %951 = vmatpush1.msra.mxu0 0.0
    %952 = vmatprep.subr.mxu0 0.0
    %953 = vmatpush1.msra.mxu0 0.0
    %954 = vmatprep.subr.mxu0 0.0
    %955 = vmatpush1.msra.mxu0 0.0
    %956 = vmatprep.subr.mxu0 0.0
    %957 = vmatpush1.msra.mxu0 0.0
    %958 = vmatprep.subr.mxu0 0.0
    %959 = vmatpush1.msra.mxu0 0.0
    %960 = vmatprep.subr.mxu0 0.0
    %961 = vmatpush1.msra.mxu0 0.0
    %962 = vmatprep.subr.mxu0 0.0
    %963 = vmatpush1.msra.mxu0 0.0
    %964 = vmatprep.subr.mxu0 0.0
    %965 = vmatpush1.msra.mxu0 0.0
    %966 = vmatprep.subr.mxu0 0.0
    %967 = vmatpush1.msra.mxu0 0.0
    %968 = vmatprep.subr.mxu0 0.0
    %969 = vmatpush1.msra.mxu0 0.0
    %970 = vmatprep.subr.mxu0 0.0
    %971 = vmatpush1.msra.mxu0 0.0
    %972 = vmatprep.subr.mxu0 0.0
    %973 = vmatpush1.msra.mxu0 0.0
    %974 = vmatprep.subr.mxu0 0.0
    %975 = vmatpush1.msra.mxu0 0.0
    %976 = vmatprep.subr.mxu0 0.0
    %977 = vmatpush1.msra.mxu0 0.0
    %978 = vmatprep.subr.mxu0 0.0
    %979 = vmatpush1.msra.mxu0 0.0
    %980 = vmatprep.subr.mxu0 0.0
    %981 = vmatpush1.msra.mxu0 0.0
    %982 = vmatprep.subr.mxu0 0.0
    %983 = vmatpush1.msra.mxu0 0.0
    %984 = vmatprep.subr.mxu0 0.0
    %985 = vmatpush1.msra.mxu0 0.0
    %986 = vmatprep.subr.mxu0 0.0
    %987 = vmatpush1.msra.mxu0 0.0
    %988 = vmatprep.subr.mxu0 0.0
    %989 = vmatpush1.msra.mxu0 0.0
    %990 = vmatprep.subr.mxu0 0.0
    %991 = vmatpush1.msra.mxu0 0.0
    %992 = vmatprep.subr.mxu0 0.0
    %993 = vmatpush1.msra.mxu0 0.0
    %994 = vmatprep.subr.mxu0 0.0
    %995 = vmatpush1.msra.mxu0 0.0
    %996 = vmatprep.subr.mxu0 0.0
    %997 = vmatpush1.msra.mxu0 0.0
    %998 = vmatprep.subr.mxu0 0.0
    %999 = vmatpush1.msra.mxu0 0.0
    %1000 = vmatprep.mubr.f32.mxu0 0.0
    %1001 = vmatmul.mubr.f32.gmra.mrb[0].mxu0 %v934
    %v1002 = vpop.f32.mrb[0].mxu0
    %v1003 = vadd.f32 %v75, %v1002
    %v1004 = vpop.f32.mrb[0].mxu0
    %1005 = vdwg.mxu0
    %v1006 = vadd.f32 %v1003, %v901
    %v1007 = vxor.u32 %v1006, 2147483648
    %v1008 = vmul.f32 %v1007, 1.442695
    %v1009 = vpow.pop %v1008
    %v1010 = vadd.f32 %v1009, 1.0
    %v1011 = vrcp.pop %v1010
    %v1012 = vmul.f32 1.0, %v1011
    %1014 = vrot.lane.b32.xlu0 %v901, 64
    %v1015 = vpop.permute.xlu0 %1014
    %v1017 = vmul.f32 %v1012, %v1015
    %1019 = vrot.lane.b32.xlu0 %v1017, 64
    %v1020 = vpop.permute.xlu0 %1019
    %v1022 = vadd.f32 %v1003, %v1020
    %v1023 = vtanh.pop %v1022
    %v1024 = vsub.f32 1.0, %v1012
    %1026 = vrot.lane.b32.xlu0 %v1023, 96
    %v1027 = vpop.permute.xlu0 %1026
    %v1029 = vmul.f32 %v1024, %v1027
    %v1030 = vmul.f32 %v1012, %v753
    %v1031 = vadd.f32 %v1029, %v1030
    %v1032 = vld [vmem:[%s1 + $0x2] sm:$0x1]
    %vm1033 = vcmp.ne.s32.totalorder %v1032, 0
    %v1034 = vsel %vm1033, 1, 0
    %1035 = vset.pattern.permute.xlu0 0
    %1036 = vperm.xlu0 %1035, %v1034
    %v1037 = vpop.permute.xlu0 %1036
    %vm1038 = vcmp.eq.s32.totalorder %v1037, 1
    %v1039 = vsel %vm1038, %v930, %v752
    %v1040 = vsel %vm1038, %v1031, %v753
    %1042 = vrot.lane.b32.xlu0 %v1039, 96
    %v1043 = vpop.permute.xlu0 %1042
    %v1044 = vsel %vm177, %v1043, 0
    %1046 = vmatprep.subr.mxu0 0.0
    %1047 = vmatpush1.msra.mxu0 %v41
    %1048 = vmatprep.subr.mxu0 0.0
    %1049 = vmatpush1.msra.mxu0 %v42
    %1050 = vmatprep.subr.mxu0 0.0
    %1051 = vmatpush1.msra.mxu0 %v43
    %1052 = vmatprep.subr.mxu0 0.0
    %1053 = vmatpush1.msra.mxu0 %v44
    %1054 = vmatprep.subr.mxu0 0.0
    %1055 = vmatpush1.msra.mxu0 0.0
    %1056 = vmatprep.subr.mxu0 0.0
    %1057 = vmatpush1.msra.mxu0 0.0
    %1058 = vmatprep.subr.mxu0 0.0
    %1059 = vmatpush1.msra.mxu0 0.0
    %1060 = vmatprep.subr.mxu0 0.0
    %1061 = vmatpush1.msra.mxu0 0.0
    %1062 = vmatprep.subr.mxu0 0.0
    %1063 = vmatpush1.msra.mxu0 0.0
    %1064 = vmatprep.subr.mxu0 0.0
    %1065 = vmatpush1.msra.mxu0 0.0
    %1066 = vmatprep.subr.mxu0 0.0
    %1067 = vmatpush1.msra.mxu0 0.0
    %1068 = vmatprep.subr.mxu0 0.0
    %1069 = vmatpush1.msra.mxu0 0.0
    %1070 = vmatprep.subr.mxu0 0.0
    %1071 = vmatpush1.msra.mxu0 0.0
    %1072 = vmatprep.subr.mxu0 0.0
    %1073 = vmatpush1.msra.mxu0 0.0
    %1074 = vmatprep.subr.mxu0 0.0
    %1075 = vmatpush1.msra.mxu0 0.0
    %1076 = vmatprep.subr.mxu0 0.0
    %1077 = vmatpush1.msra.mxu0 0.0
    %1078 = vmatprep.subr.mxu0 0.0
    %1079 = vmatpush1.msra.mxu0 0.0
    %1080 = vmatprep.subr.mxu0 0.0
    %1081 = vmatpush1.msra.mxu0 0.0
    %1082 = vmatprep.subr.mxu0 0.0
    %1083 = vmatpush1.msra.mxu0 0.0
    %1084 = vmatprep.subr.mxu0 0.0
    %1085 = vmatpush1.msra.mxu0 0.0
    %1086 = vmatprep.subr.mxu0 0.0
    %1087 = vmatpush1.msra.mxu0 0.0
    %1088 = vmatprep.subr.mxu0 0.0
    %1089 = vmatpush1.msra.mxu0 0.0
    %1090 = vmatprep.subr.mxu0 0.0
    %1091 = vmatpush1.msra.mxu0 0.0
    %1092 = vmatprep.subr.mxu0 0.0
    %1093 = vmatpush1.msra.mxu0 0.0
    %1094 = vmatprep.subr.mxu0 0.0
    %1095 = vmatpush1.msra.mxu0 0.0
    %1096 = vmatprep.subr.mxu0 0.0
    %1097 = vmatpush1.msra.mxu0 0.0
    %1098 = vmatprep.subr.mxu0 0.0
    %1099 = vmatpush1.msra.mxu0 0.0
    %1100 = vmatprep.subr.mxu0 0.0
    %1101 = vmatpush1.msra.mxu0 0.0
    %1102 = vmatprep.subr.mxu0 0.0
    %1103 = vmatpush1.msra.mxu0 0.0
    %1104 = vmatprep.subr.mxu0 0.0
    %1105 = vmatpush1.msra.mxu0 0.0
    %1106 = vmatprep.subr.mxu0 0.0
    %1107 = vmatpush1.msra.mxu0 0.0
    %1108 = vmatprep.subr.mxu0 0.0
    %1109 = vmatpush1.msra.mxu0 0.0
    %1110 = vmatprep.mubr.f32.mxu0 0.0
    %1111 = vmatmul.mubr.f32.gmra.mrb[0].mxu0 %v1044
    %v1112 = vpop.f32.mrb[0].mxu0
    %v1113 = vadd.f32 %v74, %v1112
    %v1114 = vpop.f32.mrb[0].mxu0
    %1115 = vdwg.mxu0
    %1117 = vrot.lane.b32.xlu0 %v1040, 96
    %v1118 = vpop.permute.xlu0 %1117
    %v1119 = vsel %vm177, %v1118, 0
    %1121 = vmatprep.subr.mxu0 0.0
    %1122 = vmatpush1.msra.mxu0 %v49
    %1123 = vmatprep.subr.mxu0 0.0
    %1124 = vmatpush1.msra.mxu0 %v50
    %1125 = vmatprep.subr.mxu0 0.0
    %1126 = vmatpush1.msra.mxu0 %v51
    %1127 = vmatprep.subr.mxu0 0.0
    %1128 = vmatpush1.msra.mxu0 %v52
    %1129 = vmatprep.subr.mxu0 0.0
    %1130 = vmatpush1.msra.mxu0 0.0
    %1131 = vmatprep.subr.mxu0 0.0
    %1132 = vmatpush1.msra.mxu0 0.0
    %1133 = vmatprep.subr.mxu0 0.0
    %1134 = vmatpush1.msra.mxu0 0.0
    %1135 = vmatprep.subr.mxu0 0.0
    %1136 = vmatpush1.msra.mxu0 0.0
    %1137 = vmatprep.subr.mxu0 0.0
    %1138 = vmatpush1.msra.mxu0 0.0
    %1139 = vmatprep.subr.mxu0 0.0
    %1140 = vmatpush1.msra.mxu0 0.0
    %1141 = vmatprep.subr.mxu0 0.0
    %1142 = vmatpush1.msra.mxu0 0.0
    %1143 = vmatprep.subr.mxu0 0.0
    %1144 = vmatpush1.msra.mxu0 0.0
    %1145 = vmatprep.subr.mxu0 0.0
    %1146 = vmatpush1.msra.mxu0 0.0
    %1147 = vmatprep.subr.mxu0 0.0
    %1148 = vmatpush1.msra.mxu0 0.0
    %1149 = vmatprep.subr.mxu0 0.0
    %1150 = vmatpush1.msra.mxu0 0.0
    %1151 = vmatprep.subr.mxu0 0.0
    %1152 = vmatpush1.msra.mxu0 0.0
    %1153 = vmatprep.subr.mxu0 0.0
    %1154 = vmatpush1.msra.mxu0 0.0
    %1155 = vmatprep.subr.mxu0 0.0
    %1156 = vmatpush1.msra.mxu0 0.0
    %1157 = vmatprep.subr.mxu0 0.0
    %1158 = vmatpush1.msra.mxu0 0.0
    %1159 = vmatprep.subr.mxu0 0.0
    %1160 = vmatpush1.msra.mxu0 0.0
    %1161 = vmatprep.subr.mxu0 0.0
    %1162 = vmatpush1.msra.mxu0 0.0
    %1163 = vmatprep.subr.mxu0 0.0
    %1164 = vmatpush1.msra.mxu0 0.0
    %1165 = vmatprep.subr.mxu0 0.0
    %1166 = vmatpush1.msra.mxu0 0.0
    %1167 = vmatprep.subr.mxu0 0.0
    %1168 = vmatpush1.msra.mxu0 0.0
    %1169 = vmatprep.subr.mxu0 0.0
    %1170 = vmatpush1.msra.mxu0 0.0
    %1171 = vmatprep.subr.mxu0 0.0
    %1172 = vmatpush1.msra.mxu0 0.0
    %1173 = vmatprep.subr.mxu0 0.0
    %1174 = vmatpush1.msra.mxu0 0.0
    %1175 = vmatprep.subr.mxu0 0.0
    %1176 = vmatpush1.msra.mxu0 0.0
    %1177 = vmatprep.subr.mxu0 0.0
    %1178 = vmatpush1.msra.mxu0 0.0
    %1179 = vmatprep.subr.mxu0 0.0
    %1180 = vmatpush1.msra.mxu0 0.0
    %1181 = vmatprep.subr.mxu0 0.0
    %1182 = vmatpush1.msra.mxu0 0.0
    %1183 = vmatprep.subr.mxu0 0.0
    %1184 = vmatpush1.msra.mxu0 0.0
    %1185 = vmatprep.mubr.f32.mxu0 0.0
    %1186 = vmatmul.mubr.f32.gmra.mrb[0].mxu0 %v1119
    %v1187 = vpop.f32.mrb[0].mxu0
    %v1188 = vadd.f32 %v76, %v1187
    %v1189 = vpop.f32.mrb[0].mxu0
    %1190 = vdwg.mxu0
    %v1191 = vld [vmem:[#allocation2 + $0x3] sm:$0x1]
    %v1192 = vadd.f32 %v1191, %v1113
    %v1193 = vxor.u32 %v1192, 2147483648
    %v1194 = vmul.f32 %v1193, 1.442695
    %v1195 = vpow.pop %v1194
    %v1196 = vadd.f32 %v1195, 1.0
    %v1197 = vrcp.pop %v1196
    %v1198 = vmul.f32 1.0, %v1197
    %1200 = vrot.lane.b32.xlu0 %v1113, 64
    %v1201 = vpop.permute.xlu0 %1200
    %v1203 = vmul.f32 %v1198, %v1201
    %1205 = vrot.lane.b32.xlu0 %v1203, 64
    %v1206 = vpop.permute.xlu0 %1205
    %v1208 = vadd.f32 %v1191, %v1206
    %v1209 = vtanh.pop %v1208
    %v1210 = vsub.f32 1.0, %v1198
    %1212 = vrot.lane.b32.xlu0 %v1209, 96
    %v1213 = vpop.permute.xlu0 %1212
    %v1215 = vmul.f32 %v1210, %v1213
    %v1216 = vmul.f32 %v1198, %v1039
    %v1217 = vadd.f32 %v1215, %v1216
    %1219 = vrot.lane.b32.xlu0 %v1217, 96
    %v1220 = vpop.permute.xlu0 %1219
    %v1221 = vsel %vm177, %v1220, 0
    %1223 = vmatprep.subr.mxu0 0.0
    %1224 = vmatpush1.msra.mxu0 %v45
    %1225 = vmatprep.subr.mxu0 0.0
    %1226 = vmatpush1.msra.mxu0 %v46
    %1227 = vmatprep.subr.mxu0 0.0
    %1228 = vmatpush1.msra.mxu0 %v47
    %1229 = vmatprep.subr.mxu0 0.0
    %1230 = vmatpush1.msra.mxu0 %v48
    %1231 = vmatprep.subr.mxu0 0.0
    %1232 = vmatpush1.msra.mxu0 0.0
    %1233 = vmatprep.subr.mxu0 0.0
    %1234 = vmatpush1.msra.mxu0 0.0
    %1235 = vmatprep.subr.mxu0 0.0
    %1236 = vmatpush1.msra.mxu0 0.0
    %1237 = vmatprep.subr.mxu0 0.0
    %1238 = vmatpush1.msra.mxu0 0.0
    %1239 = vmatprep.subr.mxu0 0.0
    %1240 = vmatpush1.msra.mxu0 0.0
    %1241 = vmatprep.subr.mxu0 0.0
    %1242 = vmatpush1.msra.mxu0 0.0
    %1243 = vmatprep.subr.mxu0 0.0
    %1244 = vmatpush1.msra.mxu0 0.0
    %1245 = vmatprep.subr.mxu0 0.0
    %1246 = vmatpush1.msra.mxu0 0.0
    %1247 = vmatprep.subr.mxu0 0.0
    %1248 = vmatpush1.msra.mxu0 0.0
    %1249 = vmatprep.subr.mxu0 0.0
    %1250 = vmatpush1.msra.mxu0 0.0
    %1251 = vmatprep.subr.mxu0 0.0
    %1252 = vmatpush1.msra.mxu0 0.0
    %1253 = vmatprep.subr.mxu0 0.0
    %1254 = vmatpush1.msra.mxu0 0.0
    %1255 = vmatprep.subr.mxu0 0.0
    %1256 = vmatpush1.msra.mxu0 0.0
    %1257 = vmatprep.subr.mxu0 0.0
    %1258 = vmatpush1.msra.mxu0 0.0
    %1259 = vmatprep.subr.mxu0 0.0
    %1260 = vmatpush1.msra.mxu0 0.0
    %1261 = vmatprep.subr.mxu0 0.0
    %1262 = vmatpush1.msra.mxu0 0.0
    %1263 = vmatprep.subr.mxu0 0.0
    %1264 = vmatpush1.msra.mxu0 0.0
    %1265 = vmatprep.subr.mxu0 0.0
    %1266 = vmatpush1.msra.mxu0 0.0
    %1267 = vmatprep.subr.mxu0 0.0
    %1268 = vmatpush1.msra.mxu0 0.0
    %1269 = vmatprep.subr.mxu0 0.0
    %1270 = vmatpush1.msra.mxu0 0.0
    %1271 = vmatprep.subr.mxu0 0.0
    %1272 = vmatpush1.msra.mxu0 0.0
    %1273 = vmatprep.subr.mxu0 0.0
    %1274 = vmatpush1.msra.mxu0 0.0
    %1275 = vmatprep.subr.mxu0 0.0
    %1276 = vmatpush1.msra.mxu0 0.0
    %1277 = vmatprep.subr.mxu0 0.0
    %1278 = vmatpush1.msra.mxu0 0.0
    %1279 = vmatprep.subr.mxu0 0.0
    %1280 = vmatpush1.msra.mxu0 0.0
    %1281 = vmatprep.subr.mxu0 0.0
    %1282 = vmatpush1.msra.mxu0 0.0
    %1283 = vmatprep.subr.mxu0 0.0
    %1284 = vmatpush1.msra.mxu0 0.0
    %1285 = vmatprep.subr.mxu0 0.0
    %1286 = vmatpush1.msra.mxu0 0.0
    %1287 = vmatprep.mubr.f32.mxu0 0.0
    %1288 = vmatmul.mubr.f32.gmra.mrb[0].mxu0 %v1221
    %v1289 = vpop.f32.mrb[0].mxu0
    %v1290 = vadd.f32 %v75, %v1289
    %v1291 = vpop.f32.mrb[0].mxu0
    %1292 = vdwg.mxu0
    %v1293 = vadd.f32 %v1290, %v1188
    %v1294 = vxor.u32 %v1293, 2147483648
    %v1295 = vmul.f32 %v1294, 1.442695
    %v1296 = vpow.pop %v1295
    %v1297 = vadd.f32 %v1296, 1.0
    %v1298 = vrcp.pop %v1297
    %v1299 = vmul.f32 1.0, %v1298
    %1301 = vrot.lane.b32.xlu0 %v1188, 64
    %v1302 = vpop.permute.xlu0 %1301
    %v1304 = vmul.f32 %v1299, %v1302
    %1306 = vrot.lane.b32.xlu0 %v1304, 64
    %v1307 = vpop.permute.xlu0 %1306
    %v1309 = vadd.f32 %v1290, %v1307
    %v1310 = vtanh.pop %v1309
    %v1311 = vsub.f32 1.0, %v1299
    %1313 = vrot.lane.b32.xlu0 %v1310, 96
    %v1314 = vpop.permute.xlu0 %1313
    %v1316 = vmul.f32 %v1311, %v1314
    %v1317 = vmul.f32 %v1299, %v1040
    %v1318 = vadd.f32 %v1316, %v1317
    %v1319 = vld [vmem:[%s1 + $0x3] sm:$0x1]
    %vm1320 = vcmp.ne.s32.totalorder %v1319, 0
    %v1321 = vsel %vm1320, 1, 0
    %1322 = vset.pattern.permute.xlu0 0
    %1323 = vperm.xlu0 %1322, %v1321
    %v1324 = vpop.permute.xlu0 %1323
    %vm1325 = vcmp.eq.s32.totalorder %v1324, 1
    %v1326 = vsel %vm1325, %v1217, %v1039
    %v1327 = vsel %vm1325, %v1318, %v1040
    %1329 = vrot.lane.b32.xlu0 %v1326, 96
    %v1330 = vpop.permute.xlu0 %1329
    %v1331 = vsel %vm177, %v1330, 0
    %1333 = vmatprep.subr.mxu0 0.0
    %1334 = vmatpush1.msra.mxu0 %v41
    %1335 = vmatprep.subr.mxu0 0.0
    %1336 = vmatpush1.msra.mxu0 %v42
    %1337 = vmatprep.subr.mxu0 0.0
    %1338 = vmatpush1.msra.mxu0 %v43
    %1339 = vmatprep.subr.mxu0 0.0
    %1340 = vmatpush1.msra.mxu0 %v44
    %1341 = vmatprep.subr.mxu0 0.0
    %1342 = vmatpush1.msra.mxu0 0.0
    %1343 = vmatprep.subr.mxu0 0.0
    %1344 = vmatpush1.msra.mxu0 0.0
    %1345 = vmatprep.subr.mxu0 0.0
    %1346 = vmatpush1.msra.mxu0 0.0
    %1347 = vmatprep.subr.mxu0 0.0
    %1348 = vmatpush1.msra.mxu0 0.0
    %1349 = vmatprep.subr.mxu0 0.0
    %1350 = vmatpush1.msra.mxu0 0.0
    %1351 = vmatprep.subr.mxu0 0.0
    %1352 = vmatpush1.msra.mxu0 0.0
    %1353 = vmatprep.subr.mxu0 0.0
    %1354 = vmatpush1.msra.mxu0 0.0
    %1355 = vmatprep.subr.mxu0 0.0
    %1356 = vmatpush1.msra.mxu0 0.0
    %1357 = vmatprep.subr.mxu0 0.0
    %1358 = vmatpush1.msra.mxu0 0.0
    %1359 = vmatprep.subr.mxu0 0.0
    %1360 = vmatpush1.msra.mxu0 0.0
    %1361 = vmatprep.subr.mxu0 0.0
    %1362 = vmatpush1.msra.mxu0 0.0
    %1363 = vmatprep.subr.mxu0 0.0
    %1364 = vmatpush1.msra.mxu0 0.0
    %1365 = vmatprep.subr.mxu0 0.0
    %1366 = vmatpush1.msra.mxu0 0.0
    %1367 = vmatprep.subr.mxu0 0.0
    %1368 = vmatpush1.msra.mxu0 0.0
    %1369 = vmatprep.subr.mxu0 0.0
    %1370 = vmatpush1.msra.mxu0 0.0
    %1371 = vmatprep.subr.mxu0 0.0
    %1372 = vmatpush1.msra.mxu0 0.0
    %1373 = vmatprep.subr.mxu0 0.0
    %1374 = vmatpush1.msra.mxu0 0.0
    %1375 = vmatprep.subr.mxu0 0.0
    %1376 = vmatpush1.msra.mxu0 0.0
    %1377 = vmatprep.subr.mxu0 0.0
    %1378 = vmatpush1.msra.mxu0 0.0
    %1379 = vmatprep.subr.mxu0 0.0
    %1380 = vmatpush1.msra.mxu0 0.0
    %1381 = vmatprep.subr.mxu0 0.0
    %1382 = vmatpush1.msra.mxu0 0.0
    %1383 = vmatprep.subr.mxu0 0.0
    %1384 = vmatpush1.msra.mxu0 0.0
    %1385 = vmatprep.subr.mxu0 0.0
    %1386 = vmatpush1.msra.mxu0 0.0
    %1387 = vmatprep.subr.mxu0 0.0
    %1388 = vmatpush1.msra.mxu0 0.0
    %1389 = vmatprep.subr.mxu0 0.0
    %1390 = vmatpush1.msra.mxu0 0.0
    %1391 = vmatprep.subr.mxu0 0.0
    %1392 = vmatpush1.msra.mxu0 0.0
    %1393 = vmatprep.subr.mxu0 0.0
    %1394 = vmatpush1.msra.mxu0 0.0
    %1395 = vmatprep.subr.mxu0 0.0
    %1396 = vmatpush1.msra.mxu0 0.0
    %1397 = vmatprep.mubr.f32.mxu0 0.0
    %1398 = vmatmul.mubr.f32.gmra.mrb[0].mxu0 %v1331
    %v1399 = vpop.f32.mrb[0].mxu0
    %v1400 = vadd.f32 %v74, %v1399
    %v1401 = vpop.f32.mrb[0].mxu0
    %1402 = vdwg.mxu0
    %1404 = vrot.lane.b32.xlu0 %v1327, 96
    %v1405 = vpop.permute.xlu0 %1404
    %v1406 = vsel %vm177, %v1405, 0
    %1408 = vmatprep.subr.mxu0 0.0
    %1409 = vmatpush1.msra.mxu0 %v49
    %1410 = vmatprep.subr.mxu0 0.0
    %1411 = vmatpush1.msra.mxu0 %v50
    %1412 = vmatprep.subr.mxu0 0.0
    %1413 = vmatpush1.msra.mxu0 %v51
    %1414 = vmatprep.subr.mxu0 0.0
    %1415 = vmatpush1.msra.mxu0 %v52
    %1416 = vmatprep.subr.mxu0 0.0
    %1417 = vmatpush1.msra.mxu0 0.0
    %1418 = vmatprep.subr.mxu0 0.0
    %1419 = vmatpush1.msra.mxu0 0.0
    %1420 = vmatprep.subr.mxu0 0.0
    %1421 = vmatpush1.msra.mxu0 0.0
    %1422 = vmatprep.subr.mxu0 0.0
    %1423 = vmatpush1.msra.mxu0 0.0
    %1424 = vmatprep.subr.mxu0 0.0
    %1425 = vmatpush1.msra.mxu0 0.0
    %1426 = vmatprep.subr.mxu0 0.0
    %1427 = vmatpush1.msra.mxu0 0.0
    %1428 = vmatprep.subr.mxu0 0.0
    %1429 = vmatpush1.msra.mxu0 0.0
    %1430 = vmatprep.subr.mxu0 0.0
    %1431 = vmatpush1.msra.mxu0 0.0
    %1432 = vmatprep.subr.mxu0 0.0
    %1433 = vmatpush1.msra.mxu0 0.0
    %1434 = vmatprep.subr.mxu0 0.0
    %1435 = vmatpush1.msra.mxu0 0.0
    %1436 = vmatprep.subr.mxu0 0.0
    %1437 = vmatpush1.msra.mxu0 0.0
    %1438 = vmatprep.subr.mxu0 0.0
    %1439 = vmatpush1.msra.mxu0 0.0
    %1440 = vmatprep.subr.mxu0 0.0
    %1441 = vmatpush1.msra.mxu0 0.0
    %1442 = vmatprep.subr.mxu0 0.0
    %1443 = vmatpush1.msra.mxu0 0.0
    %1444 = vmatprep.subr.mxu0 0.0
    %1445 = vmatpush1.msra.mxu0 0.0
    %1446 = vmatprep.subr.mxu0 0.0
    %1447 = vmatpush1.msra.mxu0 0.0
    %1448 = vmatprep.subr.mxu0 0.0
    %1449 = vmatpush1.msra.mxu0 0.0
    %1450 = vmatprep.subr.mxu0 0.0
    %1451 = vmatpush1.msra.mxu0 0.0
    %1452 = vmatprep.subr.mxu0 0.0
    %1453 = vmatpush1.msra.mxu0 0.0
    %1454 = vmatprep.subr.mxu0 0.0
    %1455 = vmatpush1.msra.mxu0 0.0
    %1456 = vmatprep.subr.mxu0 0.0
    %1457 = vmatpush1.msra.mxu0 0.0
    %1458 = vmatprep.subr.mxu0 0.0
    %1459 = vmatpush1.msra.mxu0 0.0
    %1460 = vmatprep.subr.mxu0 0.0
    %1461 = vmatpush1.msra.mxu0 0.0
    %1462 = vmatprep.subr.mxu0 0.0
    %1463 = vmatpush1.msra.mxu0 0.0
    %1464 = vmatprep.subr.mxu0 0.0
    %1465 = vmatpush1.msra.mxu0 0.0
    %1466 = vmatprep.subr.mxu0 0.0
    %1467 = vmatpush1.msra.mxu0 0.0
    %1468 = vmatprep.subr.mxu0 0.0
    %1469 = vmatpush1.msra.mxu0 0.0
    %1470 = vmatprep.subr.mxu0 0.0
    %1471 = vmatpush1.msra.mxu0 0.0
    %1472 = vmatprep.mubr.f32.mxu0 0.0
    %1473 = vmatmul.mubr.f32.gmra.mrb[0].mxu0 %v1406
    %v1474 = vpop.f32.mrb[0].mxu0
    %v1475 = vadd.f32 %v76, %v1474
    %v1476 = vpop.f32.mrb[0].mxu0
    %1477 = vdwg.mxu0
    %v1478 = vld [vmem:[#allocation2 + $0x4] sm:$0x1]
    %v1479 = vadd.f32 %v1478, %v1400
    %v1480 = vxor.u32 %v1479, 2147483648
    %v1481 = vmul.f32 %v1480, 1.442695
    %v1482 = vpow.pop %v1481
    %v1483 = vadd.f32 %v1482, 1.0
    %v1484 = vrcp.pop %v1483
    %v1485 = vmul.f32 1.0, %v1484
    %1487 = vrot.lane.b32.xlu0 %v1400, 64
    %v1488 = vpop.permute.xlu0 %1487
    %v1490 = vmul.f32 %v1485, %v1488
    %1492 = vrot.lane.b32.xlu0 %v1490, 64
    %v1493 = vpop.permute.xlu0 %1492
    %v1495 = vadd.f32 %v1478, %v1493
    %v1496 = vtanh.pop %v1495
    %v1497 = vsub.f32 1.0, %v1485
    %1499 = vrot.lane.b32.xlu0 %v1496, 96
    %v1500 = vpop.permute.xlu0 %1499
    %v1502 = vmul.f32 %v1497, %v1500
    %v1503 = vmul.f32 %v1485, %v1326
    %v1504 = vadd.f32 %v1502, %v1503
    %1506 = vrot.lane.b32.xlu0 %v1504, 96
    %v1507 = vpop.permute.xlu0 %1506
    %v1508 = vsel %vm177, %v1507, 0
    %1510 = vmatprep.subr.mxu0 0.0
    %1511 = vmatpush1.msra.mxu0 %v45
    %1512 = vmatprep.subr.mxu0 0.0
    %1513 = vmatpush1.msra.mxu0 %v46
    %1514 = vmatprep.subr.mxu0 0.0
    %1515 = vmatpush1.msra.mxu0 %v47
    %1516 = vmatprep.subr.mxu0 0.0
    %1517 = vmatpush1.msra.mxu0 %v48
    %1518 = vmatprep.subr.mxu0 0.0
    %1519 = vmatpush1.msra.mxu0 0.0
    %1520 = vmatprep.subr.mxu0 0.0
    %1521 = vmatpush1.msra.mxu0 0.0
    %1522 = vmatprep.subr.mxu0 0.0
    %1523 = vmatpush1.msra.mxu0 0.0
    %1524 = vmatprep.subr.mxu0 0.0
    %1525 = vmatpush1.msra.mxu0 0.0
    %1526 = vmatprep.subr.mxu0 0.0
    %1527 = vmatpush1.msra.mxu0 0.0
    %1528 = vmatprep.subr.mxu0 0.0
    %1529 = vmatpush1.msra.mxu0 0.0
    %1530 = vmatprep.subr.mxu0 0.0
    %1531 = vmatpush1.msra.mxu0 0.0
    %1532 = vmatprep.subr.mxu0 0.0
    %1533 = vmatpush1.msra.mxu0 0.0
    %1534 = vmatprep.subr.mxu0 0.0
    %1535 = vmatpush1.msra.mxu0 0.0
    %1536 = vmatprep.subr.mxu0 0.0
    %1537 = vmatpush1.msra.mxu0 0.0
    %1538 = vmatprep.subr.mxu0 0.0
    %1539 = vmatpush1.msra.mxu0 0.0
    %1540 = vmatprep.subr.mxu0 0.0
    %1541 = vmatpush1.msra.mxu0 0.0
    %1542 = vmatprep.subr.mxu0 0.0
    %1543 = vmatpush1.msra.mxu0 0.0
    %1544 = vmatprep.subr.mxu0 0.0
    %1545 = vmatpush1.msra.mxu0 0.0
    %1546 = vmatprep.subr.mxu0 0.0
    %1547 = vmatpush1.msra.mxu0 0.0
    %1548 = vmatprep.subr.mxu0 0.0
    %1549 = vmatpush1.msra.mxu0 0.0
    %1550 = vmatprep.subr.mxu0 0.0
    %1551 = vmatpush1.msra.mxu0 0.0
    %1552 = vmatprep.subr.mxu0 0.0
    %1553 = vmatpush1.msra.mxu0 0.0
    %1554 = vmatprep.subr.mxu0 0.0
    %1555 = vmatpush1.msra.mxu0 0.0
    %1556 = vmatprep.subr.mxu0 0.0
    %1557 = vmatpush1.msra.mxu0 0.0
    %1558 = vmatprep.subr.mxu0 0.0
    %1559 = vmatpush1.msra.mxu0 0.0
    %1560 = vmatprep.subr.mxu0 0.0
    %1561 = vmatpush1.msra.mxu0 0.0
    %1562 = vmatprep.subr.mxu0 0.0
    %1563 = vmatpush1.msra.mxu0 0.0
    %1564 = vmatprep.subr.mxu0 0.0
    %1565 = vmatpush1.msra.mxu0 0.0
    %1566 = vmatprep.subr.mxu0 0.0
    %1567 = vmatpush1.msra.mxu0 0.0
    %1568 = vmatprep.subr.mxu0 0.0
    %1569 = vmatpush1.msra.mxu0 0.0
    %1570 = vmatprep.subr.mxu0 0.0
    %1571 = vmatpush1.msra.mxu0 0.0
    %1572 = vmatprep.subr.mxu0 0.0
    %1573 = vmatpush1.msra.mxu0 0.0
    %1574 = vmatprep.mubr.f32.mxu0 0.0
    %1575 = vmatmul.mubr.f32.gmra.mrb[0].mxu0 %v1508
    %v1576 = vpop.f32.mrb[0].mxu0
    %v1577 = vadd.f32 %v75, %v1576
    %v1578 = vpop.f32.mrb[0].mxu0
    %1579 = vdwg.mxu0
    %v1580 = vadd.f32 %v1577, %v1475
    %v1581 = vxor.u32 %v1580, 2147483648
    %v1582 = vmul.f32 %v1581, 1.442695
    %v1583 = vpow.pop %v1582
    %v1584 = vadd.f32 %v1583, 1.0
    %v1585 = vrcp.pop %v1584
    %v1586 = vmul.f32 1.0, %v1585
    %1588 = vrot.lane.b32.xlu0 %v1475, 64
    %v1589 = vpop.permute.xlu0 %1588
    %v1591 = vmul.f32 %v1586, %v1589
    %1593 = vrot.lane.b32.xlu0 %v1591, 64
    %v1594 = vpop.permute.xlu0 %1593
    %v1596 = vadd.f32 %v1577, %v1594
    %v1597 = vtanh.pop %v1596
    %v1598 = vsub.f32 1.0, %v1586
    %1600 = vrot.lane.b32.xlu0 %v1597, 96
    %v1601 = vpop.permute.xlu0 %1600
    %v1603 = vmul.f32 %v1598, %v1601
    %v1604 = vmul.f32 %v1586, %v1327
    %v1605 = vadd.f32 %v1603, %v1604
    %v1606 = vld [vmem:[%s1 + $0x4] sm:$0x1]
    %vm1607 = vcmp.ne.s32.totalorder %v1606, 0
    %v1608 = vsel %vm1607, 1, 0
    %1609 = vset.pattern.permute.xlu0 0
    %1610 = vperm.xlu0 %1609, %v1608
    %v1611 = vpop.permute.xlu0 %1610
    %vm1612 = vcmp.eq.s32.totalorder %v1611, 1
    %v1613 = vsel %vm1612, %v1504, %v1326
    %v1614 = vsel %vm1612, %v1605, %v1327
    %1616 = vrot.lane.b32.xlu0 %v1613, 96
    %v1617 = vpop.permute.xlu0 %1616
    %v1618 = vsel %vm177, %v1617, 0
    %1620 = vmatprep.subr.mxu0 0.0
    %1621 = vmatpush1.msra.mxu0 %v41
    %1622 = vmatprep.subr.mxu0 0.0
    %1623 = vmatpush1.msra.mxu0 %v42
    %1624 = vmatprep.subr.mxu0 0.0
    %1625 = vmatpush1.msra.mxu0 %v43
    %1626 = vmatprep.subr.mxu0 0.0
    %1627 = vmatpush1.msra.mxu0 %v44
    %1628 = vmatprep.subr.mxu0 0.0
    %1629 = vmatpush1.msra.mxu0 0.0
    %1630 = vmatprep.subr.mxu0 0.0
    %1631 = vmatpush1.msra.mxu0 0.0
    %1632 = vmatprep.subr.mxu0 0.0
    %1633 = vmatpush1.msra.mxu0 0.0
    %1634 = vmatprep.subr.mxu0 0.0
    %1635 = vmatpush1.msra.mxu0 0.0
    %1636 = vmatprep.subr.mxu0 0.0
    %1637 = vmatpush1.msra.mxu0 0.0
    %1638 = vmatprep.subr.mxu0 0.0
    %1639 = vmatpush1.msra.mxu0 0.0
    %1640 = vmatprep.subr.mxu0 0.0
    %1641 = vmatpush1.msra.mxu0 0.0
    %1642 = vmatprep.subr.mxu0 0.0
    %1643 = vmatpush1.msra.mxu0 0.0
    %1644 = vmatprep.subr.mxu0 0.0
    %1645 = vmatpush1.msra.mxu0 0.0
    %1646 = vmatprep.subr.mxu0 0.0
    %1647 = vmatpush1.msra.mxu0 0.0
    %1648 = vmatprep.subr.mxu0 0.0
    %1649 = vmatpush1.msra.mxu0 0.0
    %1650 = vmatprep.subr.mxu0 0.0
    %1651 = vmatpush1.msra.mxu0 0.0
    %1652 = vmatprep.subr.mxu0 0.0
    %1653 = vmatpush1.msra.mxu0 0.0
    %1654 = vmatprep.subr.mxu0 0.0
    %1655 = vmatpush1.msra.mxu0 0.0
    %1656 = vmatprep.subr.mxu0 0.0
    %1657 = vmatpush1.msra.mxu0 0.0
    %1658 = vmatprep.subr.mxu0 0.0
    %1659 = vmatpush1.msra.mxu0 0.0
    %1660 = vmatprep.subr.mxu0 0.0
    %1661 = vmatpush1.msra.mxu0 0.0
    %1662 = vmatprep.subr.mxu0 0.0
    %1663 = vmatpush1.msra.mxu0 0.0
    %1664 = vmatprep.subr.mxu0 0.0
    %1665 = vmatpush1.msra.mxu0 0.0
    %1666 = vmatprep.subr.mxu0 0.0
    %1667 = vmatpush1.msra.mxu0 0.0
    %1668 = vmatprep.subr.mxu0 0.0
    %1669 = vmatpush1.msra.mxu0 0.0
    %1670 = vmatprep.subr.mxu0 0.0
    %1671 = vmatpush1.msra.mxu0 0.0
    %1672 = vmatprep.subr.mxu0 0.0
    %1673 = vmatpush1.msra.mxu0 0.0
    %1674 = vmatprep.subr.mxu0 0.0
    %1675 = vmatpush1.msra.mxu0 0.0
    %1676 = vmatprep.subr.mxu0 0.0
    %1677 = vmatpush1.msra.mxu0 0.0
    %1678 = vmatprep.subr.mxu0 0.0
    %1679 = vmatpush1.msra.mxu0 0.0
    %1680 = vmatprep.subr.mxu0 0.0
    %1681 = vmatpush1.msra.mxu0 0.0
    %1682 = vmatprep.subr.mxu0 0.0
    %1683 = vmatpush1.msra.mxu0 0.0
    %1684 = vmatprep.mubr.f32.mxu0 0.0
    %1685 = vmatmul.mubr.f32.gmra.mrb[0].mxu0 %v1618
    %v1686 = vpop.f32.mrb[0].mxu0
    %v1687 = vadd.f32 %v74, %v1686
    %v1688 = vpop.f32.mrb[0].mxu0
    %1689 = vdwg.mxu0
    %1691 = vrot.lane.b32.xlu0 %v1614, 96
    %v1692 = vpop.permute.xlu0 %1691
    %v1693 = vsel %vm177, %v1692, 0
    %1695 = vmatprep.subr.mxu0 0.0
    %1696 = vmatpush1.msra.mxu0 %v49
    %1697 = vmatprep.subr.mxu0 0.0
    %1698 = vmatpush1.msra.mxu0 %v50
    %1699 = vmatprep.subr.mxu0 0.0
    %1700 = vmatpush1.msra.mxu0 %v51
    %1701 = vmatprep.subr.mxu0 0.0
    %1702 = vmatpush1.msra.mxu0 %v52
    %1703 = vmatprep.subr.mxu0 0.0
    %1704 = vmatpush1.msra.mxu0 0.0
    %1705 = vmatprep.subr.mxu0 0.0
    %1706 = vmatpush1.msra.mxu0 0.0
    %1707 = vmatprep.subr.mxu0 0.0
    %1708 = vmatpush1.msra.mxu0 0.0
    %1709 = vmatprep.subr.mxu0 0.0
    %1710 = vmatpush1.msra.mxu0 0.0
    %1711 = vmatprep.subr.mxu0 0.0
    %1712 = vmatpush1.msra.mxu0 0.0
    %1713 = vmatprep.subr.mxu0 0.0
    %1714 = vmatpush1.msra.mxu0 0.0
    %1715 = vmatprep.subr.mxu0 0.0
    %1716 = vmatpush1.msra.mxu0 0.0
    %1717 = vmatprep.subr.mxu0 0.0
    %1718 = vmatpush1.msra.mxu0 0.0
    %1719 = vmatprep.subr.mxu0 0.0
    %1720 = vmatpush1.msra.mxu0 0.0
    %1721 = vmatprep.subr.mxu0 0.0
    %1722 = vmatpush1.msra.mxu0 0.0
    %1723 = vmatprep.subr.mxu0 0.0
    %1724 = vmatpush1.msra.mxu0 0.0
    %1725 = vmatprep.subr.mxu0 0.0
    %1726 = vmatpush1.msra.mxu0 0.0
    %1727 = vmatprep.subr.mxu0 0.0
    %1728 = vmatpush1.msra.mxu0 0.0
    %1729 = vmatprep.subr.mxu0 0.0
    %1730 = vmatpush1.msra.mxu0 0.0
    %1731 = vmatprep.subr.mxu0 0.0
    %1732 = vmatpush1.msra.mxu0 0.0
    %1733 = vmatprep.subr.mxu0 0.0
    %1734 = vmatpush1.msra.mxu0 0.0
    %1735 = vmatprep.subr.mxu0 0.0
    %1736 = vmatpush1.msra.mxu0 0.0
    %1737 = vmatprep.subr.mxu0 0.0
    %1738 = vmatpush1.msra.mxu0 0.0
    %1739 = vmatprep.subr.mxu0 0.0
    %1740 = vmatpush1.msra.mxu0 0.0
    %1741 = vmatprep.subr.mxu0 0.0
    %1742 = vmatpush1.msra.mxu0 0.0
    %1743 = vmatprep.subr.mxu0 0.0
    %1744 = vmatpush1.msra.mxu0 0.0
    %1745 = vmatprep.subr.mxu0 0.0
    %1746 = vmatpush1.msra.mxu0 0.0
    %1747 = vmatprep.subr.mxu0 0.0
    %1748 = vmatpush1.msra.mxu0 0.0
    %1749 = vmatprep.subr.mxu0 0.0
    %1750 = vmatpush1.msra.mxu0 0.0
    %1751 = vmatprep.subr.mxu0 0.0
    %1752 = vmatpush1.msra.mxu0 0.0
    %1753 = vmatprep.subr.mxu0 0.0
    %1754 = vmatpush1.msra.mxu0 0.0
    %1755 = vmatprep.subr.mxu0 0.0
    %1756 = vmatpush1.msra.mxu0 0.0
    %1757 = vmatprep.subr.mxu0 0.0
    %1758 = vmatpush1.msra.mxu0 0.0
    %1759 = vmatprep.mubr.f32.mxu0 0.0
    %1760 = vmatmul.mubr.f32.gmra.mrb[0].mxu0 %v1693
    %v1761 = vpop.f32.mrb[0].mxu0
    %v1762 = vadd.f32 %v76, %v1761
    %v1763 = vpop.f32.mrb[0].mxu0
    %1764 = vdwg.mxu0
    %v1765 = vld [vmem:[#allocation2 + $0x5] sm:$0x1]
    %v1766 = vadd.f32 %v1765, %v1687
    %v1767 = vxor.u32 %v1766, 2147483648
    %v1768 = vmul.f32 %v1767, 1.442695
    %v1769 = vpow.pop %v1768
    %v1770 = vadd.f32 %v1769, 1.0
    %v1771 = vrcp.pop %v1770
    %v1772 = vmul.f32 1.0, %v1771
    %1774 = vrot.lane.b32.xlu0 %v1687, 64
    %v1775 = vpop.permute.xlu0 %1774
    %v1777 = vmul.f32 %v1772, %v1775
    %1779 = vrot.lane.b32.xlu0 %v1777, 64
    %v1780 = vpop.permute.xlu0 %1779
    %v1782 = vadd.f32 %v1765, %v1780
    %v1783 = vtanh.pop %v1782
    %v1784 = vsub.f32 1.0, %v1772
    %1786 = vrot.lane.b32.xlu0 %v1783, 96
    %v1787 = vpop.permute.xlu0 %1786
    %v1789 = vmul.f32 %v1784, %v1787
    %v1790 = vmul.f32 %v1772, %v1613
    %v1791 = vadd.f32 %v1789, %v1790
    %1793 = vrot.lane.b32.xlu0 %v1791, 96
    %v1794 = vpop.permute.xlu0 %1793
    %v1795 = vsel %vm177, %v1794, 0
    %1797 = vmatprep.subr.mxu0 0.0
    %1798 = vmatpush1.msra.mxu0 %v45
    %1799 = vmatprep.subr.mxu0 0.0
    %1800 = vmatpush1.msra.mxu0 %v46
    %1801 = vmatprep.subr.mxu0 0.0
    %1802 = vmatpush1.msra.mxu0 %v47
    %1803 = vmatprep.subr.mxu0 0.0
    %1804 = vmatpush1.msra.mxu0 %v48
    %1805 = vmatprep.subr.mxu0 0.0
    %1806 = vmatpush1.msra.mxu0 0.0
    %1807 = vmatprep.subr.mxu0 0.0
    %1808 = vmatpush1.msra.mxu0 0.0
    %1809 = vmatprep.subr.mxu0 0.0
    %1810 = vmatpush1.msra.mxu0 0.0
    %1811 = vmatprep.subr.mxu0 0.0
    %1812 = vmatpush1.msra.mxu0 0.0
    %1813 = vmatprep.subr.mxu0 0.0
    %1814 = vmatpush1.msra.mxu0 0.0
    %1815 = vmatprep.subr.mxu0 0.0
    %1816 = vmatpush1.msra.mxu0 0.0
    %1817 = vmatprep.subr.mxu0 0.0
    %1818 = vmatpush1.msra.mxu0 0.0
    %1819 = vmatprep.subr.mxu0 0.0
    %1820 = vmatpush1.msra.mxu0 0.0
    %1821 = vmatprep.subr.mxu0 0.0
    %1822 = vmatpush1.msra.mxu0 0.0
    %1823 = vmatprep.subr.mxu0 0.0
    %1824 = vmatpush1.msra.mxu0 0.0
    %1825 = vmatprep.subr.mxu0 0.0
    %1826 = vmatpush1.msra.mxu0 0.0
    %1827 = vmatprep.subr.mxu0 0.0
    %1828 = vmatpush1.msra.mxu0 0.0
    %1829 = vmatprep.subr.mxu0 0.0
    %1830 = vmatpush1.msra.mxu0 0.0
    %1831 = vmatprep.subr.mxu0 0.0
    %1832 = vmatpush1.msra.mxu0 0.0
    %1833 = vmatprep.subr.mxu0 0.0
    %1834 = vmatpush1.msra.mxu0 0.0
    %1835 = vmatprep.subr.mxu0 0.0
    %1836 = vmatpush1.msra.mxu0 0.0
    %1837 = vmatprep.subr.mxu0 0.0
    %1838 = vmatpush1.msra.mxu0 0.0
    %1839 = vmatprep.subr.mxu0 0.0
    %1840 = vmatpush1.msra.mxu0 0.0
    %1841 = vmatprep.subr.mxu0 0.0
    %1842 = vmatpush1.msra.mxu0 0.0
    %1843 = vmatprep.subr.mxu0 0.0
    %1844 = vmatpush1.msra.mxu0 0.0
    %1845 = vmatprep.subr.mxu0 0.0
    %1846 = vmatpush1.msra.mxu0 0.0
    %1847 = vmatprep.subr.mxu0 0.0
    %1848 = vmatpush1.msra.mxu0 0.0
    %1849 = vmatprep.subr.mxu0 0.0
    %1850 = vmatpush1.msra.mxu0 0.0
    %1851 = vmatprep.subr.mxu0 0.0
    %1852 = vmatpush1.msra.mxu0 0.0
    %1853 = vmatprep.subr.mxu0 0.0
    %1854 = vmatpush1.msra.mxu0 0.0
    %1855 = vmatprep.subr.mxu0 0.0
    %1856 = vmatpush1.msra.mxu0 0.0
    %1857 = vmatprep.subr.mxu0 0.0
    %1858 = vmatpush1.msra.mxu0 0.0
    %1859 = vmatprep.subr.mxu0 0.0
    %1860 = vmatpush1.msra.mxu0 0.0
    %1861 = vmatprep.mubr.f32.mxu0 0.0
    %1862 = vmatmul.mubr.f32.gmra.mrb[0].mxu0 %v1795
    %v1863 = vpop.f32.mrb[0].mxu0
    %v1864 = vadd.f32 %v75, %v1863
    %v1865 = vpop.f32.mrb[0].mxu0
    %1866 = vdwg.mxu0
    %v1867 = vadd.f32 %v1864, %v1762
    %v1868 = vxor.u32 %v1867, 2147483648
    %v1869 = vmul.f32 %v1868, 1.442695
    %v1870 = vpow.pop %v1869
    %v1871 = vadd.f32 %v1870, 1.0
    %v1872 = vrcp.pop %v1871
    %v1873 = vmul.f32 1.0, %v1872
    %1875 = vrot.lane.b32.xlu0 %v1762, 64
    %v1876 = vpop.permute.xlu0 %1875
    %v1878 = vmul.f32 %v1873, %v1876
    %1880 = vrot.lane.b32.xlu0 %v1878, 64
    %v1881 = vpop.permute.xlu0 %1880
    %v1883 = vadd.f32 %v1864, %v1881
    %v1884 = vtanh.pop %v1883
    %v1885 = vsub.f32 1.0, %v1873
    %1887 = vrot.lane.b32.xlu0 %v1884, 96
    %v1888 = vpop.permute.xlu0 %1887
    %v1890 = vmul.f32 %v1885, %v1888
    %v1891 = vmul.f32 %v1873, %v1614
    %v1892 = vadd.f32 %v1890, %v1891
    %v1893 = vld [vmem:[%s1 + $0x5] sm:$0x1]
    %vm1894 = vcmp.ne.s32.totalorder %v1893, 0
    %v1895 = vsel %vm1894, 1, 0
    %1896 = vset.pattern.permute.xlu0 0
    %1897 = vperm.xlu0 %1896, %v1895
    %v1898 = vpop.permute.xlu0 %1897
    %vm1899 = vcmp.eq.s32.totalorder %v1898, 1
    %v1900 = vsel %vm1899, %v1791, %v1613
    %v1901 = vsel %vm1899, %v1892, %v1614
    %1903 = vrot.lane.b32.xlu0 %v1900, 96
    %v1904 = vpop.permute.xlu0 %1903
    %v1905 = vsel %vm177, %v1904, 0
    %1907 = vmatprep.subr.mxu0 0.0
    %1908 = vmatpush1.msra.mxu0 %v41
    %1909 = vmatprep.subr.mxu0 0.0
    %1910 = vmatpush1.msra.mxu0 %v42
    %1911 = vmatprep.subr.mxu0 0.0
    %1912 = vmatpush1.msra.mxu0 %v43
    %1913 = vmatprep.subr.mxu0 0.0
    %1914 = vmatpush1.msra.mxu0 %v44
    %1915 = vmatprep.subr.mxu0 0.0
    %1916 = vmatpush1.msra.mxu0 0.0
    %1917 = vmatprep.subr.mxu0 0.0
    %1918 = vmatpush1.msra.mxu0 0.0
    %1919 = vmatprep.subr.mxu0 0.0
    %1920 = vmatpush1.msra.mxu0 0.0
    %1921 = vmatprep.subr.mxu0 0.0
    %1922 = vmatpush1.msra.mxu0 0.0
    %1923 = vmatprep.subr.mxu0 0.0
    %1924 = vmatpush1.msra.mxu0 0.0
    %1925 = vmatprep.subr.mxu0 0.0
    %1926 = vmatpush1.msra.mxu0 0.0
    %1927 = vmatprep.subr.mxu0 0.0
    %1928 = vmatpush1.msra.mxu0 0.0
    %1929 = vmatprep.subr.mxu0 0.0
    %1930 = vmatpush1.msra.mxu0 0.0
    %1931 = vmatprep.subr.mxu0 0.0
    %1932 = vmatpush1.msra.mxu0 0.0
    %1933 = vmatprep.subr.mxu0 0.0
    %1934 = vmatpush1.msra.mxu0 0.0
    %1935 = vmatprep.subr.mxu0 0.0
    %1936 = vmatpush1.msra.mxu0 0.0
    %1937 = vmatprep.subr.mxu0 0.0
    %1938 = vmatpush1.msra.mxu0 0.0
    %1939 = vmatprep.subr.mxu0 0.0
    %1940 = vmatpush1.msra.mxu0 0.0
    %1941 = vmatprep.subr.mxu0 0.0
    %1942 = vmatpush1.msra.mxu0 0.0
    %1943 = vmatprep.subr.mxu0 0.0
    %1944 = vmatpush1.msra.mxu0 0.0
    %1945 = vmatprep.subr.mxu0 0.0
    %1946 = vmatpush1.msra.mxu0 0.0
    %1947 = vmatprep.subr.mxu0 0.0
    %1948 = vmatpush1.msra.mxu0 0.0
    %1949 = vmatprep.subr.mxu0 0.0
    %1950 = vmatpush1.msra.mxu0 0.0
    %1951 = vmatprep.subr.mxu0 0.0
    %1952 = vmatpush1.msra.mxu0 0.0
    %1953 = vmatprep.subr.mxu0 0.0
    %1954 = vmatpush1.msra.mxu0 0.0
    %1955 = vmatprep.subr.mxu0 0.0
    %1956 = vmatpush1.msra.mxu0 0.0
    %1957 = vmatprep.subr.mxu0 0.0
    %1958 = vmatpush1.msra.mxu0 0.0
    %1959 = vmatprep.subr.mxu0 0.0
    %1960 = vmatpush1.msra.mxu0 0.0
    %1961 = vmatprep.subr.mxu0 0.0
    %1962 = vmatpush1.msra.mxu0 0.0
    %1963 = vmatprep.subr.mxu0 0.0
    %1964 = vmatpush1.msra.mxu0 0.0
    %1965 = vmatprep.subr.mxu0 0.0
    %1966 = vmatpush1.msra.mxu0 0.0
    %1967 = vmatprep.subr.mxu0 0.0
    %1968 = vmatpush1.msra.mxu0 0.0
    %1969 = vmatprep.subr.mxu0 0.0
    %1970 = vmatpush1.msra.mxu0 0.0
    %1971 = vmatprep.mubr.f32.mxu0 0.0
    %1972 = vmatmul.mubr.f32.gmra.mrb[0].mxu0 %v1905
    %v1973 = vpop.f32.mrb[0].mxu0
    %v1974 = vadd.f32 %v74, %v1973
    %v1975 = vpop.f32.mrb[0].mxu0
    %1976 = vdwg.mxu0
    %1978 = vrot.lane.b32.xlu0 %v1901, 96
    %v1979 = vpop.permute.xlu0 %1978
    %v1980 = vsel %vm177, %v1979, 0
    %1982 = vmatprep.subr.mxu0 0.0
    %1983 = vmatpush1.msra.mxu0 %v49
    %1984 = vmatprep.subr.mxu0 0.0
    %1985 = vmatpush1.msra.mxu0 %v50
    %1986 = vmatprep.subr.mxu0 0.0
    %1987 = vmatpush1.msra.mxu0 %v51
    %1988 = vmatprep.subr.mxu0 0.0
    %1989 = vmatpush1.msra.mxu0 %v52
    %1990 = vmatprep.subr.mxu0 0.0
    %1991 = vmatpush1.msra.mxu0 0.0
    %1992 = vmatprep.subr.mxu0 0.0
    %1993 = vmatpush1.msra.mxu0 0.0
    %1994 = vmatprep.subr.mxu0 0.0
    %1995 = vmatpush1.msra.mxu0 0.0
    %1996 = vmatprep.subr.mxu0 0.0
    %1997 = vmatpush1.msra.mxu0 0.0
    %1998 = vmatprep.subr.mxu0 0.0
    %1999 = vmatpush1.msra.mxu0 0.0
    %2000 = vmatprep.subr.mxu0 0.0
    %2001 = vmatpush1.msra.mxu0 0.0
    %2002 = vmatprep.subr.mxu0 0.0
    %2003 = vmatpush1.msra.mxu0 0.0
    %2004 = vmatprep.subr.mxu0 0.0
    %2005 = vmatpush1.msra.mxu0 0.0
    %2006 = vmatprep.subr.mxu0 0.0
    %2007 = vmatpush1.msra.mxu0 0.0
    %2008 = vmatprep.subr.mxu0 0.0
    %2009 = vmatpush1.msra.mxu0 0.0
    %2010 = vmatprep.subr.mxu0 0.0
    %2011 = vmatpush1.msra.mxu0 0.0
    %2012 = vmatprep.subr.mxu0 0.0
    %2013 = vmatpush1.msra.mxu0 0.0
    %2014 = vmatprep.subr.mxu0 0.0
    %2015 = vmatpush1.msra.mxu0 0.0
    %2016 = vmatprep.subr.mxu0 0.0
    %2017 = vmatpush1.msra.mxu0 0.0
    %2018 = vmatprep.subr.mxu0 0.0
    %2019 = vmatpush1.msra.mxu0 0.0
    %2020 = vmatprep.subr.mxu0 0.0
    %2021 = vmatpush1.msra.mxu0 0.0
    %2022 = vmatprep.subr.mxu0 0.0
    %2023 = vmatpush1.msra.mxu0 0.0
    %2024 = vmatprep.subr.mxu0 0.0
    %2025 = vmatpush1.msra.mxu0 0.0
    %2026 = vmatprep.subr.mxu0 0.0
    %2027 = vmatpush1.msra.mxu0 0.0
    %2028 = vmatprep.subr.mxu0 0.0
    %2029 = vmatpush1.msra.mxu0 0.0
    %2030 = vmatprep.subr.mxu0 0.0
    %2031 = vmatpush1.msra.mxu0 0.0
    %2032 = vmatprep.subr.mxu0 0.0
    %2033 = vmatpush1.msra.mxu0 0.0
    %2034 = vmatprep.subr.mxu0 0.0
    %2035 = vmatpush1.msra.mxu0 0.0
    %2036 = vmatprep.subr.mxu0 0.0
    %2037 = vmatpush1.msra.mxu0 0.0
    %2038 = vmatprep.subr.mxu0 0.0
    %2039 = vmatpush1.msra.mxu0 0.0
    %2040 = vmatprep.subr.mxu0 0.0
    %2041 = vmatpush1.msra.mxu0 0.0
    %2042 = vmatprep.subr.mxu0 0.0
    %2043 = vmatpush1.msra.mxu0 0.0
    %2044 = vmatprep.subr.mxu0 0.0
    %2045 = vmatpush1.msra.mxu0 0.0
    %2046 = vmatprep.mubr.f32.mxu0 0.0
    %2047 = vmatmul.mubr.f32.gmra.mrb[0].mxu0 %v1980
    %v2048 = vpop.f32.mrb[0].mxu0
    %v2049 = vadd.f32 %v76, %v2048
    %v2050 = vpop.f32.mrb[0].mxu0
    %2051 = vdwg.mxu0
    %v2052 = vld [vmem:[#allocation2 + $0x6] sm:$0x1]
    %v2053 = vadd.f32 %v2052, %v1974
    %v2054 = vxor.u32 %v2053, 2147483648
    %v2055 = vmul.f32 %v2054, 1.442695
    %v2056 = vpow.pop %v2055
    %v2057 = vadd.f32 %v2056, 1.0
    %v2058 = vrcp.pop %v2057
    %v2059 = vmul.f32 1.0, %v2058
    %2061 = vrot.lane.b32.xlu0 %v1974, 64
    %v2062 = vpop.permute.xlu0 %2061
    %v2064 = vmul.f32 %v2059, %v2062
    %2066 = vrot.lane.b32.xlu0 %v2064, 64
    %v2067 = vpop.permute.xlu0 %2066
    %v2069 = vadd.f32 %v2052, %v2067
    %v2070 = vtanh.pop %v2069
    %v2071 = vsub.f32 1.0, %v2059
    %2073 = vrot.lane.b32.xlu0 %v2070, 96
    %v2074 = vpop.permute.xlu0 %2073
    %v2076 = vmul.f32 %v2071, %v2074
    %v2077 = vmul.f32 %v2059, %v1900
    %v2078 = vadd.f32 %v2076, %v2077
    %2080 = vrot.lane.b32.xlu0 %v2078, 96
    %v2081 = vpop.permute.xlu0 %2080
    %v2082 = vsel %vm177, %v2081, 0
    %2084 = vmatprep.subr.mxu0 0.0
    %2085 = vmatpush1.msra.mxu0 %v45
    %2086 = vmatprep.subr.mxu0 0.0
    %2087 = vmatpush1.msra.mxu0 %v46
    %2088 = vmatprep.subr.mxu0 0.0
    %2089 = vmatpush1.msra.mxu0 %v47
    %2090 = vmatprep.subr.mxu0 0.0
    %2091 = vmatpush1.msra.mxu0 %v48
    %2092 = vmatprep.subr.mxu0 0.0
    %2093 = vmatpush1.msra.mxu0 0.0
    %2094 = vmatprep.subr.mxu0 0.0
    %2095 = vmatpush1.msra.mxu0 0.0
    %2096 = vmatprep.subr.mxu0 0.0
    %2097 = vmatpush1.msra.mxu0 0.0
    %2098 = vmatprep.subr.mxu0 0.0
    %2099 = vmatpush1.msra.mxu0 0.0
    %2100 = vmatprep.subr.mxu0 0.0
    %2101 = vmatpush1.msra.mxu0 0.0
    %2102 = vmatprep.subr.mxu0 0.0
    %2103 = vmatpush1.msra.mxu0 0.0
    %2104 = vmatprep.subr.mxu0 0.0
    %2105 = vmatpush1.msra.mxu0 0.0
    %2106 = vmatprep.subr.mxu0 0.0
    %2107 = vmatpush1.msra.mxu0 0.0
    %2108 = vmatprep.subr.mxu0 0.0
    %2109 = vmatpush1.msra.mxu0 0.0
    %2110 = vmatprep.subr.mxu0 0.0
    %2111 = vmatpush1.msra.mxu0 0.0
    %2112 = vmatprep.subr.mxu0 0.0
    %2113 = vmatpush1.msra.mxu0 0.0
    %2114 = vmatprep.subr.mxu0 0.0
    %2115 = vmatpush1.msra.mxu0 0.0
    %2116 = vmatprep.subr.mxu0 0.0
    %2117 = vmatpush1.msra.mxu0 0.0
    %2118 = vmatprep.subr.mxu0 0.0
    %2119 = vmatpush1.msra.mxu0 0.0
    %2120 = vmatprep.subr.mxu0 0.0
    %2121 = vmatpush1.msra.mxu0 0.0
    %2122 = vmatprep.subr.mxu0 0.0
    %2123 = vmatpush1.msra.mxu0 0.0
    %2124 = vmatprep.subr.mxu0 0.0
    %2125 = vmatpush1.msra.mxu0 0.0
    %2126 = vmatprep.subr.mxu0 0.0
    %2127 = vmatpush1.msra.mxu0 0.0
    %2128 = vmatprep.subr.mxu0 0.0
    %2129 = vmatpush1.msra.mxu0 0.0
    %2130 = vmatprep.subr.mxu0 0.0
    %2131 = vmatpush1.msra.mxu0 0.0
    %2132 = vmatprep.subr.mxu0 0.0
    %2133 = vmatpush1.msra.mxu0 0.0
    %2134 = vmatprep.subr.mxu0 0.0
    %2135 = vmatpush1.msra.mxu0 0.0
    %2136 = vmatprep.subr.mxu0 0.0
    %2137 = vmatpush1.msra.mxu0 0.0
    %2138 = vmatprep.subr.mxu0 0.0
    %2139 = vmatpush1.msra.mxu0 0.0
    %2140 = vmatprep.subr.mxu0 0.0
    %2141 = vmatpush1.msra.mxu0 0.0
    %2142 = vmatprep.subr.mxu0 0.0
    %2143 = vmatpush1.msra.mxu0 0.0
    %2144 = vmatprep.subr.mxu0 0.0
    %2145 = vmatpush1.msra.mxu0 0.0
    %2146 = vmatprep.subr.mxu0 0.0
    %2147 = vmatpush1.msra.mxu0 0.0
    %2148 = vmatprep.mubr.f32.mxu0 0.0
    %2149 = vmatmul.mubr.f32.gmra.mrb[0].mxu0 %v2082
    %v2150 = vpop.f32.mrb[0].mxu0
    %v2151 = vadd.f32 %v75, %v2150
    %v2152 = vpop.f32.mrb[0].mxu0
    %2153 = vdwg.mxu0
    %v2154 = vadd.f32 %v2151, %v2049
    %v2155 = vxor.u32 %v2154, 2147483648
    %v2156 = vmul.f32 %v2155, 1.442695
    %v2157 = vpow.pop %v2156
    %v2158 = vadd.f32 %v2157, 1.0
    %v2159 = vrcp.pop %v2158
    %v2160 = vmul.f32 1.0, %v2159
    %2162 = vrot.lane.b32.xlu0 %v2049, 64
    %v2163 = vpop.permute.xlu0 %2162
    %v2165 = vmul.f32 %v2160, %v2163
    %2167 = vrot.lane.b32.xlu0 %v2165, 64
    %v2168 = vpop.permute.xlu0 %2167
    %v2170 = vadd.f32 %v2151, %v2168
    %v2171 = vtanh.pop %v2170
    %v2172 = vsub.f32 1.0, %v2160
    %2174 = vrot.lane.b32.xlu0 %v2171, 96
    %v2175 = vpop.permute.xlu0 %2174
    %v2177 = vmul.f32 %v2172, %v2175
    %v2178 = vmul.f32 %v2160, %v1901
    %v2179 = vadd.f32 %v2177, %v2178
    %v2180 = vld [vmem:[%s1 + $0x6] sm:$0x1]
    %vm2181 = vcmp.ne.s32.totalorder %v2180, 0
    %v2182 = vsel %vm2181, 1, 0
    %2183 = vset.pattern.permute.xlu0 0
    %2184 = vperm.xlu0 %2183, %v2182
    %v2185 = vpop.permute.xlu0 %2184
    %vm2186 = vcmp.eq.s32.totalorder %v2185, 1
    %v2187 = vsel %vm2186, %v2078, %v1900
    %v2188 = vsel %vm2186, %v2179, %v1901
    %2190 = vrot.lane.b32.xlu0 %v2187, 96
    %v2191 = vpop.permute.xlu0 %2190
    %v2192 = vsel %vm177, %v2191, 0
    %2194 = vmatprep.subr.mxu0 0.0
    %2195 = vmatpush1.msra.mxu0 %v41
    %2196 = vmatprep.subr.mxu0 0.0
    %2197 = vmatpush1.msra.mxu0 %v42
    %2198 = vmatprep.subr.mxu0 0.0
    %2199 = vmatpush1.msra.mxu0 %v43
    %2200 = vmatprep.subr.mxu0 0.0
    %2201 = vmatpush1.msra.mxu0 %v44
    %2202 = vmatprep.subr.mxu0 0.0
    %2203 = vmatpush1.msra.mxu0 0.0
    %2204 = vmatprep.subr.mxu0 0.0
    %2205 = vmatpush1.msra.mxu0 0.0
    %2206 = vmatprep.subr.mxu0 0.0
    %2207 = vmatpush1.msra.mxu0 0.0
    %2208 = vmatprep.subr.mxu0 0.0
    %2209 = vmatpush1.msra.mxu0 0.0
    %2210 = vmatprep.subr.mxu0 0.0
    %2211 = vmatpush1.msra.mxu0 0.0
    %2212 = vmatprep.subr.mxu0 0.0
    %2213 = vmatpush1.msra.mxu0 0.0
    %2214 = vmatprep.subr.mxu0 0.0
    %2215 = vmatpush1.msra.mxu0 0.0
    %2216 = vmatprep.subr.mxu0 0.0
    %2217 = vmatpush1.msra.mxu0 0.0
    %2218 = vmatprep.subr.mxu0 0.0
    %2219 = vmatpush1.msra.mxu0 0.0
    %2220 = vmatprep.subr.mxu0 0.0
    %2221 = vmatpush1.msra.mxu0 0.0
    %2222 = vmatprep.subr.mxu0 0.0
    %2223 = vmatpush1.msra.mxu0 0.0
    %2224 = vmatprep.subr.mxu0 0.0
    %2225 = vmatpush1.msra.mxu0 0.0
    %2226 = vmatprep.subr.mxu0 0.0
    %2227 = vmatpush1.msra.mxu0 0.0
    %2228 = vmatprep.subr.mxu0 0.0
    %2229 = vmatpush1.msra.mxu0 0.0
    %2230 = vmatprep.subr.mxu0 0.0
    %2231 = vmatpush1.msra.mxu0 0.0
    %2232 = vmatprep.subr.mxu0 0.0
    %2233 = vmatpush1.msra.mxu0 0.0
    %2234 = vmatprep.subr.mxu0 0.0
    %2235 = vmatpush1.msra.mxu0 0.0
    %2236 = vmatprep.subr.mxu0 0.0
    %2237 = vmatpush1.msra.mxu0 0.0
    %2238 = vmatprep.subr.mxu0 0.0
    %2239 = vmatpush1.msra.mxu0 0.0
    %2240 = vmatprep.subr.mxu0 0.0
    %2241 = vmatpush1.msra.mxu0 0.0
    %2242 = vmatprep.subr.mxu0 0.0
    %2243 = vmatpush1.msra.mxu0 0.0
    %2244 = vmatprep.subr.mxu0 0.0
    %2245 = vmatpush1.msra.mxu0 0.0
    %2246 = vmatprep.subr.mxu0 0.0
    %2247 = vmatpush1.msra.mxu0 0.0
    %2248 = vmatprep.subr.mxu0 0.0
    %2249 = vmatpush1.msra.mxu0 0.0
    %2250 = vmatprep.subr.mxu0 0.0
    %2251 = vmatpush1.msra.mxu0 0.0
    %2252 = vmatprep.subr.mxu0 0.0
    %2253 = vmatpush1.msra.mxu0 0.0
    %2254 = vmatprep.subr.mxu0 0.0
    %2255 = vmatpush1.msra.mxu0 0.0
    %2256 = vmatprep.subr.mxu0 0.0
    %2257 = vmatpush1.msra.mxu0 0.0
    %2258 = vmatprep.mubr.f32.mxu0 0.0
    %2259 = vmatmul.mubr.f32.gmra.mrb[0].mxu0 %v2192
    %v2260 = vpop.f32.mrb[0].mxu0
    %v2261 = vadd.f32 %v74, %v2260
    %v2262 = vpop.f32.mrb[0].mxu0
    %2263 = vdwg.mxu0
    %2265 = vrot.lane.b32.xlu0 %v2188, 96
    %v2266 = vpop.permute.xlu0 %2265
    %v2267 = vsel %vm177, %v2266, 0
    %2269 = vmatprep.subr.mxu0 0.0
    %2270 = vmatpush1.msra.mxu0 %v49
    %2271 = vmatprep.subr.mxu0 0.0
    %2272 = vmatpush1.msra.mxu0 %v50
    %2273 = vmatprep.subr.mxu0 0.0
    %2274 = vmatpush1.msra.mxu0 %v51
    %2275 = vmatprep.subr.mxu0 0.0
    %2276 = vmatpush1.msra.mxu0 %v52
    %2277 = vmatprep.subr.mxu0 0.0
    %2278 = vmatpush1.msra.mxu0 0.0
    %2279 = vmatprep.subr.mxu0 0.0
    %2280 = vmatpush1.msra.mxu0 0.0
    %2281 = vmatprep.subr.mxu0 0.0
    %2282 = vmatpush1.msra.mxu0 0.0
    %2283 = vmatprep.subr.mxu0 0.0
    %2284 = vmatpush1.msra.mxu0 0.0
    %2285 = vmatprep.subr.mxu0 0.0
    %2286 = vmatpush1.msra.mxu0 0.0
    %2287 = vmatprep.subr.mxu0 0.0
    %2288 = vmatpush1.msra.mxu0 0.0
    %2289 = vmatprep.subr.mxu0 0.0
    %2290 = vmatpush1.msra.mxu0 0.0
    %2291 = vmatprep.subr.mxu0 0.0
    %2292 = vmatpush1.msra.mxu0 0.0
    %2293 = vmatprep.subr.mxu0 0.0
    %2294 = vmatpush1.msra.mxu0 0.0
    %2295 = vmatprep.subr.mxu0 0.0
    %2296 = vmatpush1.msra.mxu0 0.0
    %2297 = vmatprep.subr.mxu0 0.0
    %2298 = vmatpush1.msra.mxu0 0.0
    %2299 = vmatprep.subr.mxu0 0.0
    %2300 = vmatpush1.msra.mxu0 0.0
    %2301 = vmatprep.subr.mxu0 0.0
    %2302 = vmatpush1.msra.mxu0 0.0
    %2303 = vmatprep.subr.mxu0 0.0
    %2304 = vmatpush1.msra.mxu0 0.0
    %2305 = vmatprep.subr.mxu0 0.0
    %2306 = vmatpush1.msra.mxu0 0.0
    %2307 = vmatprep.subr.mxu0 0.0
    %2308 = vmatpush1.msra.mxu0 0.0
    %2309 = vmatprep.subr.mxu0 0.0
    %2310 = vmatpush1.msra.mxu0 0.0
    %2311 = vmatprep.subr.mxu0 0.0
    %2312 = vmatpush1.msra.mxu0 0.0
    %2313 = vmatprep.subr.mxu0 0.0
    %2314 = vmatpush1.msra.mxu0 0.0
    %2315 = vmatprep.subr.mxu0 0.0
    %2316 = vmatpush1.msra.mxu0 0.0
    %2317 = vmatprep.subr.mxu0 0.0
    %2318 = vmatpush1.msra.mxu0 0.0
    %2319 = vmatprep.subr.mxu0 0.0
    %2320 = vmatpush1.msra.mxu0 0.0
    %2321 = vmatprep.subr.mxu0 0.0
    %2322 = vmatpush1.msra.mxu0 0.0
    %2323 = vmatprep.subr.mxu0 0.0
    %2324 = vmatpush1.msra.mxu0 0.0
    %2325 = vmatprep.subr.mxu0 0.0
    %2326 = vmatpush1.msra.mxu0 0.0
    %2327 = vmatprep.subr.mxu0 0.0
    %2328 = vmatpush1.msra.mxu0 0.0
    %2329 = vmatprep.subr.mxu0 0.0
    %2330 = vmatpush1.msra.mxu0 0.0
    %2331 = vmatprep.subr.mxu0 0.0
    %2332 = vmatpush1.msra.mxu0 0.0
    %2333 = vmatprep.mubr.f32.mxu0 0.0
    %2334 = vmatmul.mubr.f32.gmra.mrb[0].mxu0 %v2267
    %v2335 = vpop.f32.mrb[0].mxu0
    %v2336 = vadd.f32 %v76, %v2335
    %v2337 = vpop.f32.mrb[0].mxu0
    %2338 = vdwg.mxu0
    %v2339 = vld [vmem:[#allocation2 + $0x7] sm:$0x1]
    %v2340 = vadd.f32 %v2339, %v2261
    %v2341 = vxor.u32 %v2340, 2147483648
    %v2342 = vmul.f32 %v2341, 1.442695
    %v2343 = vpow.pop %v2342
    %v2344 = vadd.f32 %v2343, 1.0
    %v2345 = vrcp.pop %v2344
    %v2346 = vmul.f32 1.0, %v2345
    %2348 = vrot.lane.b32.xlu0 %v2261, 64
    %v2349 = vpop.permute.xlu0 %2348
    %v2351 = vmul.f32 %v2346, %v2349
    %2353 = vrot.lane.b32.xlu0 %v2351, 64
    %v2354 = vpop.permute.xlu0 %2353
    %v2356 = vadd.f32 %v2339, %v2354
    %v2357 = vtanh.pop %v2356
    %v2358 = vsub.f32 1.0, %v2346
    %2360 = vrot.lane.b32.xlu0 %v2357, 96
    %v2361 = vpop.permute.xlu0 %2360
    %v2363 = vmul.f32 %v2358, %v2361
    %v2364 = vmul.f32 %v2346, %v2187
    %v2365 = vadd.f32 %v2363, %v2364
    %2367 = vrot.lane.b32.xlu0 %v2365, 96
    %v2368 = vpop.permute.xlu0 %2367
    %v2369 = vsel %vm177, %v2368, 0
    %2371 = vmatprep.subr.mxu0 0.0
    %2372 = vmatpush1.msra.mxu0 %v45
    %2373 = vmatprep.subr.mxu0 0.0
    %2374 = vmatpush1.msra.mxu0 %v46
    %2375 = vmatprep.subr.mxu0 0.0
    %2376 = vmatpush1.msra.mxu0 %v47
    %2377 = vmatprep.subr.mxu0 0.0
    %2378 = vmatpush1.msra.mxu0 %v48
    %2379 = vmatprep.subr.mxu0 0.0
    %2380 = vmatpush1.msra.mxu0 0.0
    %2381 = vmatprep.subr.mxu0 0.0
    %2382 = vmatpush1.msra.mxu0 0.0
    %2383 = vmatprep.subr.mxu0 0.0
    %2384 = vmatpush1.msra.mxu0 0.0
    %2385 = vmatprep.subr.mxu0 0.0
    %2386 = vmatpush1.msra.mxu0 0.0
    %2387 = vmatprep.subr.mxu0 0.0
    %2388 = vmatpush1.msra.mxu0 0.0
    %2389 = vmatprep.subr.mxu0 0.0
    %2390 = vmatpush1.msra.mxu0 0.0
    %2391 = vmatprep.subr.mxu0 0.0
    %2392 = vmatpush1.msra.mxu0 0.0
    %2393 = vmatprep.subr.mxu0 0.0
    %2394 = vmatpush1.msra.mxu0 0.0
    %2395 = vmatprep.subr.mxu0 0.0
    %2396 = vmatpush1.msra.mxu0 0.0
    %2397 = vmatprep.subr.mxu0 0.0
    %2398 = vmatpush1.msra.mxu0 0.0
    %2399 = vmatprep.subr.mxu0 0.0
    %2400 = vmatpush1.msra.mxu0 0.0
    %2401 = vmatprep.subr.mxu0 0.0
    %2402 = vmatpush1.msra.mxu0 0.0
    %2403 = vmatprep.subr.mxu0 0.0
    %2404 = vmatpush1.msra.mxu0 0.0
    %2405 = vmatprep.subr.mxu0 0.0
    %2406 = vmatpush1.msra.mxu0 0.0
    %2407 = vmatprep.subr.mxu0 0.0
    %2408 = vmatpush1.msra.mxu0 0.0
    %2409 = vmatprep.subr.mxu0 0.0
    %2410 = vmatpush1.msra.mxu0 0.0
    %2411 = vmatprep.subr.mxu0 0.0
    %2412 = vmatpush1.msra.mxu0 0.0
    %2413 = vmatprep.subr.mxu0 0.0
    %2414 = vmatpush1.msra.mxu0 0.0
    %2415 = vmatprep.subr.mxu0 0.0
    %2416 = vmatpush1.msra.mxu0 0.0
    %2417 = vmatprep.subr.mxu0 0.0
    %2418 = vmatpush1.msra.mxu0 0.0
    %2419 = vmatprep.subr.mxu0 0.0
    %2420 = vmatpush1.msra.mxu0 0.0
    %2421 = vmatprep.subr.mxu0 0.0
    %2422 = vmatpush1.msra.mxu0 0.0
    %2423 = vmatprep.subr.mxu0 0.0
    %2424 = vmatpush1.msra.mxu0 0.0
    %2425 = vmatprep.subr.mxu0 0.0
    %2426 = vmatpush1.msra.mxu0 0.0
    %2427 = vmatprep.subr.mxu0 0.0
    %2428 = vmatpush1.msra.mxu0 0.0
    %2429 = vmatprep.subr.mxu0 0.0
    %2430 = vmatpush1.msra.mxu0 0.0
    %2431 = vmatprep.subr.mxu0 0.0
    %2432 = vmatpush1.msra.mxu0 0.0
    %2433 = vmatprep.subr.mxu0 0.0
    %2434 = vmatpush1.msra.mxu0 0.0
    %2435 = vmatprep.mubr.f32.mxu0 0.0
    %2436 = vmatmul.mubr.f32.gmra.mrb[0].mxu0 %v2369
    %v2437 = vpop.f32.mrb[0].mxu0
    %v2438 = vadd.f32 %v75, %v2437
    %v2439 = vpop.f32.mrb[0].mxu0
    %2440 = vdwg.mxu0
    %v2441 = vadd.f32 %v2438, %v2336
    %v2442 = vxor.u32 %v2441, 2147483648
    %v2443 = vmul.f32 %v2442, 1.442695
    %v2444 = vpow.pop %v2443
    %v2445 = vadd.f32 %v2444, 1.0
    %v2446 = vrcp.pop %v2445
    %v2447 = vmul.f32 1.0, %v2446
    %2449 = vrot.lane.b32.xlu0 %v2336, 64
    %v2450 = vpop.permute.xlu0 %2449
    %v2452 = vmul.f32 %v2447, %v2450
    %2454 = vrot.lane.b32.xlu0 %v2452, 64
    %v2455 = vpop.permute.xlu0 %2454
    %v2457 = vadd.f32 %v2438, %v2455
    %v2458 = vtanh.pop %v2457
    %v2459 = vsub.f32 1.0, %v2447
    %2461 = vrot.lane.b32.xlu0 %v2458, 96
    %v2462 = vpop.permute.xlu0 %2461
    %v2464 = vmul.f32 %v2459, %v2462
    %v2465 = vmul.f32 %v2447, %v2188
    %v2466 = vadd.f32 %v2464, %v2465
    %v2467 = vld [vmem:[%s1 + $0x7] sm:$0x1]
    %vm2468 = vcmp.ne.s32.totalorder %v2467, 0
    %v2469 = vsel %vm2468, 1, 0
    %2470 = vset.pattern.permute.xlu0 0
    %2471 = vperm.xlu0 %2470, %v2469
    %v2472 = vpop.permute.xlu0 %2471
    %vm2473 = vcmp.eq.s32.totalorder %v2472, 1
    %v2474 = vsel %vm2473, %v2365, %v2187
    %v2475 = vsel %vm2473, %v2466, %v2188
    %s2476 = sld [smem:[#allocation3]]
    %s2477 = sld [smem:[#allocation3 + $0x1]]
    %v2478 = vstv %s2476
    %vm2479 = vcmp.eq.s32.totalorder %v87, %v2478
    %v2480 = vsel %vm2479, 1, 0
    %v2481 = vcvt.s32.f32 %v2480
    %2483 = vrot.lane.b32.xlu0 %v2474, 96
    %v2484 = vpop.permute.xlu0 %2483
    %v2485 = vsel %vm177, %v2484, 0
    %2487 = vmatprep.subr.mxu0 0.0
    %2488 = vmatpush1.msra.mxu0 %v61
    %2489 = vmatprep.subr.mxu0 0.0
    %2490 = vmatpush1.msra.mxu0 %v62
    %2491 = vmatprep.subr.mxu0 0.0
    %2492 = vmatpush1.msra.mxu0 %v63
    %2493 = vmatprep.subr.mxu0 0.0
    %2494 = vmatpush1.msra.mxu0 %v64
    %2495 = vmatprep.subr.mxu0 0.0
    %2496 = vmatpush1.msra.mxu0 0.0
    %2497 = vmatprep.subr.mxu0 0.0
    %2498 = vmatpush1.msra.mxu0 0.0
    %2499 = vmatprep.subr.mxu0 0.0
    %2500 = vmatpush1.msra.mxu0 0.0
    %2501 = vmatprep.subr.mxu0 0.0
    %2502 = vmatpush1.msra.mxu0 0.0
    %2503 = vmatprep.subr.mxu0 0.0
    %2504 = vmatpush1.msra.mxu0 0.0
    %2505 = vmatprep.subr.mxu0 0.0
    %2506 = vmatpush1.msra.mxu0 0.0
    %2507 = vmatprep.subr.mxu0 0.0
    %2508 = vmatpush1.msra.mxu0 0.0
    %2509 = vmatprep.subr.mxu0 0.0
    %2510 = vmatpush1.msra.mxu0 0.0
    %2511 = vmatprep.subr.mxu0 0.0
    %2512 = vmatpush1.msra.mxu0 0.0
    %2513 = vmatprep.subr.mxu0 0.0
    %2514 = vmatpush1.msra.mxu0 0.0
    %2515 = vmatprep.subr.mxu0 0.0
    %2516 = vmatpush1.msra.mxu0 0.0
    %2517 = vmatprep.subr.mxu0 0.0
    %2518 = vmatpush1.msra.mxu0 0.0
    %2519 = vmatprep.subr.mxu0 0.0
    %2520 = vmatpush1.msra.mxu0 0.0
    %2521 = vmatprep.subr.mxu0 0.0
    %2522 = vmatpush1.msra.mxu0 0.0
    %2523 = vmatprep.subr.mxu0 0.0
    %2524 = vmatpush1.msra.mxu0 0.0
    %2525 = vmatprep.subr.mxu0 0.0
    %2526 = vmatpush1.msra.mxu0 0.0
    %2527 = vmatprep.subr.mxu0 0.0
    %2528 = vmatpush1.msra.mxu0 0.0
    %2529 = vmatprep.subr.mxu0 0.0
    %2530 = vmatpush1.msra.mxu0 0.0
    %2531 = vmatprep.subr.mxu0 0.0
    %2532 = vmatpush1.msra.mxu0 0.0
    %2533 = vmatprep.subr.mxu0 0.0
    %2534 = vmatpush1.msra.mxu0 0.0
    %2535 = vmatprep.subr.mxu0 0.0
    %2536 = vmatpush1.msra.mxu0 0.0
    %2537 = vmatprep.subr.mxu0 0.0
    %2538 = vmatpush1.msra.mxu0 0.0
    %2539 = vmatprep.subr.mxu0 0.0
    %2540 = vmatpush1.msra.mxu0 0.0
    %2541 = vmatprep.subr.mxu0 0.0
    %2542 = vmatpush1.msra.mxu0 0.0
    %2543 = vmatprep.subr.mxu0 0.0
    %2544 = vmatpush1.msra.mxu0 0.0
    %2545 = vmatprep.subr.mxu0 0.0
    %2546 = vmatpush1.msra.mxu0 0.0
    %2547 = vmatprep.subr.mxu0 0.0
    %2548 = vmatpush1.msra.mxu0 0.0
    %2549 = vmatprep.subr.mxu0 0.0
    %2550 = vmatpush1.msra.mxu0 0.0
    %2551 = vmatprep.mubr.f32.mxu0 0.0
    %2552 = vmatmul.mubr.f32.gmra.mrb[0].mxu0 %v2485
    %v2553 = vpop.f32.mrb[0].mxu0
    %v2554 = vadd.f32 %v78, %v2553
    %v2555 = vpop.f32.mrb[0].mxu0
    %2556 = vdwg.mxu0
    %2558 = vrot.lane.b32.xlu0 %v2475, 96
    %v2559 = vpop.permute.xlu0 %2558
    %v2560 = vsel %vm177, %v2559, 0
    %2562 = vmatprep.subr.mxu0 0.0
    %2563 = vmatpush1.msra.mxu0 %v69
    %2564 = vmatprep.subr.mxu0 0.0
    %2565 = vmatpush1.msra.mxu0 %v70
    %2566 = vmatprep.subr.mxu0 0.0
    %2567 = vmatpush1.msra.mxu0 %v71
    %2568 = vmatprep.subr.mxu0 0.0
    %2569 = vmatpush1.msra.mxu0 %v72
    %2570 = vmatprep.subr.mxu0 0.0
    %2571 = vmatpush1.msra.mxu0 0.0
    %2572 = vmatprep.subr.mxu0 0.0
    %2573 = vmatpush1.msra.mxu0 0.0
    %2574 = vmatprep.subr.mxu0 0.0
    %2575 = vmatpush1.msra.mxu0 0.0
    %2576 = vmatprep.subr.mxu0 0.0
    %2577 = vmatpush1.msra.mxu0 0.0
    %2578 = vmatprep.subr.mxu0 0.0
    %2579 = vmatpush1.msra.mxu0 0.0
    %2580 = vmatprep.subr.mxu0 0.0
    %2581 = vmatpush1.msra.mxu0 0.0
    %2582 = vmatprep.subr.mxu0 0.0
    %2583 = vmatpush1.msra.mxu0 0.0
    %2584 = vmatprep.subr.mxu0 0.0
    %2585 = vmatpush1.msra.mxu0 0.0
    %2586 = vmatprep.subr.mxu0 0.0
    %2587 = vmatpush1.msra.mxu0 0.0
    %2588 = vmatprep.subr.mxu0 0.0
    %2589 = vmatpush1.msra.mxu0 0.0
    %2590 = vmatprep.subr.mxu0 0.0
    %2591 = vmatpush1.msra.mxu0 0.0
    %2592 = vmatprep.subr.mxu0 0.0
    %2593 = vmatpush1.msra.mxu0 0.0
    %2594 = vmatprep.subr.mxu0 0.0
    %2595 = vmatpush1.msra.mxu0 0.0
    %2596 = vmatprep.subr.mxu0 0.0
    %2597 = vmatpush1.msra.mxu0 0.0
    %2598 = vmatprep.subr.mxu0 0.0
    %2599 = vmatpush1.msra.mxu0 0.0
    %2600 = vmatprep.subr.mxu0 0.0
    %2601 = vmatpush1.msra.mxu0 0.0
    %2602 = vmatprep.subr.mxu0 0.0
    %2603 = vmatpush1.msra.mxu0 0.0
    %2604 = vmatprep.subr.mxu0 0.0
    %2605 = vmatpush1.msra.mxu0 0.0
    %2606 = vmatprep.subr.mxu0 0.0
    %2607 = vmatpush1.msra.mxu0 0.0
    %2608 = vmatprep.subr.mxu0 0.0
    %2609 = vmatpush1.msra.mxu0 0.0
    %2610 = vmatprep.subr.mxu0 0.0
    %2611 = vmatpush1.msra.mxu0 0.0
    %2612 = vmatprep.subr.mxu0 0.0
    %2613 = vmatpush1.msra.mxu0 0.0
    %2614 = vmatprep.subr.mxu0 0.0
    %2615 = vmatpush1.msra.mxu0 0.0
    %2616 = vmatprep.subr.mxu0 0.0
    %2617 = vmatpush1.msra.mxu0 0.0
    %2618 = vmatprep.subr.mxu0 0.0
    %2619 = vmatpush1.msra.mxu0 0.0
    %2620 = vmatprep.subr.mxu0 0.0
    %2621 = vmatpush1.msra.mxu0 0.0
    %2622 = vmatprep.subr.mxu0 0.0
    %2623 = vmatpush1.msra.mxu0 0.0
    %2624 = vmatprep.subr.mxu0 0.0
    %2625 = vmatpush1.msra.mxu0 0.0
    %2626 = vmatprep.mubr.f32.mxu0 0.0
    %2627 = vmatmul.mubr.f32.gmra.mrb[0].mxu0 %v2560
    %v2628 = vpop.f32.mrb[0].mxu0
    %v2629 = vadd.f32 %v80, %v2628
    %v2630 = vpop.f32.mrb[0].mxu0
    %2631 = vdwg.mxu0
    %v2633 = vsel %vm99, %v2481, 0
    %2635 = vmatprep.subr.mxu0 0.0
    %2636 = vmatpush1.msra.mxu0 %v53
    %2637 = vmatprep.subr.mxu0 0.0
    %2638 = vmatpush1.msra.mxu0 %v54
    %2639 = vmatprep.subr.mxu0 0.0
    %2640 = vmatpush1.msra.mxu0 %v55
    %2641 = vmatprep.subr.mxu0 0.0
    %2642 = vmatpush1.msra.mxu0 %v56
    %2643 = vmatprep.subr.mxu0 0.0
    %2644 = vmatpush1.msra.mxu0 %v57
    %2645 = vmatprep.subr.mxu0 0.0
    %2646 = vmatpush1.msra.mxu0 %v58
    %2647 = vmatprep.subr.mxu0 0.0
    %2648 = vmatpush1.msra.mxu0 %v59
    %2649 = vmatprep.subr.mxu0 0.0
    %2650 = vmatpush1.msra.mxu0 %v60
    %2651 = vmatprep.subr.mxu0 0.0
    %2652 = vmatpush1.msra.mxu0 0.0
    %2653 = vmatprep.subr.mxu0 0.0
    %2654 = vmatpush1.msra.mxu0 0.0
    %2655 = vmatprep.subr.mxu0 0.0
    %2656 = vmatpush1.msra.mxu0 0.0
    %2657 = vmatprep.subr.mxu0 0.0
    %2658 = vmatpush1.msra.mxu0 0.0
    %2659 = vmatprep.subr.mxu0 0.0
    %2660 = vmatpush1.msra.mxu0 0.0
    %2661 = vmatprep.subr.mxu0 0.0
    %2662 = vmatpush1.msra.mxu0 0.0
    %2663 = vmatprep.subr.mxu0 0.0
    %2664 = vmatpush1.msra.mxu0 0.0
    %2665 = vmatprep.subr.mxu0 0.0
    %2666 = vmatpush1.msra.mxu0 0.0
    %2667 = vmatprep.subr.mxu0 0.0
    %2668 = vmatpush1.msra.mxu0 0.0
    %2669 = vmatprep.subr.mxu0 0.0
    %2670 = vmatpush1.msra.mxu0 0.0
    %2671 = vmatprep.subr.mxu0 0.0
    %2672 = vmatpush1.msra.mxu0 0.0
    %2673 = vmatprep.subr.mxu0 0.0
    %2674 = vmatpush1.msra.mxu0 0.0
    %2675 = vmatprep.subr.mxu0 0.0
    %2676 = vmatpush1.msra.mxu0 0.0
    %2677 = vmatprep.subr.mxu0 0.0
    %2678 = vmatpush1.msra.mxu0 0.0
    %2679 = vmatprep.subr.mxu0 0.0
    %2680 = vmatpush1.msra.mxu0 0.0
    %2681 = vmatprep.subr.mxu0 0.0
    %2682 = vmatpush1.msra.mxu0 0.0
    %2683 = vmatprep.subr.mxu0 0.0
    %2684 = vmatpush1.msra.mxu0 0.0
    %2685 = vmatprep.subr.mxu0 0.0
    %2686 = vmatpush1.msra.mxu0 0.0
    %2687 = vmatprep.subr.mxu0 0.0
    %2688 = vmatpush1.msra.mxu0 0.0
    %2689 = vmatprep.subr.mxu0 0.0
    %2690 = vmatpush1.msra.mxu0 0.0
    %2691 = vmatprep.subr.mxu0 0.0
    %2692 = vmatpush1.msra.mxu0 0.0
    %2693 = vmatprep.subr.mxu0 0.0
    %2694 = vmatpush1.msra.mxu0 0.0
    %2695 = vmatprep.subr.mxu0 0.0
    %2696 = vmatpush1.msra.mxu0 0.0
    %2697 = vmatprep.subr.mxu0 0.0
    %2698 = vmatpush1.msra.mxu0 0.0
    %2699 = vmatprep.mubr.f32.mxu0 0.0
    %2700 = vmatmul.mubr.f32.gmra.mrb[0].mxu0 %v2633
    %v2701 = vpop.f32.mrb[0].mxu0
    %v2702 = vadd.f32 %v77, %v2701
    %v2703 = vpop.f32.mrb[0].mxu0
    %2704 = vdwg.mxu0
    %v2705 = vadd.f32 %v2702, %v2554
    %v2706 = vxor.u32 %v2705, 2147483648
    %v2707 = vmul.f32 %v2706, 1.442695
    %v2708 = vpow.pop %v2707
    %v2709 = vadd.f32 %v2708, 1.0
    %v2710 = vrcp.pop %v2709
    %v2711 = vmul.f32 1.0, %v2710
    %2713 = vrot.lane.b32.xlu0 %v2554, 64
    %v2714 = vpop.permute.xlu0 %2713
    %v2716 = vmul.f32 %v2711, %v2714
    %2718 = vrot.lane.b32.xlu0 %v2716, 64
    %v2719 = vpop.permute.xlu0 %2718
    %v2721 = vadd.f32 %v2702, %v2719
    %v2722 = vtanh.pop %v2721
    %v2723 = vsub.f32 1.0, %v2711
    %2725 = vrot.lane.b32.xlu0 %v2722, 96
    %v2726 = vpop.permute.xlu0 %2725
    %v2728 = vmul.f32 %v2723, %v2726
    %v2729 = vmul.f32 %v2711, %v2474
    %v2730 = vadd.f32 %v2728, %v2729
    %2732 = vrot.lane.b32.xlu0 %v2730, 96
    %v2733 = vpop.permute.xlu0 %2732
    %v2734 = vsel %vm177, %v2733, 0
    %2736 = vmatprep.subr.mxu0 0.0
    %2737 = vmatpush1.msra.mxu0 %v65
    %2738 = vmatprep.subr.mxu0 0.0
    %2739 = vmatpush1.msra.mxu0 %v66
    %2740 = vmatprep.subr.mxu0 0.0
    %2741 = vmatpush1.msra.mxu0 %v67
    %2742 = vmatprep.subr.mxu0 0.0
    %2743 = vmatpush1.msra.mxu0 %v68
    %2744 = vmatprep.subr.mxu0 0.0
    %2745 = vmatpush1.msra.mxu0 0.0
    %2746 = vmatprep.subr.mxu0 0.0
    %2747 = vmatpush1.msra.mxu0 0.0
    %2748 = vmatprep.subr.mxu0 0.0
    %2749 = vmatpush1.msra.mxu0 0.0
    %2750 = vmatprep.subr.mxu0 0.0
    %2751 = vmatpush1.msra.mxu0 0.0
    %2752 = vmatprep.subr.mxu0 0.0
    %2753 = vmatpush1.msra.mxu0 0.0
    %2754 = vmatprep.subr.mxu0 0.0
    %2755 = vmatpush1.msra.mxu0 0.0
    %2756 = vmatprep.subr.mxu0 0.0
    %2757 = vmatpush1.msra.mxu0 0.0
    %2758 = vmatprep.subr.mxu0 0.0
    %2759 = vmatpush1.msra.mxu0 0.0
    %2760 = vmatprep.subr.mxu0 0.0
    %2761 = vmatpush1.msra.mxu0 0.0
    %2762 = vmatprep.subr.mxu0 0.0
    %2763 = vmatpush1.msra.mxu0 0.0
    %2764 = vmatprep.subr.mxu0 0.0
    %2765 = vmatpush1.msra.mxu0 0.0
    %2766 = vmatprep.subr.mxu0 0.0
    %2767 = vmatpush1.msra.mxu0 0.0
    %2768 = vmatprep.subr.mxu0 0.0
    %2769 = vmatpush1.msra.mxu0 0.0
    %2770 = vmatprep.subr.mxu0 0.0
    %2771 = vmatpush1.msra.mxu0 0.0
    %2772 = vmatprep.subr.mxu0 0.0
    %2773 = vmatpush1.msra.mxu0 0.0
    %2774 = vmatprep.subr.mxu0 0.0
    %2775 = vmatpush1.msra.mxu0 0.0
    %2776 = vmatprep.subr.mxu0 0.0
    %2777 = vmatpush1.msra.mxu0 0.0
    %2778 = vmatprep.subr.mxu0 0.0
    %2779 = vmatpush1.msra.mxu0 0.0
    %2780 = vmatprep.subr.mxu0 0.0
    %2781 = vmatpush1.msra.mxu0 0.0
    %2782 = vmatprep.subr.mxu0 0.0
    %2783 = vmatpush1.msra.mxu0 0.0
    %2784 = vmatprep.subr.mxu0 0.0
    %2785 = vmatpush1.msra.mxu0 0.0
    %2786 = vmatprep.subr.mxu0 0.0
    %2787 = vmatpush1.msra.mxu0 0.0
    %2788 = vmatprep.subr.mxu0 0.0
    %2789 = vmatpush1.msra.mxu0 0.0
    %2790 = vmatprep.subr.mxu0 0.0
    %2791 = vmatpush1.msra.mxu0 0.0
    %2792 = vmatprep.subr.mxu0 0.0
    %2793 = vmatpush1.msra.mxu0 0.0
    %2794 = vmatprep.subr.mxu0 0.0
    %2795 = vmatpush1.msra.mxu0 0.0
    %2796 = vmatprep.subr.mxu0 0.0
    %2797 = vmatpush1.msra.mxu0 0.0
    %2798 = vmatprep.subr.mxu0 0.0
    %2799 = vmatpush1.msra.mxu0 0.0
    %2800 = vmatprep.mubr.f32.mxu0 0.0
    %2801 = vmatmul.mubr.f32.gmra.mrb[0].mxu0 %v2734
    %v2802 = vpop.f32.mrb[0].mxu0
    %v2803 = vadd.f32 %v79, %v2802
    %v2804 = vpop.f32.mrb[0].mxu0
    %2805 = vdwg.mxu0
    %v2806 = vadd.f32 %v2803, %v2629
    %v2807 = vxor.u32 %v2806, 2147483648
    %v2808 = vmul.f32 %v2807, 1.442695
    %v2809 = vpow.pop %v2808
    %v2810 = vadd.f32 %v2809, 1.0
    %v2811 = vrcp.pop %v2810
    %v2812 = vmul.f32 1.0, %v2811
    %2814 = vrot.lane.b32.xlu0 %v2629, 64
    %v2815 = vpop.permute.xlu0 %2814
    %v2817 = vmul.f32 %v2812, %v2815
    %2819 = vrot.lane.b32.xlu0 %v2817, 64
    %v2820 = vpop.permute.xlu0 %2819
    %v2822 = vadd.f32 %v2803, %v2820
    %v2823 = vtanh.pop %v2822
    %v2824 = vsub.f32 1.0, %v2812
    %2826 = vrot.lane.b32.xlu0 %v2823, 96
    %v2827 = vpop.permute.xlu0 %2826
    %v2829 = vmul.f32 %v2824, %v2827
    %v2830 = vmul.f32 %v2812, %v2475
    %v2831 = vadd.f32 %v2829, %v2830
    %2833 = vrot.lane.b32.xlu0 %v2831, 96
    %v2834 = vpop.permute.xlu0 %2833
    %v2835 = vsel %vm177, %v2834, 0
    %2837 = vmatprep.subr.mxu0 0.0
    %2838 = vmatpush1.msra.mxu0 %v81
    %2839 = vmatprep.subr.mxu0 0.0
    %2840 = vmatpush1.msra.mxu0 %v82
    %2841 = vmatprep.subr.mxu0 0.0
    %2842 = vmatpush1.msra.mxu0 %v83
    %2843 = vmatprep.subr.mxu0 0.0
    %2844 = vmatpush1.msra.mxu0 %v84
    %2845 = vmatprep.subr.mxu0 0.0
    %2846 = vmatpush1.msra.mxu0 0.0
    %2847 = vmatprep.subr.mxu0 0.0
    %2848 = vmatpush1.msra.mxu0 0.0
    %2849 = vmatprep.subr.mxu0 0.0
    %2850 = vmatpush1.msra.mxu0 0.0
    %2851 = vmatprep.subr.mxu0 0.0
    %2852 = vmatpush1.msra.mxu0 0.0
    %2853 = vmatprep.subr.mxu0 0.0
    %2854 = vmatpush1.msra.mxu0 0.0
    %2855 = vmatprep.subr.mxu0 0.0
    %2856 = vmatpush1.msra.mxu0 0.0
    %2857 = vmatprep.subr.mxu0 0.0
    %2858 = vmatpush1.msra.mxu0 0.0
    %2859 = vmatprep.subr.mxu0 0.0
    %2860 = vmatpush1.msra.mxu0 0.0
    %2861 = vmatprep.subr.mxu0 0.0
    %2862 = vmatpush1.msra.mxu0 0.0
    %2863 = vmatprep.subr.mxu0 0.0
    %2864 = vmatpush1.msra.mxu0 0.0
    %2865 = vmatprep.subr.mxu0 0.0
    %2866 = vmatpush1.msra.mxu0 0.0
    %2867 = vmatprep.subr.mxu0 0.0
    %2868 = vmatpush1.msra.mxu0 0.0
    %2869 = vmatprep.subr.mxu0 0.0
    %2870 = vmatpush1.msra.mxu0 0.0
    %2871 = vmatprep.subr.mxu0 0.0
    %2872 = vmatpush1.msra.mxu0 0.0
    %2873 = vmatprep.subr.mxu0 0.0
    %2874 = vmatpush1.msra.mxu0 0.0
    %2875 = vmatprep.subr.mxu0 0.0
    %2876 = vmatpush1.msra.mxu0 0.0
    %2877 = vmatprep.subr.mxu0 0.0
    %2878 = vmatpush1.msra.mxu0 0.0
    %2879 = vmatprep.subr.mxu0 0.0
    %2880 = vmatpush1.msra.mxu0 0.0
    %2881 = vmatprep.subr.mxu0 0.0
    %2882 = vmatpush1.msra.mxu0 0.0
    %2883 = vmatprep.subr.mxu0 0.0
    %2884 = vmatpush1.msra.mxu0 0.0
    %2885 = vmatprep.subr.mxu0 0.0
    %2886 = vmatpush1.msra.mxu0 0.0
    %2887 = vmatprep.subr.mxu0 0.0
    %2888 = vmatpush1.msra.mxu0 0.0
    %2889 = vmatprep.subr.mxu0 0.0
    %2890 = vmatpush1.msra.mxu0 0.0
    %2891 = vmatprep.subr.mxu0 0.0
    %2892 = vmatpush1.msra.mxu0 0.0
    %2893 = vmatprep.subr.mxu0 0.0
    %2894 = vmatpush1.msra.mxu0 0.0
    %2895 = vmatprep.subr.mxu0 0.0
    %2896 = vmatpush1.msra.mxu0 0.0
    %2897 = vmatprep.subr.mxu0 0.0
    %2898 = vmatpush1.msra.mxu0 0.0
    %2899 = vmatprep.subr.mxu0 0.0
    %2900 = vmatpush1.msra.mxu0 0.0
    %2901 = vmatprep.mubr.f32.mxu0 0.0
    %2902 = vmatmul.mubr.f32.gmra.mrb[0].mxu0 %v2835
    %v2903 = vpop.f32.mrb[0].mxu0
    %v2904 = vadd.f32 %v85, %v2903
    %v2905 = vpop.f32.mrb[0].mxu0
    %2906 = vdwg.mxu0
    %vm2907 = vcmask 516096
    %v2908 = vsel %vm2907, %v2904, -inf
    %2909 = vmax.xlane.f32.xlu0 %v2908
    %v2910 = vpop.xlane.xlu0 %2909
    %vm2911 = vcmp.eq.f32.partialorder %v2904, %v2910
    %v2912 = vsel %vm2911, %v87, 64
    %v2913 = vsel %vm2907, %v2912, 2147483647
    %v2914 = vand.u32 %v2913, 65535
    %v2915 = vshra.s32 %v2913, 16
    %v2916 = vcvt.s32.f32 %v2914
    %v2917 = vcvt.s32.f32 %v2915
    %2918 = vmin.xlane.f32.xlu0 %v2917
    %v2919 = vpop.xlane.xlu0 %2918
    %vm2920 = vcmp.eq.f32.partialorder %v2917, %v2919
    %v2921 = vsel %vm2920, %v2916, inf
    %2922 = vmin.xlane.f32.xlu0 %v2921
    %v2923 = vpop.xlane.xlu0 %2922
    %v2924 = vcvt.f32.s32 %v2923
    %v2925 = vcvt.f32.s32 %v2919
    %v2926 = vshll.u32 %v2925, 16
    %v2927 = vadd.s32 %v2926, %v2924
    %vm2928 = vcmp.eq.s32.totalorder %v87, %v2927
    %v2929 = vsel %vm2928, 1, 0
    %v2930 = vcvt.s32.f32 %v2929
    %2931 = vrot.lane.b32.xlu0 %v2730, 32
    %v2932 = vpop.permute.xlu0 %2931
    %2934 = vrot.lane.b32.xlu0 %v2831, 64
    %v2935 = vpop.permute.xlu0 %2934
    %v2937 = vsel %vm99, %v2904, %v2932
    %v2938 = vsel %vm173, %v2937, %v2935
    %2939 = vst [vmem:[%s5] sm:$0x1] %v2938
    %v2940 = vstv %s2477
    %vm2941 = vcmp.eq.s32.totalorder %v2927, %v2940
    %2942 = vmatprep.subr.mxu0 0.0
    %2943 = vmatpush1.msra.mxu0 %v61
    %2944 = vmatprep.subr.mxu0 0.0
    %2945 = vmatpush1.msra.mxu0 %v62
    %2946 = vmatprep.subr.mxu0 0.0
    %2947 = vmatpush1.msra.mxu0 %v63
    %2948 = vmatprep.subr.mxu0 0.0
    %2949 = vmatpush1.msra.mxu0 %v64
    %2950 = vmatprep.subr.mxu0 0.0
    %2951 = vmatpush1.msra.mxu0 0.0
    %2952 = vmatprep.subr.mxu0 0.0
    %2953 = vmatpush1.msra.mxu0 0.0
    %2954 = vmatprep.subr.mxu0 0.0
    %2955 = vmatpush1.msra.mxu0 0.0
    %2956 = vmatprep.subr.mxu0 0.0
    %2957 = vmatpush1.msra.mxu0 0.0
    %2958 = vmatprep.subr.mxu0 0.0
    %2959 = vmatpush1.msra.mxu0 0.0
    %2960 = vmatprep.subr.mxu0 0.0
    %2961 = vmatpush1.msra.mxu0 0.0
    %2962 = vmatprep.subr.mxu0 0.0
    %2963 = vmatpush1.msra.mxu0 0.0
    %2964 = vmatprep.subr.mxu0 0.0
    %2965 = vmatpush1.msra.mxu0 0.0
    %2966 = vmatprep.subr.mxu0 0.0
    %2967 = vmatpush1.msra.mxu0 0.0
    %2968 = vmatprep.subr.mxu0 0.0
    %2969 = vmatpush1.msra.mxu0 0.0
    %2970 = vmatprep.subr.mxu0 0.0
    %2971 = vmatpush1.msra.mxu0 0.0
    %2972 = vmatprep.subr.mxu0 0.0
    %2973 = vmatpush1.msra.mxu0 0.0
    %2974 = vmatprep.subr.mxu0 0.0
    %2975 = vmatpush1.msra.mxu0 0.0
    %2976 = vmatprep.subr.mxu0 0.0
    %2977 = vmatpush1.msra.mxu0 0.0
    %2978 = vmatprep.subr.mxu0 0.0
    %2979 = vmatpush1.msra.mxu0 0.0
    %2980 = vmatprep.subr.mxu0 0.0
    %2981 = vmatpush1.msra.mxu0 0.0
    %2982 = vmatprep.subr.mxu0 0.0
    %2983 = vmatpush1.msra.mxu0 0.0
    %2984 = vmatprep.subr.mxu0 0.0
    %2985 = vmatpush1.msra.mxu0 0.0
    %2986 = vmatprep.subr.mxu0 0.0
    %2987 = vmatpush1.msra.mxu0 0.0
    %2988 = vmatprep.subr.mxu0 0.0
    %2989 = vmatpush1.msra.mxu0 0.0
    %2990 = vmatprep.subr.mxu0 0.0
    %2991 = vmatpush1.msra.mxu0 0.0
    %2992 = vmatprep.subr.mxu0 0.0
    %2993 = vmatpush1.msra.mxu0 0.0
    %2994 = vmatprep.subr.mxu0 0.0
    %2995 = vmatpush1.msra.mxu0 0.0
    %2996 = vmatprep.subr.mxu0 0.0
    %2997 = vmatpush1.msra.mxu0 0.0
    %2998 = vmatprep.subr.mxu0 0.0
    %2999 = vmatpush1.msra.mxu0 0.0
    %3000 = vmatprep.subr.mxu0 0.0
    %3001 = vmatpush1.msra.mxu0 0.0
    %3002 = vmatprep.subr.mxu0 0.0
    %3003 = vmatpush1.msra.mxu0 0.0
    %3004 = vmatprep.subr.mxu0 0.0
    %3005 = vmatpush1.msra.mxu0 0.0
    %3006 = vmatprep.mubr.f32.mxu0 0.0
    %3007 = vmatmul.mubr.f32.gmra.mrb[0].mxu0 %v2734
    %v3008 = vpop.f32.mrb[0].mxu0
    %v3009 = vadd.f32 %v78, %v3008
    %v3010 = vpop.f32.mrb[0].mxu0
    %3011 = vdwg.mxu0
    %3012 = vmatprep.subr.mxu0 0.0
    %3013 = vmatpush1.msra.mxu0 %v69
    %3014 = vmatprep.subr.mxu0 0.0
    %3015 = vmatpush1.msra.mxu0 %v70
    %3016 = vmatprep.subr.mxu0 0.0
    %3017 = vmatpush1.msra.mxu0 %v71
    %3018 = vmatprep.subr.mxu0 0.0
    %3019 = vmatpush1.msra.mxu0 %v72
    %3020 = vmatprep.subr.mxu0 0.0
    %3021 = vmatpush1.msra.mxu0 0.0
    %3022 = vmatprep.subr.mxu0 0.0
    %3023 = vmatpush1.msra.mxu0 0.0
    %3024 = vmatprep.subr.mxu0 0.0
    %3025 = vmatpush1.msra.mxu0 0.0
    %3026 = vmatprep.subr.mxu0 0.0
    %3027 = vmatpush1.msra.mxu0 0.0
    %3028 = vmatprep.subr.mxu0 0.0
    %3029 = vmatpush1.msra.mxu0 0.0
    %3030 = vmatprep.subr.mxu0 0.0
    %3031 = vmatpush1.msra.mxu0 0.0
    %3032 = vmatprep.subr.mxu0 0.0
    %3033 = vmatpush1.msra.mxu0 0.0
    %3034 = vmatprep.subr.mxu0 0.0
    %3035 = vmatpush1.msra.mxu0 0.0
    %3036 = vmatprep.subr.mxu0 0.0
    %3037 = vmatpush1.msra.mxu0 0.0
    %3038 = vmatprep.subr.mxu0 0.0
    %3039 = vmatpush1.msra.mxu0 0.0
    %3040 = vmatprep.subr.mxu0 0.0
    %3041 = vmatpush1.msra.mxu0 0.0
    %3042 = vmatprep.subr.mxu0 0.0
    %3043 = vmatpush1.msra.mxu0 0.0
    %3044 = vmatprep.subr.mxu0 0.0
    %3045 = vmatpush1.msra.mxu0 0.0
    %3046 = vmatprep.subr.mxu0 0.0
    %3047 = vmatpush1.msra.mxu0 0.0
    %3048 = vmatprep.subr.mxu0 0.0
    %3049 = vmatpush1.msra.mxu0 0.0
    %3050 = vmatprep.subr.mxu0 0.0
    %3051 = vmatpush1.msra.mxu0 0.0
    %3052 = vmatprep.subr.mxu0 0.0
    %3053 = vmatpush1.msra.mxu0 0.0
    %3054 = vmatprep.subr.mxu0 0.0
    %3055 = vmatpush1.msra.mxu0 0.0
    %3056 = vmatprep.subr.mxu0 0.0
    %3057 = vmatpush1.msra.mxu0 0.0
    %3058 = vmatprep.subr.mxu0 0.0
    %3059 = vmatpush1.msra.mxu0 0.0
    %3060 = vmatprep.subr.mxu0 0.0
    %3061 = vmatpush1.msra.mxu0 0.0
    %3062 = vmatprep.subr.mxu0 0.0
    %3063 = vmatpush1.msra.mxu0 0.0
    %3064 = vmatprep.subr.mxu0 0.0
    %3065 = vmatpush1.msra.mxu0 0.0
    %3066 = vmatprep.subr.mxu0 0.0
    %3067 = vmatpush1.msra.mxu0 0.0
    %3068 = vmatprep.subr.mxu0 0.0
    %3069 = vmatpush1.msra.mxu0 0.0
    %3070 = vmatprep.subr.mxu0 0.0
    %3071 = vmatpush1.msra.mxu0 0.0
    %3072 = vmatprep.subr.mxu0 0.0
    %3073 = vmatpush1.msra.mxu0 0.0
    %3074 = vmatprep.subr.mxu0 0.0
    %3075 = vmatpush1.msra.mxu0 0.0
    %3076 = vmatprep.mubr.f32.mxu0 0.0
    %3077 = vmatmul.mubr.f32.gmra.mrb[0].mxu0 %v2835
    %v3078 = vpop.f32.mrb[0].mxu0
    %v3079 = vadd.f32 %v80, %v3078
    %v3080 = vpop.f32.mrb[0].mxu0
    %3081 = vdwg.mxu0
    %v3083 = vsel %vm99, %v2930, 0
    %3085 = vmatprep.subr.mxu0 0.0
    %3086 = vmatpush1.msra.mxu0 %v53
    %3087 = vmatprep.subr.mxu0 0.0
    %3088 = vmatpush1.msra.mxu0 %v54
    %3089 = vmatprep.subr.mxu0 0.0
    %3090 = vmatpush1.msra.mxu0 %v55
    %3091 = vmatprep.subr.mxu0 0.0
    %3092 = vmatpush1.msra.mxu0 %v56
    %3093 = vmatprep.subr.mxu0 0.0
    %3094 = vmatpush1.msra.mxu0 %v57
    %3095 = vmatprep.subr.mxu0 0.0
    %3096 = vmatpush1.msra.mxu0 %v58
    %3097 = vmatprep.subr.mxu0 0.0
    %3098 = vmatpush1.msra.mxu0 %v59
    %3099 = vmatprep.subr.mxu0 0.0
    %3100 = vmatpush1.msra.mxu0 %v60
    %3101 = vmatprep.subr.mxu0 0.0
    %3102 = vmatpush1.msra.mxu0 0.0
    %3103 = vmatprep.subr.mxu0 0.0
    %3104 = vmatpush1.msra.mxu0 0.0
    %3105 = vmatprep.subr.mxu0 0.0
    %3106 = vmatpush1.msra.mxu0 0.0
    %3107 = vmatprep.subr.mxu0 0.0
    %3108 = vmatpush1.msra.mxu0 0.0
    %3109 = vmatprep.subr.mxu0 0.0
    %3110 = vmatpush1.msra.mxu0 0.0
    %3111 = vmatprep.subr.mxu0 0.0
    %3112 = vmatpush1.msra.mxu0 0.0
    %3113 = vmatprep.subr.mxu0 0.0
    %3114 = vmatpush1.msra.mxu0 0.0
    %3115 = vmatprep.subr.mxu0 0.0
    %3116 = vmatpush1.msra.mxu0 0.0
    %3117 = vmatprep.subr.mxu0 0.0
    %3118 = vmatpush1.msra.mxu0 0.0
    %3119 = vmatprep.subr.mxu0 0.0
    %3120 = vmatpush1.msra.mxu0 0.0
    %3121 = vmatprep.subr.mxu0 0.0
    %3122 = vmatpush1.msra.mxu0 0.0
    %3123 = vmatprep.subr.mxu0 0.0
    %3124 = vmatpush1.msra.mxu0 0.0
    %3125 = vmatprep.subr.mxu0 0.0
    %3126 = vmatpush1.msra.mxu0 0.0
    %3127 = vmatprep.subr.mxu0 0.0
    %3128 = vmatpush1.msra.mxu0 0.0
    %3129 = vmatprep.subr.mxu0 0.0
    %3130 = vmatpush1.msra.mxu0 0.0
    %3131 = vmatprep.subr.mxu0 0.0
    %3132 = vmatpush1.msra.mxu0 0.0
    %3133 = vmatprep.subr.mxu0 0.0
    %3134 = vmatpush1.msra.mxu0 0.0
    %3135 = vmatprep.subr.mxu0 0.0
    %3136 = vmatpush1.msra.mxu0 0.0
    %3137 = vmatprep.subr.mxu0 0.0
    %3138 = vmatpush1.msra.mxu0 0.0
    %3139 = vmatprep.subr.mxu0 0.0
    %3140 = vmatpush1.msra.mxu0 0.0
    %3141 = vmatprep.subr.mxu0 0.0
    %3142 = vmatpush1.msra.mxu0 0.0
    %3143 = vmatprep.subr.mxu0 0.0
    %3144 = vmatpush1.msra.mxu0 0.0
    %3145 = vmatprep.subr.mxu0 0.0
    %3146 = vmatpush1.msra.mxu0 0.0
    %3147 = vmatprep.subr.mxu0 0.0
    %3148 = vmatpush1.msra.mxu0 0.0
    %3149 = vmatprep.mubr.f32.mxu0 0.0
    %3150 = vmatmul.mubr.f32.gmra.mrb[0].mxu0 %v3083
    %v3151 = vpop.f32.mrb[0].mxu0
    %v3152 = vadd.f32 %v77, %v3151
    %v3153 = vpop.f32.mrb[0].mxu0
    %3154 = vdwg.mxu0
    %v3155 = vadd.f32 %v3152, %v3009
    %v3156 = vxor.u32 %v3155, 2147483648
    %v3157 = vmul.f32 %v3156, 1.442695
    %v3158 = vpow.pop %v3157
    %v3159 = vadd.f32 %v3158, 1.0
    %v3160 = vrcp.pop %v3159
    %v3161 = vmul.f32 1.0, %v3160
    %3163 = vrot.lane.b32.xlu0 %v3009, 64
    %v3164 = vpop.permute.xlu0 %3163
    %v3166 = vmul.f32 %v3161, %v3164
    %3168 = vrot.lane.b32.xlu0 %v3166, 64
    %v3169 = vpop.permute.xlu0 %3168
    %v3171 = vadd.f32 %v3152, %v3169
    %v3172 = vtanh.pop %v3171
    %v3173 = vsub.f32 1.0, %v3161
    %3175 = vrot.lane.b32.xlu0 %v3172, 96
    %v3176 = vpop.permute.xlu0 %3175
    %v3178 = vmul.f32 %v3173, %v3176
    %v3179 = vmul.f32 %v3161, %v2730
    %v3180 = vadd.f32 %v3178, %v3179
    %3182 = vrot.lane.b32.xlu0 %v3180, 96
    %v3183 = vpop.permute.xlu0 %3182
    %v3184 = vsel %vm177, %v3183, 0
    %3186 = vmatprep.subr.mxu0 0.0
    %3187 = vmatpush1.msra.mxu0 %v65
    %3188 = vmatprep.subr.mxu0 0.0
    %3189 = vmatpush1.msra.mxu0 %v66
    %3190 = vmatprep.subr.mxu0 0.0
    %3191 = vmatpush1.msra.mxu0 %v67
    %3192 = vmatprep.subr.mxu0 0.0
    %3193 = vmatpush1.msra.mxu0 %v68
    %3194 = vmatprep.subr.mxu0 0.0
    %3195 = vmatpush1.msra.mxu0 0.0
    %3196 = vmatprep.subr.mxu0 0.0
    %3197 = vmatpush1.msra.mxu0 0.0
    %3198 = vmatprep.subr.mxu0 0.0
    %3199 = vmatpush1.msra.mxu0 0.0
    %3200 = vmatprep.subr.mxu0 0.0
    %3201 = vmatpush1.msra.mxu0 0.0
    %3202 = vmatprep.subr.mxu0 0.0
    %3203 = vmatpush1.msra.mxu0 0.0
    %3204 = vmatprep.subr.mxu0 0.0
    %3205 = vmatpush1.msra.mxu0 0.0
    %3206 = vmatprep.subr.mxu0 0.0
    %3207 = vmatpush1.msra.mxu0 0.0
    %3208 = vmatprep.subr.mxu0 0.0
    %3209 = vmatpush1.msra.mxu0 0.0
    %3210 = vmatprep.subr.mxu0 0.0
    %3211 = vmatpush1.msra.mxu0 0.0
    %3212 = vmatprep.subr.mxu0 0.0
    %3213 = vmatpush1.msra.mxu0 0.0
    %3214 = vmatprep.subr.mxu0 0.0
    %3215 = vmatpush1.msra.mxu0 0.0
    %3216 = vmatprep.subr.mxu0 0.0
    %3217 = vmatpush1.msra.mxu0 0.0
    %3218 = vmatprep.subr.mxu0 0.0
    %3219 = vmatpush1.msra.mxu0 0.0
    %3220 = vmatprep.subr.mxu0 0.0
    %3221 = vmatpush1.msra.mxu0 0.0
    %3222 = vmatprep.subr.mxu0 0.0
    %3223 = vmatpush1.msra.mxu0 0.0
    %3224 = vmatprep.subr.mxu0 0.0
    %3225 = vmatpush1.msra.mxu0 0.0
    %3226 = vmatprep.subr.mxu0 0.0
    %3227 = vmatpush1.msra.mxu0 0.0
    %3228 = vmatprep.subr.mxu0 0.0
    %3229 = vmatpush1.msra.mxu0 0.0
    %3230 = vmatprep.subr.mxu0 0.0
    %3231 = vmatpush1.msra.mxu0 0.0
    %3232 = vmatprep.subr.mxu0 0.0
    %3233 = vmatpush1.msra.mxu0 0.0
    %3234 = vmatprep.subr.mxu0 0.0
    %3235 = vmatpush1.msra.mxu0 0.0
    %3236 = vmatprep.subr.mxu0 0.0
    %3237 = vmatpush1.msra.mxu0 0.0
    %3238 = vmatprep.subr.mxu0 0.0
    %3239 = vmatpush1.msra.mxu0 0.0
    %3240 = vmatprep.subr.mxu0 0.0
    %3241 = vmatpush1.msra.mxu0 0.0
    %3242 = vmatprep.subr.mxu0 0.0
    %3243 = vmatpush1.msra.mxu0 0.0
    %3244 = vmatprep.subr.mxu0 0.0
    %3245 = vmatpush1.msra.mxu0 0.0
    %3246 = vmatprep.subr.mxu0 0.0
    %3247 = vmatpush1.msra.mxu0 0.0
    %3248 = vmatprep.subr.mxu0 0.0
    %3249 = vmatpush1.msra.mxu0 0.0
    %3250 = vmatprep.mubr.f32.mxu0 0.0
    %3251 = vmatmul.mubr.f32.gmra.mrb[0].mxu0 %v3184
    %v3252 = vpop.f32.mrb[0].mxu0
    %v3253 = vadd.f32 %v79, %v3252
    %v3254 = vpop.f32.mrb[0].mxu0
    %3255 = vdwg.mxu0
    %v3256 = vadd.f32 %v3253, %v3079
    %v3257 = vxor.u32 %v3256, 2147483648
    %v3258 = vmul.f32 %v3257, 1.442695
    %v3259 = vpow.pop %v3258
    %v3260 = vadd.f32 %v3259, 1.0
    %v3261 = vrcp.pop %v3260
    %v3262 = vmul.f32 1.0, %v3261
    %3264 = vrot.lane.b32.xlu0 %v3079, 64
    %v3265 = vpop.permute.xlu0 %3264
    %v3267 = vmul.f32 %v3262, %v3265
    %3269 = vrot.lane.b32.xlu0 %v3267, 64
    %v3270 = vpop.permute.xlu0 %3269
    %v3272 = vadd.f32 %v3253, %v3270
    %v3273 = vtanh.pop %v3272
    %v3274 = vsub.f32 1.0, %v3262
    %3276 = vrot.lane.b32.xlu0 %v3273, 96
    %v3277 = vpop.permute.xlu0 %3276
    %v3279 = vmul.f32 %v3274, %v3277
    %v3280 = vmul.f32 %v3262, %v2831
    %v3281 = vadd.f32 %v3279, %v3280
    %3283 = vrot.lane.b32.xlu0 %v3281, 96
    %v3284 = vpop.permute.xlu0 %3283
    %v3285 = vsel %vm177, %v3284, 0
    %3287 = vmatprep.subr.mxu0 0.0
    %3288 = vmatpush1.msra.mxu0 %v81
    %3289 = vmatprep.subr.mxu0 0.0
    %3290 = vmatpush1.msra.mxu0 %v82
    %3291 = vmatprep.subr.mxu0 0.0
    %3292 = vmatpush1.msra.mxu0 %v83
    %3293 = vmatprep.subr.mxu0 0.0
    %3294 = vmatpush1.msra.mxu0 %v84
    %3295 = vmatprep.subr.mxu0 0.0
    %3296 = vmatpush1.msra.mxu0 0.0
    %3297 = vmatprep.subr.mxu0 0.0
    %3298 = vmatpush1.msra.mxu0 0.0
    %3299 = vmatprep.subr.mxu0 0.0
    %3300 = vmatpush1.msra.mxu0 0.0
    %3301 = vmatprep.subr.mxu0 0.0
    %3302 = vmatpush1.msra.mxu0 0.0
    %3303 = vmatprep.subr.mxu0 0.0
    %3304 = vmatpush1.msra.mxu0 0.0
    %3305 = vmatprep.subr.mxu0 0.0
    %3306 = vmatpush1.msra.mxu0 0.0
    %3307 = vmatprep.subr.mxu0 0.0
    %3308 = vmatpush1.msra.mxu0 0.0
    %3309 = vmatprep.subr.mxu0 0.0
    %3310 = vmatpush1.msra.mxu0 0.0
    %3311 = vmatprep.subr.mxu0 0.0
    %3312 = vmatpush1.msra.mxu0 0.0
    %3313 = vmatprep.subr.mxu0 0.0
    %3314 = vmatpush1.msra.mxu0 0.0
    %3315 = vmatprep.subr.mxu0 0.0
    %3316 = vmatpush1.msra.mxu0 0.0
    %3317 = vmatprep.subr.mxu0 0.0
    %3318 = vmatpush1.msra.mxu0 0.0
    %3319 = vmatprep.subr.mxu0 0.0
    %3320 = vmatpush1.msra.mxu0 0.0
    %3321 = vmatprep.subr.mxu0 0.0
    %3322 = vmatpush1.msra.mxu0 0.0
    %3323 = vmatprep.subr.mxu0 0.0
    %3324 = vmatpush1.msra.mxu0 0.0
    %3325 = vmatprep.subr.mxu0 0.0
    %3326 = vmatpush1.msra.mxu0 0.0
    %3327 = vmatprep.subr.mxu0 0.0
    %3328 = vmatpush1.msra.mxu0 0.0
    %3329 = vmatprep.subr.mxu0 0.0
    %3330 = vmatpush1.msra.mxu0 0.0
    %3331 = vmatprep.subr.mxu0 0.0
    %3332 = vmatpush1.msra.mxu0 0.0
    %3333 = vmatprep.subr.mxu0 0.0
    %3334 = vmatpush1.msra.mxu0 0.0
    %3335 = vmatprep.subr.mxu0 0.0
    %3336 = vmatpush1.msra.mxu0 0.0
    %3337 = vmatprep.subr.mxu0 0.0
    %3338 = vmatpush1.msra.mxu0 0.0
    %3339 = vmatprep.subr.mxu0 0.0
    %3340 = vmatpush1.msra.mxu0 0.0
    %3341 = vmatprep.subr.mxu0 0.0
    %3342 = vmatpush1.msra.mxu0 0.0
    %3343 = vmatprep.subr.mxu0 0.0
    %3344 = vmatpush1.msra.mxu0 0.0
    %3345 = vmatprep.subr.mxu0 0.0
    %3346 = vmatpush1.msra.mxu0 0.0
    %3347 = vmatprep.subr.mxu0 0.0
    %3348 = vmatpush1.msra.mxu0 0.0
    %3349 = vmatprep.subr.mxu0 0.0
    %3350 = vmatpush1.msra.mxu0 0.0
    %3351 = vmatprep.mubr.f32.mxu0 0.0
    %3352 = vmatmul.mubr.f32.gmra.mrb[0].mxu0 %v3285
    %v3353 = vpop.f32.mrb[0].mxu0
    %v3354 = vadd.f32 %v85, %v3353
    %v3355 = vpop.f32.mrb[0].mxu0
    %3356 = vdwg.mxu0
    %v3357 = vsel %vm2907, %v3354, -inf
    %3358 = vmax.xlane.f32.xlu0 %v3357
    %v3359 = vpop.xlane.xlu0 %3358
    %vm3360 = vcmp.eq.f32.partialorder %v3354, %v3359
    %v3361 = vsel %vm3360, %v87, 64
    %v3362 = vsel %vm2907, %v3361, 2147483647
    %v3363 = vand.u32 %v3362, 65535
    %v3364 = vshra.s32 %v3362, 16
    %v3365 = vcvt.s32.f32 %v3363
    %v3366 = vcvt.s32.f32 %v3364
    %3367 = vmin.xlane.f32.xlu0 %v3366
    %v3368 = vpop.xlane.xlu0 %3367
    %vm3369 = vcmp.eq.f32.partialorder %v3366, %v3368
    %v3370 = vsel %vm3369, %v3365, inf
    %3371 = vmin.xlane.f32.xlu0 %v3370
    %v3372 = vpop.xlane.xlu0 %3371
    %v3373 = vcvt.f32.s32 %v3372
    %v3374 = vcvt.f32.s32 %v3368
    %v3375 = vshll.u32 %v3374, 16
    %v3376 = vadd.s32 %v3375, %v3373
    %vm3377 = vcmp.eq.s32.totalorder %v87, %v3376
    %v3378 = vsel %vm3377, 1, 0
    %v3379 = vcvt.s32.f32 %v3378
    %vm3380 = vmxor %vm2941, 1
    %3381 = vrot.lane.b32.xlu0 %v3180, 32
    %v3382 = vpop.permute.xlu0 %3381
    %3384 = vrot.lane.b32.xlu0 %v3281, 64
    %v3385 = vpop.permute.xlu0 %3384
    %v3387 = vsel %vm99, %v3354, %v3382
    %v3388 = vsel %vm173, %v3387, %v3385
    %v3389 = vsel %vm3380, 1, 0
    %vm3390 = vcmp.eq.s32.totalorder %v3389, 1
    %v3391 = vsel %vm3390, %v3388, 0.0
    %3392 = vst [vmem:[%s5 + $0x1] sm:$0x1] %v3391
    %v3393 = vsel %vm3390, %v3180, %v2730
    %v3394 = vsel %vm3390, %v3281, %v2831
    %v3395 = vsel %vm3390, %v3379, %v2930
    %vm3396 = vcmp.eq.s32.totalorder %v3376, %v2940
    %vm3397 = vmand %vm3380, %vm3396
    %vm3398 = vmor %vm2941, %vm3397
    %3400 = vrot.lane.b32.xlu0 %v3393, 96
    %v3401 = vpop.permute.xlu0 %3400
    %v3402 = vsel %vm177, %v3401, 0
    %3404 = vmatprep.subr.mxu0 0.0
    %3405 = vmatpush1.msra.mxu0 %v61
    %3406 = vmatprep.subr.mxu0 0.0
    %3407 = vmatpush1.msra.mxu0 %v62
    %3408 = vmatprep.subr.mxu0 0.0
    %3409 = vmatpush1.msra.mxu0 %v63
    %3410 = vmatprep.subr.mxu0 0.0
    %3411 = vmatpush1.msra.mxu0 %v64
    %3412 = vmatprep.subr.mxu0 0.0
    %3413 = vmatpush1.msra.mxu0 0.0
    %3414 = vmatprep.subr.mxu0 0.0
    %3415 = vmatpush1.msra.mxu0 0.0
    %3416 = vmatprep.subr.mxu0 0.0
    %3417 = vmatpush1.msra.mxu0 0.0
    %3418 = vmatprep.subr.mxu0 0.0
    %3419 = vmatpush1.msra.mxu0 0.0
    %3420 = vmatprep.subr.mxu0 0.0
    %3421 = vmatpush1.msra.mxu0 0.0
    %3422 = vmatprep.subr.mxu0 0.0
    %3423 = vmatpush1.msra.mxu0 0.0
    %3424 = vmatprep.subr.mxu0 0.0
    %3425 = vmatpush1.msra.mxu0 0.0
    %3426 = vmatprep.subr.mxu0 0.0
    %3427 = vmatpush1.msra.mxu0 0.0
    %3428 = vmatprep.subr.mxu0 0.0
    %3429 = vmatpush1.msra.mxu0 0.0
    %3430 = vmatprep.subr.mxu0 0.0
    %3431 = vmatpush1.msra.mxu0 0.0
    %3432 = vmatprep.subr.mxu0 0.0
    %3433 = vmatpush1.msra.mxu0 0.0
    %3434 = vmatprep.subr.mxu0 0.0
    %3435 = vmatpush1.msra.mxu0 0.0
    %3436 = vmatprep.subr.mxu0 0.0
    %3437 = vmatpush1.msra.mxu0 0.0
    %3438 = vmatprep.subr.mxu0 0.0
    %3439 = vmatpush1.msra.mxu0 0.0
    %3440 = vmatprep.subr.mxu0 0.0
    %3441 = vmatpush1.msra.mxu0 0.0
    %3442 = vmatprep.subr.mxu0 0.0
    %3443 = vmatpush1.msra.mxu0 0.0
    %3444 = vmatprep.subr.mxu0 0.0
    %3445 = vmatpush1.msra.mxu0 0.0
    %3446 = vmatprep.subr.mxu0 0.0
    %3447 = vmatpush1.msra.mxu0 0.0
    %3448 = vmatprep.subr.mxu0 0.0
    %3449 = vmatpush1.msra.mxu0 0.0
    %3450 = vmatprep.subr.mxu0 0.0
    %3451 = vmatpush1.msra.mxu0 0.0
    %3452 = vmatprep.subr.mxu0 0.0
    %3453 = vmatpush1.msra.mxu0 0.0
    %3454 = vmatprep.subr.mxu0 0.0
    %3455 = vmatpush1.msra.mxu0 0.0
    %3456 = vmatprep.subr.mxu0 0.0
    %3457 = vmatpush1.msra.mxu0 0.0
    %3458 = vmatprep.subr.mxu0 0.0
    %3459 = vmatpush1.msra.mxu0 0.0
    %3460 = vmatprep.subr.mxu0 0.0
    %3461 = vmatpush1.msra.mxu0 0.0
    %3462 = vmatprep.subr.mxu0 0.0
    %3463 = vmatpush1.msra.mxu0 0.0
    %3464 = vmatprep.subr.mxu0 0.0
    %3465 = vmatpush1.msra.mxu0 0.0
    %3466 = vmatprep.subr.mxu0 0.0
    %3467 = vmatpush1.msra.mxu0 0.0
    %3468 = vmatprep.mubr.f32.mxu0 0.0
    %3469 = vmatmul.mubr.f32.gmra.mrb[0].mxu0 %v3402
    %v3470 = vpop.f32.mrb[0].mxu0
    %v3471 = vadd.f32 %v78, %v3470
    %v3472 = vpop.f32.mrb[0].mxu0
    %3473 = vdwg.mxu0
    %3475 = vrot.lane.b32.xlu0 %v3394, 96
    %v3476 = vpop.permute.xlu0 %3475
    %v3477 = vsel %vm177, %v3476, 0
    %3479 = vmatprep.subr.mxu0 0.0
    %3480 = vmatpush1.msra.mxu0 %v69
    %3481 = vmatprep.subr.mxu0 0.0
    %3482 = vmatpush1.msra.mxu0 %v70
    %3483 = vmatprep.subr.mxu0 0.0
    %3484 = vmatpush1.msra.mxu0 %v71
    %3485 = vmatprep.subr.mxu0 0.0
    %3486 = vmatpush1.msra.mxu0 %v72
    %3487 = vmatprep.subr.mxu0 0.0
    %3488 = vmatpush1.msra.mxu0 0.0
    %3489 = vmatprep.subr.mxu0 0.0
    %3490 = vmatpush1.msra.mxu0 0.0
    %3491 = vmatprep.subr.mxu0 0.0
    %3492 = vmatpush1.msra.mxu0 0.0
    %3493 = vmatprep.subr.mxu0 0.0
    %3494 = vmatpush1.msra.mxu0 0.0
    %3495 = vmatprep.subr.mxu0 0.0
    %3496 = vmatpush1.msra.mxu0 0.0
    %3497 = vmatprep.subr.mxu0 0.0
    %3498 = vmatpush1.msra.mxu0 0.0
    %3499 = vmatprep.subr.mxu0 0.0
    %3500 = vmatpush1.msra.mxu0 0.0
    %3501 = vmatprep.subr.mxu0 0.0
    %3502 = vmatpush1.msra.mxu0 0.0
    %3503 = vmatprep.subr.mxu0 0.0
    %3504 = vmatpush1.msra.mxu0 0.0
    %3505 = vmatprep.subr.mxu0 0.0
    %3506 = vmatpush1.msra.mxu0 0.0
    %3507 = vmatprep.subr.mxu0 0.0
    %3508 = vmatpush1.msra.mxu0 0.0
    %3509 = vmatprep.subr.mxu0 0.0
    %3510 = vmatpush1.msra.mxu0 0.0
    %3511 = vmatprep.subr.mxu0 0.0
    %3512 = vmatpush1.msra.mxu0 0.0
    %3513 = vmatprep.subr.mxu0 0.0
    %3514 = vmatpush1.msra.mxu0 0.0
    %3515 = vmatprep.subr.mxu0 0.0
    %3516 = vmatpush1.msra.mxu0 0.0
    %3517 = vmatprep.subr.mxu0 0.0
    %3518 = vmatpush1.msra.mxu0 0.0
    %3519 = vmatprep.subr.mxu0 0.0
    %3520 = vmatpush1.msra.mxu0 0.0
    %3521 = vmatprep.subr.mxu0 0.0
    %3522 = vmatpush1.msra.mxu0 0.0
    %3523 = vmatprep.subr.mxu0 0.0
    %3524 = vmatpush1.msra.mxu0 0.0
    %3525 = vmatprep.subr.mxu0 0.0
    %3526 = vmatpush1.msra.mxu0 0.0
    %3527 = vmatprep.subr.mxu0 0.0
    %3528 = vmatpush1.msra.mxu0 0.0
    %3529 = vmatprep.subr.mxu0 0.0
    %3530 = vmatpush1.msra.mxu0 0.0
    %3531 = vmatprep.subr.mxu0 0.0
    %3532 = vmatpush1.msra.mxu0 0.0
    %3533 = vmatprep.subr.mxu0 0.0
    %3534 = vmatpush1.msra.mxu0 0.0
    %3535 = vmatprep.subr.mxu0 0.0
    %3536 = vmatpush1.msra.mxu0 0.0
    %3537 = vmatprep.subr.mxu0 0.0
    %3538 = vmatpush1.msra.mxu0 0.0
    %3539 = vmatprep.subr.mxu0 0.0
    %3540 = vmatpush1.msra.mxu0 0.0
    %3541 = vmatprep.subr.mxu0 0.0
    %3542 = vmatpush1.msra.mxu0 0.0
    %3543 = vmatprep.mubr.f32.mxu0 0.0
    %3544 = vmatmul.mubr.f32.gmra.mrb[0].mxu0 %v3477
    %v3545 = vpop.f32.mrb[0].mxu0
    %v3546 = vadd.f32 %v80, %v3545
    %v3547 = vpop.f32.mrb[0].mxu0
    %3548 = vdwg.mxu0
    %v3550 = vsel %vm99, %v3395, 0
    %3552 = vmatprep.subr.mxu0 0.0
    %3553 = vmatpush1.msra.mxu0 %v53
    %3554 = vmatprep.subr.mxu0 0.0
    %3555 = vmatpush1.msra.mxu0 %v54
    %3556 = vmatprep.subr.mxu0 0.0
    %3557 = vmatpush1.msra.mxu0 %v55
    %3558 = vmatprep.subr.mxu0 0.0
    %3559 = vmatpush1.msra.mxu0 %v56
    %3560 = vmatprep.subr.mxu0 0.0
    %3561 = vmatpush1.msra.mxu0 %v57
    %3562 = vmatprep.subr.mxu0 0.0
    %3563 = vmatpush1.msra.mxu0 %v58
    %3564 = vmatprep.subr.mxu0 0.0
    %3565 = vmatpush1.msra.mxu0 %v59
    %3566 = vmatprep.subr.mxu0 0.0
    %3567 = vmatpush1.msra.mxu0 %v60
    %3568 = vmatprep.subr.mxu0 0.0
    %3569 = vmatpush1.msra.mxu0 0.0
    %3570 = vmatprep.subr.mxu0 0.0
    %3571 = vmatpush1.msra.mxu0 0.0
    %3572 = vmatprep.subr.mxu0 0.0
    %3573 = vmatpush1.msra.mxu0 0.0
    %3574 = vmatprep.subr.mxu0 0.0
    %3575 = vmatpush1.msra.mxu0 0.0
    %3576 = vmatprep.subr.mxu0 0.0
    %3577 = vmatpush1.msra.mxu0 0.0
    %3578 = vmatprep.subr.mxu0 0.0
    %3579 = vmatpush1.msra.mxu0 0.0
    %3580 = vmatprep.subr.mxu0 0.0
    %3581 = vmatpush1.msra.mxu0 0.0
    %3582 = vmatprep.subr.mxu0 0.0
    %3583 = vmatpush1.msra.mxu0 0.0
    %3584 = vmatprep.subr.mxu0 0.0
    %3585 = vmatpush1.msra.mxu0 0.0
    %3586 = vmatprep.subr.mxu0 0.0
    %3587 = vmatpush1.msra.mxu0 0.0
    %3588 = vmatprep.subr.mxu0 0.0
    %3589 = vmatpush1.msra.mxu0 0.0
    %3590 = vmatprep.subr.mxu0 0.0
    %3591 = vmatpush1.msra.mxu0 0.0
    %3592 = vmatprep.subr.mxu0 0.0
    %3593 = vmatpush1.msra.mxu0 0.0
    %3594 = vmatprep.subr.mxu0 0.0
    %3595 = vmatpush1.msra.mxu0 0.0
    %3596 = vmatprep.subr.mxu0 0.0
    %3597 = vmatpush1.msra.mxu0 0.0
    %3598 = vmatprep.subr.mxu0 0.0
    %3599 = vmatpush1.msra.mxu0 0.0
    %3600 = vmatprep.subr.mxu0 0.0
    %3601 = vmatpush1.msra.mxu0 0.0
    %3602 = vmatprep.subr.mxu0 0.0
    %3603 = vmatpush1.msra.mxu0 0.0
    %3604 = vmatprep.subr.mxu0 0.0
    %3605 = vmatpush1.msra.mxu0 0.0
    %3606 = vmatprep.subr.mxu0 0.0
    %3607 = vmatpush1.msra.mxu0 0.0
    %3608 = vmatprep.subr.mxu0 0.0
    %3609 = vmatpush1.msra.mxu0 0.0
    %3610 = vmatprep.subr.mxu0 0.0
    %3611 = vmatpush1.msra.mxu0 0.0
    %3612 = vmatprep.subr.mxu0 0.0
    %3613 = vmatpush1.msra.mxu0 0.0
    %3614 = vmatprep.subr.mxu0 0.0
    %3615 = vmatpush1.msra.mxu0 0.0
    %3616 = vmatprep.mubr.f32.mxu0 0.0
    %3617 = vmatmul.mubr.f32.gmra.mrb[0].mxu0 %v3550
    %v3618 = vpop.f32.mrb[0].mxu0
    %v3619 = vadd.f32 %v77, %v3618
    %v3620 = vpop.f32.mrb[0].mxu0
    %3621 = vdwg.mxu0
    %v3622 = vadd.f32 %v3619, %v3471
    %v3623 = vxor.u32 %v3622, 2147483648
    %v3624 = vmul.f32 %v3623, 1.442695
    %v3625 = vpow.pop %v3624
    %v3626 = vadd.f32 %v3625, 1.0
    %v3627 = vrcp.pop %v3626
    %v3628 = vmul.f32 1.0, %v3627
    %3630 = vrot.lane.b32.xlu0 %v3471, 64
    %v3631 = vpop.permute.xlu0 %3630
    %v3633 = vmul.f32 %v3628, %v3631
    %3635 = vrot.lane.b32.xlu0 %v3633, 64
    %v3636 = vpop.permute.xlu0 %3635
    %v3638 = vadd.f32 %v3619, %v3636
    %v3639 = vtanh.pop %v3638
    %v3640 = vsub.f32 1.0, %v3628
    %3642 = vrot.lane.b32.xlu0 %v3639, 96
    %v3643 = vpop.permute.xlu0 %3642
    %v3645 = vmul.f32 %v3640, %v3643
    %v3646 = vmul.f32 %v3628, %v3393
    %v3647 = vadd.f32 %v3645, %v3646
    %3649 = vrot.lane.b32.xlu0 %v3647, 96
    %v3650 = vpop.permute.xlu0 %3649
    %v3651 = vsel %vm177, %v3650, 0
    %3653 = vmatprep.subr.mxu0 0.0
    %3654 = vmatpush1.msra.mxu0 %v65
    %3655 = vmatprep.subr.mxu0 0.0
    %3656 = vmatpush1.msra.mxu0 %v66
    %3657 = vmatprep.subr.mxu0 0.0
    %3658 = vmatpush1.msra.mxu0 %v67
    %3659 = vmatprep.subr.mxu0 0.0
    %3660 = vmatpush1.msra.mxu0 %v68
    %3661 = vmatprep.subr.mxu0 0.0
    %3662 = vmatpush1.msra.mxu0 0.0
    %3663 = vmatprep.subr.mxu0 0.0
    %3664 = vmatpush1.msra.mxu0 0.0
    %3665 = vmatprep.subr.mxu0 0.0
    %3666 = vmatpush1.msra.mxu0 0.0
    %3667 = vmatprep.subr.mxu0 0.0
    %3668 = vmatpush1.msra.mxu0 0.0
    %3669 = vmatprep.subr.mxu0 0.0
    %3670 = vmatpush1.msra.mxu0 0.0
    %3671 = vmatprep.subr.mxu0 0.0
    %3672 = vmatpush1.msra.mxu0 0.0
    %3673 = vmatprep.subr.mxu0 0.0
    %3674 = vmatpush1.msra.mxu0 0.0
    %3675 = vmatprep.subr.mxu0 0.0
    %3676 = vmatpush1.msra.mxu0 0.0
    %3677 = vmatprep.subr.mxu0 0.0
    %3678 = vmatpush1.msra.mxu0 0.0
    %3679 = vmatprep.subr.mxu0 0.0
    %3680 = vmatpush1.msra.mxu0 0.0
    %3681 = vmatprep.subr.mxu0 0.0
    %3682 = vmatpush1.msra.mxu0 0.0
    %3683 = vmatprep.subr.mxu0 0.0
    %3684 = vmatpush1.msra.mxu0 0.0
    %3685 = vmatprep.subr.mxu0 0.0
    %3686 = vmatpush1.msra.mxu0 0.0
    %3687 = vmatprep.subr.mxu0 0.0
    %3688 = vmatpush1.msra.mxu0 0.0
    %3689 = vmatprep.subr.mxu0 0.0
    %3690 = vmatpush1.msra.mxu0 0.0
    %3691 = vmatprep.subr.mxu0 0.0
    %3692 = vmatpush1.msra.mxu0 0.0
    %3693 = vmatprep.subr.mxu0 0.0
    %3694 = vmatpush1.msra.mxu0 0.0
    %3695 = vmatprep.subr.mxu0 0.0
    %3696 = vmatpush1.msra.mxu0 0.0
    %3697 = vmatprep.subr.mxu0 0.0
    %3698 = vmatpush1.msra.mxu0 0.0
    %3699 = vmatprep.subr.mxu0 0.0
    %3700 = vmatpush1.msra.mxu0 0.0
    %3701 = vmatprep.subr.mxu0 0.0
    %3702 = vmatpush1.msra.mxu0 0.0
    %3703 = vmatprep.subr.mxu0 0.0
    %3704 = vmatpush1.msra.mxu0 0.0
    %3705 = vmatprep.subr.mxu0 0.0
    %3706 = vmatpush1.msra.mxu0 0.0
    %3707 = vmatprep.subr.mxu0 0.0
    %3708 = vmatpush1.msra.mxu0 0.0
    %3709 = vmatprep.subr.mxu0 0.0
    %3710 = vmatpush1.msra.mxu0 0.0
    %3711 = vmatprep.subr.mxu0 0.0
    %3712 = vmatpush1.msra.mxu0 0.0
    %3713 = vmatprep.subr.mxu0 0.0
    %3714 = vmatpush1.msra.mxu0 0.0
    %3715 = vmatprep.subr.mxu0 0.0
    %3716 = vmatpush1.msra.mxu0 0.0
    %3717 = vmatprep.mubr.f32.mxu0 0.0
    %3718 = vmatmul.mubr.f32.gmra.mrb[0].mxu0 %v3651
    %v3719 = vpop.f32.mrb[0].mxu0
    %v3720 = vadd.f32 %v79, %v3719
    %v3721 = vpop.f32.mrb[0].mxu0
    %3722 = vdwg.mxu0
    %v3723 = vadd.f32 %v3720, %v3546
    %v3724 = vxor.u32 %v3723, 2147483648
    %v3725 = vmul.f32 %v3724, 1.442695
    %v3726 = vpow.pop %v3725
    %v3727 = vadd.f32 %v3726, 1.0
    %v3728 = vrcp.pop %v3727
    %v3729 = vmul.f32 1.0, %v3728
    %3731 = vrot.lane.b32.xlu0 %v3546, 64
    %v3732 = vpop.permute.xlu0 %3731
    %v3734 = vmul.f32 %v3729, %v3732
    %3736 = vrot.lane.b32.xlu0 %v3734, 64
    %v3737 = vpop.permute.xlu0 %3736
    %v3739 = vadd.f32 %v3720, %v3737
    %v3740 = vtanh.pop %v3739
    %v3741 = vsub.f32 1.0, %v3729
    %3743 = vrot.lane.b32.xlu0 %v3740, 96
    %v3744 = vpop.permute.xlu0 %3743
    %v3746 = vmul.f32 %v3741, %v3744
    %v3747 = vmul.f32 %v3729, %v3394
    %v3748 = vadd.f32 %v3746, %v3747
    %3750 = vrot.lane.b32.xlu0 %v3748, 96
    %v3751 = vpop.permute.xlu0 %3750
    %v3752 = vsel %vm177, %v3751, 0
    %3754 = vmatprep.subr.mxu0 0.0
    %3755 = vmatpush1.msra.mxu0 %v81
    %3756 = vmatprep.subr.mxu0 0.0
    %3757 = vmatpush1.msra.mxu0 %v82
    %3758 = vmatprep.subr.mxu0 0.0
    %3759 = vmatpush1.msra.mxu0 %v83
    %3760 = vmatprep.subr.mxu0 0.0
    %3761 = vmatpush1.msra.mxu0 %v84
    %3762 = vmatprep.subr.mxu0 0.0
    %3763 = vmatpush1.msra.mxu0 0.0
    %3764 = vmatprep.subr.mxu0 0.0
    %3765 = vmatpush1.msra.mxu0 0.0
    %3766 = vmatprep.subr.mxu0 0.0
    %3767 = vmatpush1.msra.mxu0 0.0
    %3768 = vmatprep.subr.mxu0 0.0
    %3769 = vmatpush1.msra.mxu0 0.0
    %3770 = vmatprep.subr.mxu0 0.0
    %3771 = vmatpush1.msra.mxu0 0.0
    %3772 = vmatprep.subr.mxu0 0.0
    %3773 = vmatpush1.msra.mxu0 0.0
    %3774 = vmatprep.subr.mxu0 0.0
    %3775 = vmatpush1.msra.mxu0 0.0
    %3776 = vmatprep.subr.mxu0 0.0
    %3777 = vmatpush1.msra.mxu0 0.0
    %3778 = vmatprep.subr.mxu0 0.0
    %3779 = vmatpush1.msra.mxu0 0.0
    %3780 = vmatprep.subr.mxu0 0.0
    %3781 = vmatpush1.msra.mxu0 0.0
    %3782 = vmatprep.subr.mxu0 0.0
    %3783 = vmatpush1.msra.mxu0 0.0
    %3784 = vmatprep.subr.mxu0 0.0
    %3785 = vmatpush1.msra.mxu0 0.0
    %3786 = vmatprep.subr.mxu0 0.0
    %3787 = vmatpush1.msra.mxu0 0.0
    %3788 = vmatprep.subr.mxu0 0.0
    %3789 = vmatpush1.msra.mxu0 0.0
    %3790 = vmatprep.subr.mxu0 0.0
    %3791 = vmatpush1.msra.mxu0 0.0
    %3792 = vmatprep.subr.mxu0 0.0
    %3793 = vmatpush1.msra.mxu0 0.0
    %3794 = vmatprep.subr.mxu0 0.0
    %3795 = vmatpush1.msra.mxu0 0.0
    %3796 = vmatprep.subr.mxu0 0.0
    %3797 = vmatpush1.msra.mxu0 0.0
    %3798 = vmatprep.subr.mxu0 0.0
    %3799 = vmatpush1.msra.mxu0 0.0
    %3800 = vmatprep.subr.mxu0 0.0
    %3801 = vmatpush1.msra.mxu0 0.0
    %3802 = vmatprep.subr.mxu0 0.0
    %3803 = vmatpush1.msra.mxu0 0.0
    %3804 = vmatprep.subr.mxu0 0.0
    %3805 = vmatpush1.msra.mxu0 0.0
    %3806 = vmatprep.subr.mxu0 0.0
    %3807 = vmatpush1.msra.mxu0 0.0
    %3808 = vmatprep.subr.mxu0 0.0
    %3809 = vmatpush1.msra.mxu0 0.0
    %3810 = vmatprep.subr.mxu0 0.0
    %3811 = vmatpush1.msra.mxu0 0.0
    %3812 = vmatprep.subr.mxu0 0.0
    %3813 = vmatpush1.msra.mxu0 0.0
    %3814 = vmatprep.subr.mxu0 0.0
    %3815 = vmatpush1.msra.mxu0 0.0
    %3816 = vmatprep.subr.mxu0 0.0
    %3817 = vmatpush1.msra.mxu0 0.0
    %3818 = vmatprep.mubr.f32.mxu0 0.0
    %3819 = vmatmul.mubr.f32.gmra.mrb[0].mxu0 %v3752
    %v3820 = vpop.f32.mrb[0].mxu0
    %v3821 = vadd.f32 %v85, %v3820
    %v3822 = vpop.f32.mrb[0].mxu0
    %3823 = vdwg.mxu0
    %v3824 = vsel %vm2907, %v3821, -inf
    %3825 = vmax.xlane.f32.xlu0 %v3824
    %v3826 = vpop.xlane.xlu0 %3825
    %vm3827 = vcmp.eq.f32.partialorder %v3821, %v3826
    %v3828 = vsel %vm3827, %v87, 64
    %v3829 = vsel %vm2907, %v3828, 2147483647
    %v3830 = vand.u32 %v3829, 65535
    %v3831 = vshra.s32 %v3829, 16
    %v3832 = vcvt.s32.f32 %v3830
    %v3833 = vcvt.s32.f32 %v3831
    %3834 = vmin.xlane.f32.xlu0 %v3833
    %v3835 = vpop.xlane.xlu0 %3834
    %vm3836 = vcmp.eq.f32.partialorder %v3833, %v3835
    %v3837 = vsel %vm3836, %v3832, inf
    %3838 = vmin.xlane.f32.xlu0 %v3837
    %v3839 = vpop.xlane.xlu0 %3838
    %v3840 = vcvt.f32.s32 %v3839
    %v3841 = vcvt.f32.s32 %v3835
    %v3842 = vshll.u32 %v3841, 16
    %v3843 = vadd.s32 %v3842, %v3840
    %vm3844 = vcmp.eq.s32.totalorder %v87, %v3843
    %v3845 = vsel %vm3844, 1, 0
    %v3846 = vcvt.s32.f32 %v3845
    %vm3847 = vmxor %vm3398, 1
    %3848 = vrot.lane.b32.xlu0 %v3647, 32
    %v3849 = vpop.permute.xlu0 %3848
    %3851 = vrot.lane.b32.xlu0 %v3748, 64
    %v3852 = vpop.permute.xlu0 %3851
    %v3854 = vsel %vm99, %v3821, %v3849
    %v3855 = vsel %vm173, %v3854, %v3852
    %v3856 = vsel %vm3847, 1, 0
    %vm3857 = vcmp.eq.s32.totalorder %v3856, 1
    %v3858 = vsel %vm3857, %v3855, 0.0
    %3859 = vst [vmem:[%s5 + $0x2] sm:$0x1] %v3858
    %v3860 = vsel %vm3857, %v3647, %v3393
    %v3861 = vsel %vm3857, %v3748, %v3394
    %v3862 = vsel %vm3857, %v3846, %v3395
    %vm3863 = vcmp.eq.s32.totalorder %v3843, %v2940
    %vm3864 = vmand %vm3847, %vm3863
    %vm3865 = vmor %vm3398, %vm3864
    %3867 = vrot.lane.b32.xlu0 %v3860, 96
    %v3868 = vpop.permute.xlu0 %3867
    %v3869 = vsel %vm177, %v3868, 0
    %3871 = vmatprep.subr.mxu0 0.0
    %3872 = vmatpush1.msra.mxu0 %v61
    %3873 = vmatprep.subr.mxu0 0.0
    %3874 = vmatpush1.msra.mxu0 %v62
    %3875 = vmatprep.subr.mxu0 0.0
    %3876 = vmatpush1.msra.mxu0 %v63
    %3877 = vmatprep.subr.mxu0 0.0
    %3878 = vmatpush1.msra.mxu0 %v64
    %3879 = vmatprep.subr.mxu0 0.0
    %3880 = vmatpush1.msra.mxu0 0.0
    %3881 = vmatprep.subr.mxu0 0.0
    %3882 = vmatpush1.msra.mxu0 0.0
    %3883 = vmatprep.subr.mxu0 0.0
    %3884 = vmatpush1.msra.mxu0 0.0
    %3885 = vmatprep.subr.mxu0 0.0
    %3886 = vmatpush1.msra.mxu0 0.0
    %3887 = vmatprep.subr.mxu0 0.0
    %3888 = vmatpush1.msra.mxu0 0.0
    %3889 = vmatprep.subr.mxu0 0.0
    %3890 = vmatpush1.msra.mxu0 0.0
    %3891 = vmatprep.subr.mxu0 0.0
    %3892 = vmatpush1.msra.mxu0 0.0
    %3893 = vmatprep.subr.mxu0 0.0
    %3894 = vmatpush1.msra.mxu0 0.0
    %3895 = vmatprep.subr.mxu0 0.0
    %3896 = vmatpush1.msra.mxu0 0.0
    %3897 = vmatprep.subr.mxu0 0.0
    %3898 = vmatpush1.msra.mxu0 0.0
    %3899 = vmatprep.subr.mxu0 0.0
    %3900 = vmatpush1.msra.mxu0 0.0
    %3901 = vmatprep.subr.mxu0 0.0
    %3902 = vmatpush1.msra.mxu0 0.0
    %3903 = vmatprep.subr.mxu0 0.0
    %3904 = vmatpush1.msra.mxu0 0.0
    %3905 = vmatprep.subr.mxu0 0.0
    %3906 = vmatpush1.msra.mxu0 0.0
    %3907 = vmatprep.subr.mxu0 0.0
    %3908 = vmatpush1.msra.mxu0 0.0
    %3909 = vmatprep.subr.mxu0 0.0
    %3910 = vmatpush1.msra.mxu0 0.0
    %3911 = vmatprep.subr.mxu0 0.0
    %3912 = vmatpush1.msra.mxu0 0.0
    %3913 = vmatprep.subr.mxu0 0.0
    %3914 = vmatpush1.msra.mxu0 0.0
    %3915 = vmatprep.subr.mxu0 0.0
    %3916 = vmatpush1.msra.mxu0 0.0
    %3917 = vmatprep.subr.mxu0 0.0
    %3918 = vmatpush1.msra.mxu0 0.0
    %3919 = vmatprep.subr.mxu0 0.0
    %3920 = vmatpush1.msra.mxu0 0.0
    %3921 = vmatprep.subr.mxu0 0.0
    %3922 = vmatpush1.msra.mxu0 0.0
    %3923 = vmatprep.subr.mxu0 0.0
    %3924 = vmatpush1.msra.mxu0 0.0
    %3925 = vmatprep.subr.mxu0 0.0
    %3926 = vmatpush1.msra.mxu0 0.0
    %3927 = vmatprep.subr.mxu0 0.0
    %3928 = vmatpush1.msra.mxu0 0.0
    %3929 = vmatprep.subr.mxu0 0.0
    %3930 = vmatpush1.msra.mxu0 0.0
    %3931 = vmatprep.subr.mxu0 0.0
    %3932 = vmatpush1.msra.mxu0 0.0
    %3933 = vmatprep.subr.mxu0 0.0
    %3934 = vmatpush1.msra.mxu0 0.0
    %3935 = vmatprep.mubr.f32.mxu0 0.0
    %3936 = vmatmul.mubr.f32.gmra.mrb[0].mxu0 %v3869
    %v3937 = vpop.f32.mrb[0].mxu0
    %v3938 = vadd.f32 %v78, %v3937
    %v3939 = vpop.f32.mrb[0].mxu0
    %3940 = vdwg.mxu0
    %3942 = vrot.lane.b32.xlu0 %v3861, 96
    %v3943 = vpop.permute.xlu0 %3942
    %v3944 = vsel %vm177, %v3943, 0
    %3946 = vmatprep.subr.mxu0 0.0
    %3947 = vmatpush1.msra.mxu0 %v69
    %3948 = vmatprep.subr.mxu0 0.0
    %3949 = vmatpush1.msra.mxu0 %v70
    %3950 = vmatprep.subr.mxu0 0.0
    %3951 = vmatpush1.msra.mxu0 %v71
    %3952 = vmatprep.subr.mxu0 0.0
    %3953 = vmatpush1.msra.mxu0 %v72
    %3954 = vmatprep.subr.mxu0 0.0
    %3955 = vmatpush1.msra.mxu0 0.0
    %3956 = vmatprep.subr.mxu0 0.0
    %3957 = vmatpush1.msra.mxu0 0.0
    %3958 = vmatprep.subr.mxu0 0.0
    %3959 = vmatpush1.msra.mxu0 0.0
    %3960 = vmatprep.subr.mxu0 0.0
    %3961 = vmatpush1.msra.mxu0 0.0
    %3962 = vmatprep.subr.mxu0 0.0
    %3963 = vmatpush1.msra.mxu0 0.0
    %3964 = vmatprep.subr.mxu0 0.0
    %3965 = vmatpush1.msra.mxu0 0.0
    %3966 = vmatprep.subr.mxu0 0.0
    %3967 = vmatpush1.msra.mxu0 0.0
    %3968 = vmatprep.subr.mxu0 0.0
    %3969 = vmatpush1.msra.mxu0 0.0
    %3970 = vmatprep.subr.mxu0 0.0
    %3971 = vmatpush1.msra.mxu0 0.0
    %3972 = vmatprep.subr.mxu0 0.0
    %3973 = vmatpush1.msra.mxu0 0.0
    %3974 = vmatprep.subr.mxu0 0.0
    %3975 = vmatpush1.msra.mxu0 0.0
    %3976 = vmatprep.subr.mxu0 0.0
    %3977 = vmatpush1.msra.mxu0 0.0
    %3978 = vmatprep.subr.mxu0 0.0
    %3979 = vmatpush1.msra.mxu0 0.0
    %3980 = vmatprep.subr.mxu0 0.0
    %3981 = vmatpush1.msra.mxu0 0.0
    %3982 = vmatprep.subr.mxu0 0.0
    %3983 = vmatpush1.msra.mxu0 0.0
    %3984 = vmatprep.subr.mxu0 0.0
    %3985 = vmatpush1.msra.mxu0 0.0
    %3986 = vmatprep.subr.mxu0 0.0
    %3987 = vmatpush1.msra.mxu0 0.0
    %3988 = vmatprep.subr.mxu0 0.0
    %3989 = vmatpush1.msra.mxu0 0.0
    %3990 = vmatprep.subr.mxu0 0.0
    %3991 = vmatpush1.msra.mxu0 0.0
    %3992 = vmatprep.subr.mxu0 0.0
    %3993 = vmatpush1.msra.mxu0 0.0
    %3994 = vmatprep.subr.mxu0 0.0
    %3995 = vmatpush1.msra.mxu0 0.0
    %3996 = vmatprep.subr.mxu0 0.0
    %3997 = vmatpush1.msra.mxu0 0.0
    %3998 = vmatprep.subr.mxu0 0.0
    %3999 = vmatpush1.msra.mxu0 0.0
    %4000 = vmatprep.subr.mxu0 0.0
    %4001 = vmatpush1.msra.mxu0 0.0
    %4002 = vmatprep.subr.mxu0 0.0
    %4003 = vmatpush1.msra.mxu0 0.0
    %4004 = vmatprep.subr.mxu0 0.0
    %4005 = vmatpush1.msra.mxu0 0.0
    %4006 = vmatprep.subr.mxu0 0.0
    %4007 = vmatpush1.msra.mxu0 0.0
    %4008 = vmatprep.subr.mxu0 0.0
    %4009 = vmatpush1.msra.mxu0 0.0
    %4010 = vmatprep.mubr.f32.mxu0 0.0
    %4011 = vmatmul.mubr.f32.gmra.mrb[0].mxu0 %v3944
    %v4012 = vpop.f32.mrb[0].mxu0
    %v4013 = vadd.f32 %v80, %v4012
    %v4014 = vpop.f32.mrb[0].mxu0
    %4015 = vdwg.mxu0
    %v4017 = vsel %vm99, %v3862, 0
    %4019 = vmatprep.subr.mxu0 0.0
    %4020 = vmatpush1.msra.mxu0 %v53
    %4021 = vmatprep.subr.mxu0 0.0
    %4022 = vmatpush1.msra.mxu0 %v54
    %4023 = vmatprep.subr.mxu0 0.0
    %4024 = vmatpush1.msra.mxu0 %v55
    %4025 = vmatprep.subr.mxu0 0.0
    %4026 = vmatpush1.msra.mxu0 %v56
    %4027 = vmatprep.subr.mxu0 0.0
    %4028 = vmatpush1.msra.mxu0 %v57
    %4029 = vmatprep.subr.mxu0 0.0
    %4030 = vmatpush1.msra.mxu0 %v58
    %4031 = vmatprep.subr.mxu0 0.0
    %4032 = vmatpush1.msra.mxu0 %v59
    %4033 = vmatprep.subr.mxu0 0.0
    %4034 = vmatpush1.msra.mxu0 %v60
    %4035 = vmatprep.subr.mxu0 0.0
    %4036 = vmatpush1.msra.mxu0 0.0
    %4037 = vmatprep.subr.mxu0 0.0
    %4038 = vmatpush1.msra.mxu0 0.0
    %4039 = vmatprep.subr.mxu0 0.0
    %4040 = vmatpush1.msra.mxu0 0.0
    %4041 = vmatprep.subr.mxu0 0.0
    %4042 = vmatpush1.msra.mxu0 0.0
    %4043 = vmatprep.subr.mxu0 0.0
    %4044 = vmatpush1.msra.mxu0 0.0
    %4045 = vmatprep.subr.mxu0 0.0
    %4046 = vmatpush1.msra.mxu0 0.0
    %4047 = vmatprep.subr.mxu0 0.0
    %4048 = vmatpush1.msra.mxu0 0.0
    %4049 = vmatprep.subr.mxu0 0.0
    %4050 = vmatpush1.msra.mxu0 0.0
    %4051 = vmatprep.subr.mxu0 0.0
    %4052 = vmatpush1.msra.mxu0 0.0
    %4053 = vmatprep.subr.mxu0 0.0
    %4054 = vmatpush1.msra.mxu0 0.0
    %4055 = vmatprep.subr.mxu0 0.0
    %4056 = vmatpush1.msra.mxu0 0.0
    %4057 = vmatprep.subr.mxu0 0.0
    %4058 = vmatpush1.msra.mxu0 0.0
    %4059 = vmatprep.subr.mxu0 0.0
    %4060 = vmatpush1.msra.mxu0 0.0
    %4061 = vmatprep.subr.mxu0 0.0
    %4062 = vmatpush1.msra.mxu0 0.0
    %4063 = vmatprep.subr.mxu0 0.0
    %4064 = vmatpush1.msra.mxu0 0.0
    %4065 = vmatprep.subr.mxu0 0.0
    %4066 = vmatpush1.msra.mxu0 0.0
    %4067 = vmatprep.subr.mxu0 0.0
    %4068 = vmatpush1.msra.mxu0 0.0
    %4069 = vmatprep.subr.mxu0 0.0
    %4070 = vmatpush1.msra.mxu0 0.0
    %4071 = vmatprep.subr.mxu0 0.0
    %4072 = vmatpush1.msra.mxu0 0.0
    %4073 = vmatprep.subr.mxu0 0.0
    %4074 = vmatpush1.msra.mxu0 0.0
    %4075 = vmatprep.subr.mxu0 0.0
    %4076 = vmatpush1.msra.mxu0 0.0
    %4077 = vmatprep.subr.mxu0 0.0
    %4078 = vmatpush1.msra.mxu0 0.0
    %4079 = vmatprep.subr.mxu0 0.0
    %4080 = vmatpush1.msra.mxu0 0.0
    %4081 = vmatprep.subr.mxu0 0.0
    %4082 = vmatpush1.msra.mxu0 0.0
    %4083 = vmatprep.mubr.f32.mxu0 0.0
    %4084 = vmatmul.mubr.f32.gmra.mrb[0].mxu0 %v4017
    %v4085 = vpop.f32.mrb[0].mxu0
    %v4086 = vadd.f32 %v77, %v4085
    %v4087 = vpop.f32.mrb[0].mxu0
    %4088 = vdwg.mxu0
    %v4089 = vadd.f32 %v4086, %v3938
    %v4090 = vxor.u32 %v4089, 2147483648
    %v4091 = vmul.f32 %v4090, 1.442695
    %v4092 = vpow.pop %v4091
    %v4093 = vadd.f32 %v4092, 1.0
    %v4094 = vrcp.pop %v4093
    %v4095 = vmul.f32 1.0, %v4094
    %4097 = vrot.lane.b32.xlu0 %v3938, 64
    %v4098 = vpop.permute.xlu0 %4097
    %v4100 = vmul.f32 %v4095, %v4098
    %4102 = vrot.lane.b32.xlu0 %v4100, 64
    %v4103 = vpop.permute.xlu0 %4102
    %v4105 = vadd.f32 %v4086, %v4103
    %v4106 = vtanh.pop %v4105
    %v4107 = vsub.f32 1.0, %v4095
    %4109 = vrot.lane.b32.xlu0 %v4106, 96
    %v4110 = vpop.permute.xlu0 %4109
    %v4112 = vmul.f32 %v4107, %v4110
    %v4113 = vmul.f32 %v4095, %v3860
    %v4114 = vadd.f32 %v4112, %v4113
    %4116 = vrot.lane.b32.xlu0 %v4114, 96
    %v4117 = vpop.permute.xlu0 %4116
    %v4118 = vsel %vm177, %v4117, 0
    %4120 = vmatprep.subr.mxu0 0.0
    %4121 = vmatpush1.msra.mxu0 %v65
    %4122 = vmatprep.subr.mxu0 0.0
    %4123 = vmatpush1.msra.mxu0 %v66
    %4124 = vmatprep.subr.mxu0 0.0
    %4125 = vmatpush1.msra.mxu0 %v67
    %4126 = vmatprep.subr.mxu0 0.0
    %4127 = vmatpush1.msra.mxu0 %v68
    %4128 = vmatprep.subr.mxu0 0.0
    %4129 = vmatpush1.msra.mxu0 0.0
    %4130 = vmatprep.subr.mxu0 0.0
    %4131 = vmatpush1.msra.mxu0 0.0
    %4132 = vmatprep.subr.mxu0 0.0
    %4133 = vmatpush1.msra.mxu0 0.0
    %4134 = vmatprep.subr.mxu0 0.0
    %4135 = vmatpush1.msra.mxu0 0.0
    %4136 = vmatprep.subr.mxu0 0.0
    %4137 = vmatpush1.msra.mxu0 0.0
    %4138 = vmatprep.subr.mxu0 0.0
    %4139 = vmatpush1.msra.mxu0 0.0
    %4140 = vmatprep.subr.mxu0 0.0
    %4141 = vmatpush1.msra.mxu0 0.0
    %4142 = vmatprep.subr.mxu0 0.0
    %4143 = vmatpush1.msra.mxu0 0.0
    %4144 = vmatprep.subr.mxu0 0.0
    %4145 = vmatpush1.msra.mxu0 0.0
    %4146 = vmatprep.subr.mxu0 0.0
    %4147 = vmatpush1.msra.mxu0 0.0
    %4148 = vmatprep.subr.mxu0 0.0
    %4149 = vmatpush1.msra.mxu0 0.0
    %4150 = vmatprep.subr.mxu0 0.0
    %4151 = vmatpush1.msra.mxu0 0.0
    %4152 = vmatprep.subr.mxu0 0.0
    %4153 = vmatpush1.msra.mxu0 0.0
    %4154 = vmatprep.subr.mxu0 0.0
    %4155 = vmatpush1.msra.mxu0 0.0
    %4156 = vmatprep.subr.mxu0 0.0
    %4157 = vmatpush1.msra.mxu0 0.0
    %4158 = vmatprep.subr.mxu0 0.0
    %4159 = vmatpush1.msra.mxu0 0.0
    %4160 = vmatprep.subr.mxu0 0.0
    %4161 = vmatpush1.msra.mxu0 0.0
    %4162 = vmatprep.subr.mxu0 0.0
    %4163 = vmatpush1.msra.mxu0 0.0
    %4164 = vmatprep.subr.mxu0 0.0
    %4165 = vmatpush1.msra.mxu0 0.0
    %4166 = vmatprep.subr.mxu0 0.0
    %4167 = vmatpush1.msra.mxu0 0.0
    %4168 = vmatprep.subr.mxu0 0.0
    %4169 = vmatpush1.msra.mxu0 0.0
    %4170 = vmatprep.subr.mxu0 0.0
    %4171 = vmatpush1.msra.mxu0 0.0
    %4172 = vmatprep.subr.mxu0 0.0
    %4173 = vmatpush1.msra.mxu0 0.0
    %4174 = vmatprep.subr.mxu0 0.0
    %4175 = vmatpush1.msra.mxu0 0.0
    %4176 = vmatprep.subr.mxu0 0.0
    %4177 = vmatpush1.msra.mxu0 0.0
    %4178 = vmatprep.subr.mxu0 0.0
    %4179 = vmatpush1.msra.mxu0 0.0
    %4180 = vmatprep.subr.mxu0 0.0
    %4181 = vmatpush1.msra.mxu0 0.0
    %4182 = vmatprep.subr.mxu0 0.0
    %4183 = vmatpush1.msra.mxu0 0.0
    %4184 = vmatprep.mubr.f32.mxu0 0.0
    %4185 = vmatmul.mubr.f32.gmra.mrb[0].mxu0 %v4118
    %v4186 = vpop.f32.mrb[0].mxu0
    %v4187 = vadd.f32 %v79, %v4186
    %v4188 = vpop.f32.mrb[0].mxu0
    %4189 = vdwg.mxu0
    %v4190 = vadd.f32 %v4187, %v4013
    %v4191 = vxor.u32 %v4190, 2147483648
    %v4192 = vmul.f32 %v4191, 1.442695
    %v4193 = vpow.pop %v4192
    %v4194 = vadd.f32 %v4193, 1.0
    %v4195 = vrcp.pop %v4194
    %v4196 = vmul.f32 1.0, %v4195
    %4198 = vrot.lane.b32.xlu0 %v4013, 64
    %v4199 = vpop.permute.xlu0 %4198
    %v4201 = vmul.f32 %v4196, %v4199
    %4203 = vrot.lane.b32.xlu0 %v4201, 64
    %v4204 = vpop.permute.xlu0 %4203
    %v4206 = vadd.f32 %v4187, %v4204
    %v4207 = vtanh.pop %v4206
    %v4208 = vsub.f32 1.0, %v4196
    %4210 = vrot.lane.b32.xlu0 %v4207, 96
    %v4211 = vpop.permute.xlu0 %4210
    %v4213 = vmul.f32 %v4208, %v4211
    %v4214 = vmul.f32 %v4196, %v3861
    %v4215 = vadd.f32 %v4213, %v4214
    %4217 = vrot.lane.b32.xlu0 %v4215, 96
    %v4218 = vpop.permute.xlu0 %4217
    %v4219 = vsel %vm177, %v4218, 0
    %4221 = vmatprep.subr.mxu0 0.0
    %4222 = vmatpush1.msra.mxu0 %v81
    %4223 = vmatprep.subr.mxu0 0.0
    %4224 = vmatpush1.msra.mxu0 %v82
    %4225 = vmatprep.subr.mxu0 0.0
    %4226 = vmatpush1.msra.mxu0 %v83
    %4227 = vmatprep.subr.mxu0 0.0
    %4228 = vmatpush1.msra.mxu0 %v84
    %4229 = vmatprep.subr.mxu0 0.0
    %4230 = vmatpush1.msra.mxu0 0.0
    %4231 = vmatprep.subr.mxu0 0.0
    %4232 = vmatpush1.msra.mxu0 0.0
    %4233 = vmatprep.subr.mxu0 0.0
    %4234 = vmatpush1.msra.mxu0 0.0
    %4235 = vmatprep.subr.mxu0 0.0
    %4236 = vmatpush1.msra.mxu0 0.0
    %4237 = vmatprep.subr.mxu0 0.0
    %4238 = vmatpush1.msra.mxu0 0.0
    %4239 = vmatprep.subr.mxu0 0.0
    %4240 = vmatpush1.msra.mxu0 0.0
    %4241 = vmatprep.subr.mxu0 0.0
    %4242 = vmatpush1.msra.mxu0 0.0
    %4243 = vmatprep.subr.mxu0 0.0
    %4244 = vmatpush1.msra.mxu0 0.0
    %4245 = vmatprep.subr.mxu0 0.0
    %4246 = vmatpush1.msra.mxu0 0.0
    %4247 = vmatprep.subr.mxu0 0.0
    %4248 = vmatpush1.msra.mxu0 0.0
    %4249 = vmatprep.subr.mxu0 0.0
    %4250 = vmatpush1.msra.mxu0 0.0
    %4251 = vmatprep.subr.mxu0 0.0
    %4252 = vmatpush1.msra.mxu0 0.0
    %4253 = vmatprep.subr.mxu0 0.0
    %4254 = vmatpush1.msra.mxu0 0.0
    %4255 = vmatprep.subr.mxu0 0.0
    %4256 = vmatpush1.msra.mxu0 0.0
    %4257 = vmatprep.subr.mxu0 0.0
    %4258 = vmatpush1.msra.mxu0 0.0
    %4259 = vmatprep.subr.mxu0 0.0
    %4260 = vmatpush1.msra.mxu0 0.0
    %4261 = vmatprep.subr.mxu0 0.0
    %4262 = vmatpush1.msra.mxu0 0.0
    %4263 = vmatprep.subr.mxu0 0.0
    %4264 = vmatpush1.msra.mxu0 0.0
    %4265 = vmatprep.subr.mxu0 0.0
    %4266 = vmatpush1.msra.mxu0 0.0
    %4267 = vmatprep.subr.mxu0 0.0
    %4268 = vmatpush1.msra.mxu0 0.0
    %4269 = vmatprep.subr.mxu0 0.0
    %4270 = vmatpush1.msra.mxu0 0.0
    %4271 = vmatprep.subr.mxu0 0.0
    %4272 = vmatpush1.msra.mxu0 0.0
    %4273 = vmatprep.subr.mxu0 0.0
    %4274 = vmatpush1.msra.mxu0 0.0
    %4275 = vmatprep.subr.mxu0 0.0
    %4276 = vmatpush1.msra.mxu0 0.0
    %4277 = vmatprep.subr.mxu0 0.0
    %4278 = vmatpush1.msra.mxu0 0.0
    %4279 = vmatprep.subr.mxu0 0.0
    %4280 = vmatpush1.msra.mxu0 0.0
    %4281 = vmatprep.subr.mxu0 0.0
    %4282 = vmatpush1.msra.mxu0 0.0
    %4283 = vmatprep.subr.mxu0 0.0
    %4284 = vmatpush1.msra.mxu0 0.0
    %4285 = vmatprep.mubr.f32.mxu0 0.0
    %4286 = vmatmul.mubr.f32.gmra.mrb[0].mxu0 %v4219
    %v4287 = vpop.f32.mrb[0].mxu0
    %v4288 = vadd.f32 %v85, %v4287
    %v4289 = vpop.f32.mrb[0].mxu0
    %4290 = vdwg.mxu0
    %v4291 = vsel %vm2907, %v4288, -inf
    %4292 = vmax.xlane.f32.xlu0 %v4291
    %v4293 = vpop.xlane.xlu0 %4292
    %vm4294 = vcmp.eq.f32.partialorder %v4288, %v4293
    %v4295 = vsel %vm4294, %v87, 64
    %v4296 = vsel %vm2907, %v4295, 2147483647
    %v4297 = vand.u32 %v4296, 65535
    %v4298 = vshra.s32 %v4296, 16
    %v4299 = vcvt.s32.f32 %v4297
    %v4300 = vcvt.s32.f32 %v4298
    %4301 = vmin.xlane.f32.xlu0 %v4300
    %v4302 = vpop.xlane.xlu0 %4301
    %vm4303 = vcmp.eq.f32.partialorder %v4300, %v4302
    %v4304 = vsel %vm4303, %v4299, inf
    %4305 = vmin.xlane.f32.xlu0 %v4304
    %v4306 = vpop.xlane.xlu0 %4305
    %v4307 = vcvt.f32.s32 %v4306
    %v4308 = vcvt.f32.s32 %v4302
    %v4309 = vshll.u32 %v4308, 16
    %v4310 = vadd.s32 %v4309, %v4307
    %vm4311 = vcmp.eq.s32.totalorder %v87, %v4310
    %v4312 = vsel %vm4311, 1, 0
    %v4313 = vcvt.s32.f32 %v4312
    %vm4314 = vmxor %vm3865, 1
    %4315 = vrot.lane.b32.xlu0 %v4114, 32
    %v4316 = vpop.permute.xlu0 %4315
    %4318 = vrot.lane.b32.xlu0 %v4215, 64
    %v4319 = vpop.permute.xlu0 %4318
    %v4321 = vsel %vm99, %v4288, %v4316
    %v4322 = vsel %vm173, %v4321, %v4319
    %v4323 = vsel %vm4314, 1, 0
    %vm4324 = vcmp.eq.s32.totalorder %v4323, 1
    %v4325 = vsel %vm4324, %v4322, 0.0
    %4326 = vst [vmem:[%s5 + $0x3] sm:$0x1] %v4325
    %v4327 = vsel %vm4324, %v4114, %v3860
    %v4328 = vsel %vm4324, %v4215, %v3861
    %v4329 = vsel %vm4324, %v4313, %v3862
    %vm4330 = vcmp.eq.s32.totalorder %v4310, %v2940
    %vm4331 = vmand %vm4314, %vm4330
    %vm4332 = vmor %vm3865, %vm4331
    %4334 = vrot.lane.b32.xlu0 %v4327, 96
    %v4335 = vpop.permute.xlu0 %4334
    %v4336 = vsel %vm177, %v4335, 0
    %4338 = vmatprep.subr.mxu0 0.0
    %4339 = vmatpush1.msra.mxu0 %v61
    %4340 = vmatprep.subr.mxu0 0.0
    %4341 = vmatpush1.msra.mxu0 %v62
    %4342 = vmatprep.subr.mxu0 0.0
    %4343 = vmatpush1.msra.mxu0 %v63
    %4344 = vmatprep.subr.mxu0 0.0
    %4345 = vmatpush1.msra.mxu0 %v64
    %4346 = vmatprep.subr.mxu0 0.0
    %4347 = vmatpush1.msra.mxu0 0.0
    %4348 = vmatprep.subr.mxu0 0.0
    %4349 = vmatpush1.msra.mxu0 0.0
    %4350 = vmatprep.subr.mxu0 0.0
    %4351 = vmatpush1.msra.mxu0 0.0
    %4352 = vmatprep.subr.mxu0 0.0
    %4353 = vmatpush1.msra.mxu0 0.0
    %4354 = vmatprep.subr.mxu0 0.0
    %4355 = vmatpush1.msra.mxu0 0.0
    %4356 = vmatprep.subr.mxu0 0.0
    %4357 = vmatpush1.msra.mxu0 0.0
    %4358 = vmatprep.subr.mxu0 0.0
    %4359 = vmatpush1.msra.mxu0 0.0
    %4360 = vmatprep.subr.mxu0 0.0
    %4361 = vmatpush1.msra.mxu0 0.0
    %4362 = vmatprep.subr.mxu0 0.0
    %4363 = vmatpush1.msra.mxu0 0.0
    %4364 = vmatprep.subr.mxu0 0.0
    %4365 = vmatpush1.msra.mxu0 0.0
    %4366 = vmatprep.subr.mxu0 0.0
    %4367 = vmatpush1.msra.mxu0 0.0
    %4368 = vmatprep.subr.mxu0 0.0
    %4369 = vmatpush1.msra.mxu0 0.0
    %4370 = vmatprep.subr.mxu0 0.0
    %4371 = vmatpush1.msra.mxu0 0.0
    %4372 = vmatprep.subr.mxu0 0.0
    %4373 = vmatpush1.msra.mxu0 0.0
    %4374 = vmatprep.subr.mxu0 0.0
    %4375 = vmatpush1.msra.mxu0 0.0
    %4376 = vmatprep.subr.mxu0 0.0
    %4377 = vmatpush1.msra.mxu0 0.0
    %4378 = vmatprep.subr.mxu0 0.0
    %4379 = vmatpush1.msra.mxu0 0.0
    %4380 = vmatprep.subr.mxu0 0.0
    %4381 = vmatpush1.msra.mxu0 0.0
    %4382 = vmatprep.subr.mxu0 0.0
    %4383 = vmatpush1.msra.mxu0 0.0
    %4384 = vmatprep.subr.mxu0 0.0
    %4385 = vmatpush1.msra.mxu0 0.0
    %4386 = vmatprep.subr.mxu0 0.0
    %4387 = vmatpush1.msra.mxu0 0.0
    %4388 = vmatprep.subr.mxu0 0.0
    %4389 = vmatpush1.msra.mxu0 0.0
    %4390 = vmatprep.subr.mxu0 0.0
    %4391 = vmatpush1.msra.mxu0 0.0
    %4392 = vmatprep.subr.mxu0 0.0
    %4393 = vmatpush1.msra.mxu0 0.0
    %4394 = vmatprep.subr.mxu0 0.0
    %4395 = vmatpush1.msra.mxu0 0.0
    %4396 = vmatprep.subr.mxu0 0.0
    %4397 = vmatpush1.msra.mxu0 0.0
    %4398 = vmatprep.subr.mxu0 0.0
    %4399 = vmatpush1.msra.mxu0 0.0
    %4400 = vmatprep.subr.mxu0 0.0
    %4401 = vmatpush1.msra.mxu0 0.0
    %4402 = vmatprep.mubr.f32.mxu0 0.0
    %4403 = vmatmul.mubr.f32.gmra.mrb[0].mxu0 %v4336
    %v4404 = vpop.f32.mrb[0].mxu0
    %v4405 = vadd.f32 %v78, %v4404
    %v4406 = vpop.f32.mrb[0].mxu0
    %4407 = vdwg.mxu0
    %4409 = vrot.lane.b32.xlu0 %v4328, 96
    %v4410 = vpop.permute.xlu0 %4409
    %v4411 = vsel %vm177, %v4410, 0
    %4413 = vmatprep.subr.mxu0 0.0
    %4414 = vmatpush1.msra.mxu0 %v69
    %4415 = vmatprep.subr.mxu0 0.0
    %4416 = vmatpush1.msra.mxu0 %v70
    %4417 = vmatprep.subr.mxu0 0.0
    %4418 = vmatpush1.msra.mxu0 %v71
    %4419 = vmatprep.subr.mxu0 0.0
    %4420 = vmatpush1.msra.mxu0 %v72
    %4421 = vmatprep.subr.mxu0 0.0
    %4422 = vmatpush1.msra.mxu0 0.0
    %4423 = vmatprep.subr.mxu0 0.0
    %4424 = vmatpush1.msra.mxu0 0.0
    %4425 = vmatprep.subr.mxu0 0.0
    %4426 = vmatpush1.msra.mxu0 0.0
    %4427 = vmatprep.subr.mxu0 0.0
    %4428 = vmatpush1.msra.mxu0 0.0
    %4429 = vmatprep.subr.mxu0 0.0
    %4430 = vmatpush1.msra.mxu0 0.0
    %4431 = vmatprep.subr.mxu0 0.0
    %4432 = vmatpush1.msra.mxu0 0.0
    %4433 = vmatprep.subr.mxu0 0.0
    %4434 = vmatpush1.msra.mxu0 0.0
    %4435 = vmatprep.subr.mxu0 0.0
    %4436 = vmatpush1.msra.mxu0 0.0
    %4437 = vmatprep.subr.mxu0 0.0
    %4438 = vmatpush1.msra.mxu0 0.0
    %4439 = vmatprep.subr.mxu0 0.0
    %4440 = vmatpush1.msra.mxu0 0.0
    %4441 = vmatprep.subr.mxu0 0.0
    %4442 = vmatpush1.msra.mxu0 0.0
    %4443 = vmatprep.subr.mxu0 0.0
    %4444 = vmatpush1.msra.mxu0 0.0
    %4445 = vmatprep.subr.mxu0 0.0
    %4446 = vmatpush1.msra.mxu0 0.0
    %4447 = vmatprep.subr.mxu0 0.0
    %4448 = vmatpush1.msra.mxu0 0.0
    %4449 = vmatprep.subr.mxu0 0.0
    %4450 = vmatpush1.msra.mxu0 0.0
    %4451 = vmatprep.subr.mxu0 0.0
    %4452 = vmatpush1.msra.mxu0 0.0
    %4453 = vmatprep.subr.mxu0 0.0
    %4454 = vmatpush1.msra.mxu0 0.0
    %4455 = vmatprep.subr.mxu0 0.0
    %4456 = vmatpush1.msra.mxu0 0.0
    %4457 = vmatprep.subr.mxu0 0.0
    %4458 = vmatpush1.msra.mxu0 0.0
    %4459 = vmatprep.subr.mxu0 0.0
    %4460 = vmatpush1.msra.mxu0 0.0
    %4461 = vmatprep.subr.mxu0 0.0
    %4462 = vmatpush1.msra.mxu0 0.0
    %4463 = vmatprep.subr.mxu0 0.0
    %4464 = vmatpush1.msra.mxu0 0.0
    %4465 = vmatprep.subr.mxu0 0.0
    %4466 = vmatpush1.msra.mxu0 0.0
    %4467 = vmatprep.subr.mxu0 0.0
    %4468 = vmatpush1.msra.mxu0 0.0
    %4469 = vmatprep.subr.mxu0 0.0
    %4470 = vmatpush1.msra.mxu0 0.0
    %4471 = vmatprep.subr.mxu0 0.0
    %4472 = vmatpush1.msra.mxu0 0.0
    %4473 = vmatprep.subr.mxu0 0.0
    %4474 = vmatpush1.msra.mxu0 0.0
    %4475 = vmatprep.subr.mxu0 0.0
    %4476 = vmatpush1.msra.mxu0 0.0
    %4477 = vmatprep.mubr.f32.mxu0 0.0
    %4478 = vmatmul.mubr.f32.gmra.mrb[0].mxu0 %v4411
    %v4479 = vpop.f32.mrb[0].mxu0
    %v4480 = vadd.f32 %v80, %v4479
    %v4481 = vpop.f32.mrb[0].mxu0
    %4482 = vdwg.mxu0
    %v4484 = vsel %vm99, %v4329, 0
    %4486 = vmatprep.subr.mxu0 0.0
    %4487 = vmatpush1.msra.mxu0 %v53
    %4488 = vmatprep.subr.mxu0 0.0
    %4489 = vmatpush1.msra.mxu0 %v54
    %4490 = vmatprep.subr.mxu0 0.0
    %4491 = vmatpush1.msra.mxu0 %v55
    %4492 = vmatprep.subr.mxu0 0.0
    %4493 = vmatpush1.msra.mxu0 %v56
    %4494 = vmatprep.subr.mxu0 0.0
    %4495 = vmatpush1.msra.mxu0 %v57
    %4496 = vmatprep.subr.mxu0 0.0
    %4497 = vmatpush1.msra.mxu0 %v58
    %4498 = vmatprep.subr.mxu0 0.0
    %4499 = vmatpush1.msra.mxu0 %v59
    %4500 = vmatprep.subr.mxu0 0.0
    %4501 = vmatpush1.msra.mxu0 %v60
    %4502 = vmatprep.subr.mxu0 0.0
    %4503 = vmatpush1.msra.mxu0 0.0
    %4504 = vmatprep.subr.mxu0 0.0
    %4505 = vmatpush1.msra.mxu0 0.0
    %4506 = vmatprep.subr.mxu0 0.0
    %4507 = vmatpush1.msra.mxu0 0.0
    %4508 = vmatprep.subr.mxu0 0.0
    %4509 = vmatpush1.msra.mxu0 0.0
    %4510 = vmatprep.subr.mxu0 0.0
    %4511 = vmatpush1.msra.mxu0 0.0
    %4512 = vmatprep.subr.mxu0 0.0
    %4513 = vmatpush1.msra.mxu0 0.0
    %4514 = vmatprep.subr.mxu0 0.0
    %4515 = vmatpush1.msra.mxu0 0.0
    %4516 = vmatprep.subr.mxu0 0.0
    %4517 = vmatpush1.msra.mxu0 0.0
    %4518 = vmatprep.subr.mxu0 0.0
    %4519 = vmatpush1.msra.mxu0 0.0
    %4520 = vmatprep.subr.mxu0 0.0
    %4521 = vmatpush1.msra.mxu0 0.0
    %4522 = vmatprep.subr.mxu0 0.0
    %4523 = vmatpush1.msra.mxu0 0.0
    %4524 = vmatprep.subr.mxu0 0.0
    %4525 = vmatpush1.msra.mxu0 0.0
    %4526 = vmatprep.subr.mxu0 0.0
    %4527 = vmatpush1.msra.mxu0 0.0
    %4528 = vmatprep.subr.mxu0 0.0
    %4529 = vmatpush1.msra.mxu0 0.0
    %4530 = vmatprep.subr.mxu0 0.0
    %4531 = vmatpush1.msra.mxu0 0.0
    %4532 = vmatprep.subr.mxu0 0.0
    %4533 = vmatpush1.msra.mxu0 0.0
    %4534 = vmatprep.subr.mxu0 0.0
    %4535 = vmatpush1.msra.mxu0 0.0
    %4536 = vmatprep.subr.mxu0 0.0
    %4537 = vmatpush1.msra.mxu0 0.0
    %4538 = vmatprep.subr.mxu0 0.0
    %4539 = vmatpush1.msra.mxu0 0.0
    %4540 = vmatprep.subr.mxu0 0.0
    %4541 = vmatpush1.msra.mxu0 0.0
    %4542 = vmatprep.subr.mxu0 0.0
    %4543 = vmatpush1.msra.mxu0 0.0
    %4544 = vmatprep.subr.mxu0 0.0
    %4545 = vmatpush1.msra.mxu0 0.0
    %4546 = vmatprep.subr.mxu0 0.0
    %4547 = vmatpush1.msra.mxu0 0.0
    %4548 = vmatprep.subr.mxu0 0.0
    %4549 = vmatpush1.msra.mxu0 0.0
    %4550 = vmatprep.mubr.f32.mxu0 0.0
    %4551 = vmatmul.mubr.f32.gmra.mrb[0].mxu0 %v4484
    %v4552 = vpop.f32.mrb[0].mxu0
    %v4553 = vadd.f32 %v77, %v4552
    %v4554 = vpop.f32.mrb[0].mxu0
    %4555 = vdwg.mxu0
    %v4556 = vadd.f32 %v4553, %v4405
    %v4557 = vxor.u32 %v4556, 2147483648
    %v4558 = vmul.f32 %v4557, 1.442695
    %v4559 = vpow.pop %v4558
    %v4560 = vadd.f32 %v4559, 1.0
    %v4561 = vrcp.pop %v4560
    %v4562 = vmul.f32 1.0, %v4561
    %4564 = vrot.lane.b32.xlu0 %v4405, 64
    %v4565 = vpop.permute.xlu0 %4564
    %v4567 = vmul.f32 %v4562, %v4565
    %4569 = vrot.lane.b32.xlu0 %v4567, 64
    %v4570 = vpop.permute.xlu0 %4569
    %v4572 = vadd.f32 %v4553, %v4570
    %v4573 = vtanh.pop %v4572
    %v4574 = vsub.f32 1.0, %v4562
    %4576 = vrot.lane.b32.xlu0 %v4573, 96
    %v4577 = vpop.permute.xlu0 %4576
    %v4579 = vmul.f32 %v4574, %v4577
    %v4580 = vmul.f32 %v4562, %v4327
    %v4581 = vadd.f32 %v4579, %v4580
    %4583 = vrot.lane.b32.xlu0 %v4581, 96
    %v4584 = vpop.permute.xlu0 %4583
    %v4585 = vsel %vm177, %v4584, 0
    %4587 = vmatprep.subr.mxu0 0.0
    %4588 = vmatpush1.msra.mxu0 %v65
    %4589 = vmatprep.subr.mxu0 0.0
    %4590 = vmatpush1.msra.mxu0 %v66
    %4591 = vmatprep.subr.mxu0 0.0
    %4592 = vmatpush1.msra.mxu0 %v67
    %4593 = vmatprep.subr.mxu0 0.0
    %4594 = vmatpush1.msra.mxu0 %v68
    %4595 = vmatprep.subr.mxu0 0.0
    %4596 = vmatpush1.msra.mxu0 0.0
    %4597 = vmatprep.subr.mxu0 0.0
    %4598 = vmatpush1.msra.mxu0 0.0
    %4599 = vmatprep.subr.mxu0 0.0
    %4600 = vmatpush1.msra.mxu0 0.0
    %4601 = vmatprep.subr.mxu0 0.0
    %4602 = vmatpush1.msra.mxu0 0.0
    %4603 = vmatprep.subr.mxu0 0.0
    %4604 = vmatpush1.msra.mxu0 0.0
    %4605 = vmatprep.subr.mxu0 0.0
    %4606 = vmatpush1.msra.mxu0 0.0
    %4607 = vmatprep.subr.mxu0 0.0
    %4608 = vmatpush1.msra.mxu0 0.0
    %4609 = vmatprep.subr.mxu0 0.0
    %4610 = vmatpush1.msra.mxu0 0.0
    %4611 = vmatprep.subr.mxu0 0.0
    %4612 = vmatpush1.msra.mxu0 0.0
    %4613 = vmatprep.subr.mxu0 0.0
    %4614 = vmatpush1.msra.mxu0 0.0
    %4615 = vmatprep.subr.mxu0 0.0
    %4616 = vmatpush1.msra.mxu0 0.0
    %4617 = vmatprep.subr.mxu0 0.0
    %4618 = vmatpush1.msra.mxu0 0.0
    %4619 = vmatprep.subr.mxu0 0.0
    %4620 = vmatpush1.msra.mxu0 0.0
    %4621 = vmatprep.subr.mxu0 0.0
    %4622 = vmatpush1.msra.mxu0 0.0
    %4623 = vmatprep.subr.mxu0 0.0
    %4624 = vmatpush1.msra.mxu0 0.0
    %4625 = vmatprep.subr.mxu0 0.0
    %4626 = vmatpush1.msra.mxu0 0.0
    %4627 = vmatprep.subr.mxu0 0.0
    %4628 = vmatpush1.msra.mxu0 0.0
    %4629 = vmatprep.subr.mxu0 0.0
    %4630 = vmatpush1.msra.mxu0 0.0
    %4631 = vmatprep.subr.mxu0 0.0
    %4632 = vmatpush1.msra.mxu0 0.0
    %4633 = vmatprep.subr.mxu0 0.0
    %4634 = vmatpush1.msra.mxu0 0.0
    %4635 = vmatprep.subr.mxu0 0.0
    %4636 = vmatpush1.msra.mxu0 0.0
    %4637 = vmatprep.subr.mxu0 0.0
    %4638 = vmatpush1.msra.mxu0 0.0
    %4639 = vmatprep.subr.mxu0 0.0
    %4640 = vmatpush1.msra.mxu0 0.0
    %4641 = vmatprep.subr.mxu0 0.0
    %4642 = vmatpush1.msra.mxu0 0.0
    %4643 = vmatprep.subr.mxu0 0.0
    %4644 = vmatpush1.msra.mxu0 0.0
    %4645 = vmatprep.subr.mxu0 0.0
    %4646 = vmatpush1.msra.mxu0 0.0
    %4647 = vmatprep.subr.mxu0 0.0
    %4648 = vmatpush1.msra.mxu0 0.0
    %4649 = vmatprep.subr.mxu0 0.0
    %4650 = vmatpush1.msra.mxu0 0.0
    %4651 = vmatprep.mubr.f32.mxu0 0.0
    %4652 = vmatmul.mubr.f32.gmra.mrb[0].mxu0 %v4585
    %v4653 = vpop.f32.mrb[0].mxu0
    %v4654 = vadd.f32 %v79, %v4653
    %v4655 = vpop.f32.mrb[0].mxu0
    %4656 = vdwg.mxu0
    %v4657 = vadd.f32 %v4654, %v4480
    %v4658 = vxor.u32 %v4657, 2147483648
    %v4659 = vmul.f32 %v4658, 1.442695
    %v4660 = vpow.pop %v4659
    %v4661 = vadd.f32 %v4660, 1.0
    %v4662 = vrcp.pop %v4661
    %v4663 = vmul.f32 1.0, %v4662
    %4665 = vrot.lane.b32.xlu0 %v4480, 64
    %v4666 = vpop.permute.xlu0 %4665
    %v4668 = vmul.f32 %v4663, %v4666
    %4670 = vrot.lane.b32.xlu0 %v4668, 64
    %v4671 = vpop.permute.xlu0 %4670
    %v4673 = vadd.f32 %v4654, %v4671
    %v4674 = vtanh.pop %v4673
    %v4675 = vsub.f32 1.0, %v4663
    %4677 = vrot.lane.b32.xlu0 %v4674, 96
    %v4678 = vpop.permute.xlu0 %4677
    %v4680 = vmul.f32 %v4675, %v4678
    %v4681 = vmul.f32 %v4663, %v4328
    %v4682 = vadd.f32 %v4680, %v4681
    %4684 = vrot.lane.b32.xlu0 %v4682, 96
    %v4685 = vpop.permute.xlu0 %4684
    %v4686 = vsel %vm177, %v4685, 0
    %4688 = vmatprep.subr.mxu0 0.0
    %4689 = vmatpush1.msra.mxu0 %v81
    %4690 = vmatprep.subr.mxu0 0.0
    %4691 = vmatpush1.msra.mxu0 %v82
    %4692 = vmatprep.subr.mxu0 0.0
    %4693 = vmatpush1.msra.mxu0 %v83
    %4694 = vmatprep.subr.mxu0 0.0
    %4695 = vmatpush1.msra.mxu0 %v84
    %4696 = vmatprep.subr.mxu0 0.0
    %4697 = vmatpush1.msra.mxu0 0.0
    %4698 = vmatprep.subr.mxu0 0.0
    %4699 = vmatpush1.msra.mxu0 0.0
    %4700 = vmatprep.subr.mxu0 0.0
    %4701 = vmatpush1.msra.mxu0 0.0
    %4702 = vmatprep.subr.mxu0 0.0
    %4703 = vmatpush1.msra.mxu0 0.0
    %4704 = vmatprep.subr.mxu0 0.0
    %4705 = vmatpush1.msra.mxu0 0.0
    %4706 = vmatprep.subr.mxu0 0.0
    %4707 = vmatpush1.msra.mxu0 0.0
    %4708 = vmatprep.subr.mxu0 0.0
    %4709 = vmatpush1.msra.mxu0 0.0
    %4710 = vmatprep.subr.mxu0 0.0
    %4711 = vmatpush1.msra.mxu0 0.0
    %4712 = vmatprep.subr.mxu0 0.0
    %4713 = vmatpush1.msra.mxu0 0.0
    %4714 = vmatprep.subr.mxu0 0.0
    %4715 = vmatpush1.msra.mxu0 0.0
    %4716 = vmatprep.subr.mxu0 0.0
    %4717 = vmatpush1.msra.mxu0 0.0
    %4718 = vmatprep.subr.mxu0 0.0
    %4719 = vmatpush1.msra.mxu0 0.0
    %4720 = vmatprep.subr.mxu0 0.0
    %4721 = vmatpush1.msra.mxu0 0.0
    %4722 = vmatprep.subr.mxu0 0.0
    %4723 = vmatpush1.msra.mxu0 0.0
    %4724 = vmatprep.subr.mxu0 0.0
    %4725 = vmatpush1.msra.mxu0 0.0
    %4726 = vmatprep.subr.mxu0 0.0
    %4727 = vmatpush1.msra.mxu0 0.0
    %4728 = vmatprep.subr.mxu0 0.0
    %4729 = vmatpush1.msra.mxu0 0.0
    %4730 = vmatprep.subr.mxu0 0.0
    %4731 = vmatpush1.msra.mxu0 0.0
    %4732 = vmatprep.subr.mxu0 0.0
    %4733 = vmatpush1.msra.mxu0 0.0
    %4734 = vmatprep.subr.mxu0 0.0
    %4735 = vmatpush1.msra.mxu0 0.0
    %4736 = vmatprep.subr.mxu0 0.0
    %4737 = vmatpush1.msra.mxu0 0.0
    %4738 = vmatprep.subr.mxu0 0.0
    %4739 = vmatpush1.msra.mxu0 0.0
    %4740 = vmatprep.subr.mxu0 0.0
    %4741 = vmatpush1.msra.mxu0 0.0
    %4742 = vmatprep.subr.mxu0 0.0
    %4743 = vmatpush1.msra.mxu0 0.0
    %4744 = vmatprep.subr.mxu0 0.0
    %4745 = vmatpush1.msra.mxu0 0.0
    %4746 = vmatprep.subr.mxu0 0.0
    %4747 = vmatpush1.msra.mxu0 0.0
    %4748 = vmatprep.subr.mxu0 0.0
    %4749 = vmatpush1.msra.mxu0 0.0
    %4750 = vmatprep.subr.mxu0 0.0
    %4751 = vmatpush1.msra.mxu0 0.0
    %4752 = vmatprep.mubr.f32.mxu0 0.0
    %4753 = vmatmul.mubr.f32.gmra.mrb[0].mxu0 %v4686
    %v4754 = vpop.f32.mrb[0].mxu0
    %v4755 = vadd.f32 %v85, %v4754
    %v4756 = vpop.f32.mrb[0].mxu0
    %4757 = vdwg.mxu0
    %v4758 = vsel %vm2907, %v4755, -inf
    %4759 = vmax.xlane.f32.xlu0 %v4758
    %v4760 = vpop.xlane.xlu0 %4759
    %vm4761 = vcmp.eq.f32.partialorder %v4755, %v4760
    %v4762 = vsel %vm4761, %v87, 64
    %v4763 = vsel %vm2907, %v4762, 2147483647
    %v4764 = vand.u32 %v4763, 65535
    %v4765 = vshra.s32 %v4763, 16
    %v4766 = vcvt.s32.f32 %v4764
    %v4767 = vcvt.s32.f32 %v4765
    %4768 = vmin.xlane.f32.xlu0 %v4767
    %v4769 = vpop.xlane.xlu0 %4768
    %vm4770 = vcmp.eq.f32.partialorder %v4767, %v4769
    %v4771 = vsel %vm4770, %v4766, inf
    %4772 = vmin.xlane.f32.xlu0 %v4771
    %v4773 = vpop.xlane.xlu0 %4772
    %v4774 = vcvt.f32.s32 %v4773
    %v4775 = vcvt.f32.s32 %v4769
    %v4776 = vshll.u32 %v4775, 16
    %v4777 = vadd.s32 %v4776, %v4774
    %vm4778 = vcmp.eq.s32.totalorder %v87, %v4777
    %v4779 = vsel %vm4778, 1, 0
    %v4780 = vcvt.s32.f32 %v4779
    %vm4781 = vmxor %vm4332, 1
    %4782 = vrot.lane.b32.xlu0 %v4581, 32
    %v4783 = vpop.permute.xlu0 %4782
    %4785 = vrot.lane.b32.xlu0 %v4682, 64
    %v4786 = vpop.permute.xlu0 %4785
    %v4788 = vsel %vm99, %v4755, %v4783
    %v4789 = vsel %vm173, %v4788, %v4786
    %v4790 = vsel %vm4781, 1, 0
    %vm4791 = vcmp.eq.s32.totalorder %v4790, 1
    %v4792 = vsel %vm4791, %v4789, 0.0
    %4793 = vst [vmem:[%s5 + $0x4] sm:$0x1] %v4792
    %v4794 = vsel %vm4791, %v4581, %v4327
    %v4795 = vsel %vm4791, %v4682, %v4328
    %v4796 = vsel %vm4791, %v4780, %v4329
    %vm4797 = vcmp.eq.s32.totalorder %v4777, %v2940
    %vm4798 = vmand %vm4781, %vm4797
    %vm4799 = vmor %vm4332, %vm4798
    %4801 = vrot.lane.b32.xlu0 %v4794, 96
    %v4802 = vpop.permute.xlu0 %4801
    %v4803 = vsel %vm177, %v4802, 0
    %4805 = vmatprep.subr.mxu0 0.0
    %4806 = vmatpush1.msra.mxu0 %v61
    %4807 = vmatprep.subr.mxu0 0.0
    %4808 = vmatpush1.msra.mxu0 %v62
    %4809 = vmatprep.subr.mxu0 0.0
    %4810 = vmatpush1.msra.mxu0 %v63
    %4811 = vmatprep.subr.mxu0 0.0
    %4812 = vmatpush1.msra.mxu0 %v64
    %4813 = vmatprep.subr.mxu0 0.0
    %4814 = vmatpush1.msra.mxu0 0.0
    %4815 = vmatprep.subr.mxu0 0.0
    %4816 = vmatpush1.msra.mxu0 0.0
    %4817 = vmatprep.subr.mxu0 0.0
    %4818 = vmatpush1.msra.mxu0 0.0
    %4819 = vmatprep.subr.mxu0 0.0
    %4820 = vmatpush1.msra.mxu0 0.0
    %4821 = vmatprep.subr.mxu0 0.0
    %4822 = vmatpush1.msra.mxu0 0.0
    %4823 = vmatprep.subr.mxu0 0.0
    %4824 = vmatpush1.msra.mxu0 0.0
    %4825 = vmatprep.subr.mxu0 0.0
    %4826 = vmatpush1.msra.mxu0 0.0
    %4827 = vmatprep.subr.mxu0 0.0
    %4828 = vmatpush1.msra.mxu0 0.0
    %4829 = vmatprep.subr.mxu0 0.0
    %4830 = vmatpush1.msra.mxu0 0.0
    %4831 = vmatprep.subr.mxu0 0.0
    %4832 = vmatpush1.msra.mxu0 0.0
    %4833 = vmatprep.subr.mxu0 0.0
    %4834 = vmatpush1.msra.mxu0 0.0
    %4835 = vmatprep.subr.mxu0 0.0
    %4836 = vmatpush1.msra.mxu0 0.0
    %4837 = vmatprep.subr.mxu0 0.0
    %4838 = vmatpush1.msra.mxu0 0.0
    %4839 = vmatprep.subr.mxu0 0.0
    %4840 = vmatpush1.msra.mxu0 0.0
    %4841 = vmatprep.subr.mxu0 0.0
    %4842 = vmatpush1.msra.mxu0 0.0
    %4843 = vmatprep.subr.mxu0 0.0
    %4844 = vmatpush1.msra.mxu0 0.0
    %4845 = vmatprep.subr.mxu0 0.0
    %4846 = vmatpush1.msra.mxu0 0.0
    %4847 = vmatprep.subr.mxu0 0.0
    %4848 = vmatpush1.msra.mxu0 0.0
    %4849 = vmatprep.subr.mxu0 0.0
    %4850 = vmatpush1.msra.mxu0 0.0
    %4851 = vmatprep.subr.mxu0 0.0
    %4852 = vmatpush1.msra.mxu0 0.0
    %4853 = vmatprep.subr.mxu0 0.0
    %4854 = vmatpush1.msra.mxu0 0.0
    %4855 = vmatprep.subr.mxu0 0.0
    %4856 = vmatpush1.msra.mxu0 0.0
    %4857 = vmatprep.subr.mxu0 0.0
    %4858 = vmatpush1.msra.mxu0 0.0
    %4859 = vmatprep.subr.mxu0 0.0
    %4860 = vmatpush1.msra.mxu0 0.0
    %4861 = vmatprep.subr.mxu0 0.0
    %4862 = vmatpush1.msra.mxu0 0.0
    %4863 = vmatprep.subr.mxu0 0.0
    %4864 = vmatpush1.msra.mxu0 0.0
    %4865 = vmatprep.subr.mxu0 0.0
    %4866 = vmatpush1.msra.mxu0 0.0
    %4867 = vmatprep.subr.mxu0 0.0
    %4868 = vmatpush1.msra.mxu0 0.0
    %4869 = vmatprep.mubr.f32.mxu0 0.0
    %4870 = vmatmul.mubr.f32.gmra.mrb[0].mxu0 %v4803
    %v4871 = vpop.f32.mrb[0].mxu0
    %v4872 = vadd.f32 %v78, %v4871
    %v4873 = vpop.f32.mrb[0].mxu0
    %4874 = vdwg.mxu0
    %4876 = vrot.lane.b32.xlu0 %v4795, 96
    %v4877 = vpop.permute.xlu0 %4876
    %v4878 = vsel %vm177, %v4877, 0
    %4880 = vmatprep.subr.mxu0 0.0
    %4881 = vmatpush1.msra.mxu0 %v69
    %4882 = vmatprep.subr.mxu0 0.0
    %4883 = vmatpush1.msra.mxu0 %v70
    %4884 = vmatprep.subr.mxu0 0.0
    %4885 = vmatpush1.msra.mxu0 %v71
    %4886 = vmatprep.subr.mxu0 0.0
    %4887 = vmatpush1.msra.mxu0 %v72
    %4888 = vmatprep.subr.mxu0 0.0
    %4889 = vmatpush1.msra.mxu0 0.0
    %4890 = vmatprep.subr.mxu0 0.0
    %4891 = vmatpush1.msra.mxu0 0.0
    %4892 = vmatprep.subr.mxu0 0.0
    %4893 = vmatpush1.msra.mxu0 0.0
    %4894 = vmatprep.subr.mxu0 0.0
    %4895 = vmatpush1.msra.mxu0 0.0
    %4896 = vmatprep.subr.mxu0 0.0
    %4897 = vmatpush1.msra.mxu0 0.0
    %4898 = vmatprep.subr.mxu0 0.0
    %4899 = vmatpush1.msra.mxu0 0.0
    %4900 = vmatprep.subr.mxu0 0.0
    %4901 = vmatpush1.msra.mxu0 0.0
    %4902 = vmatprep.subr.mxu0 0.0
    %4903 = vmatpush1.msra.mxu0 0.0
    %4904 = vmatprep.subr.mxu0 0.0
    %4905 = vmatpush1.msra.mxu0 0.0
    %4906 = vmatprep.subr.mxu0 0.0
    %4907 = vmatpush1.msra.mxu0 0.0
    %4908 = vmatprep.subr.mxu0 0.0
    %4909 = vmatpush1.msra.mxu0 0.0
    %4910 = vmatprep.subr.mxu0 0.0
    %4911 = vmatpush1.msra.mxu0 0.0
    %4912 = vmatprep.subr.mxu0 0.0
    %4913 = vmatpush1.msra.mxu0 0.0
    %4914 = vmatprep.subr.mxu0 0.0
    %4915 = vmatpush1.msra.mxu0 0.0
    %4916 = vmatprep.subr.mxu0 0.0
    %4917 = vmatpush1.msra.mxu0 0.0
    %4918 = vmatprep.subr.mxu0 0.0
    %4919 = vmatpush1.msra.mxu0 0.0
    %4920 = vmatprep.subr.mxu0 0.0
    %4921 = vmatpush1.msra.mxu0 0.0
    %4922 = vmatprep.subr.mxu0 0.0
    %4923 = vmatpush1.msra.mxu0 0.0
    %4924 = vmatprep.subr.mxu0 0.0
    %4925 = vmatpush1.msra.mxu0 0.0
    %4926 = vmatprep.subr.mxu0 0.0
    %4927 = vmatpush1.msra.mxu0 0.0
    %4928 = vmatprep.subr.mxu0 0.0
    %4929 = vmatpush1.msra.mxu0 0.0
    %4930 = vmatprep.subr.mxu0 0.0
    %4931 = vmatpush1.msra.mxu0 0.0
    %4932 = vmatprep.subr.mxu0 0.0
    %4933 = vmatpush1.msra.mxu0 0.0
    %4934 = vmatprep.subr.mxu0 0.0
    %4935 = vmatpush1.msra.mxu0 0.0
    %4936 = vmatprep.subr.mxu0 0.0
    %4937 = vmatpush1.msra.mxu0 0.0
    %4938 = vmatprep.subr.mxu0 0.0
    %4939 = vmatpush1.msra.mxu0 0.0
    %4940 = vmatprep.subr.mxu0 0.0
    %4941 = vmatpush1.msra.mxu0 0.0
    %4942 = vmatprep.subr.mxu0 0.0
    %4943 = vmatpush1.msra.mxu0 0.0
    %4944 = vmatprep.mubr.f32.mxu0 0.0
    %4945 = vmatmul.mubr.f32.gmra.mrb[0].mxu0 %v4878
    %v4946 = vpop.f32.mrb[0].mxu0
    %v4947 = vadd.f32 %v80, %v4946
    %v4948 = vpop.f32.mrb[0].mxu0
    %4949 = vdwg.mxu0
    %v4951 = vsel %vm99, %v4796, 0
    %4953 = vmatprep.subr.mxu0 0.0
    %4954 = vmatpush1.msra.mxu0 %v53
    %4955 = vmatprep.subr.mxu0 0.0
    %4956 = vmatpush1.msra.mxu0 %v54
    %4957 = vmatprep.subr.mxu0 0.0
    %4958 = vmatpush1.msra.mxu0 %v55
    %4959 = vmatprep.subr.mxu0 0.0
    %4960 = vmatpush1.msra.mxu0 %v56
    %4961 = vmatprep.subr.mxu0 0.0
    %4962 = vmatpush1.msra.mxu0 %v57
    %4963 = vmatprep.subr.mxu0 0.0
    %4964 = vmatpush1.msra.mxu0 %v58
    %4965 = vmatprep.subr.mxu0 0.0
    %4966 = vmatpush1.msra.mxu0 %v59
    %4967 = vmatprep.subr.mxu0 0.0
    %4968 = vmatpush1.msra.mxu0 %v60
    %4969 = vmatprep.subr.mxu0 0.0
    %4970 = vmatpush1.msra.mxu0 0.0
    %4971 = vmatprep.subr.mxu0 0.0
    %4972 = vmatpush1.msra.mxu0 0.0
    %4973 = vmatprep.subr.mxu0 0.0
    %4974 = vmatpush1.msra.mxu0 0.0
    %4975 = vmatprep.subr.mxu0 0.0
    %4976 = vmatpush1.msra.mxu0 0.0
    %4977 = vmatprep.subr.mxu0 0.0
    %4978 = vmatpush1.msra.mxu0 0.0
    %4979 = vmatprep.subr.mxu0 0.0
    %4980 = vmatpush1.msra.mxu0 0.0
    %4981 = vmatprep.subr.mxu0 0.0
    %4982 = vmatpush1.msra.mxu0 0.0
    %4983 = vmatprep.subr.mxu0 0.0
    %4984 = vmatpush1.msra.mxu0 0.0
    %4985 = vmatprep.subr.mxu0 0.0
    %4986 = vmatpush1.msra.mxu0 0.0
    %4987 = vmatprep.subr.mxu0 0.0
    %4988 = vmatpush1.msra.mxu0 0.0
    %4989 = vmatprep.subr.mxu0 0.0
    %4990 = vmatpush1.msra.mxu0 0.0
    %4991 = vmatprep.subr.mxu0 0.0
    %4992 = vmatpush1.msra.mxu0 0.0
    %4993 = vmatprep.subr.mxu0 0.0
    %4994 = vmatpush1.msra.mxu0 0.0
    %4995 = vmatprep.subr.mxu0 0.0
    %4996 = vmatpush1.msra.mxu0 0.0
    %4997 = vmatprep.subr.mxu0 0.0
    %4998 = vmatpush1.msra.mxu0 0.0
    %4999 = vmatprep.subr.mxu0 0.0
    %5000 = vmatpush1.msra.mxu0 0.0
    %5001 = vmatprep.subr.mxu0 0.0
    %5002 = vmatpush1.msra.mxu0 0.0
    %5003 = vmatprep.subr.mxu0 0.0
    %5004 = vmatpush1.msra.mxu0 0.0
    %5005 = vmatprep.subr.mxu0 0.0
    %5006 = vmatpush1.msra.mxu0 0.0
    %5007 = vmatprep.subr.mxu0 0.0
    %5008 = vmatpush1.msra.mxu0 0.0
    %5009 = vmatprep.subr.mxu0 0.0
    %5010 = vmatpush1.msra.mxu0 0.0
    %5011 = vmatprep.subr.mxu0 0.0
    %5012 = vmatpush1.msra.mxu0 0.0
    %5013 = vmatprep.subr.mxu0 0.0
    %5014 = vmatpush1.msra.mxu0 0.0
    %5015 = vmatprep.subr.mxu0 0.0
    %5016 = vmatpush1.msra.mxu0 0.0
    %5017 = vmatprep.mubr.f32.mxu0 0.0
    %5018 = vmatmul.mubr.f32.gmra.mrb[0].mxu0 %v4951
    %v5019 = vpop.f32.mrb[0].mxu0
    %v5020 = vadd.f32 %v77, %v5019
    %v5021 = vpop.f32.mrb[0].mxu0
    %5022 = vdwg.mxu0
    %v5023 = vadd.f32 %v5020, %v4872
    %v5024 = vxor.u32 %v5023, 2147483648
    %v5025 = vmul.f32 %v5024, 1.442695
    %v5026 = vpow.pop %v5025
    %v5027 = vadd.f32 %v5026, 1.0
    %v5028 = vrcp.pop %v5027
    %v5029 = vmul.f32 1.0, %v5028
    %5031 = vrot.lane.b32.xlu0 %v4872, 64
    %v5032 = vpop.permute.xlu0 %5031
    %v5034 = vmul.f32 %v5029, %v5032
    %5036 = vrot.lane.b32.xlu0 %v5034, 64
    %v5037 = vpop.permute.xlu0 %5036
    %v5039 = vadd.f32 %v5020, %v5037
    %v5040 = vtanh.pop %v5039
    %v5041 = vsub.f32 1.0, %v5029
    %5043 = vrot.lane.b32.xlu0 %v5040, 96
    %v5044 = vpop.permute.xlu0 %5043
    %v5046 = vmul.f32 %v5041, %v5044
    %v5047 = vmul.f32 %v5029, %v4794
    %v5048 = vadd.f32 %v5046, %v5047
    %5050 = vrot.lane.b32.xlu0 %v5048, 96
    %v5051 = vpop.permute.xlu0 %5050
    %v5052 = vsel %vm177, %v5051, 0
    %5054 = vmatprep.subr.mxu0 0.0
    %5055 = vmatpush1.msra.mxu0 %v65
    %5056 = vmatprep.subr.mxu0 0.0
    %5057 = vmatpush1.msra.mxu0 %v66
    %5058 = vmatprep.subr.mxu0 0.0
    %5059 = vmatpush1.msra.mxu0 %v67
    %5060 = vmatprep.subr.mxu0 0.0
    %5061 = vmatpush1.msra.mxu0 %v68
    %5062 = vmatprep.subr.mxu0 0.0
    %5063 = vmatpush1.msra.mxu0 0.0
    %5064 = vmatprep.subr.mxu0 0.0
    %5065 = vmatpush1.msra.mxu0 0.0
    %5066 = vmatprep.subr.mxu0 0.0
    %5067 = vmatpush1.msra.mxu0 0.0
    %5068 = vmatprep.subr.mxu0 0.0
    %5069 = vmatpush1.msra.mxu0 0.0
    %5070 = vmatprep.subr.mxu0 0.0
    %5071 = vmatpush1.msra.mxu0 0.0
    %5072 = vmatprep.subr.mxu0 0.0
    %5073 = vmatpush1.msra.mxu0 0.0
    %5074 = vmatprep.subr.mxu0 0.0
    %5075 = vmatpush1.msra.mxu0 0.0
    %5076 = vmatprep.subr.mxu0 0.0
    %5077 = vmatpush1.msra.mxu0 0.0
    %5078 = vmatprep.subr.mxu0 0.0
    %5079 = vmatpush1.msra.mxu0 0.0
    %5080 = vmatprep.subr.mxu0 0.0
    %5081 = vmatpush1.msra.mxu0 0.0
    %5082 = vmatprep.subr.mxu0 0.0
    %5083 = vmatpush1.msra.mxu0 0.0
    %5084 = vmatprep.subr.mxu0 0.0
    %5085 = vmatpush1.msra.mxu0 0.0
    %5086 = vmatprep.subr.mxu0 0.0
    %5087 = vmatpush1.msra.mxu0 0.0
    %5088 = vmatprep.subr.mxu0 0.0
    %5089 = vmatpush1.msra.mxu0 0.0
    %5090 = vmatprep.subr.mxu0 0.0
    %5091 = vmatpush1.msra.mxu0 0.0
    %5092 = vmatprep.subr.mxu0 0.0
    %5093 = vmatpush1.msra.mxu0 0.0
    %5094 = vmatprep.subr.mxu0 0.0
    %5095 = vmatpush1.msra.mxu0 0.0
    %5096 = vmatprep.subr.mxu0 0.0
    %5097 = vmatpush1.msra.mxu0 0.0
    %5098 = vmatprep.subr.mxu0 0.0
    %5099 = vmatpush1.msra.mxu0 0.0
    %5100 = vmatprep.subr.mxu0 0.0
    %5101 = vmatpush1.msra.mxu0 0.0
    %5102 = vmatprep.subr.mxu0 0.0
    %5103 = vmatpush1.msra.mxu0 0.0
    %5104 = vmatprep.subr.mxu0 0.0
    %5105 = vmatpush1.msra.mxu0 0.0
    %5106 = vmatprep.subr.mxu0 0.0
    %5107 = vmatpush1.msra.mxu0 0.0
    %5108 = vmatprep.subr.mxu0 0.0
    %5109 = vmatpush1.msra.mxu0 0.0
    %5110 = vmatprep.subr.mxu0 0.0
    %5111 = vmatpush1.msra.mxu0 0.0
    %5112 = vmatprep.subr.mxu0 0.0
    %5113 = vmatpush1.msra.mxu0 0.0
    %5114 = vmatprep.subr.mxu0 0.0
    %5115 = vmatpush1.msra.mxu0 0.0
    %5116 = vmatprep.subr.mxu0 0.0
    %5117 = vmatpush1.msra.mxu0 0.0
    %5118 = vmatprep.mubr.f32.mxu0 0.0
    %5119 = vmatmul.mubr.f32.gmra.mrb[0].mxu0 %v5052
    %v5120 = vpop.f32.mrb[0].mxu0
    %v5121 = vadd.f32 %v79, %v5120
    %v5122 = vpop.f32.mrb[0].mxu0
    %5123 = vdwg.mxu0
    %v5124 = vadd.f32 %v5121, %v4947
    %v5125 = vxor.u32 %v5124, 2147483648
    %v5126 = vmul.f32 %v5125, 1.442695
    %v5127 = vpow.pop %v5126
    %v5128 = vadd.f32 %v5127, 1.0
    %v5129 = vrcp.pop %v5128
    %v5130 = vmul.f32 1.0, %v5129
    %5132 = vrot.lane.b32.xlu0 %v4947, 64
    %v5133 = vpop.permute.xlu0 %5132
    %v5135 = vmul.f32 %v5130, %v5133
    %5137 = vrot.lane.b32.xlu0 %v5135, 64
    %v5138 = vpop.permute.xlu0 %5137
    %v5140 = vadd.f32 %v5121, %v5138
    %v5141 = vtanh.pop %v5140
    %v5142 = vsub.f32 1.0, %v5130
    %5144 = vrot.lane.b32.xlu0 %v5141, 96
    %v5145 = vpop.permute.xlu0 %5144
    %v5147 = vmul.f32 %v5142, %v5145
    %v5148 = vmul.f32 %v5130, %v4795
    %v5149 = vadd.f32 %v5147, %v5148
    %5151 = vrot.lane.b32.xlu0 %v5149, 96
    %v5152 = vpop.permute.xlu0 %5151
    %v5153 = vsel %vm177, %v5152, 0
    %5155 = vmatprep.subr.mxu0 0.0
    %5156 = vmatpush1.msra.mxu0 %v81
    %5157 = vmatprep.subr.mxu0 0.0
    %5158 = vmatpush1.msra.mxu0 %v82
    %5159 = vmatprep.subr.mxu0 0.0
    %5160 = vmatpush1.msra.mxu0 %v83
    %5161 = vmatprep.subr.mxu0 0.0
    %5162 = vmatpush1.msra.mxu0 %v84
    %5163 = vmatprep.subr.mxu0 0.0
    %5164 = vmatpush1.msra.mxu0 0.0
    %5165 = vmatprep.subr.mxu0 0.0
    %5166 = vmatpush1.msra.mxu0 0.0
    %5167 = vmatprep.subr.mxu0 0.0
    %5168 = vmatpush1.msra.mxu0 0.0
    %5169 = vmatprep.subr.mxu0 0.0
    %5170 = vmatpush1.msra.mxu0 0.0
    %5171 = vmatprep.subr.mxu0 0.0
    %5172 = vmatpush1.msra.mxu0 0.0
    %5173 = vmatprep.subr.mxu0 0.0
    %5174 = vmatpush1.msra.mxu0 0.0
    %5175 = vmatprep.subr.mxu0 0.0
    %5176 = vmatpush1.msra.mxu0 0.0
    %5177 = vmatprep.subr.mxu0 0.0
    %5178 = vmatpush1.msra.mxu0 0.0
    %5179 = vmatprep.subr.mxu0 0.0
    %5180 = vmatpush1.msra.mxu0 0.0
    %5181 = vmatprep.subr.mxu0 0.0
    %5182 = vmatpush1.msra.mxu0 0.0
    %5183 = vmatprep.subr.mxu0 0.0
    %5184 = vmatpush1.msra.mxu0 0.0
    %5185 = vmatprep.subr.mxu0 0.0
    %5186 = vmatpush1.msra.mxu0 0.0
    %5187 = vmatprep.subr.mxu0 0.0
    %5188 = vmatpush1.msra.mxu0 0.0
    %5189 = vmatprep.subr.mxu0 0.0
    %5190 = vmatpush1.msra.mxu0 0.0
    %5191 = vmatprep.subr.mxu0 0.0
    %5192 = vmatpush1.msra.mxu0 0.0
    %5193 = vmatprep.subr.mxu0 0.0
    %5194 = vmatpush1.msra.mxu0 0.0
    %5195 = vmatprep.subr.mxu0 0.0
    %5196 = vmatpush1.msra.mxu0 0.0
    %5197 = vmatprep.subr.mxu0 0.0
    %5198 = vmatpush1.msra.mxu0 0.0
    %5199 = vmatprep.subr.mxu0 0.0
    %5200 = vmatpush1.msra.mxu0 0.0
    %5201 = vmatprep.subr.mxu0 0.0
    %5202 = vmatpush1.msra.mxu0 0.0
    %5203 = vmatprep.subr.mxu0 0.0
    %5204 = vmatpush1.msra.mxu0 0.0
    %5205 = vmatprep.subr.mxu0 0.0
    %5206 = vmatpush1.msra.mxu0 0.0
    %5207 = vmatprep.subr.mxu0 0.0
    %5208 = vmatpush1.msra.mxu0 0.0
    %5209 = vmatprep.subr.mxu0 0.0
    %5210 = vmatpush1.msra.mxu0 0.0
    %5211 = vmatprep.subr.mxu0 0.0
    %5212 = vmatpush1.msra.mxu0 0.0
    %5213 = vmatprep.subr.mxu0 0.0
    %5214 = vmatpush1.msra.mxu0 0.0
    %5215 = vmatprep.subr.mxu0 0.0
    %5216 = vmatpush1.msra.mxu0 0.0
    %5217 = vmatprep.subr.mxu0 0.0
    %5218 = vmatpush1.msra.mxu0 0.0
    %5219 = vmatprep.mubr.f32.mxu0 0.0
    %5220 = vmatmul.mubr.f32.gmra.mrb[0].mxu0 %v5153
    %v5221 = vpop.f32.mrb[0].mxu0
    %v5222 = vadd.f32 %v85, %v5221
    %v5223 = vpop.f32.mrb[0].mxu0
    %5224 = vdwg.mxu0
    %v5225 = vsel %vm2907, %v5222, -inf
    %5226 = vmax.xlane.f32.xlu0 %v5225
    %v5227 = vpop.xlane.xlu0 %5226
    %vm5228 = vcmp.eq.f32.partialorder %v5222, %v5227
    %v5229 = vsel %vm5228, %v87, 64
    %v5230 = vsel %vm2907, %v5229, 2147483647
    %v5231 = vand.u32 %v5230, 65535
    %v5232 = vshra.s32 %v5230, 16
    %v5233 = vcvt.s32.f32 %v5231
    %v5234 = vcvt.s32.f32 %v5232
    %5235 = vmin.xlane.f32.xlu0 %v5234
    %v5236 = vpop.xlane.xlu0 %5235
    %vm5237 = vcmp.eq.f32.partialorder %v5234, %v5236
    %v5238 = vsel %vm5237, %v5233, inf
    %5239 = vmin.xlane.f32.xlu0 %v5238
    %v5240 = vpop.xlane.xlu0 %5239
    %v5241 = vcvt.f32.s32 %v5240
    %v5242 = vcvt.f32.s32 %v5236
    %v5243 = vshll.u32 %v5242, 16
    %v5244 = vadd.s32 %v5243, %v5241
    %vm5245 = vcmp.eq.s32.totalorder %v87, %v5244
    %v5246 = vsel %vm5245, 1, 0
    %v5247 = vcvt.s32.f32 %v5246
    %vm5248 = vmxor %vm4799, 1
    %5249 = vrot.lane.b32.xlu0 %v5048, 32
    %v5250 = vpop.permute.xlu0 %5249
    %5252 = vrot.lane.b32.xlu0 %v5149, 64
    %v5253 = vpop.permute.xlu0 %5252
    %v5255 = vsel %vm99, %v5222, %v5250
    %v5256 = vsel %vm173, %v5255, %v5253
    %v5257 = vsel %vm5248, 1, 0
    %vm5258 = vcmp.eq.s32.totalorder %v5257, 1
    %v5259 = vsel %vm5258, %v5256, 0.0
    %5260 = vst [vmem:[%s5 + $0x5] sm:$0x1] %v5259
    %v5261 = vsel %vm5258, %v5048, %v4794
    %v5262 = vsel %vm5258, %v5149, %v4795
    %v5263 = vsel %vm5258, %v5247, %v4796
    %vm5264 = vcmp.eq.s32.totalorder %v5244, %v2940
    %vm5265 = vmand %vm5248, %vm5264
    %vm5266 = vmor %vm4799, %vm5265
    %5268 = vrot.lane.b32.xlu0 %v5261, 96
    %v5269 = vpop.permute.xlu0 %5268
    %v5270 = vsel %vm177, %v5269, 0
    %5272 = vmatprep.subr.mxu0 0.0
    %5273 = vmatpush1.msra.mxu0 %v61
    %5274 = vmatprep.subr.mxu0 0.0
    %5275 = vmatpush1.msra.mxu0 %v62
    %5276 = vmatprep.subr.mxu0 0.0
    %5277 = vmatpush1.msra.mxu0 %v63
    %5278 = vmatprep.subr.mxu0 0.0
    %5279 = vmatpush1.msra.mxu0 %v64
    %5280 = vmatprep.subr.mxu0 0.0
    %5281 = vmatpush1.msra.mxu0 0.0
    %5282 = vmatprep.subr.mxu0 0.0
    %5283 = vmatpush1.msra.mxu0 0.0
    %5284 = vmatprep.subr.mxu0 0.0
    %5285 = vmatpush1.msra.mxu0 0.0
    %5286 = vmatprep.subr.mxu0 0.0
    %5287 = vmatpush1.msra.mxu0 0.0
    %5288 = vmatprep.subr.mxu0 0.0
    %5289 = vmatpush1.msra.mxu0 0.0
    %5290 = vmatprep.subr.mxu0 0.0
    %5291 = vmatpush1.msra.mxu0 0.0
    %5292 = vmatprep.subr.mxu0 0.0
    %5293 = vmatpush1.msra.mxu0 0.0
    %5294 = vmatprep.subr.mxu0 0.0
    %5295 = vmatpush1.msra.mxu0 0.0
    %5296 = vmatprep.subr.mxu0 0.0
    %5297 = vmatpush1.msra.mxu0 0.0
    %5298 = vmatprep.subr.mxu0 0.0
    %5299 = vmatpush1.msra.mxu0 0.0
    %5300 = vmatprep.subr.mxu0 0.0
    %5301 = vmatpush1.msra.mxu0 0.0
    %5302 = vmatprep.subr.mxu0 0.0
    %5303 = vmatpush1.msra.mxu0 0.0
    %5304 = vmatprep.subr.mxu0 0.0
    %5305 = vmatpush1.msra.mxu0 0.0
    %5306 = vmatprep.subr.mxu0 0.0
    %5307 = vmatpush1.msra.mxu0 0.0
    %5308 = vmatprep.subr.mxu0 0.0
    %5309 = vmatpush1.msra.mxu0 0.0
    %5310 = vmatprep.subr.mxu0 0.0
    %5311 = vmatpush1.msra.mxu0 0.0
    %5312 = vmatprep.subr.mxu0 0.0
    %5313 = vmatpush1.msra.mxu0 0.0
    %5314 = vmatprep.subr.mxu0 0.0
    %5315 = vmatpush1.msra.mxu0 0.0
    %5316 = vmatprep.subr.mxu0 0.0
    %5317 = vmatpush1.msra.mxu0 0.0
    %5318 = vmatprep.subr.mxu0 0.0
    %5319 = vmatpush1.msra.mxu0 0.0
    %5320 = vmatprep.subr.mxu0 0.0
    %5321 = vmatpush1.msra.mxu0 0.0
    %5322 = vmatprep.subr.mxu0 0.0
    %5323 = vmatpush1.msra.mxu0 0.0
    %5324 = vmatprep.subr.mxu0 0.0
    %5325 = vmatpush1.msra.mxu0 0.0
    %5326 = vmatprep.subr.mxu0 0.0
    %5327 = vmatpush1.msra.mxu0 0.0
    %5328 = vmatprep.subr.mxu0 0.0
    %5329 = vmatpush1.msra.mxu0 0.0
    %5330 = vmatprep.subr.mxu0 0.0
    %5331 = vmatpush1.msra.mxu0 0.0
    %5332 = vmatprep.subr.mxu0 0.0
    %5333 = vmatpush1.msra.mxu0 0.0
    %5334 = vmatprep.subr.mxu0 0.0
    %5335 = vmatpush1.msra.mxu0 0.0
    %5336 = vmatprep.mubr.f32.mxu0 0.0
    %5337 = vmatmul.mubr.f32.gmra.mrb[0].mxu0 %v5270
    %v5338 = vpop.f32.mrb[0].mxu0
    %v5339 = vadd.f32 %v78, %v5338
    %v5340 = vpop.f32.mrb[0].mxu0
    %5341 = vdwg.mxu0
    %5343 = vrot.lane.b32.xlu0 %v5262, 96
    %v5344 = vpop.permute.xlu0 %5343
    %v5345 = vsel %vm177, %v5344, 0
    %5347 = vmatprep.subr.mxu0 0.0
    %5348 = vmatpush1.msra.mxu0 %v69
    %5349 = vmatprep.subr.mxu0 0.0
    %5350 = vmatpush1.msra.mxu0 %v70
    %5351 = vmatprep.subr.mxu0 0.0
    %5352 = vmatpush1.msra.mxu0 %v71
    %5353 = vmatprep.subr.mxu0 0.0
    %5354 = vmatpush1.msra.mxu0 %v72
    %5355 = vmatprep.subr.mxu0 0.0
    %5356 = vmatpush1.msra.mxu0 0.0
    %5357 = vmatprep.subr.mxu0 0.0
    %5358 = vmatpush1.msra.mxu0 0.0
    %5359 = vmatprep.subr.mxu0 0.0
    %5360 = vmatpush1.msra.mxu0 0.0
    %5361 = vmatprep.subr.mxu0 0.0
    %5362 = vmatpush1.msra.mxu0 0.0
    %5363 = vmatprep.subr.mxu0 0.0
    %5364 = vmatpush1.msra.mxu0 0.0
    %5365 = vmatprep.subr.mxu0 0.0
    %5366 = vmatpush1.msra.mxu0 0.0
    %5367 = vmatprep.subr.mxu0 0.0
    %5368 = vmatpush1.msra.mxu0 0.0
    %5369 = vmatprep.subr.mxu0 0.0
    %5370 = vmatpush1.msra.mxu0 0.0
    %5371 = vmatprep.subr.mxu0 0.0
    %5372 = vmatpush1.msra.mxu0 0.0
    %5373 = vmatprep.subr.mxu0 0.0
    %5374 = vmatpush1.msra.mxu0 0.0
    %5375 = vmatprep.subr.mxu0 0.0
    %5376 = vmatpush1.msra.mxu0 0.0
    %5377 = vmatprep.subr.mxu0 0.0
    %5378 = vmatpush1.msra.mxu0 0.0
    %5379 = vmatprep.subr.mxu0 0.0
    %5380 = vmatpush1.msra.mxu0 0.0
    %5381 = vmatprep.subr.mxu0 0.0
    %5382 = vmatpush1.msra.mxu0 0.0
    %5383 = vmatprep.subr.mxu0 0.0
    %5384 = vmatpush1.msra.mxu0 0.0
    %5385 = vmatprep.subr.mxu0 0.0
    %5386 = vmatpush1.msra.mxu0 0.0
    %5387 = vmatprep.subr.mxu0 0.0
    %5388 = vmatpush1.msra.mxu0 0.0
    %5389 = vmatprep.subr.mxu0 0.0
    %5390 = vmatpush1.msra.mxu0 0.0
    %5391 = vmatprep.subr.mxu0 0.0
    %5392 = vmatpush1.msra.mxu0 0.0
    %5393 = vmatprep.subr.mxu0 0.0
    %5394 = vmatpush1.msra.mxu0 0.0
    %5395 = vmatprep.subr.mxu0 0.0
    %5396 = vmatpush1.msra.mxu0 0.0
    %5397 = vmatprep.subr.mxu0 0.0
    %5398 = vmatpush1.msra.mxu0 0.0
    %5399 = vmatprep.subr.mxu0 0.0
    %5400 = vmatpush1.msra.mxu0 0.0
    %5401 = vmatprep.subr.mxu0 0.0
    %5402 = vmatpush1.msra.mxu0 0.0
    %5403 = vmatprep.subr.mxu0 0.0
    %5404 = vmatpush1.msra.mxu0 0.0
    %5405 = vmatprep.subr.mxu0 0.0
    %5406 = vmatpush1.msra.mxu0 0.0
    %5407 = vmatprep.subr.mxu0 0.0
    %5408 = vmatpush1.msra.mxu0 0.0
    %5409 = vmatprep.subr.mxu0 0.0
    %5410 = vmatpush1.msra.mxu0 0.0
    %5411 = vmatprep.mubr.f32.mxu0 0.0
    %5412 = vmatmul.mubr.f32.gmra.mrb[0].mxu0 %v5345
    %v5413 = vpop.f32.mrb[0].mxu0
    %v5414 = vadd.f32 %v80, %v5413
    %v5415 = vpop.f32.mrb[0].mxu0
    %5416 = vdwg.mxu0
    %v5418 = vsel %vm99, %v5263, 0
    %5420 = vmatprep.subr.mxu0 0.0
    %5421 = vmatpush1.msra.mxu0 %v53
    %5422 = vmatprep.subr.mxu0 0.0
    %5423 = vmatpush1.msra.mxu0 %v54
    %5424 = vmatprep.subr.mxu0 0.0
    %5425 = vmatpush1.msra.mxu0 %v55
    %5426 = vmatprep.subr.mxu0 0.0
    %5427 = vmatpush1.msra.mxu0 %v56
    %5428 = vmatprep.subr.mxu0 0.0
    %5429 = vmatpush1.msra.mxu0 %v57
    %5430 = vmatprep.subr.mxu0 0.0
    %5431 = vmatpush1.msra.mxu0 %v58
    %5432 = vmatprep.subr.mxu0 0.0
    %5433 = vmatpush1.msra.mxu0 %v59
    %5434 = vmatprep.subr.mxu0 0.0
    %5435 = vmatpush1.msra.mxu0 %v60
    %5436 = vmatprep.subr.mxu0 0.0
    %5437 = vmatpush1.msra.mxu0 0.0
    %5438 = vmatprep.subr.mxu0 0.0
    %5439 = vmatpush1.msra.mxu0 0.0
    %5440 = vmatprep.subr.mxu0 0.0
    %5441 = vmatpush1.msra.mxu0 0.0
    %5442 = vmatprep.subr.mxu0 0.0
    %5443 = vmatpush1.msra.mxu0 0.0
    %5444 = vmatprep.subr.mxu0 0.0
    %5445 = vmatpush1.msra.mxu0 0.0
    %5446 = vmatprep.subr.mxu0 0.0
    %5447 = vmatpush1.msra.mxu0 0.0
    %5448 = vmatprep.subr.mxu0 0.0
    %5449 = vmatpush1.msra.mxu0 0.0
    %5450 = vmatprep.subr.mxu0 0.0
    %5451 = vmatpush1.msra.mxu0 0.0
    %5452 = vmatprep.subr.mxu0 0.0
    %5453 = vmatpush1.msra.mxu0 0.0
    %5454 = vmatprep.subr.mxu0 0.0
    %5455 = vmatpush1.msra.mxu0 0.0
    %5456 = vmatprep.subr.mxu0 0.0
    %5457 = vmatpush1.msra.mxu0 0.0
    %5458 = vmatprep.subr.mxu0 0.0
    %5459 = vmatpush1.msra.mxu0 0.0
    %5460 = vmatprep.subr.mxu0 0.0
    %5461 = vmatpush1.msra.mxu0 0.0
    %5462 = vmatprep.subr.mxu0 0.0
    %5463 = vmatpush1.msra.mxu0 0.0
    %5464 = vmatprep.subr.mxu0 0.0
    %5465 = vmatpush1.msra.mxu0 0.0
    %5466 = vmatprep.subr.mxu0 0.0
    %5467 = vmatpush1.msra.mxu0 0.0
    %5468 = vmatprep.subr.mxu0 0.0
    %5469 = vmatpush1.msra.mxu0 0.0
    %5470 = vmatprep.subr.mxu0 0.0
    %5471 = vmatpush1.msra.mxu0 0.0
    %5472 = vmatprep.subr.mxu0 0.0
    %5473 = vmatpush1.msra.mxu0 0.0
    %5474 = vmatprep.subr.mxu0 0.0
    %5475 = vmatpush1.msra.mxu0 0.0
    %5476 = vmatprep.subr.mxu0 0.0
    %5477 = vmatpush1.msra.mxu0 0.0
    %5478 = vmatprep.subr.mxu0 0.0
    %5479 = vmatpush1.msra.mxu0 0.0
    %5480 = vmatprep.subr.mxu0 0.0
    %5481 = vmatpush1.msra.mxu0 0.0
    %5482 = vmatprep.subr.mxu0 0.0
    %5483 = vmatpush1.msra.mxu0 0.0
    %5484 = vmatprep.mubr.f32.mxu0 0.0
    %5485 = vmatmul.mubr.f32.gmra.mrb[0].mxu0 %v5418
    %v5486 = vpop.f32.mrb[0].mxu0
    %v5487 = vadd.f32 %v77, %v5486
    %v5488 = vpop.f32.mrb[0].mxu0
    %5489 = vdwg.mxu0
    %v5490 = vadd.f32 %v5487, %v5339
    %v5491 = vxor.u32 %v5490, 2147483648
    %v5492 = vmul.f32 %v5491, 1.442695
    %v5493 = vpow.pop %v5492
    %v5494 = vadd.f32 %v5493, 1.0
    %v5495 = vrcp.pop %v5494
    %v5496 = vmul.f32 1.0, %v5495
    %5498 = vrot.lane.b32.xlu0 %v5339, 64
    %v5499 = vpop.permute.xlu0 %5498
    %v5501 = vmul.f32 %v5496, %v5499
    %5503 = vrot.lane.b32.xlu0 %v5501, 64
    %v5504 = vpop.permute.xlu0 %5503
    %v5506 = vadd.f32 %v5487, %v5504
    %v5507 = vtanh.pop %v5506
    %v5508 = vsub.f32 1.0, %v5496
    %5510 = vrot.lane.b32.xlu0 %v5507, 96
    %v5511 = vpop.permute.xlu0 %5510
    %v5513 = vmul.f32 %v5508, %v5511
    %v5514 = vmul.f32 %v5496, %v5261
    %v5515 = vadd.f32 %v5513, %v5514
    %5517 = vrot.lane.b32.xlu0 %v5515, 96
    %v5518 = vpop.permute.xlu0 %5517
    %v5519 = vsel %vm177, %v5518, 0
    %5521 = vmatprep.subr.mxu0 0.0
    %5522 = vmatpush1.msra.mxu0 %v65
    %5523 = vmatprep.subr.mxu0 0.0
    %5524 = vmatpush1.msra.mxu0 %v66
    %5525 = vmatprep.subr.mxu0 0.0
    %5526 = vmatpush1.msra.mxu0 %v67
    %5527 = vmatprep.subr.mxu0 0.0
    %5528 = vmatpush1.msra.mxu0 %v68
    %5529 = vmatprep.subr.mxu0 0.0
    %5530 = vmatpush1.msra.mxu0 0.0
    %5531 = vmatprep.subr.mxu0 0.0
    %5532 = vmatpush1.msra.mxu0 0.0
    %5533 = vmatprep.subr.mxu0 0.0
    %5534 = vmatpush1.msra.mxu0 0.0
    %5535 = vmatprep.subr.mxu0 0.0
    %5536 = vmatpush1.msra.mxu0 0.0
    %5537 = vmatprep.subr.mxu0 0.0
    %5538 = vmatpush1.msra.mxu0 0.0
    %5539 = vmatprep.subr.mxu0 0.0
    %5540 = vmatpush1.msra.mxu0 0.0
    %5541 = vmatprep.subr.mxu0 0.0
    %5542 = vmatpush1.msra.mxu0 0.0
    %5543 = vmatprep.subr.mxu0 0.0
    %5544 = vmatpush1.msra.mxu0 0.0
    %5545 = vmatprep.subr.mxu0 0.0
    %5546 = vmatpush1.msra.mxu0 0.0
    %5547 = vmatprep.subr.mxu0 0.0
    %5548 = vmatpush1.msra.mxu0 0.0
    %5549 = vmatprep.subr.mxu0 0.0
    %5550 = vmatpush1.msra.mxu0 0.0
    %5551 = vmatprep.subr.mxu0 0.0
    %5552 = vmatpush1.msra.mxu0 0.0
    %5553 = vmatprep.subr.mxu0 0.0
    %5554 = vmatpush1.msra.mxu0 0.0
    %5555 = vmatprep.subr.mxu0 0.0
    %5556 = vmatpush1.msra.mxu0 0.0
    %5557 = vmatprep.subr.mxu0 0.0
    %5558 = vmatpush1.msra.mxu0 0.0
    %5559 = vmatprep.subr.mxu0 0.0
    %5560 = vmatpush1.msra.mxu0 0.0
    %5561 = vmatprep.subr.mxu0 0.0
    %5562 = vmatpush1.msra.mxu0 0.0
    %5563 = vmatprep.subr.mxu0 0.0
    %5564 = vmatpush1.msra.mxu0 0.0
    %5565 = vmatprep.subr.mxu0 0.0
    %5566 = vmatpush1.msra.mxu0 0.0
    %5567 = vmatprep.subr.mxu0 0.0
    %5568 = vmatpush1.msra.mxu0 0.0
    %5569 = vmatprep.subr.mxu0 0.0
    %5570 = vmatpush1.msra.mxu0 0.0
    %5571 = vmatprep.subr.mxu0 0.0
    %5572 = vmatpush1.msra.mxu0 0.0
    %5573 = vmatprep.subr.mxu0 0.0
    %5574 = vmatpush1.msra.mxu0 0.0
    %5575 = vmatprep.subr.mxu0 0.0
    %5576 = vmatpush1.msra.mxu0 0.0
    %5577 = vmatprep.subr.mxu0 0.0
    %5578 = vmatpush1.msra.mxu0 0.0
    %5579 = vmatprep.subr.mxu0 0.0
    %5580 = vmatpush1.msra.mxu0 0.0
    %5581 = vmatprep.subr.mxu0 0.0
    %5582 = vmatpush1.msra.mxu0 0.0
    %5583 = vmatprep.subr.mxu0 0.0
    %5584 = vmatpush1.msra.mxu0 0.0
    %5585 = vmatprep.mubr.f32.mxu0 0.0
    %5586 = vmatmul.mubr.f32.gmra.mrb[0].mxu0 %v5519
    %v5587 = vpop.f32.mrb[0].mxu0
    %v5588 = vadd.f32 %v79, %v5587
    %v5589 = vpop.f32.mrb[0].mxu0
    %5590 = vdwg.mxu0
    %v5591 = vadd.f32 %v5588, %v5414
    %v5592 = vxor.u32 %v5591, 2147483648
    %v5593 = vmul.f32 %v5592, 1.442695
    %v5594 = vpow.pop %v5593
    %v5595 = vadd.f32 %v5594, 1.0
    %v5596 = vrcp.pop %v5595
    %v5597 = vmul.f32 1.0, %v5596
    %5599 = vrot.lane.b32.xlu0 %v5414, 64
    %v5600 = vpop.permute.xlu0 %5599
    %v5602 = vmul.f32 %v5597, %v5600
    %5604 = vrot.lane.b32.xlu0 %v5602, 64
    %v5605 = vpop.permute.xlu0 %5604
    %v5607 = vadd.f32 %v5588, %v5605
    %v5608 = vtanh.pop %v5607
    %v5609 = vsub.f32 1.0, %v5597
    %5611 = vrot.lane.b32.xlu0 %v5608, 96
    %v5612 = vpop.permute.xlu0 %5611
    %v5614 = vmul.f32 %v5609, %v5612
    %v5615 = vmul.f32 %v5597, %v5262
    %v5616 = vadd.f32 %v5614, %v5615
    %5618 = vrot.lane.b32.xlu0 %v5616, 96
    %v5619 = vpop.permute.xlu0 %5618
    %v5620 = vsel %vm177, %v5619, 0
    %5622 = vmatprep.subr.mxu0 0.0
    %5623 = vmatpush1.msra.mxu0 %v81
    %5624 = vmatprep.subr.mxu0 0.0
    %5625 = vmatpush1.msra.mxu0 %v82
    %5626 = vmatprep.subr.mxu0 0.0
    %5627 = vmatpush1.msra.mxu0 %v83
    %5628 = vmatprep.subr.mxu0 0.0
    %5629 = vmatpush1.msra.mxu0 %v84
    %5630 = vmatprep.subr.mxu0 0.0
    %5631 = vmatpush1.msra.mxu0 0.0
    %5632 = vmatprep.subr.mxu0 0.0
    %5633 = vmatpush1.msra.mxu0 0.0
    %5634 = vmatprep.subr.mxu0 0.0
    %5635 = vmatpush1.msra.mxu0 0.0
    %5636 = vmatprep.subr.mxu0 0.0
    %5637 = vmatpush1.msra.mxu0 0.0
    %5638 = vmatprep.subr.mxu0 0.0
    %5639 = vmatpush1.msra.mxu0 0.0
    %5640 = vmatprep.subr.mxu0 0.0
    %5641 = vmatpush1.msra.mxu0 0.0
    %5642 = vmatprep.subr.mxu0 0.0
    %5643 = vmatpush1.msra.mxu0 0.0
    %5644 = vmatprep.subr.mxu0 0.0
    %5645 = vmatpush1.msra.mxu0 0.0
    %5646 = vmatprep.subr.mxu0 0.0
    %5647 = vmatpush1.msra.mxu0 0.0
    %5648 = vmatprep.subr.mxu0 0.0
    %5649 = vmatpush1.msra.mxu0 0.0
    %5650 = vmatprep.subr.mxu0 0.0
    %5651 = vmatpush1.msra.mxu0 0.0
    %5652 = vmatprep.subr.mxu0 0.0
    %5653 = vmatpush1.msra.mxu0 0.0
    %5654 = vmatprep.subr.mxu0 0.0
    %5655 = vmatpush1.msra.mxu0 0.0
    %5656 = vmatprep.subr.mxu0 0.0
    %5657 = vmatpush1.msra.mxu0 0.0
    %5658 = vmatprep.subr.mxu0 0.0
    %5659 = vmatpush1.msra.mxu0 0.0
    %5660 = vmatprep.subr.mxu0 0.0
    %5661 = vmatpush1.msra.mxu0 0.0
    %5662 = vmatprep.subr.mxu0 0.0
    %5663 = vmatpush1.msra.mxu0 0.0
    %5664 = vmatprep.subr.mxu0 0.0
    %5665 = vmatpush1.msra.mxu0 0.0
    %5666 = vmatprep.subr.mxu0 0.0
    %5667 = vmatpush1.msra.mxu0 0.0
    %5668 = vmatprep.subr.mxu0 0.0
    %5669 = vmatpush1.msra.mxu0 0.0
    %5670 = vmatprep.subr.mxu0 0.0
    %5671 = vmatpush1.msra.mxu0 0.0
    %5672 = vmatprep.subr.mxu0 0.0
    %5673 = vmatpush1.msra.mxu0 0.0
    %5674 = vmatprep.subr.mxu0 0.0
    %5675 = vmatpush1.msra.mxu0 0.0
    %5676 = vmatprep.subr.mxu0 0.0
    %5677 = vmatpush1.msra.mxu0 0.0
    %5678 = vmatprep.subr.mxu0 0.0
    %5679 = vmatpush1.msra.mxu0 0.0
    %5680 = vmatprep.subr.mxu0 0.0
    %5681 = vmatpush1.msra.mxu0 0.0
    %5682 = vmatprep.subr.mxu0 0.0
    %5683 = vmatpush1.msra.mxu0 0.0
    %5684 = vmatprep.subr.mxu0 0.0
    %5685 = vmatpush1.msra.mxu0 0.0
    %5686 = vmatprep.mubr.f32.mxu0 0.0
    %5687 = vmatmul.mubr.f32.gmra.mrb[0].mxu0 %v5620
    %v5688 = vpop.f32.mrb[0].mxu0
    %v5689 = vadd.f32 %v85, %v5688
    %v5690 = vpop.f32.mrb[0].mxu0
    %5691 = vdwg.mxu0
    %v5692 = vsel %vm2907, %v5689, -inf
    %5693 = vmax.xlane.f32.xlu0 %v5692
    %v5694 = vpop.xlane.xlu0 %5693
    %vm5695 = vcmp.eq.f32.partialorder %v5689, %v5694
    %v5696 = vsel %vm5695, %v87, 64
    %v5697 = vsel %vm2907, %v5696, 2147483647
    %v5698 = vand.u32 %v5697, 65535
    %v5699 = vshra.s32 %v5697, 16
    %v5700 = vcvt.s32.f32 %v5698
    %v5701 = vcvt.s32.f32 %v5699
    %5702 = vmin.xlane.f32.xlu0 %v5701
    %v5703 = vpop.xlane.xlu0 %5702
    %vm5704 = vcmp.eq.f32.partialorder %v5701, %v5703
    %v5705 = vsel %vm5704, %v5700, inf
    %5706 = vmin.xlane.f32.xlu0 %v5705
    %v5707 = vpop.xlane.xlu0 %5706
    %v5708 = vcvt.f32.s32 %v5707
    %v5709 = vcvt.f32.s32 %v5703
    %v5710 = vshll.u32 %v5709, 16
    %v5711 = vadd.s32 %v5710, %v5708
    %vm5712 = vcmp.eq.s32.totalorder %v87, %v5711
    %v5713 = vsel %vm5712, 1, 0
    %v5714 = vcvt.s32.f32 %v5713
    %vm5715 = vmxor %vm5266, 1
    %5716 = vrot.lane.b32.xlu0 %v5515, 32
    %v5717 = vpop.permute.xlu0 %5716
    %5719 = vrot.lane.b32.xlu0 %v5616, 64
    %v5720 = vpop.permute.xlu0 %5719
    %v5722 = vsel %vm99, %v5689, %v5717
    %v5723 = vsel %vm173, %v5722, %v5720
    %v5724 = vsel %vm5715, 1, 0
    %vm5725 = vcmp.eq.s32.totalorder %v5724, 1
    %v5726 = vsel %vm5725, %v5723, 0.0
    %5727 = vst [vmem:[%s5 + $0x6] sm:$0x1] %v5726
    %v5728 = vsel %vm5725, %v5515, %v5261
    %v5729 = vsel %vm5725, %v5616, %v5262
    %v5730 = vsel %vm5725, %v5714, %v5263
    %vm5731 = vcmp.eq.s32.totalorder %v5711, %v2940
    %vm5732 = vmand %vm5715, %vm5731
    %vm5733 = vmor %vm5266, %vm5732
    %5735 = vrot.lane.b32.xlu0 %v5728, 96
    %v5736 = vpop.permute.xlu0 %5735
    %v5737 = vsel %vm177, %v5736, 0
    %5739 = vmatprep.subr.mxu0 0.0
    %5740 = vmatpush1.msra.mxu0 %v61
    %5741 = vmatprep.subr.mxu0 0.0
    %5742 = vmatpush1.msra.mxu0 %v62
    %5743 = vmatprep.subr.mxu0 0.0
    %5744 = vmatpush1.msra.mxu0 %v63
    %5745 = vmatprep.subr.mxu0 0.0
    %5746 = vmatpush1.msra.mxu0 %v64
    %5747 = vmatprep.subr.mxu0 0.0
    %5748 = vmatpush1.msra.mxu0 0.0
    %5749 = vmatprep.subr.mxu0 0.0
    %5750 = vmatpush1.msra.mxu0 0.0
    %5751 = vmatprep.subr.mxu0 0.0
    %5752 = vmatpush1.msra.mxu0 0.0
    %5753 = vmatprep.subr.mxu0 0.0
    %5754 = vmatpush1.msra.mxu0 0.0
    %5755 = vmatprep.subr.mxu0 0.0
    %5756 = vmatpush1.msra.mxu0 0.0
    %5757 = vmatprep.subr.mxu0 0.0
    %5758 = vmatpush1.msra.mxu0 0.0
    %5759 = vmatprep.subr.mxu0 0.0
    %5760 = vmatpush1.msra.mxu0 0.0
    %5761 = vmatprep.subr.mxu0 0.0
    %5762 = vmatpush1.msra.mxu0 0.0
    %5763 = vmatprep.subr.mxu0 0.0
    %5764 = vmatpush1.msra.mxu0 0.0
    %5765 = vmatprep.subr.mxu0 0.0
    %5766 = vmatpush1.msra.mxu0 0.0
    %5767 = vmatprep.subr.mxu0 0.0
    %5768 = vmatpush1.msra.mxu0 0.0
    %5769 = vmatprep.subr.mxu0 0.0
    %5770 = vmatpush1.msra.mxu0 0.0
    %5771 = vmatprep.subr.mxu0 0.0
    %5772 = vmatpush1.msra.mxu0 0.0
    %5773 = vmatprep.subr.mxu0 0.0
    %5774 = vmatpush1.msra.mxu0 0.0
    %5775 = vmatprep.subr.mxu0 0.0
    %5776 = vmatpush1.msra.mxu0 0.0
    %5777 = vmatprep.subr.mxu0 0.0
    %5778 = vmatpush1.msra.mxu0 0.0
    %5779 = vmatprep.subr.mxu0 0.0
    %5780 = vmatpush1.msra.mxu0 0.0
    %5781 = vmatprep.subr.mxu0 0.0
    %5782 = vmatpush1.msra.mxu0 0.0
    %5783 = vmatprep.subr.mxu0 0.0
    %5784 = vmatpush1.msra.mxu0 0.0
    %5785 = vmatprep.subr.mxu0 0.0
    %5786 = vmatpush1.msra.mxu0 0.0
    %5787 = vmatprep.subr.mxu0 0.0
    %5788 = vmatpush1.msra.mxu0 0.0
    %5789 = vmatprep.subr.mxu0 0.0
    %5790 = vmatpush1.msra.mxu0 0.0
    %5791 = vmatprep.subr.mxu0 0.0
    %5792 = vmatpush1.msra.mxu0 0.0
    %5793 = vmatprep.subr.mxu0 0.0
    %5794 = vmatpush1.msra.mxu0 0.0
    %5795 = vmatprep.subr.mxu0 0.0
    %5796 = vmatpush1.msra.mxu0 0.0
    %5797 = vmatprep.subr.mxu0 0.0
    %5798 = vmatpush1.msra.mxu0 0.0
    %5799 = vmatprep.subr.mxu0 0.0
    %5800 = vmatpush1.msra.mxu0 0.0
    %5801 = vmatprep.subr.mxu0 0.0
    %5802 = vmatpush1.msra.mxu0 0.0
    %5803 = vmatprep.mubr.f32.mxu0 0.0
    %5804 = vmatmul.mubr.f32.gmra.mrb[0].mxu0 %v5737
    %v5805 = vpop.f32.mrb[0].mxu0
    %v5806 = vadd.f32 %v78, %v5805
    %v5807 = vpop.f32.mrb[0].mxu0
    %5808 = vdwg.mxu0
    %5810 = vrot.lane.b32.xlu0 %v5729, 96
    %v5811 = vpop.permute.xlu0 %5810
    %v5812 = vsel %vm177, %v5811, 0
    %5814 = vmatprep.subr.mxu0 0.0
    %5815 = vmatpush1.msra.mxu0 %v69
    %5816 = vmatprep.subr.mxu0 0.0
    %5817 = vmatpush1.msra.mxu0 %v70
    %5818 = vmatprep.subr.mxu0 0.0
    %5819 = vmatpush1.msra.mxu0 %v71
    %5820 = vmatprep.subr.mxu0 0.0
    %5821 = vmatpush1.msra.mxu0 %v72
    %5822 = vmatprep.subr.mxu0 0.0
    %5823 = vmatpush1.msra.mxu0 0.0
    %5824 = vmatprep.subr.mxu0 0.0
    %5825 = vmatpush1.msra.mxu0 0.0
    %5826 = vmatprep.subr.mxu0 0.0
    %5827 = vmatpush1.msra.mxu0 0.0
    %5828 = vmatprep.subr.mxu0 0.0
    %5829 = vmatpush1.msra.mxu0 0.0
    %5830 = vmatprep.subr.mxu0 0.0
    %5831 = vmatpush1.msra.mxu0 0.0
    %5832 = vmatprep.subr.mxu0 0.0
    %5833 = vmatpush1.msra.mxu0 0.0
    %5834 = vmatprep.subr.mxu0 0.0
    %5835 = vmatpush1.msra.mxu0 0.0
    %5836 = vmatprep.subr.mxu0 0.0
    %5837 = vmatpush1.msra.mxu0 0.0
    %5838 = vmatprep.subr.mxu0 0.0
    %5839 = vmatpush1.msra.mxu0 0.0
    %5840 = vmatprep.subr.mxu0 0.0
    %5841 = vmatpush1.msra.mxu0 0.0
    %5842 = vmatprep.subr.mxu0 0.0
    %5843 = vmatpush1.msra.mxu0 0.0
    %5844 = vmatprep.subr.mxu0 0.0
    %5845 = vmatpush1.msra.mxu0 0.0
    %5846 = vmatprep.subr.mxu0 0.0
    %5847 = vmatpush1.msra.mxu0 0.0
    %5848 = vmatprep.subr.mxu0 0.0
    %5849 = vmatpush1.msra.mxu0 0.0
    %5850 = vmatprep.subr.mxu0 0.0
    %5851 = vmatpush1.msra.mxu0 0.0
    %5852 = vmatprep.subr.mxu0 0.0
    %5853 = vmatpush1.msra.mxu0 0.0
    %5854 = vmatprep.subr.mxu0 0.0
    %5855 = vmatpush1.msra.mxu0 0.0
    %5856 = vmatprep.subr.mxu0 0.0
    %5857 = vmatpush1.msra.mxu0 0.0
    %5858 = vmatprep.subr.mxu0 0.0
    %5859 = vmatpush1.msra.mxu0 0.0
    %5860 = vmatprep.subr.mxu0 0.0
    %5861 = vmatpush1.msra.mxu0 0.0
    %5862 = vmatprep.subr.mxu0 0.0
    %5863 = vmatpush1.msra.mxu0 0.0
    %5864 = vmatprep.subr.mxu0 0.0
    %5865 = vmatpush1.msra.mxu0 0.0
    %5866 = vmatprep.subr.mxu0 0.0
    %5867 = vmatpush1.msra.mxu0 0.0
    %5868 = vmatprep.subr.mxu0 0.0
    %5869 = vmatpush1.msra.mxu0 0.0
    %5870 = vmatprep.subr.mxu0 0.0
    %5871 = vmatpush1.msra.mxu0 0.0
    %5872 = vmatprep.subr.mxu0 0.0
    %5873 = vmatpush1.msra.mxu0 0.0
    %5874 = vmatprep.subr.mxu0 0.0
    %5875 = vmatpush1.msra.mxu0 0.0
    %5876 = vmatprep.subr.mxu0 0.0
    %5877 = vmatpush1.msra.mxu0 0.0
    %5878 = vmatprep.mubr.f32.mxu0 0.0
    %5879 = vmatmul.mubr.f32.gmra.mrb[0].mxu0 %v5812
    %v5880 = vpop.f32.mrb[0].mxu0
    %v5881 = vadd.f32 %v80, %v5880
    %v5882 = vpop.f32.mrb[0].mxu0
    %5883 = vdwg.mxu0
    %v5885 = vsel %vm99, %v5730, 0
    %5887 = vmatprep.subr.mxu0 0.0
    %5888 = vmatpush1.msra.mxu0 %v53
    %5889 = vmatprep.subr.mxu0 0.0
    %5890 = vmatpush1.msra.mxu0 %v54
    %5891 = vmatprep.subr.mxu0 0.0
    %5892 = vmatpush1.msra.mxu0 %v55
    %5893 = vmatprep.subr.mxu0 0.0
    %5894 = vmatpush1.msra.mxu0 %v56
    %5895 = vmatprep.subr.mxu0 0.0
    %5896 = vmatpush1.msra.mxu0 %v57
    %5897 = vmatprep.subr.mxu0 0.0
    %5898 = vmatpush1.msra.mxu0 %v58
    %5899 = vmatprep.subr.mxu0 0.0
    %5900 = vmatpush1.msra.mxu0 %v59
    %5901 = vmatprep.subr.mxu0 0.0
    %5902 = vmatpush1.msra.mxu0 %v60
    %5903 = vmatprep.subr.mxu0 0.0
    %5904 = vmatpush1.msra.mxu0 0.0
    %5905 = vmatprep.subr.mxu0 0.0
    %5906 = vmatpush1.msra.mxu0 0.0
    %5907 = vmatprep.subr.mxu0 0.0
    %5908 = vmatpush1.msra.mxu0 0.0
    %5909 = vmatprep.subr.mxu0 0.0
    %5910 = vmatpush1.msra.mxu0 0.0
    %5911 = vmatprep.subr.mxu0 0.0
    %5912 = vmatpush1.msra.mxu0 0.0
    %5913 = vmatprep.subr.mxu0 0.0
    %5914 = vmatpush1.msra.mxu0 0.0
    %5915 = vmatprep.subr.mxu0 0.0
    %5916 = vmatpush1.msra.mxu0 0.0
    %5917 = vmatprep.subr.mxu0 0.0
    %5918 = vmatpush1.msra.mxu0 0.0
    %5919 = vmatprep.subr.mxu0 0.0
    %5920 = vmatpush1.msra.mxu0 0.0
    %5921 = vmatprep.subr.mxu0 0.0
    %5922 = vmatpush1.msra.mxu0 0.0
    %5923 = vmatprep.subr.mxu0 0.0
    %5924 = vmatpush1.msra.mxu0 0.0
    %5925 = vmatprep.subr.mxu0 0.0
    %5926 = vmatpush1.msra.mxu0 0.0
    %5927 = vmatprep.subr.mxu0 0.0
    %5928 = vmatpush1.msra.mxu0 0.0
    %5929 = vmatprep.subr.mxu0 0.0
    %5930 = vmatpush1.msra.mxu0 0.0
    %5931 = vmatprep.subr.mxu0 0.0
    %5932 = vmatpush1.msra.mxu0 0.0
    %5933 = vmatprep.subr.mxu0 0.0
    %5934 = vmatpush1.msra.mxu0 0.0
    %5935 = vmatprep.subr.mxu0 0.0
    %5936 = vmatpush1.msra.mxu0 0.0
    %5937 = vmatprep.subr.mxu0 0.0
    %5938 = vmatpush1.msra.mxu0 0.0
    %5939 = vmatprep.subr.mxu0 0.0
    %5940 = vmatpush1.msra.mxu0 0.0
    %5941 = vmatprep.subr.mxu0 0.0
    %5942 = vmatpush1.msra.mxu0 0.0
    %5943 = vmatprep.subr.mxu0 0.0
    %5944 = vmatpush1.msra.mxu0 0.0
    %5945 = vmatprep.subr.mxu0 0.0
    %5946 = vmatpush1.msra.mxu0 0.0
    %5947 = vmatprep.subr.mxu0 0.0
    %5948 = vmatpush1.msra.mxu0 0.0
    %5949 = vmatprep.subr.mxu0 0.0
    %5950 = vmatpush1.msra.mxu0 0.0
    %5951 = vmatprep.mubr.f32.mxu0 0.0
    %5952 = vmatmul.mubr.f32.gmra.mrb[0].mxu0 %v5885
    %v5953 = vpop.f32.mrb[0].mxu0
    %v5954 = vadd.f32 %v77, %v5953
    %v5955 = vpop.f32.mrb[0].mxu0
    %5956 = vdwg.mxu0
    %v5957 = vadd.f32 %v5954, %v5806
    %v5958 = vxor.u32 %v5957, 2147483648
    %v5959 = vmul.f32 %v5958, 1.442695
    %v5960 = vpow.pop %v5959
    %v5961 = vadd.f32 %v5960, 1.0
    %v5962 = vrcp.pop %v5961
    %v5963 = vmul.f32 1.0, %v5962
    %5965 = vrot.lane.b32.xlu0 %v5806, 64
    %v5966 = vpop.permute.xlu0 %5965
    %v5968 = vmul.f32 %v5963, %v5966
    %5970 = vrot.lane.b32.xlu0 %v5968, 64
    %v5971 = vpop.permute.xlu0 %5970
    %v5973 = vadd.f32 %v5954, %v5971
    %v5974 = vtanh.pop %v5973
    %v5975 = vsub.f32 1.0, %v5963
    %5977 = vrot.lane.b32.xlu0 %v5974, 96
    %v5978 = vpop.permute.xlu0 %5977
    %v5980 = vmul.f32 %v5975, %v5978
    %v5981 = vmul.f32 %v5963, %v5728
    %v5982 = vadd.f32 %v5980, %v5981
    %5984 = vrot.lane.b32.xlu0 %v5982, 96
    %v5985 = vpop.permute.xlu0 %5984
    %v5986 = vsel %vm177, %v5985, 0
    %5988 = vmatprep.subr.mxu0 0.0
    %5989 = vmatpush1.msra.mxu0 %v65
    %5990 = vmatprep.subr.mxu0 0.0
    %5991 = vmatpush1.msra.mxu0 %v66
    %5992 = vmatprep.subr.mxu0 0.0
    %5993 = vmatpush1.msra.mxu0 %v67
    %5994 = vmatprep.subr.mxu0 0.0
    %5995 = vmatpush1.msra.mxu0 %v68
    %5996 = vmatprep.subr.mxu0 0.0
    %5997 = vmatpush1.msra.mxu0 0.0
    %5998 = vmatprep.subr.mxu0 0.0
    %5999 = vmatpush1.msra.mxu0 0.0
    %6000 = vmatprep.subr.mxu0 0.0
    %6001 = vmatpush1.msra.mxu0 0.0
    %6002 = vmatprep.subr.mxu0 0.0
    %6003 = vmatpush1.msra.mxu0 0.0
    %6004 = vmatprep.subr.mxu0 0.0
    %6005 = vmatpush1.msra.mxu0 0.0
    %6006 = vmatprep.subr.mxu0 0.0
    %6007 = vmatpush1.msra.mxu0 0.0
    %6008 = vmatprep.subr.mxu0 0.0
    %6009 = vmatpush1.msra.mxu0 0.0
    %6010 = vmatprep.subr.mxu0 0.0
    %6011 = vmatpush1.msra.mxu0 0.0
    %6012 = vmatprep.subr.mxu0 0.0
    %6013 = vmatpush1.msra.mxu0 0.0
    %6014 = vmatprep.subr.mxu0 0.0
    %6015 = vmatpush1.msra.mxu0 0.0
    %6016 = vmatprep.subr.mxu0 0.0
    %6017 = vmatpush1.msra.mxu0 0.0
    %6018 = vmatprep.subr.mxu0 0.0
    %6019 = vmatpush1.msra.mxu0 0.0
    %6020 = vmatprep.subr.mxu0 0.0
    %6021 = vmatpush1.msra.mxu0 0.0
    %6022 = vmatprep.subr.mxu0 0.0
    %6023 = vmatpush1.msra.mxu0 0.0
    %6024 = vmatprep.subr.mxu0 0.0
    %6025 = vmatpush1.msra.mxu0 0.0
    %6026 = vmatprep.subr.mxu0 0.0
    %6027 = vmatpush1.msra.mxu0 0.0
    %6028 = vmatprep.subr.mxu0 0.0
    %6029 = vmatpush1.msra.mxu0 0.0
    %6030 = vmatprep.subr.mxu0 0.0
    %6031 = vmatpush1.msra.mxu0 0.0
    %6032 = vmatprep.subr.mxu0 0.0
    %6033 = vmatpush1.msra.mxu0 0.0
    %6034 = vmatprep.subr.mxu0 0.0
    %6035 = vmatpush1.msra.mxu0 0.0
    %6036 = vmatprep.subr.mxu0 0.0
    %6037 = vmatpush1.msra.mxu0 0.0
    %6038 = vmatprep.subr.mxu0 0.0
    %6039 = vmatpush1.msra.mxu0 0.0
    %6040 = vmatprep.subr.mxu0 0.0
    %6041 = vmatpush1.msra.mxu0 0.0
    %6042 = vmatprep.subr.mxu0 0.0
    %6043 = vmatpush1.msra.mxu0 0.0
    %6044 = vmatprep.subr.mxu0 0.0
    %6045 = vmatpush1.msra.mxu0 0.0
    %6046 = vmatprep.subr.mxu0 0.0
    %6047 = vmatpush1.msra.mxu0 0.0
    %6048 = vmatprep.subr.mxu0 0.0
    %6049 = vmatpush1.msra.mxu0 0.0
    %6050 = vmatprep.subr.mxu0 0.0
    %6051 = vmatpush1.msra.mxu0 0.0
    %6052 = vmatprep.mubr.f32.mxu0 0.0
    %6053 = vmatmul.mubr.f32.gmra.mrb[0].mxu0 %v5986
    %v6054 = vpop.f32.mrb[0].mxu0
    %v6055 = vadd.f32 %v79, %v6054
    %v6056 = vpop.f32.mrb[0].mxu0
    %6057 = vdwg.mxu0
    %v6058 = vadd.f32 %v6055, %v5881
    %v6059 = vxor.u32 %v6058, 2147483648
    %v6060 = vmul.f32 %v6059, 1.442695
    %v6061 = vpow.pop %v6060
    %v6062 = vadd.f32 %v6061, 1.0
    %v6063 = vrcp.pop %v6062
    %v6064 = vmul.f32 1.0, %v6063
    %6066 = vrot.lane.b32.xlu0 %v5881, 64
    %v6067 = vpop.permute.xlu0 %6066
    %v6069 = vmul.f32 %v6064, %v6067
    %6071 = vrot.lane.b32.xlu0 %v6069, 64
    %v6072 = vpop.permute.xlu0 %6071
    %v6074 = vadd.f32 %v6055, %v6072
    %v6075 = vtanh.pop %v6074
    %v6076 = vsub.f32 1.0, %v6064
    %6078 = vrot.lane.b32.xlu0 %v6075, 96
    %v6079 = vpop.permute.xlu0 %6078
    %v6081 = vmul.f32 %v6076, %v6079
    %v6082 = vmul.f32 %v6064, %v5729
    %v6083 = vadd.f32 %v6081, %v6082
    %6085 = vrot.lane.b32.xlu0 %v6083, 96
    %v6086 = vpop.permute.xlu0 %6085
    %v6087 = vsel %vm177, %v6086, 0
    %6089 = vmatprep.subr.mxu0 0.0
    %6090 = vmatpush1.msra.mxu0 %v81
    %6091 = vmatprep.subr.mxu0 0.0
    %6092 = vmatpush1.msra.mxu0 %v82
    %6093 = vmatprep.subr.mxu0 0.0
    %6094 = vmatpush1.msra.mxu0 %v83
    %6095 = vmatprep.subr.mxu0 0.0
    %6096 = vmatpush1.msra.mxu0 %v84
    %6097 = vmatprep.subr.mxu0 0.0
    %6098 = vmatpush1.msra.mxu0 0.0
    %6099 = vmatprep.subr.mxu0 0.0
    %6100 = vmatpush1.msra.mxu0 0.0
    %6101 = vmatprep.subr.mxu0 0.0
    %6102 = vmatpush1.msra.mxu0 0.0
    %6103 = vmatprep.subr.mxu0 0.0
    %6104 = vmatpush1.msra.mxu0 0.0
    %6105 = vmatprep.subr.mxu0 0.0
    %6106 = vmatpush1.msra.mxu0 0.0
    %6107 = vmatprep.subr.mxu0 0.0
    %6108 = vmatpush1.msra.mxu0 0.0
    %6109 = vmatprep.subr.mxu0 0.0
    %6110 = vmatpush1.msra.mxu0 0.0
    %6111 = vmatprep.subr.mxu0 0.0
    %6112 = vmatpush1.msra.mxu0 0.0
    %6113 = vmatprep.subr.mxu0 0.0
    %6114 = vmatpush1.msra.mxu0 0.0
    %6115 = vmatprep.subr.mxu0 0.0
    %6116 = vmatpush1.msra.mxu0 0.0
    %6117 = vmatprep.subr.mxu0 0.0
    %6118 = vmatpush1.msra.mxu0 0.0
    %6119 = vmatprep.subr.mxu0 0.0
    %6120 = vmatpush1.msra.mxu0 0.0
    %6121 = vmatprep.subr.mxu0 0.0
    %6122 = vmatpush1.msra.mxu0 0.0
    %6123 = vmatprep.subr.mxu0 0.0
    %6124 = vmatpush1.msra.mxu0 0.0
    %6125 = vmatprep.subr.mxu0 0.0
    %6126 = vmatpush1.msra.mxu0 0.0
    %6127 = vmatprep.subr.mxu0 0.0
    %6128 = vmatpush1.msra.mxu0 0.0
    %6129 = vmatprep.subr.mxu0 0.0
    %6130 = vmatpush1.msra.mxu0 0.0
    %6131 = vmatprep.subr.mxu0 0.0
    %6132 = vmatpush1.msra.mxu0 0.0
    %6133 = vmatprep.subr.mxu0 0.0
    %6134 = vmatpush1.msra.mxu0 0.0
    %6135 = vmatprep.subr.mxu0 0.0
    %6136 = vmatpush1.msra.mxu0 0.0
    %6137 = vmatprep.subr.mxu0 0.0
    %6138 = vmatpush1.msra.mxu0 0.0
    %6139 = vmatprep.subr.mxu0 0.0
    %6140 = vmatpush1.msra.mxu0 0.0
    %6141 = vmatprep.subr.mxu0 0.0
    %6142 = vmatpush1.msra.mxu0 0.0
    %6143 = vmatprep.subr.mxu0 0.0
    %6144 = vmatpush1.msra.mxu0 0.0
    %6145 = vmatprep.subr.mxu0 0.0
    %6146 = vmatpush1.msra.mxu0 0.0
    %6147 = vmatprep.subr.mxu0 0.0
    %6148 = vmatpush1.msra.mxu0 0.0
    %6149 = vmatprep.subr.mxu0 0.0
    %6150 = vmatpush1.msra.mxu0 0.0
    %6151 = vmatprep.subr.mxu0 0.0
    %6152 = vmatpush1.msra.mxu0 0.0
    %6153 = vmatprep.mubr.f32.mxu0 0.0
    %6154 = vmatmul.mubr.f32.gmra.mrb[0].mxu0 %v6087
    %v6155 = vpop.f32.mrb[0].mxu0
    %v6156 = vadd.f32 %v85, %v6155
    %v6157 = vpop.f32.mrb[0].mxu0
    %6158 = vdwg.mxu0
    %vm6159 = vmxor %vm5733, 1
    %6160 = vrot.lane.b32.xlu0 %v5982, 32
    %v6161 = vpop.permute.xlu0 %6160
    %6163 = vrot.lane.b32.xlu0 %v6083, 64
    %v6164 = vpop.permute.xlu0 %6163
    %v6166 = vsel %vm99, %v6156, %v6161
    %v6167 = vsel %vm173, %v6166, %v6164
    %v6168 = vsel %vm6159, 1, 0
    %vm6169 = vcmp.eq.s32.totalorder %v6168, 1
    %v6170 = vsel %vm6169, %v6167, 0.0
    %6171 = vst [vmem:[%s5 + $0x7] sm:$0x1] %v6170
    // Predicated region
    $region26: #{segment_decoder_forward.1} parent=1 // pred_check
      _
    $region27: #{segment_decoder_forward.1} parent=1 // pred_check_branch
      %6173 = sbr.rel (0) target = $region29
    $region28: #{segment_decoder_forward.1} parent=1 // pred_region
      _
    $region29: #{segment_decoder_forward.1} parent=1 // pred_fallthru
      _
    // Predicated region
    $region30: #{segment_decoder_forward.1} parent=1 // pred_check
      _
    $region31: #{segment_decoder_forward.1} parent=1 // pred_check_branch
      %6175 = sbr.rel (0) target = $region33
    $region32: #{segment_decoder_forward.1} parent=1 // pred_region
      _
    $region33: #{segment_decoder_forward.1} parent=1 // pred_fallthru
      _
    %6176 = vsyncpa [#allocation4], 1

</llo_original>
